<compile_context>
chip_gen: v6e
topology: v6e:2x2x1
jax: 0.10.0
libtpu: 0.0.40
codegen_flags: <defaults>
</compile_context>

<pallas_src>
import jax
import jax.numpy as jnp
from jax.experimental import pallas as pl
from jax.experimental.pallas import tpu as pltpu

# --- small, module-consistent demo shapes (original script: n_embd=1568, n_head=16) ---
B = 64                     # batch (the attention in this module runs over 2-D x)
TILE_B = 16                # rows per grid step (multiple of 8 sublanes)
N_EMBD = 128               # embedding dim -> lane-dense last dim
N_HEAD = 4                 # heads
HEAD_SIZE = N_EMBD // N_HEAD
HIDDEN = 4 * N_EMBD        # feed-forward hidden dim
LN_EPS = 1e-5


def _layer_norm(v, g, b):
    mu = jnp.mean(v, axis=-1, keepdims=True)
    var = jnp.mean((v - mu) ** 2, axis=-1, keepdims=True)
    return (v - mu) * jax.lax.rsqrt(var + LN_EPS) * g + b


def _gelu(v):
    # TODO(synk): PyTorch nn.GELU() is the exact erf-based GELU; the tanh approximation
    # is used here (guaranteed Mosaic lowering); max abs diff vs erf-GELU ~1e-3.
    return 0.5 * v * (1.0 + jnp.tanh(0.7978845608028654 * (v + 0.044715 * v * v * v)))


def block_kernel(x_ref, ln1g_ref, ln1b_ref, wqkv_ref, wo_ref, bo_ref,
                 ln2g_ref, ln2b_ref, w1_ref, b1_ref, w2_ref, b2_ref, o_ref):
    x = x_ref[...]                                   # (TB, D) float32
    tb = x.shape[0]

    # ---- x = x + MultiHead(ln1(x)) ----------------------------------------------
    h = _layer_norm(x, ln1g_ref[...], ln1b_ref[...])

    # Fused QKV projection: one (TB, D) @ (D, 3D) MXU launch instead of three.
    qkv = jnp.dot(h, wqkv_ref[...], preferred_element_type=jnp.float32)   # (TB, 3D)
    q = qkv[:, 0 * N_EMBD:1 * N_EMBD]
    k = qkv[:, 1 * N_EMBD:2 * N_EMBD]
    v = qkv[:, 2 * N_EMBD:3 * N_EMBD]

    # Stack heads along the sublane axis -> one batched softmax for ALL heads.
    def split_heads(t):                              # (TB, D) -> (N_HEAD*TB, HS)
        return jnp.concatenate(
            [t[:, hd * HEAD_SIZE:(hd + 1) * HEAD_SIZE] for hd in range(N_HEAD)],
            axis=0)

    qh, kh, vh = split_heads(q), split_heads(k), split_heads(v)

    scale = N_EMBD ** (-0.5)      # Head.forward: B, N = x.shape -> scale uses N == n_embd
    logits = qh[:, :, None] * kh[:, None, :] * scale           # (N_HEAD*TB, HS, HS)
    logits = logits - jnp.max(logits, axis=-1, keepdims=True)
    e = jnp.exp(logits)
    denom = jnp.sum(e, axis=-1, keepdims=True)
    p = e * pl.reciprocal(denom, approx=True)                  # softmax(dim=-1)
    # attention dropout: identity (eval mode)
    oh = jnp.sum(p * vh[:, None, :], axis=-1)                  # 'bij,bj->bi' for all heads

    # torch.cat([head(x) for head in heads], dim=-1)
    cat = jnp.concatenate(
        [oh[hd * tb:(hd + 1) * tb, :] for hd in range(N_HEAD)], axis=-1)   # (TB, D)

    attn = jnp.dot(cat, wo_ref[...], preferred_element_type=jnp.float32) + bo_ref[...]
    x1 = x + attn                                              # proj dropout: identity

    # ---- x = x + FeedForward(ln2(x)) ----------------------------------------------
    h2 = _layer_norm(x1, ln2g_ref[...], ln2b_ref[...])
    f = jnp.dot(h2, w1_ref[...], preferred_element_type=jnp.float32) + b1_ref[...]
    f = _gelu(f)
    f = jnp.dot(f, w2_ref[...], preferred_element_type=jnp.float32) + b2_ref[...]

    o_ref[...] = (x1 + f).astype(o_ref.dtype)


def block_forward(x, p, *, tile_b=TILE_B):
    bsz, d = x.shape
    assert bsz % tile_b == 0 and d == N_EMBD

    # Fuse the three projection weights once, outside the kernel: (D, 3D), 3D % 128 == 0.
    wqkv = jnp.concatenate([p["wq"], p["wk"], p["wv"]], axis=1)

    row_spec = pl.BlockSpec((tile_b, d), lambda i: (i, 0))

    def whole(arr):
        # Whole-array VMEM block with a constant index_map: DMA'd once, reused each step.
        return pl.BlockSpec(arr.shape, lambda i: (0,) * arr.ndim)

    args = (x, p["ln1_g"], p["ln1_b"], wqkv, p["wo"], p["bo"],
            p["ln2_g"], p["ln2_b"], p["w1"], p["b1"], p["w2"], p["b2"])
    in_specs = [row_spec] + [whole(a) for a in args[1:]]

    return pl.pallas_call(
        block_kernel,
        out_shape=jax.ShapeDtypeStruct(x.shape, x.dtype),
        grid=(bsz // tile_b,),
        in_specs=in_specs,
        out_specs=row_spec,
        compiler_params=pltpu.CompilerParams(
            dimension_semantics=("parallel",),       # batch tiles are independent
            vmem_limit_bytes=32 * 1024 * 1024,
        ),
    )(*args)


def block_reference(x, p):
    """Pure-JAX reference mirroring the PyTorch forward (eval mode)."""
    h = _layer_norm(x, p["ln1_g"], p["ln1_b"])
    q, k, v = h @ p["wq"], h @ p["wk"], h @ p["wv"]
    scale = N_EMBD ** (-0.5)
    outs = []
    for hd in range(N_HEAD):
        sl = slice(hd * HEAD_SIZE, (hd + 1) * HEAD_SIZE)
        logits = jnp.einsum("bi,bj->bij", q[:, sl], k[:, sl]) * scale
        pattn = jax.nn.softmax(logits, axis=-1)
        outs.append(jnp.einsum("bij,bj->bi", pattn, v[:, sl]))
    cat = jnp.concatenate(outs, axis=-1)
    x1 = x + cat @ p["wo"] + p["bo"]
    h2 = _layer_norm(x1, p["ln2_g"], p["ln2_b"])
    f = _gelu(h2 @ p["w1"] + p["b1"])
    return x1 + f @ p["w2"] + p["b2"]


if __name__ == "__main__":
    key = jax.random.PRNGKey(0)
    keys = jax.random.split(key, 10)

    def init(k, shape, s=0.02):
        return (s * jax.random.normal(k, shape)).astype(jnp.float32)

    x = jax.random.normal(keys[0], (B, N_EMBD), dtype=jnp.float32)
    params = dict(
        ln1_g=jnp.ones((1, N_EMBD), jnp.float32),
        ln1_b=jnp.zeros((1, N_EMBD), jnp.float32),
        # per-head Wq/Wk/Wv (n_embd -> head_size, no bias) concatenated along out dim
        wq=init(keys[1], (N_EMBD, N_EMBD)),
        wk=init(keys[2], (N_EMBD, N_EMBD)),
        wv=init(keys[3], (N_EMBD, N_EMBD)),
        wo=init(keys[4], (N_EMBD, N_EMBD)),
        bo=init(keys[5], (1, N_EMBD)),
        ln2_g=jnp.ones((1, N_EMBD), jnp.float32),
        ln2_b=jnp.zeros((1, N_EMBD), jnp.float32),
        w1=init(keys[6], (N_EMBD, HIDDEN)),
        b1=init(keys[7], (1, HIDDEN)),
        w2=init(keys[8], (HIDDEN, N_EMBD)),
        b2=init(keys[9], (1, N_EMBD)),
    )

    out = block_forward(x, params)
    jax.block_until_ready(out)

    # Reference at full f32 matmul precision (XLA's TPU default may downcast to bf16).
    with jax.default_matmul_precision("highest"):
        ref = block_reference(x, params)

    assert out.shape == (B, N_EMBD)
    # Tolerance covers MXU multi-pass f32 differences + approx reciprocal in softmax.
    assert jnp.allclose(out, ref, atol=5e-4, rtol=5e-4), "mismatch vs JAX reference"
    print("KERNEL_OK")
</pallas_src>

<mosaic_0001>
module attributes {stable_mosaic.version = 11 : i64} {
  func.func @block_kernel(%arg0: i32, %arg1: memref<16x128xf32, #tpu.memory_space<vmem>>, %arg2: memref<1x128xf32, #tpu.memory_space<vmem>>, %arg3: memref<1x128xf32, #tpu.memory_space<vmem>>, %arg4: memref<128x384xf32, #tpu.memory_space<vmem>>, %arg5: memref<128x128xf32, #tpu.memory_space<vmem>>, %arg6: memref<1x128xf32, #tpu.memory_space<vmem>>, %arg7: memref<1x128xf32, #tpu.memory_space<vmem>>, %arg8: memref<1x128xf32, #tpu.memory_space<vmem>>, %arg9: memref<128x512xf32, #tpu.memory_space<vmem>>, %arg10: memref<1x512xf32, #tpu.memory_space<vmem>>, %arg11: memref<512x128xf32, #tpu.memory_space<vmem>>, %arg12: memref<1x128xf32, #tpu.memory_space<vmem>>, %arg13: memref<16x128xf32, #tpu.memory_space<vmem>>) attributes {dimension_semantics = [#tpu.dimension_semantics<parallel>], iteration_bounds = array<i64: 4>, scalar_prefetch = 0 : i64, scratch_operands = 0 : i64, tpu.core_type = #tpu.core_type<tc>, window_params = [{transform_indices = @transform_0, window_bounds = array<i64: 16, 128>}, {pipeline_mode = #tpu.pipeline_mode<synchronous>, transform_indices = @transform_1, window_bounds = array<i64: 1, 128>}, {pipeline_mode = #tpu.pipeline_mode<synchronous>, transform_indices = @transform_2, window_bounds = array<i64: 1, 128>}, {pipeline_mode = #tpu.pipeline_mode<synchronous>, transform_indices = @transform_3, window_bounds = array<i64: 128, 384>}, {pipeline_mode = #tpu.pipeline_mode<synchronous>, transform_indices = @transform_4, window_bounds = array<i64: 128, 128>}, {pipeline_mode = #tpu.pipeline_mode<synchronous>, transform_indices = @transform_5, window_bounds = array<i64: 1, 128>}, {pipeline_mode = #tpu.pipeline_mode<synchronous>, transform_indices = @transform_6, window_bounds = array<i64: 1, 128>}, {pipeline_mode = #tpu.pipeline_mode<synchronous>, transform_indices = @transform_7, window_bounds = array<i64: 1, 128>}, {pipeline_mode = #tpu.pipeline_mode<synchronous>, transform_indices = @transform_8, window_bounds = array<i64: 128, 512>}, {pipeline_mode = #tpu.pipeline_mode<synchronous>, transform_indices = @transform_9, window_bounds = array<i64: 1, 512>}, {pipeline_mode = #tpu.pipeline_mode<synchronous>, transform_indices = @transform_10, window_bounds = array<i64: 512, 128>}, {pipeline_mode = #tpu.pipeline_mode<synchronous>, transform_indices = @transform_11, window_bounds = array<i64: 1, 128>}, {transform_indices = @transform_12, window_bounds = array<i64: 16, 128>}]} {
    %c0 = arith.constant 0 : index
    %c0_0 = arith.constant 0 : index
    %0 = vector.load %arg1[%c0, %c0_0] : memref<16x128xf32, #tpu.memory_space<vmem>>, vector<16x128xf32>
    %c0_1 = arith.constant 0 : index
    %c0_2 = arith.constant 0 : index
    %1 = vector.load %arg2[%c0_1, %c0_2] : memref<1x128xf32, #tpu.memory_space<vmem>>, vector<1x128xf32>
    %c0_3 = arith.constant 0 : index
    %c0_4 = arith.constant 0 : index
    %2 = vector.load %arg3[%c0_3, %c0_4] : memref<1x128xf32, #tpu.memory_space<vmem>>, vector<1x128xf32>
    %cst = arith.constant dense<0.000000e+00> : vector<16xf32>
    %3 = vector.multi_reduction <add>, %0, %cst [1] : vector<16x128xf32> to vector<16xf32>
    %4 = vector.shape_cast %3 : vector<16xf32> to vector<16x1xf32>
    %cst_5 = arith.constant 1.280000e+02 : f32
    %5 = vector.broadcast %cst_5 : f32 to vector<16x1xf32>
    %6 = arith.divf %4, %5 : vector<16x1xf32>
    %7 = vector.broadcast %6 : vector<16x1xf32> to vector<16x128xf32>
    %8 = arith.subf %0, %7 : vector<16x128xf32>
    %9 = arith.mulf %8, %8 : vector<16x128xf32>
    %cst_6 = arith.constant dense<0.000000e+00> : vector<16xf32>
    %10 = vector.multi_reduction <add>, %9, %cst_6 [1] : vector<16x128xf32> to vector<16xf32>
    %11 = vector.shape_cast %10 : vector<16xf32> to vector<16x1xf32>
    %cst_7 = arith.constant 1.280000e+02 : f32
    %12 = vector.broadcast %cst_7 : f32 to vector<16x1xf32>
    %13 = arith.divf %11, %12 : vector<16x1xf32>
    %14 = vector.broadcast %6 : vector<16x1xf32> to vector<16x128xf32>
    %15 = arith.subf %0, %14 : vector<16x128xf32>
    %cst_8 = arith.constant 9.99999974E-6 : f32
    %16 = vector.broadcast %cst_8 : f32 to vector<16x1xf32>
    %17 = arith.addf %13, %16 : vector<16x1xf32>
    %18 = math.rsqrt %17 : vector<16x1xf32>
    %19 = vector.broadcast %18 : vector<16x1xf32> to vector<16x128xf32>
    %20 = arith.mulf %15, %19 : vector<16x128xf32>
    %21 = vector.broadcast %1 : vector<1x128xf32> to vector<16x128xf32>
    %22 = arith.mulf %20, %21 : vector<16x128xf32>
    %23 = vector.broadcast %2 : vector<1x128xf32> to vector<16x128xf32>
    %24 = arith.addf %22, %23 : vector<16x128xf32>
    %c0_9 = arith.constant 0 : index
    %c0_10 = arith.constant 0 : index
    %25 = vector.load %arg4[%c0_9, %c0_10] : memref<128x384xf32, #tpu.memory_space<vmem>>, vector<128x384xf32>
    %cst_11 = arith.constant dense<0.000000e+00> : vector<16x384xf32>
    %26 = tpu.matmul %24, %25, %cst_11 {dimension_numbers = #tpu.dot_dimension_numbers<[1], [0], [0], [1], [0, 0, 1, 1], [], []>} : vector<16x128xf32>, vector<128x384xf32>, vector<16x384xf32> -> vector<16x384xf32>
    %27 = vector.extract_strided_slice %26 {offsets = [0, 0], sizes = [16, 128], strides = [1, 1]} : vector<16x384xf32> to vector<16x128xf32>
    %28 = vector.extract_strided_slice %26 {offsets = [0, 128], sizes = [16, 128], strides = [1, 1]} : vector<16x384xf32> to vector<16x128xf32>
    %29 = vector.extract_strided_slice %26 {offsets = [0, 256], sizes = [16, 128], strides = [1, 1]} : vector<16x384xf32> to vector<16x128xf32>
    %30 = vector.extract_strided_slice %27 {offsets = [0, 0], sizes = [16, 32], strides = [1, 1]} : vector<16x128xf32> to vector<16x32xf32>
    %31 = vector.extract_strided_slice %27 {offsets = [0, 32], sizes = [16, 32], strides = [1, 1]} : vector<16x128xf32> to vector<16x32xf32>
    %32 = vector.extract_strided_slice %27 {offsets = [0, 64], sizes = [16, 32], strides = [1, 1]} : vector<16x128xf32> to vector<16x32xf32>
    %33 = vector.extract_strided_slice %27 {offsets = [0, 96], sizes = [16, 32], strides = [1, 1]} : vector<16x128xf32> to vector<16x32xf32>
    %34 = tpu.concatenate %30, %31, %32, %33 in 0 : vector<16x32xf32>, vector<16x32xf32>, vector<16x32xf32>, vector<16x32xf32> -> vector<64x32xf32>
    %35 = vector.extract_strided_slice %28 {offsets = [0, 0], sizes = [16, 32], strides = [1, 1]} : vector<16x128xf32> to vector<16x32xf32>
    %36 = vector.extract_strided_slice %28 {offsets = [0, 32], sizes = [16, 32], strides = [1, 1]} : vector<16x128xf32> to vector<16x32xf32>
    %37 = vector.extract_strided_slice %28 {offsets = [0, 64], sizes = [16, 32], strides = [1, 1]} : vector<16x128xf32> to vector<16x32xf32>
    %38 = vector.extract_strided_slice %28 {offsets = [0, 96], sizes = [16, 32], strides = [1, 1]} : vector<16x128xf32> to vector<16x32xf32>
    %39 = tpu.concatenate %35, %36, %37, %38 in 0 : vector<16x32xf32>, vector<16x32xf32>, vector<16x32xf32>, vector<16x32xf32> -> vector<64x32xf32>
    %40 = vector.extract_strided_slice %29 {offsets = [0, 0], sizes = [16, 32], strides = [1, 1]} : vector<16x128xf32> to vector<16x32xf32>
    %41 = vector.extract_strided_slice %29 {offsets = [0, 32], sizes = [16, 32], strides = [1, 1]} : vector<16x128xf32> to vector<16x32xf32>
    %42 = vector.extract_strided_slice %29 {offsets = [0, 64], sizes = [16, 32], strides = [1, 1]} : vector<16x128xf32> to vector<16x32xf32>
    %43 = vector.extract_strided_slice %29 {offsets = [0, 96], sizes = [16, 32], strides = [1, 1]} : vector<16x128xf32> to vector<16x32xf32>
    %44 = tpu.concatenate %40, %41, %42, %43 in 0 : vector<16x32xf32>, vector<16x32xf32>, vector<16x32xf32>, vector<16x32xf32> -> vector<64x32xf32>
    %45 = vector.shape_cast %34 : vector<64x32xf32> to vector<64x32x1xf32>
    %46 = vector.shape_cast %39 : vector<64x32xf32> to vector<64x1x32xf32>
    %47 = vector.broadcast %45 : vector<64x32x1xf32> to vector<64x32x32xf32>
    %48 = vector.broadcast %46 : vector<64x1x32xf32> to vector<64x32x32xf32>
    %49 = arith.mulf %47, %48 : vector<64x32x32xf32>
    %cst_12 = arith.constant 0.0883883461 : f32
    %50 = vector.broadcast %cst_12 : f32 to vector<64x32x32xf32>
    %51 = arith.mulf %49, %50 : vector<64x32x32xf32>
    %cst_13 = arith.constant dense<0xFF800000> : vector<64x32xf32>
    %52 = vector.multi_reduction <maximumf>, %51, %cst_13 [2] : vector<64x32x32xf32> to vector<64x32xf32>
    %53 = vector.shape_cast %52 : vector<64x32xf32> to vector<64x32x1xf32>
    %54 = vector.broadcast %53 : vector<64x32x1xf32> to vector<64x32x32xf32>
    %55 = arith.subf %51, %54 : vector<64x32x32xf32>
    %56 = math.exp %55 : vector<64x32x32xf32>
    %cst_14 = arith.constant dense<0.000000e+00> : vector<64x32xf32>
    %57 = vector.multi_reduction <add>, %56, %cst_14 [2] : vector<64x32x32xf32> to vector<64x32xf32>
    %58 = vector.shape_cast %57 : vector<64x32xf32> to vector<64x32x1xf32>
    %59 = tpu.reciprocal %58 {approx = true} : vector<64x32x1xf32> -> vector<64x32x1xf32>
    %60 = vector.broadcast %59 : vector<64x32x1xf32> to vector<64x32x32xf32>
    %61 = arith.mulf %56, %60 : vector<64x32x32xf32>
    %62 = vector.shape_cast %44 : vector<64x32xf32> to vector<64x1x32xf32>
    %63 = vector.broadcast %62 : vector<64x1x32xf32> to vector<64x32x32xf32>
    %64 = arith.mulf %61, %63 : vector<64x32x32xf32>
    %cst_15 = arith.constant dense<0.000000e+00> : vector<64x32xf32>
    %65 = vector.multi_reduction <add>, %64, %cst_15 [2] : vector<64x32x32xf32> to vector<64x32xf32>
    %66 = vector.extract_strided_slice %65 {offsets = [0, 0], sizes = [16, 32], strides = [1, 1]} : vector<64x32xf32> to vector<16x32xf32>
    %67 = vector.extract_strided_slice %65 {offsets = [16, 0], sizes = [16, 32], strides = [1, 1]} : vector<64x32xf32> to vector<16x32xf32>
    %68 = vector.extract_strided_slice %65 {offsets = [32, 0], sizes = [16, 32], strides = [1, 1]} : vector<64x32xf32> to vector<16x32xf32>
    %69 = vector.extract_strided_slice %65 {offsets = [48, 0], sizes = [16, 32], strides = [1, 1]} : vector<64x32xf32> to vector<16x32xf32>
    %70 = tpu.concatenate %66, %67, %68, %69 in 1 : vector<16x32xf32>, vector<16x32xf32>, vector<16x32xf32>, vector<16x32xf32> -> vector<16x128xf32>
    %c0_16 = arith.constant 0 : index
    %c0_17 = arith.constant 0 : index
    %71 = vector.load %arg5[%c0_16, %c0_17] : memref<128x128xf32, #tpu.memory_space<vmem>>, vector<128x128xf32>
    %cst_18 = arith.constant dense<0.000000e+00> : vector<16x128xf32>
    %72 = tpu.matmul %70, %71, %cst_18 {dimension_numbers = #tpu.dot_dimension_numbers<[1], [0], [0], [1], [0, 0, 1, 1], [], []>} : vector<16x128xf32>, vector<128x128xf32>, vector<16x128xf32> -> vector<16x128xf32>
    %c0_19 = arith.constant 0 : index
    %c0_20 = arith.constant 0 : index
    %73 = vector.load %arg6[%c0_19, %c0_20] : memref<1x128xf32, #tpu.memory_space<vmem>>, vector<1x128xf32>
    %74 = vector.broadcast %73 : vector<1x128xf32> to vector<16x128xf32>
    %75 = arith.addf %72, %74 : vector<16x128xf32>
    %76 = arith.addf %0, %75 : vector<16x128xf32>
    %c0_21 = arith.constant 0 : index
    %c0_22 = arith.constant 0 : index
    %77 = vector.load %arg7[%c0_21, %c0_22] : memref<1x128xf32, #tpu.memory_space<vmem>>, vector<1x128xf32>
    %c0_23 = arith.constant 0 : index
    %c0_24 = arith.constant 0 : index
    %78 = vector.load %arg8[%c0_23, %c0_24] : memref<1x128xf32, #tpu.memory_space<vmem>>, vector<1x128xf32>
    %cst_25 = arith.constant dense<0.000000e+00> : vector<16xf32>
    %79 = vector.multi_reduction <add>, %76, %cst_25 [1] : vector<16x128xf32> to vector<16xf32>
    %80 = vector.shape_cast %79 : vector<16xf32> to vector<16x1xf32>
    %cst_26 = arith.constant 1.280000e+02 : f32
    %81 = vector.broadcast %cst_26 : f32 to vector<16x1xf32>
    %82 = arith.divf %80, %81 : vector<16x1xf32>
    %83 = vector.broadcast %82 : vector<16x1xf32> to vector<16x128xf32>
    %84 = arith.subf %76, %83 : vector<16x128xf32>
    %85 = arith.mulf %84, %84 : vector<16x128xf32>
    %cst_27 = arith.constant dense<0.000000e+00> : vector<16xf32>
    %86 = vector.multi_reduction <add>, %85, %cst_27 [1] : vector<16x128xf32> to vector<16xf32>
    %87 = vector.shape_cast %86 : vector<16xf32> to vector<16x1xf32>
    %cst_28 = arith.constant 1.280000e+02 : f32
    %88 = vector.broadcast %cst_28 : f32 to vector<16x1xf32>
    %89 = arith.divf %87, %88 : vector<16x1xf32>
    %90 = vector.broadcast %82 : vector<16x1xf32> to vector<16x128xf32>
    %91 = arith.subf %76, %90 : vector<16x128xf32>
    %cst_29 = arith.constant 9.99999974E-6 : f32
    %92 = vector.broadcast %cst_29 : f32 to vector<16x1xf32>
    %93 = arith.addf %89, %92 : vector<16x1xf32>
    %94 = math.rsqrt %93 : vector<16x1xf32>
    %95 = vector.broadcast %94 : vector<16x1xf32> to vector<16x128xf32>
    %96 = arith.mulf %91, %95 : vector<16x128xf32>
    %97 = vector.broadcast %77 : vector<1x128xf32> to vector<16x128xf32>
    %98 = arith.mulf %96, %97 : vector<16x128xf32>
    %99 = vector.broadcast %78 : vector<1x128xf32> to vector<16x128xf32>
    %100 = arith.addf %98, %99 : vector<16x128xf32>
    %c0_30 = arith.constant 0 : index
    %c0_31 = arith.constant 0 : index
    %101 = vector.load %arg9[%c0_30, %c0_31] : memref<128x512xf32, #tpu.memory_space<vmem>>, vector<128x512xf32>
    %cst_32 = arith.constant dense<0.000000e+00> : vector<16x512xf32>
    %102 = tpu.matmul %100, %101, %cst_32 {dimension_numbers = #tpu.dot_dimension_numbers<[1], [0], [0], [1], [0, 0, 1, 1], [], []>} : vector<16x128xf32>, vector<128x512xf32>, vector<16x512xf32> -> vector<16x512xf32>
    %c0_33 = arith.constant 0 : index
    %c0_34 = arith.constant 0 : index
    %103 = vector.load %arg10[%c0_33, %c0_34] : memref<1x512xf32, #tpu.memory_space<vmem>>, vector<1x512xf32>
    %104 = vector.broadcast %103 : vector<1x512xf32> to vector<16x512xf32>
    %105 = arith.addf %102, %104 : vector<16x512xf32>
    %cst_35 = arith.constant 5.000000e-01 : f32
    %106 = vector.broadcast %cst_35 : f32 to vector<16x512xf32>
    %107 = arith.mulf %106, %105 : vector<16x512xf32>
    %cst_36 = arith.constant 4.471500e-02 : f32
    %108 = vector.broadcast %cst_36 : f32 to vector<16x512xf32>
    %109 = arith.mulf %108, %105 : vector<16x512xf32>
    %110 = arith.mulf %109, %105 : vector<16x512xf32>
    %111 = arith.mulf %110, %105 : vector<16x512xf32>
    %112 = arith.addf %105, %111 : vector<16x512xf32>
    %cst_37 = arith.constant 0.797884583 : f32
    %113 = vector.broadcast %cst_37 : f32 to vector<16x512xf32>
    %114 = arith.mulf %113, %112 : vector<16x512xf32>
    %115 = math.tanh %114 : vector<16x512xf32>
    %cst_38 = arith.constant 1.000000e+00 : f32
    %116 = vector.broadcast %cst_38 : f32 to vector<16x512xf32>
    %117 = arith.addf %116, %115 : vector<16x512xf32>
    %118 = arith.mulf %107, %117 : vector<16x512xf32>
    %c0_39 = arith.constant 0 : index
    %c0_40 = arith.constant 0 : index
    %119 = vector.load %arg11[%c0_39, %c0_40] : memref<512x128xf32, #tpu.memory_space<vmem>>, vector<512x128xf32>
    %cst_41 = arith.constant dense<0.000000e+00> : vector<16x128xf32>
    %120 = tpu.matmul %118, %119, %cst_41 {dimension_numbers = #tpu.dot_dimension_numbers<[1], [0], [0], [1], [0, 0, 1, 1], [], []>} : vector<16x512xf32>, vector<512x128xf32>, vector<16x128xf32> -> vector<16x128xf32>
    %c0_42 = arith.constant 0 : index
    %c0_43 = arith.constant 0 : index
    %121 = vector.load %arg12[%c0_42, %c0_43] : memref<1x128xf32, #tpu.memory_space<vmem>>, vector<1x128xf32>
    %122 = vector.broadcast %121 : vector<1x128xf32> to vector<16x128xf32>
    %123 = arith.addf %120, %122 : vector<16x128xf32>
    %124 = arith.addf %76, %123 : vector<16x128xf32>
    %c0_44 = arith.constant 0 : index
    %c0_45 = arith.constant 0 : index
    %125 = vector.load %arg13[%c0_44, %c0_45] : memref<16x128xf32, #tpu.memory_space<vmem>>, vector<16x128xf32>
    tpu.vector_store %arg13[%c0_44, %c0_45], %124 {strides = array<i32>} : memref<16x128xf32, #tpu.memory_space<vmem>>, vector<16x128xf32>,
    return
  }
  func.func @transform_0(%arg0: i32) -> (i32, i32) {
    %c0_i32 = arith.constant 0 : i32
    %c0_i32_0 = arith.constant 0 : i32
    return %arg0, %c0_i32 : i32, i32
  }
  func.func @transform_1(%arg0: i32) -> (i32, i32) {
    %c0_i32 = arith.constant 0 : i32
    %c0_i32_0 = arith.constant 0 : i32
    %c0_i32_1 = arith.constant 0 : i32
    return %c0_i32, %c0_i32_0 : i32, i32
  }
  func.func @transform_2(%arg0: i32) -> (i32, i32) {
    %c0_i32 = arith.constant 0 : i32
    %c0_i32_0 = arith.constant 0 : i32
    %c0_i32_1 = arith.constant 0 : i32
    return %c0_i32, %c0_i32_0 : i32, i32
  }
  func.func @transform_3(%arg0: i32) -> (i32, i32) {
    %c0_i32 = arith.constant 0 : i32
    %c0_i32_0 = arith.constant 0 : i32
    %c0_i32_1 = arith.constant 0 : i32
    return %c0_i32, %c0_i32_0 : i32, i32
  }
  func.func @transform_4(%arg0: i32) -> (i32, i32) {
    %c0_i32 = arith.constant 0 : i32
    %c0_i32_0 = arith.constant 0 : i32
    %c0_i32_1 = arith.constant 0 : i32
    return %c0_i32, %c0_i32_0 : i32, i32
  }
  func.func @transform_5(%arg0: i32) -> (i32, i32) {
    %c0_i32 = arith.constant 0 : i32
    %c0_i32_0 = arith.constant 0 : i32
    %c0_i32_1 = arith.constant 0 : i32
    return %c0_i32, %c0_i32_0 : i32, i32
  }
  func.func @transform_6(%arg0: i32) -> (i32, i32) {
    %c0_i32 = arith.constant 0 : i32
    %c0_i32_0 = arith.constant 0 : i32
    %c0_i32_1 = arith.constant 0 : i32
    return %c0_i32, %c0_i32_0 : i32, i32
  }
  func.func @transform_7(%arg0: i32) -> (i32, i32) {
    %c0_i32 = arith.constant 0 : i32
    %c0_i32_0 = arith.constant 0 : i32
    %c0_i32_1 = arith.constant 0 : i32
    return %c0_i32, %c0_i32_0 : i32, i32
  }
  func.func @transform_8(%arg0: i32) -> (i32, i32) {
    %c0_i32 = arith.constant 0 : i32
    %c0_i32_0 = arith.constant 0 : i32
    %c0_i32_1 = arith.constant 0 : i32
    return %c0_i32, %c0_i32_0 : i32, i32
  }
  func.func @transform_9(%arg0: i32) -> (i32, i32) {
    %c0_i32 = arith.constant 0 : i32
    %c0_i32_0 = arith.constant 0 : i32
    %c0_i32_1 = arith.constant 0 : i32
    return %c0_i32, %c0_i32_0 : i32, i32
  }
  func.func @transform_10(%arg0: i32) -> (i32, i32) {
    %c0_i32 = arith.constant 0 : i32
    %c0_i32_0 = arith.constant 0 : i32
    %c0_i32_1 = arith.constant 0 : i32
    return %c0_i32, %c0_i32_0 : i32, i32
  }
  func.func @transform_11(%arg0: i32) -> (i32, i32) {
    %c0_i32 = arith.constant 0 : i32
    %c0_i32_0 = arith.constant 0 : i32
    %c0_i32_1 = arith.constant 0 : i32
    return %c0_i32, %c0_i32_0 : i32, i32
  }
  func.func @transform_12(%arg0: i32) -> (i32, i32) {
    %c0_i32 = arith.constant 0 : i32
    %c0_i32_0 = arith.constant 0 : i32
    return %arg0, %c0_i32 : i32, i32
  }
}

</mosaic_0001>

<llo_original>
// kernel: tpu_custom_call.1
$region0: #{tpu_custom_call.1}
  #allocation0 [shape = 'u32[]', space=smem, size = 0x4, offset = 0x4, fixed_abs, tag = 'smem constant byte address 0x4 - core index']
  #allocation1 [shape = 'u32[144,128]{1,0:T(1,128)}', space=vmem, size = 0x12000, scoped, tag = 'internal scratch']
  %s0 = inlined_call_operand.hbm [shape: f32[64,128], index: 0, kind: input, shape index: {}]
  %s1 = inlined_call_operand.vmem [shape: f32[1,128], index: 1, kind: input, shape index: {}]
  %s2 = inlined_call_operand.vmem [shape: f32[1,128], index: 2, kind: input, shape index: {}]
  %s3 = inlined_call_operand.hbm [shape: f32[128,384], index: 3, kind: input, shape index: {}]
  %s4 = inlined_call_operand.hbm [shape: f32[128,128], index: 4, kind: input, shape index: {}]
  %s5 = inlined_call_operand.vmem [shape: f32[1,128], index: 5, kind: input, shape index: {}]
  %s6 = inlined_call_operand.vmem [shape: f32[1,128], index: 6, kind: input, shape index: {}]
  %s7 = inlined_call_operand.vmem [shape: f32[1,128], index: 7, kind: input, shape index: {}]
  %s8 = inlined_call_operand.hbm [shape: f32[128,512], index: 8, kind: input, shape index: {}]
  %s9 = inlined_call_operand.vmem [shape: f32[1,512], index: 9, kind: input, shape index: {}]
  %s10 = inlined_call_operand.hbm [shape: f32[512,128], index: 10, kind: input, shape index: {}]
  %s11 = inlined_call_operand.vmem [shape: f32[1,128], index: 11, kind: input, shape index: {}]
  %s12 = inlined_call_operand.hbm [shape: f32[64,128], index: 12, kind: output, shape index: {}]
  %s13 = sld [smem:[#allocation0]]
  $region101: #{tpu_custom_call.1} parent=0
    _
  %s15 = ssub.s32 1, %s13
  %s16 = scalar_select 0, %s15, %s13
  $region1: #{tpu_custom_call.1} parent=0
    #allocation2 [shape = 'u8[16384]{0}', space=vmem, size = 0x4000, scoped, tag = 'input window, operand 0']
    #allocation3 [shape = 's32[2]{0}', space=sflag, size = 0x8, scoped, tag = 'scoped memory for tpu_custom_call.1']
    #allocation4 [shape = 's32[2]{0}', space=sflag, size = 0x8, scoped, tag = 'scoped memory for tpu_custom_call.1']
    #allocation5 [shape = 'u8[196608]{0}', space=vmem, size = 0x30000, scoped, tag = 'input window, operand 3, single buffered']
    #allocation6 [shape = 's32[1]{0}', space=sflag, size = 0x4, scoped, tag = 'scoped memory for tpu_custom_call.1']
    #allocation7 [shape = 'u8[65536]{0}', space=vmem, size = 0x10000, scoped, tag = 'input window, operand 4, single buffered']
    #allocation8 [shape = 'u8[262144]{0}', space=vmem, size = 0x40000, scoped, tag = 'input window, operand 8, single buffered']
    #allocation9 [shape = 's32[1]{0}', space=sflag, size = 0x4, scoped, tag = 'scoped memory for tpu_custom_call.1']
    #allocation10 [shape = 'u8[262144]{0}', space=vmem, size = 0x40000, scoped, tag = 'input window, operand 10, single buffered']
    #allocation11 [shape = 'u8[16384]{0}', space=vmem, size = 0x4000, scoped, tag = 'output window, operand 0']
    %17 = vsyncpa [#allocation3], 0
    %s18 = scalar_lea.sflag [#allocation3], 1
    %19 = vsyncpa %s18, 0
    %20 = vsyncpa [#allocation6], 0
    %21 = vsyncpa [#allocation9], 0
    %22 = vsyncpa [#allocation4], 0
    %s23 = scalar_lea.sflag [#allocation4], 1
    %24 = vsyncpa %s23, 0
    loop: start=0, step=1, limit=6
    $region2: #{tpu_custom_call.1} parent=1 // loop_pre_header
      _
    $region3: #{tpu_custom_call.1} parent=1 // loop_header
      %s26 = sphi 0, %s30
      %p27 = scmp.ge.s32.totalorder %s26, 6
      %s36 = sphi 0, %s38
      %s39 = sphi 0, %s36
      %s40 = sphi 0, %s39
      %s56 = sphi 0, %s40
      %s60 = sphi 0, %s60
      %s62 = sphi 0, %s60
      %s63 = sphi 0, %s62
      %s77 = sphi 0, %s63
      %s81 = sphi 0, %s81
      %s83 = sphi 0, %s81
      %s84 = sphi 0, %s83
      %s98 = sphi 0, %s84
      %s102 = sphi 0, %s102
      %s104 = sphi 0, %s102
      %s105 = sphi 0, %s104
      %s119 = sphi 0, %s105
      %s123 = sphi 0, %s123
      %s125 = sphi 0, %s123
      %s126 = sphi 0, %s125
      %s140 = sphi 0, %s126
      %s144 = sphi 0, %s144
      %s146 = sphi 0, %s144
      %s147 = sphi 0, %s146
      %s161 = sphi 0, %s147
      %s165 = sphi 0, %s165
      %s167 = sphi 0, %s165
      %s168 = sphi 0, %s167
      %s182 = sphi 0, %s168
      %s186 = sphi 0, %s186
      %s188 = sphi 0, %s186
      %s189 = sphi 0, %s188
      %s203 = sphi 0, %s189
      %s207 = sphi 0, %s207
      %s209 = sphi 0, %s207
      %s210 = sphi 0, %s209
      %s224 = sphi 0, %s210
      %s228 = sphi 0, %s228
      %s230 = sphi 0, %s228
      %s231 = sphi 0, %s230
      %s245 = sphi 0, %s231
      %s249 = sphi 0, %s249
      %s251 = sphi 0, %s249
      %s252 = sphi 0, %s251
      %s266 = sphi 0, %s252
      %s270 = sphi 0, %s270
      %s272 = sphi 0, %s270
      %s273 = sphi 0, %s272
      %s287 = sphi 0, %s273
      %s293 = sphi 0, %s295
      %s296 = sphi 0, %s293
      %s297 = sphi 0, %s296
      %s313 = sphi 0, %s297
    $region4: #{tpu_custom_call.1} parent=1 // loop_header_branch
      %29 = sbr.rel (%p27) target = $region8
    $region5: #{tpu_custom_call.1} parent=1 // loop_body
      %s31 = ssub.s32 %s26, 1
      %s32 = ssub.s32 %s26, 2
      %s33 = sadd.s32 %s26, 1
      %s34 = ssub.s32 %s26, %s33
      %p35 = scmp.eq.s32.totalorder %s34, 0
      %s37 = sadd.s32 %s36, 1
      %s38 = scalar_select %p35, %s36, %s37
      %p41 = pneg %p35
      %p42 = scmp.eq.s32.totalorder %s26, 3
      %p43 = por %p41, %p42
      %p44 = scmp.ne.s32.totalorder %s36, %s39
      %p45 = scmp.eq.s32.totalorder %s26, 0
      %p46 = por %p44, %p45
      %p47 = scmp.ne.s32.totalorder %s36, %s39
      %p48 = scmp.eq.s32.totalorder %s31, 3
      %p49 = por %p47, %p48
      %p50 = scmp.ne.s32.totalorder %s39, %s40
      %p51 = scmp.eq.s32.totalorder %s31, 0
      %p52 = por %p50, %p51
      %p53 = scmp.ne.s32.totalorder %s39, %s40
      %p54 = scmp.eq.s32.totalorder %s32, 3
      %p55 = por %p53, %p54
      %p57 = scmp.ne.s32.totalorder %s40, %s56
      %p58 = scmp.eq.s32.totalorder %s32, 0
      %p59 = por %p57, %p58
      %s61 = sadd.s32 %s60, 1
      %p64 = scmp.eq.s32.totalorder %s26, 3
      %p65 = scmp.ne.s32.totalorder %s60, %s62
      %p66 = scmp.eq.s32.totalorder %s26, 0
      %p67 = por %p65, %p66
      %p68 = scmp.ne.s32.totalorder %s60, %s62
      %p69 = scmp.eq.s32.totalorder %s31, 3
      %p70 = por %p68, %p69
      %p71 = scmp.ne.s32.totalorder %s62, %s63
      %p72 = scmp.eq.s32.totalorder %s31, 0
      %p73 = por %p71, %p72
      %p74 = scmp.ne.s32.totalorder %s62, %s63
      %p75 = scmp.eq.s32.totalorder %s32, 3
      %p76 = por %p74, %p75
      %p78 = scmp.ne.s32.totalorder %s63, %s77
      %p79 = scmp.eq.s32.totalorder %s32, 0
      %p80 = por %p78, %p79
      %s82 = sadd.s32 %s81, 1
      %p85 = scmp.eq.s32.totalorder %s26, 3
      %p86 = scmp.ne.s32.totalorder %s81, %s83
      %p87 = scmp.eq.s32.totalorder %s26, 0
      %p88 = por %p86, %p87
      %p89 = scmp.ne.s32.totalorder %s81, %s83
      %p90 = scmp.eq.s32.totalorder %s31, 3
      %p91 = por %p89, %p90
      %p92 = scmp.ne.s32.totalorder %s83, %s84
      %p93 = scmp.eq.s32.totalorder %s31, 0
      %p94 = por %p92, %p93
      %p95 = scmp.ne.s32.totalorder %s83, %s84
      %p96 = scmp.eq.s32.totalorder %s32, 3
      %p97 = por %p95, %p96
      %p99 = scmp.ne.s32.totalorder %s84, %s98
      %p100 = scmp.eq.s32.totalorder %s32, 0
      %p101 = por %p99, %p100
      %s103 = sadd.s32 %s102, 1
      %p106 = scmp.eq.s32.totalorder %s26, 3
      %p107 = scmp.ne.s32.totalorder %s102, %s104
      %p108 = scmp.eq.s32.totalorder %s26, 0
      %p109 = por %p107, %p108
      %p110 = scmp.ne.s32.totalorder %s102, %s104
      %p111 = scmp.eq.s32.totalorder %s31, 3
      %p112 = por %p110, %p111
      %p113 = scmp.ne.s32.totalorder %s104, %s105
      %p114 = scmp.eq.s32.totalorder %s31, 0
      %p115 = por %p113, %p114
      %p116 = scmp.ne.s32.totalorder %s104, %s105
      %p117 = scmp.eq.s32.totalorder %s32, 3
      %p118 = por %p116, %p117
      %p120 = scmp.ne.s32.totalorder %s105, %s119
      %p121 = scmp.eq.s32.totalorder %s32, 0
      %p122 = por %p120, %p121
      %s124 = sadd.s32 %s123, 1
      %p127 = scmp.eq.s32.totalorder %s26, 3
      %p128 = scmp.ne.s32.totalorder %s123, %s125
      %p129 = scmp.eq.s32.totalorder %s26, 0
      %p130 = por %p128, %p129
      %p131 = scmp.ne.s32.totalorder %s123, %s125
      %p132 = scmp.eq.s32.totalorder %s31, 3
      %p133 = por %p131, %p132
      %p134 = scmp.ne.s32.totalorder %s125, %s126
      %p135 = scmp.eq.s32.totalorder %s31, 0
      %p136 = por %p134, %p135
      %p137 = scmp.ne.s32.totalorder %s125, %s126
      %p138 = scmp.eq.s32.totalorder %s32, 3
      %p139 = por %p137, %p138
      %p141 = scmp.ne.s32.totalorder %s126, %s140
      %p142 = scmp.eq.s32.totalorder %s32, 0
      %p143 = por %p141, %p142
      %s145 = sadd.s32 %s144, 1
      %p148 = scmp.eq.s32.totalorder %s26, 3
      %p149 = scmp.ne.s32.totalorder %s144, %s146
      %p150 = scmp.eq.s32.totalorder %s26, 0
      %p151 = por %p149, %p150
      %p152 = scmp.ne.s32.totalorder %s144, %s146
      %p153 = scmp.eq.s32.totalorder %s31, 3
      %p154 = por %p152, %p153
      %p155 = scmp.ne.s32.totalorder %s146, %s147
      %p156 = scmp.eq.s32.totalorder %s31, 0
      %p157 = por %p155, %p156
      %p158 = scmp.ne.s32.totalorder %s146, %s147
      %p159 = scmp.eq.s32.totalorder %s32, 3
      %p160 = por %p158, %p159
      %p162 = scmp.ne.s32.totalorder %s147, %s161
      %p163 = scmp.eq.s32.totalorder %s32, 0
      %p164 = por %p162, %p163
      %s166 = sadd.s32 %s165, 1
      %p169 = scmp.eq.s32.totalorder %s26, 3
      %p170 = scmp.ne.s32.totalorder %s165, %s167
      %p171 = scmp.eq.s32.totalorder %s26, 0
      %p172 = por %p170, %p171
      %p173 = scmp.ne.s32.totalorder %s165, %s167
      %p174 = scmp.eq.s32.totalorder %s31, 3
      %p175 = por %p173, %p174
      %p176 = scmp.ne.s32.totalorder %s167, %s168
      %p177 = scmp.eq.s32.totalorder %s31, 0
      %p178 = por %p176, %p177
      %p179 = scmp.ne.s32.totalorder %s167, %s168
      %p180 = scmp.eq.s32.totalorder %s32, 3
      %p181 = por %p179, %p180
      %p183 = scmp.ne.s32.totalorder %s168, %s182
      %p184 = scmp.eq.s32.totalorder %s32, 0
      %p185 = por %p183, %p184
      %s187 = sadd.s32 %s186, 1
      %p190 = scmp.eq.s32.totalorder %s26, 3
      %p191 = scmp.ne.s32.totalorder %s186, %s188
      %p192 = scmp.eq.s32.totalorder %s26, 0
      %p193 = por %p191, %p192
      %p194 = scmp.ne.s32.totalorder %s186, %s188
      %p195 = scmp.eq.s32.totalorder %s31, 3
      %p196 = por %p194, %p195
      %p197 = scmp.ne.s32.totalorder %s188, %s189
      %p198 = scmp.eq.s32.totalorder %s31, 0
      %p199 = por %p197, %p198
      %p200 = scmp.ne.s32.totalorder %s188, %s189
      %p201 = scmp.eq.s32.totalorder %s32, 3
      %p202 = por %p200, %p201
      %p204 = scmp.ne.s32.totalorder %s189, %s203
      %p205 = scmp.eq.s32.totalorder %s32, 0
      %p206 = por %p204, %p205
      %s208 = sadd.s32 %s207, 1
      %p211 = scmp.eq.s32.totalorder %s26, 3
      %p212 = scmp.ne.s32.totalorder %s207, %s209
      %p213 = scmp.eq.s32.totalorder %s26, 0
      %p214 = por %p212, %p213
      %p215 = scmp.ne.s32.totalorder %s207, %s209
      %p216 = scmp.eq.s32.totalorder %s31, 3
      %p217 = por %p215, %p216
      %p218 = scmp.ne.s32.totalorder %s209, %s210
      %p219 = scmp.eq.s32.totalorder %s31, 0
      %p220 = por %p218, %p219
      %p221 = scmp.ne.s32.totalorder %s209, %s210
      %p222 = scmp.eq.s32.totalorder %s32, 3
      %p223 = por %p221, %p222
      %p225 = scmp.ne.s32.totalorder %s210, %s224
      %p226 = scmp.eq.s32.totalorder %s32, 0
      %p227 = por %p225, %p226
      %s229 = sadd.s32 %s228, 1
      %p232 = scmp.eq.s32.totalorder %s26, 3
      %p233 = scmp.ne.s32.totalorder %s228, %s230
      %p234 = scmp.eq.s32.totalorder %s26, 0
      %p235 = por %p233, %p234
      %p236 = scmp.ne.s32.totalorder %s228, %s230
      %p237 = scmp.eq.s32.totalorder %s31, 3
      %p238 = por %p236, %p237
      %p239 = scmp.ne.s32.totalorder %s230, %s231
      %p240 = scmp.eq.s32.totalorder %s31, 0
      %p241 = por %p239, %p240
      %p242 = scmp.ne.s32.totalorder %s230, %s231
      %p243 = scmp.eq.s32.totalorder %s32, 3
      %p244 = por %p242, %p243
      %p246 = scmp.ne.s32.totalorder %s231, %s245
      %p247 = scmp.eq.s32.totalorder %s32, 0
      %p248 = por %p246, %p247
      %s250 = sadd.s32 %s249, 1
      %p253 = scmp.eq.s32.totalorder %s26, 3
      %p254 = scmp.ne.s32.totalorder %s249, %s251
      %p255 = scmp.eq.s32.totalorder %s26, 0
      %p256 = por %p254, %p255
      %p257 = scmp.ne.s32.totalorder %s249, %s251
      %p258 = scmp.eq.s32.totalorder %s31, 3
      %p259 = por %p257, %p258
      %p260 = scmp.ne.s32.totalorder %s251, %s252
      %p261 = scmp.eq.s32.totalorder %s31, 0
      %p262 = por %p260, %p261
      %p263 = scmp.ne.s32.totalorder %s251, %s252
      %p264 = scmp.eq.s32.totalorder %s32, 3
      %p265 = por %p263, %p264
      %p267 = scmp.ne.s32.totalorder %s252, %s266
      %p268 = scmp.eq.s32.totalorder %s32, 0
      %p269 = por %p267, %p268
      %s271 = sadd.s32 %s270, 1
      %p274 = scmp.eq.s32.totalorder %s26, 3
      %p275 = scmp.ne.s32.totalorder %s270, %s272
      %p276 = scmp.eq.s32.totalorder %s26, 0
      %p277 = por %p275, %p276
      %p278 = scmp.ne.s32.totalorder %s270, %s272
      %p279 = scmp.eq.s32.totalorder %s31, 3
      %p280 = por %p278, %p279
      %p281 = scmp.ne.s32.totalorder %s272, %s273
      %p282 = scmp.eq.s32.totalorder %s31, 0
      %p283 = por %p281, %p282
      %p284 = scmp.ne.s32.totalorder %s272, %s273
      %p285 = scmp.eq.s32.totalorder %s32, 3
      %p286 = por %p284, %p285
      %p288 = scmp.ne.s32.totalorder %s273, %s287
      %p289 = scmp.eq.s32.totalorder %s32, 0
      %p290 = por %p288, %p289
      %s291 = ssub.s32 %s26, %s33
      %p292 = scmp.eq.s32.totalorder %s291, 0
      %s294 = sadd.s32 %s293, 1
      %s295 = scalar_select %p292, %s293, %s294
      %p298 = pneg %p292
      %p299 = scmp.eq.s32.totalorder %s26, 3
      %p300 = por %p298, %p299
      %p301 = scmp.ne.s32.totalorder %s293, %s296
      %p302 = scmp.eq.s32.totalorder %s26, 0
      %p303 = por %p301, %p302
      %p304 = scmp.ne.s32.totalorder %s293, %s296
      %p305 = scmp.eq.s32.totalorder %s31, 3
      %p306 = por %p304, %p305
      %p307 = scmp.ne.s32.totalorder %s296, %s297
      %p308 = scmp.eq.s32.totalorder %s31, 0
      %p309 = por %p307, %p308
      %p310 = scmp.ne.s32.totalorder %s296, %s297
      %p311 = scmp.eq.s32.totalorder %s32, 3
      %p312 = por %p310, %p311
      %p314 = scmp.ne.s32.totalorder %s297, %s313
      %p315 = scmp.eq.s32.totalorder %s32, 0
      %p316 = por %p314, %p315
      %p317 = scmp.le.s32.totalorder 1, %s26
      %p318 = scmp.lt.s32.totalorder %s26, 5
      %p319 = pnand %p317, %p318
      %p320 = pneg %p319
      // Predicated region
      $region9: #{tpu_custom_call.1} parent=5 // pred_check
        _
      $region10: #{tpu_custom_call.1} parent=5 // pred_check_branch
        %322 = sbr.rel (%p319) target = $region12
      $region11: #{tpu_custom_call.1} parent=5 // pred_region
        %s323 = ssub.s32 %s26, 1
        // Predicated region
        $region13: #{tpu_custom_call.1} parent=11 // pred_check
          %p324 = pneg %p73
        $region14: #{tpu_custom_call.1} parent=11 // pred_check_branch
          %326 = sbr.rel (%p324) target = $region16
        $region15: #{tpu_custom_call.1} parent=11 // pred_region
          _
        $region16: #{tpu_custom_call.1} parent=11 // pred_fallthru
          _
        // Predicated region
        $region17: #{tpu_custom_call.1} parent=11 // pred_check
          %p327 = pneg %p94
        $region18: #{tpu_custom_call.1} parent=11 // pred_check_branch
          %329 = sbr.rel (%p327) target = $region20
        $region19: #{tpu_custom_call.1} parent=11 // pred_region
          _
        $region20: #{tpu_custom_call.1} parent=11 // pred_fallthru
          _
        // Predicated region
        $region21: #{tpu_custom_call.1} parent=11 // pred_check
          %p330 = pneg %p115
        $region22: #{tpu_custom_call.1} parent=11 // pred_check_branch
          %332 = sbr.rel (%p330) target = $region24
        $region23: #{tpu_custom_call.1} parent=11 // pred_region
          %s334 = ssub.s32 6144, 6144
          %335 = vsyncadd [#allocation6], %s334
          %s336 = sshll.u32 [#allocation5], 4
          %s337 = int_to_ptr.vmem [resolvable:$true] %s336
          %342 = dma.hbm_to_vmem [thread:$0]  %s3, 6144, %s337, [#allocation6], 384, 384, 24
        $region24: #{tpu_custom_call.1} parent=11 // pred_fallthru
          _
        // Predicated region
        $region25: #{tpu_custom_call.1} parent=11 // pred_check
          %p343 = pneg %p136
        $region26: #{tpu_custom_call.1} parent=11 // pred_check_branch
          %345 = sbr.rel (%p343) target = $region28
        $region27: #{tpu_custom_call.1} parent=11 // pred_region
          %s347 = ssub.s32 2048, 2048
          %348 = vsyncadd [#allocation6], %s347
          %s349 = sshll.u32 [#allocation7], 4
          %s350 = int_to_ptr.vmem [resolvable:$true] %s349
          %355 = dma.hbm_to_vmem [thread:$0]  %s4, 2048, %s350, [#allocation6], 128, 128, 8
        $region28: #{tpu_custom_call.1} parent=11 // pred_fallthru
          _
        // Predicated region
        $region29: #{tpu_custom_call.1} parent=11 // pred_check
          %p356 = pneg %p157
        $region30: #{tpu_custom_call.1} parent=11 // pred_check_branch
          %358 = sbr.rel (%p356) target = $region32
        $region31: #{tpu_custom_call.1} parent=11 // pred_region
          _
        $region32: #{tpu_custom_call.1} parent=11 // pred_fallthru
          _
        // Predicated region
        $region33: #{tpu_custom_call.1} parent=11 // pred_check
          %p359 = pneg %p178
        $region34: #{tpu_custom_call.1} parent=11 // pred_check_branch
          %361 = sbr.rel (%p359) target = $region36
        $region35: #{tpu_custom_call.1} parent=11 // pred_region
          _
        $region36: #{tpu_custom_call.1} parent=11 // pred_fallthru
          _
        // Predicated region
        $region37: #{tpu_custom_call.1} parent=11 // pred_check
          %p362 = pneg %p199
        $region38: #{tpu_custom_call.1} parent=11 // pred_check_branch
          %364 = sbr.rel (%p362) target = $region40
        $region39: #{tpu_custom_call.1} parent=11 // pred_region
          _
        $region40: #{tpu_custom_call.1} parent=11 // pred_fallthru
          _
        // Predicated region
        $region41: #{tpu_custom_call.1} parent=11 // pred_check
          %p365 = pneg %p220
        $region42: #{tpu_custom_call.1} parent=11 // pred_check_branch
          %367 = sbr.rel (%p365) target = $region44
        $region43: #{tpu_custom_call.1} parent=11 // pred_region
          %s369 = ssub.s32 8192, 8192
          %370 = vsyncadd [#allocation9], %s369
          %s371 = sshll.u32 [#allocation8], 4
          %s372 = int_to_ptr.vmem [resolvable:$true] %s371
          %377 = dma.hbm_to_vmem [thread:$0]  %s8, 8192, %s372, [#allocation9], 512, 512, 32
        $region44: #{tpu_custom_call.1} parent=11 // pred_fallthru
          _
        // Predicated region
        $region45: #{tpu_custom_call.1} parent=11 // pred_check
          %p378 = pneg %p241
        $region46: #{tpu_custom_call.1} parent=11 // pred_check_branch
          %380 = sbr.rel (%p378) target = $region48
        $region47: #{tpu_custom_call.1} parent=11 // pred_region
          _
        $region48: #{tpu_custom_call.1} parent=11 // pred_fallthru
          _
        // Predicated region
        $region49: #{tpu_custom_call.1} parent=11 // pred_check
          %p381 = pneg %p262
        $region50: #{tpu_custom_call.1} parent=11 // pred_check_branch
          %383 = sbr.rel (%p381) target = $region52
        $region51: #{tpu_custom_call.1} parent=11 // pred_region
          %s385 = ssub.s32 8192, 8192
          %386 = vsyncadd [#allocation9], %s385
          %s387 = sshll.u32 [#allocation10], 4
          %s388 = int_to_ptr.vmem [resolvable:$true] %s387
          %393 = dma.hbm_to_vmem [thread:$0]  %s10, 8192, %s388, [#allocation9], 128, 128, 8
        $region52: #{tpu_custom_call.1} parent=11 // pred_fallthru
          _
        // Predicated region
        $region53: #{tpu_custom_call.1} parent=11 // pred_check
          %p394 = pneg %p283
        $region54: #{tpu_custom_call.1} parent=11 // pred_check_branch
          %396 = sbr.rel (%p394) target = $region56
        $region55: #{tpu_custom_call.1} parent=11 // pred_region
          _
        $region56: #{tpu_custom_call.1} parent=11 // pred_fallthru
          _
      $region12: #{tpu_custom_call.1} parent=5 // pred_fallthru
        _
      %p397 = scmp.lt.s32.totalorder %s26, 4
      // Predicated region
      $region57: #{tpu_custom_call.1} parent=5 // pred_check
        %p398 = pneg %p397
      $region58: #{tpu_custom_call.1} parent=5 // pred_check_branch
        %400 = sbr.rel (%p398) target = $region60
      $region59: #{tpu_custom_call.1} parent=5 // pred_region
        // Predicated region
        $region61: #{tpu_custom_call.1} parent=59 // pred_check
          %p401 = pneg %p46
        $region62: #{tpu_custom_call.1} parent=59 // pred_check_branch
          %403 = sbr.rel (%p401) target = $region64
        $region63: #{tpu_custom_call.1} parent=59 // pred_region
          %s404 = sand.u32 %s36, 1
          %s405 = scalar_lea.sflag [#allocation3], %s404
          %s406 = sand.u32 %s36, 1
          %s407 = smul.addr %s406, 16
          %s408 = scalar_lea.vmem [#allocation2], %s407
          %s409 = smul.u32 2, %s26
          %s411 = ssub.s32 256, 256
          %412 = vsyncadd %s405, %s411
          %s413 = smul.addr %s409, 128
          %s414 = scalar_lea.hbm %s0, %s413
          %s415 = sshll.u32 %s408, 4
          %s416 = int_to_ptr.vmem [resolvable:$true] %s415
          %421 = dma.hbm_to_vmem [thread:$0]  %s414, 256, %s416, %s405, 128, 128, 8
        $region64: #{tpu_custom_call.1} parent=59 // pred_fallthru
          _
      $region60: #{tpu_custom_call.1} parent=5 // pred_fallthru
        _
      %p422 = scmp.le.s32.totalorder 1, %s26
      %p423 = scmp.lt.s32.totalorder %s26, 5
      %p424 = pnand %p422, %p423
      %p425 = pneg %p424
      // Predicated region
      $region65: #{tpu_custom_call.1} parent=5 // pred_check
        _
      $region66: #{tpu_custom_call.1} parent=5 // pred_check_branch
        %427 = sbr.rel (%p424) target = $region68
      $region67: #{tpu_custom_call.1} parent=5 // pred_region
        %s428 = ssub.s32 %s26, 1
        %s429 = sand.u32 %s39, 1
        %s430 = scalar_lea.sflag [#allocation3], %s429
        %s431 = sand.u32 %s39, 1
        %s432 = smul.addr %s431, 16
        %s433 = scalar_lea.vmem [#allocation2], %s432
        // Predicated region
        $region69: #{tpu_custom_call.1} parent=67 // pred_check
          %p434 = pneg %p52
        $region70: #{tpu_custom_call.1} parent=67 // pred_check_branch
          %436 = sbr.rel (%p434) target = $region72
        $region71: #{tpu_custom_call.1} parent=67 // pred_region
          %437 = dma.done %s430, 256
        $region72: #{tpu_custom_call.1} parent=67 // pred_fallthru
          _
        // Predicated region
        $region73: #{tpu_custom_call.1} parent=67 // pred_check
          %p438 = pneg %p115
        $region74: #{tpu_custom_call.1} parent=67 // pred_check_branch
          %440 = sbr.rel (%p438) target = $region76
        $region75: #{tpu_custom_call.1} parent=67 // pred_region
          %441 = dma.done [#allocation6], 6144
        $region76: #{tpu_custom_call.1} parent=67 // pred_fallthru
          _
        // Predicated region
        $region77: #{tpu_custom_call.1} parent=67 // pred_check
          %p442 = pneg %p136
        $region78: #{tpu_custom_call.1} parent=67 // pred_check_branch
          %444 = sbr.rel (%p442) target = $region80
        $region79: #{tpu_custom_call.1} parent=67 // pred_region
          %445 = dma.done [#allocation6], 2048
        $region80: #{tpu_custom_call.1} parent=67 // pred_fallthru
          _
        // Predicated region
        $region81: #{tpu_custom_call.1} parent=67 // pred_check
          %p446 = pneg %p220
        $region82: #{tpu_custom_call.1} parent=67 // pred_check_branch
          %448 = sbr.rel (%p446) target = $region84
        $region83: #{tpu_custom_call.1} parent=67 // pred_region
          %449 = dma.done [#allocation9], 8192
        $region84: #{tpu_custom_call.1} parent=67 // pred_fallthru
          _
        // Predicated region
        $region85: #{tpu_custom_call.1} parent=67 // pred_check
          %p450 = pneg %p262
        $region86: #{tpu_custom_call.1} parent=67 // pred_check_branch
          %452 = sbr.rel (%p450) target = $region88
        $region87: #{tpu_custom_call.1} parent=67 // pred_region
          %453 = dma.done [#allocation9], 8192
        $region88: #{tpu_custom_call.1} parent=67 // pred_fallthru
          _
        %s454 = sand.u32 %s39, 1
        %s455 = scalar_lea.sflag [#allocation3], %s454
        %s456 = sand.u32 %s39, 1
        %s457 = smul.addr %s456, 16
        %s458 = scalar_lea.vmem [#allocation2], %s457
        %p459 = pneg %p52
        %p460 = pneg %p49
        %p461 = pneg %p73
        %p462 = pneg %p70
        %p463 = pneg %p94
        %p464 = pneg %p91
        %p465 = pneg %p115
        %p466 = pneg %p112
        %p467 = pneg %p136
        %p468 = pneg %p133
        %p469 = pneg %p157
        %p470 = pneg %p154
        %p471 = pneg %p178
        %p472 = pneg %p175
        %p473 = pneg %p199
        %p474 = pneg %p196
        %p475 = pneg %p220
        %p476 = pneg %p217
        %p477 = pneg %p241
        %p478 = pneg %p238
        %p479 = pneg %p262
        %p480 = pneg %p259
        %p481 = pneg %p283
        %p482 = pneg %p280
        %p483 = pneg %p309
        %p484 = pneg %p306
        %s485 = sand.u32 %s296, 1
        %s486 = scalar_lea.sflag [#allocation4], %s485
        %s487 = sand.u32 %s296, 1
        %s488 = smul.addr %s487, 16
        %s489 = scalar_lea.vmem [#allocation11], %s488
        %s490 = smul.u32 2, %s31
        %s491 = smul.u32 2, %s31
        %v492 = vld [vmem:[%s433] sm:$0xff]
        %v493 = vld [vmem:[%s433 + $0x8] sm:$0xff]
        %v494 = vld [vmem:[%s1] sm:$0x1]
        %v495 = vld [vmem:[%s2] sm:$0x1]
        %496 = vadd.xlane.f32.xlu0 %v492
        %v497 = vpop.xlane.xlu0 %496
        %498 = vadd.xlane.f32.xlu0 %v493
        %v499 = vpop.xlane.xlu0 %498
        %v500 = vrcp.pop 128.0
        %v501 = vmul.f32 %v497, %v500
        %v502 = vmul.f32 %v499, %v500
        %v503 = vsub.f32 %v492, %v501
        %v504 = vsub.f32 %v493, %v502
        %v505 = vmul.f32 %v503, %v503
        %v506 = vmul.f32 %v504, %v504
        %507 = vadd.xlane.f32.xlu0 %v505
        %v508 = vpop.xlane.xlu0 %507
        %509 = vadd.xlane.f32.xlu0 %v506
        %v510 = vpop.xlane.xlu0 %509
        %v511 = vmul.f32 %v508, %v500
        %v512 = vmul.f32 %v510, %v500
        %v513 = vadd.f32 %v511, 1e-05
        %v514 = vadd.f32 %v512, 1e-05
        %v515 = vrsqrt.pop %v513
        %v516 = vrsqrt.pop %v514
        %v517 = vmul.f32 %v503, %v515
        %v518 = vmul.f32 %v504, %v516
        %v520 = vlaneseq
        %v521 = vshrl.u32 %v520, 7
        %v522 = vsub.s32 0, %v521
        %v523 = vrot.slane %v494, %v522
        %v525 = vmul.f32 %v517, %v523
        %v526 = vmul.f32 %v518, %v523
        %v528 = vlaneseq
        %v529 = vshrl.u32 %v528, 7
        %v530 = vsub.s32 0, %v529
        %v531 = vrot.slane %v495, %v530
        %v533 = vadd.f32 %v525, %v531
        %v534 = vadd.f32 %v526, %v531
        %v535 = vld [vmem:[#allocation5] sm:$0xff]
        %v536 = vld [vmem:[#allocation5 + $0x8] sm:$0xff]
        %v537 = vld [vmem:[#allocation5 + $0x10] sm:$0xff]
        %v538 = vld [vmem:[#allocation5 + $0x18] sm:$0xff]
        %v539 = vld [vmem:[#allocation5 + $0x20] sm:$0xff]
        %v540 = vld [vmem:[#allocation5 + $0x28] sm:$0xff]
        %v541 = vld [vmem:[#allocation5 + $0x30] sm:$0xff]
        %v542 = vld [vmem:[#allocation5 + $0x38] sm:$0xff]
        %v543 = vld [vmem:[#allocation5 + $0x40] sm:$0xff]
        %v544 = vld [vmem:[#allocation5 + $0x48] sm:$0xff]
        %v545 = vld [vmem:[#allocation5 + $0x50] sm:$0xff]
        %v546 = vld [vmem:[#allocation5 + $0x58] sm:$0xff]
        %v547 = vld [vmem:[#allocation5 + $0x60] sm:$0xff]
        %v548 = vld [vmem:[#allocation5 + $0x68] sm:$0xff]
        %v549 = vld [vmem:[#allocation5 + $0x70] sm:$0xff]
        %v550 = vld [vmem:[#allocation5 + $0x78] sm:$0xff]
        %v551 = vld [vmem:[#allocation5 + $0x80] sm:$0xff]
        %v552 = vld [vmem:[#allocation5 + $0x88] sm:$0xff]
        %v553 = vld [vmem:[#allocation5 + $0x90] sm:$0xff]
        %v554 = vld [vmem:[#allocation5 + $0x98] sm:$0xff]
        %v555 = vld [vmem:[#allocation5 + $0xa0] sm:$0xff]
        %v556 = vld [vmem:[#allocation5 + $0xa8] sm:$0xff]
        %v557 = vld [vmem:[#allocation5 + $0xb0] sm:$0xff]
        %v558 = vld [vmem:[#allocation5 + $0xb8] sm:$0xff]
        %v559 = vld [vmem:[#allocation5 + $0xc0] sm:$0xff]
        %v560 = vld [vmem:[#allocation5 + $0xc8] sm:$0xff]
        %v561 = vld [vmem:[#allocation5 + $0xd0] sm:$0xff]
        %v562 = vld [vmem:[#allocation5 + $0xd8] sm:$0xff]
        %v563 = vld [vmem:[#allocation5 + $0xe0] sm:$0xff]
        %v564 = vld [vmem:[#allocation5 + $0xe8] sm:$0xff]
        %v565 = vld [vmem:[#allocation5 + $0xf0] sm:$0xff]
        %v566 = vld [vmem:[#allocation5 + $0xf8] sm:$0xff]
        %v567 = vld [vmem:[#allocation5 + $0x100] sm:$0xff]
        %v568 = vld [vmem:[#allocation5 + $0x108] sm:$0xff]
        %v569 = vld [vmem:[#allocation5 + $0x110] sm:$0xff]
        %v570 = vld [vmem:[#allocation5 + $0x118] sm:$0xff]
        %v571 = vld [vmem:[#allocation5 + $0x120] sm:$0xff]
        %v572 = vld [vmem:[#allocation5 + $0x128] sm:$0xff]
        %v573 = vld [vmem:[#allocation5 + $0x130] sm:$0xff]
        %v574 = vld [vmem:[#allocation5 + $0x138] sm:$0xff]
        %v575 = vld [vmem:[#allocation5 + $0x140] sm:$0xff]
        %v576 = vld [vmem:[#allocation5 + $0x148] sm:$0xff]
        %v577 = vld [vmem:[#allocation5 + $0x150] sm:$0xff]
        %v578 = vld [vmem:[#allocation5 + $0x158] sm:$0xff]
        %v579 = vld [vmem:[#allocation5 + $0x160] sm:$0xff]
        %v580 = vld [vmem:[#allocation5 + $0x168] sm:$0xff]
        %v581 = vld [vmem:[#allocation5 + $0x170] sm:$0xff]
        %v582 = vld [vmem:[#allocation5 + $0x178] sm:$0xff]
        %583 = vmatprep.subr.mxu0 %v581
        %584 = vmatpush1.msra.mxu0 %v580
        %585 = vmatprep.subr.mxu0 %v578
        %586 = vmatpush1.msra.mxu0 %v577
        %587 = vmatprep.subr.mxu0 %v575
        %588 = vmatpush1.msra.mxu0 %v574
        %589 = vmatprep.subr.mxu0 %v572
        %590 = vmatpush1.msra.mxu0 %v571
        %591 = vmatprep.subr.mxu0 %v569
        %592 = vmatpush1.msra.mxu0 %v568
        %593 = vmatprep.subr.mxu0 %v566
        %594 = vmatpush1.msra.mxu0 %v565
        %595 = vmatprep.subr.mxu0 %v563
        %596 = vmatpush1.msra.mxu0 %v562
        %597 = vmatprep.subr.mxu0 %v560
        %598 = vmatpush1.msra.mxu0 %v559
        %599 = vmatprep.subr.mxu0 %v557
        %600 = vmatpush1.msra.mxu0 %v556
        %601 = vmatprep.subr.mxu0 %v554
        %602 = vmatpush1.msra.mxu0 %v553
        %603 = vmatprep.subr.mxu0 %v551
        %604 = vmatpush1.msra.mxu0 %v550
        %605 = vmatprep.subr.mxu0 %v548
        %606 = vmatpush1.msra.mxu0 %v547
        %607 = vmatprep.subr.mxu0 %v545
        %608 = vmatpush1.msra.mxu0 %v544
        %609 = vmatprep.subr.mxu0 %v542
        %610 = vmatpush1.msra.mxu0 %v541
        %611 = vmatprep.subr.mxu0 %v539
        %612 = vmatpush1.msra.mxu0 %v538
        %613 = vmatprep.subr.mxu0 %v536
        %614 = vmatpush1.msra.mxu0 %v535
        %615 = vmatprep.subr.mxu0 0.0
        %616 = vmatpush2.msra.mxu0 0.0
        %617 = vmatprep.subr.mxu0 0.0
        %618 = vmatpush2.msra.mxu0 0.0
        %619 = vmatprep.subr.mxu0 0.0
        %620 = vmatpush2.msra.mxu0 0.0
        %621 = vmatprep.subr.mxu0 0.0
        %622 = vmatpush2.msra.mxu0 0.0
        %623 = vmatprep.subr.mxu0 0.0
        %624 = vmatpush2.msra.mxu0 0.0
        %625 = vmatprep.subr.mxu0 0.0
        %626 = vmatpush2.msra.mxu0 0.0
        %627 = vmatprep.subr.mxu0 0.0
        %628 = vmatpush2.msra.mxu0 0.0
        %629 = vmatprep.subr.mxu0 0.0
        %630 = vmatpush2.msra.mxu0 0.0
        %631 = vmatprep.subr.mxu0 0.0
        %632 = vmatpush2.msra.mxu0 0.0
        %633 = vmatprep.subr.mxu0 0.0
        %634 = vmatpush2.msra.mxu0 0.0
        %635 = vmatprep.subr.mxu0 0.0
        %636 = vmatpush2.msra.mxu0 0.0
        %637 = vmatprep.subr.mxu0 0.0
        %638 = vmatpush2.msra.mxu0 0.0
        %639 = vmatprep.subr.mxu0 0.0
        %640 = vmatpush2.msra.mxu0 0.0
        %641 = vmatprep.subr.mxu0 0.0
        %642 = vmatpush2.msra.mxu0 0.0
        %643 = vmatprep.subr.mxu0 0.0
        %644 = vmatpush2.msra.mxu0 0.0
        %645 = vmatprep.subr.mxu0 0.0
        %646 = vmatpush2.msra.mxu0 0.0
        %647 = vmatprep.mubr.f32.mxu0 0.0
        %648 = vmatmul.mubr.f32.gmra.mxu0 %v533
        %v649 = vpop.f32.mrf.mxu0
        %v650 = vadd.f32 0.0, %v649
        %v651 = vpop.f32.mrf.mxu0
        %v652 = vadd.f32 0.0, %v651
        %653 = vmatprep.mubr.f32.mxu0 0.0
        %654 = vmatmul.mubr.f32.gmra.mxu0 %v534
        %v655 = vpop.f32.mrf.mxu0
        %v656 = vadd.f32 0.0, %v655
        %v657 = vpop.f32.mrf.mxu0
        %v658 = vadd.f32 0.0, %v657
        %659 = vdwg.mxu0
        %660 = vmatprep.subr.mxu0 0.0
        %661 = vmatpush1.msra.mxu0 %v582
        %662 = vmatprep.subr.mxu0 0.0
        %663 = vmatpush1.msra.mxu0 %v579
        %664 = vmatprep.subr.mxu0 0.0
        %665 = vmatpush1.msra.mxu0 %v576
        %666 = vmatprep.subr.mxu0 0.0
        %667 = vmatpush1.msra.mxu0 %v573
        %668 = vmatprep.subr.mxu0 0.0
        %669 = vmatpush1.msra.mxu0 %v570
        %670 = vmatprep.subr.mxu0 0.0
        %671 = vmatpush1.msra.mxu0 %v567
        %672 = vmatprep.subr.mxu0 0.0
        %673 = vmatpush1.msra.mxu0 %v564
        %674 = vmatprep.subr.mxu0 0.0
        %675 = vmatpush1.msra.mxu0 %v561
        %676 = vmatprep.subr.mxu0 0.0
        %677 = vmatpush1.msra.mxu0 %v558
        %678 = vmatprep.subr.mxu0 0.0
        %679 = vmatpush1.msra.mxu0 %v555
        %680 = vmatprep.subr.mxu0 0.0
        %681 = vmatpush1.msra.mxu0 %v552
        %682 = vmatprep.subr.mxu0 0.0
        %683 = vmatpush1.msra.mxu0 %v549
        %684 = vmatprep.subr.mxu0 0.0
        %685 = vmatpush1.msra.mxu0 %v546
        %686 = vmatprep.subr.mxu0 0.0
        %687 = vmatpush1.msra.mxu0 %v543
        %688 = vmatprep.subr.mxu0 0.0
        %689 = vmatpush1.msra.mxu0 %v540
        %690 = vmatprep.subr.mxu0 0.0
        %691 = vmatpush1.msra.mxu0 %v537
        %692 = vmatprep.subr.mxu0 0.0
        %693 = vmatpush2.msra.mxu0 0.0
        %694 = vmatprep.subr.mxu0 0.0
        %695 = vmatpush2.msra.mxu0 0.0
        %696 = vmatprep.subr.mxu0 0.0
        %697 = vmatpush2.msra.mxu0 0.0
        %698 = vmatprep.subr.mxu0 0.0
        %699 = vmatpush2.msra.mxu0 0.0
        %700 = vmatprep.subr.mxu0 0.0
        %701 = vmatpush2.msra.mxu0 0.0
        %702 = vmatprep.subr.mxu0 0.0
        %703 = vmatpush2.msra.mxu0 0.0
        %704 = vmatprep.subr.mxu0 0.0
        %705 = vmatpush2.msra.mxu0 0.0
        %706 = vmatprep.subr.mxu0 0.0
        %707 = vmatpush2.msra.mxu0 0.0
        %708 = vmatprep.subr.mxu0 0.0
        %709 = vmatpush2.msra.mxu0 0.0
        %710 = vmatprep.subr.mxu0 0.0
        %711 = vmatpush2.msra.mxu0 0.0
        %712 = vmatprep.subr.mxu0 0.0
        %713 = vmatpush2.msra.mxu0 0.0
        %714 = vmatprep.subr.mxu0 0.0
        %715 = vmatpush2.msra.mxu0 0.0
        %716 = vmatprep.subr.mxu0 0.0
        %717 = vmatpush2.msra.mxu0 0.0
        %718 = vmatprep.subr.mxu0 0.0
        %719 = vmatpush2.msra.mxu0 0.0
        %720 = vmatprep.subr.mxu0 0.0
        %721 = vmatpush2.msra.mxu0 0.0
        %722 = vmatprep.subr.mxu0 0.0
        %723 = vmatpush2.msra.mxu0 0.0
        %724 = vmatprep.mubr.f32.mxu0 0.0
        %725 = vmatmul.mubr.f32.gmra.mxu0 %v533
        %v726 = vpop.f32.mrf.mxu0
        %v727 = vadd.f32 0.0, %v726
        %v728 = vpop.f32.mrf.mxu0
        %729 = vmatprep.mubr.f32.mxu0 0.0
        %730 = vmatmul.mubr.f32.gmra.mxu0 %v534
        %v731 = vpop.f32.mrf.mxu0
        %v732 = vadd.f32 0.0, %v731
        %v733 = vpop.f32.mrf.mxu0
        %734 = vdwg.mxu0
        %737 = vrot.lane.b32.xlu0 %v650, 96
        %v738 = vpop.permute.xlu0 %737
        %739 = vrot.lane.b32.xlu0 %v656, 96
        %v740 = vpop.permute.xlu0 %739
        %743 = vrot.lane.b32.xlu0 %v650, 64
        %v744 = vpop.permute.xlu0 %743
        %745 = vrot.lane.b32.xlu0 %v656, 64
        %v746 = vpop.permute.xlu0 %745
        %749 = vrot.lane.b32.xlu0 %v650, 32
        %v750 = vpop.permute.xlu0 %749
        %751 = vrot.lane.b32.xlu0 %v656, 32
        %v752 = vpop.permute.xlu0 %751
        %757 = vrot.lane.b32.xlu0 %v652, 96
        %v758 = vpop.permute.xlu0 %757
        %759 = vrot.lane.b32.xlu0 %v658, 96
        %v760 = vpop.permute.xlu0 %759
        %761 = vrot.lane.b32.xlu0 %v652, 64
        %v762 = vpop.permute.xlu0 %761
        %763 = vrot.lane.b32.xlu0 %v658, 64
        %v764 = vpop.permute.xlu0 %763
        %765 = vrot.lane.b32.xlu0 %v652, 32
        %v766 = vpop.permute.xlu0 %765
        %767 = vrot.lane.b32.xlu0 %v658, 32
        %v768 = vpop.permute.xlu0 %767
        %771 = vrot.lane.b32.xlu0 %v727, 96
        %v772 = vpop.permute.xlu0 %771
        %773 = vrot.lane.b32.xlu0 %v732, 96
        %v774 = vpop.permute.xlu0 %773
        %775 = vrot.lane.b32.xlu0 %v727, 64
        %v776 = vpop.permute.xlu0 %775
        %777 = vrot.lane.b32.xlu0 %v732, 64
        %v778 = vpop.permute.xlu0 %777
        %779 = vrot.lane.b32.xlu0 %v727, 32
        %v780 = vpop.permute.xlu0 %779
        %781 = vrot.lane.b32.xlu0 %v732, 32
        %v782 = vpop.permute.xlu0 %781
        %v783 = vlaneseq
        %v784 = vshrl.u32 %v783, 7
        %v785 = vsub.s32 0, %v784
        %v786 = vrot.slane %v650, %v785
        %788 = vbcast.lane.b32.xlu0 %v786, 256
        %v789 = vpop.permute.xlu0 %788
        %s791 = sor.u32 256, 8
        %792 = vbcast.lane.b32.xlu0 %v786, %s791
        %v793 = vpop.permute.xlu0 %792
        %s795 = sor.u32 256, 16
        %796 = vbcast.lane.b32.xlu0 %v786, %s795
        %v797 = vpop.permute.xlu0 %796
        %s799 = sor.u32 256, 24
        %800 = vbcast.lane.b32.xlu0 %v786, %s799
        %v801 = vpop.permute.xlu0 %800
        %v802 = vlaneseq
        %v803 = vshrl.u32 %v802, 7
        %v804 = vsub.s32 1, %v803
        %v805 = vrot.slane %v650, %v804
        %807 = vbcast.lane.b32.xlu0 %v805, 256
        %v808 = vpop.permute.xlu0 %807
        %s810 = sor.u32 256, 8
        %811 = vbcast.lane.b32.xlu0 %v805, %s810
        %v812 = vpop.permute.xlu0 %811
        %s814 = sor.u32 256, 16
        %815 = vbcast.lane.b32.xlu0 %v805, %s814
        %v816 = vpop.permute.xlu0 %815
        %s818 = sor.u32 256, 24
        %819 = vbcast.lane.b32.xlu0 %v805, %s818
        %v820 = vpop.permute.xlu0 %819
        %v821 = vlaneseq
        %v822 = vshrl.u32 %v821, 7
        %v823 = vsub.s32 2, %v822
        %v824 = vrot.slane %v650, %v823
        %826 = vbcast.lane.b32.xlu0 %v824, 256
        %v827 = vpop.permute.xlu0 %826
        %s829 = sor.u32 256, 8
        %830 = vbcast.lane.b32.xlu0 %v824, %s829
        %v831 = vpop.permute.xlu0 %830
        %s833 = sor.u32 256, 16
        %834 = vbcast.lane.b32.xlu0 %v824, %s833
        %v835 = vpop.permute.xlu0 %834
        %s837 = sor.u32 256, 24
        %838 = vbcast.lane.b32.xlu0 %v824, %s837
        %v839 = vpop.permute.xlu0 %838
        %v840 = vlaneseq
        %v841 = vshrl.u32 %v840, 7
        %v842 = vsub.s32 3, %v841
        %v843 = vrot.slane %v650, %v842
        %845 = vbcast.lane.b32.xlu0 %v843, 256
        %v846 = vpop.permute.xlu0 %845
        %s848 = sor.u32 256, 8
        %849 = vbcast.lane.b32.xlu0 %v843, %s848
        %v850 = vpop.permute.xlu0 %849
        %s852 = sor.u32 256, 16
        %853 = vbcast.lane.b32.xlu0 %v843, %s852
        %v854 = vpop.permute.xlu0 %853
        %s856 = sor.u32 256, 24
        %857 = vbcast.lane.b32.xlu0 %v843, %s856
        %v858 = vpop.permute.xlu0 %857
        %v859 = vlaneseq
        %v860 = vshrl.u32 %v859, 7
        %v861 = vsub.s32 4, %v860
        %v862 = vrot.slane %v650, %v861
        %864 = vbcast.lane.b32.xlu0 %v862, 256
        %v865 = vpop.permute.xlu0 %864
        %s867 = sor.u32 256, 8
        %868 = vbcast.lane.b32.xlu0 %v862, %s867
        %v869 = vpop.permute.xlu0 %868
        %s871 = sor.u32 256, 16
        %872 = vbcast.lane.b32.xlu0 %v862, %s871
        %v873 = vpop.permute.xlu0 %872
        %s875 = sor.u32 256, 24
        %876 = vbcast.lane.b32.xlu0 %v862, %s875
        %v877 = vpop.permute.xlu0 %876
        %v878 = vlaneseq
        %v879 = vshrl.u32 %v878, 7
        %v880 = vsub.s32 5, %v879
        %v881 = vrot.slane %v650, %v880
        %883 = vbcast.lane.b32.xlu0 %v881, 256
        %v884 = vpop.permute.xlu0 %883
        %s886 = sor.u32 256, 8
        %887 = vbcast.lane.b32.xlu0 %v881, %s886
        %v888 = vpop.permute.xlu0 %887
        %s890 = sor.u32 256, 16
        %891 = vbcast.lane.b32.xlu0 %v881, %s890
        %v892 = vpop.permute.xlu0 %891
        %s894 = sor.u32 256, 24
        %895 = vbcast.lane.b32.xlu0 %v881, %s894
        %v896 = vpop.permute.xlu0 %895
        %v897 = vlaneseq
        %v898 = vshrl.u32 %v897, 7
        %v899 = vsub.s32 6, %v898
        %v900 = vrot.slane %v650, %v899
        %902 = vbcast.lane.b32.xlu0 %v900, 256
        %v903 = vpop.permute.xlu0 %902
        %s905 = sor.u32 256, 8
        %906 = vbcast.lane.b32.xlu0 %v900, %s905
        %v907 = vpop.permute.xlu0 %906
        %s909 = sor.u32 256, 16
        %910 = vbcast.lane.b32.xlu0 %v900, %s909
        %v911 = vpop.permute.xlu0 %910
        %s913 = sor.u32 256, 24
        %914 = vbcast.lane.b32.xlu0 %v900, %s913
        %v915 = vpop.permute.xlu0 %914
        %v916 = vlaneseq
        %v917 = vshrl.u32 %v916, 7
        %v918 = vsub.s32 7, %v917
        %v919 = vrot.slane %v650, %v918
        %921 = vbcast.lane.b32.xlu0 %v919, 256
        %v922 = vpop.permute.xlu0 %921
        %s924 = sor.u32 256, 8
        %925 = vbcast.lane.b32.xlu0 %v919, %s924
        %v926 = vpop.permute.xlu0 %925
        %s928 = sor.u32 256, 16
        %929 = vbcast.lane.b32.xlu0 %v919, %s928
        %v930 = vpop.permute.xlu0 %929
        %s932 = sor.u32 256, 24
        %933 = vbcast.lane.b32.xlu0 %v919, %s932
        %v934 = vpop.permute.xlu0 %933
        %v935 = vlaneseq
        %v936 = vshrl.u32 %v935, 7
        %v937 = vsub.s32 0, %v936
        %v938 = vrot.slane %v656, %v937
        %940 = vbcast.lane.b32.xlu0 %v938, 256
        %v941 = vpop.permute.xlu0 %940
        %s943 = sor.u32 256, 8
        %944 = vbcast.lane.b32.xlu0 %v938, %s943
        %v945 = vpop.permute.xlu0 %944
        %s947 = sor.u32 256, 16
        %948 = vbcast.lane.b32.xlu0 %v938, %s947
        %v949 = vpop.permute.xlu0 %948
        %s951 = sor.u32 256, 24
        %952 = vbcast.lane.b32.xlu0 %v938, %s951
        %v953 = vpop.permute.xlu0 %952
        %v954 = vlaneseq
        %v955 = vshrl.u32 %v954, 7
        %v956 = vsub.s32 1, %v955
        %v957 = vrot.slane %v656, %v956
        %959 = vbcast.lane.b32.xlu0 %v957, 256
        %v960 = vpop.permute.xlu0 %959
        %s962 = sor.u32 256, 8
        %963 = vbcast.lane.b32.xlu0 %v957, %s962
        %v964 = vpop.permute.xlu0 %963
        %s966 = sor.u32 256, 16
        %967 = vbcast.lane.b32.xlu0 %v957, %s966
        %v968 = vpop.permute.xlu0 %967
        %s970 = sor.u32 256, 24
        %971 = vbcast.lane.b32.xlu0 %v957, %s970
        %v972 = vpop.permute.xlu0 %971
        %v973 = vlaneseq
        %v974 = vshrl.u32 %v973, 7
        %v975 = vsub.s32 2, %v974
        %v976 = vrot.slane %v656, %v975
        %978 = vbcast.lane.b32.xlu0 %v976, 256
        %v979 = vpop.permute.xlu0 %978
        %s981 = sor.u32 256, 8
        %982 = vbcast.lane.b32.xlu0 %v976, %s981
        %v983 = vpop.permute.xlu0 %982
        %s985 = sor.u32 256, 16
        %986 = vbcast.lane.b32.xlu0 %v976, %s985
        %v987 = vpop.permute.xlu0 %986
        %s989 = sor.u32 256, 24
        %990 = vbcast.lane.b32.xlu0 %v976, %s989
        %v991 = vpop.permute.xlu0 %990
        %v992 = vlaneseq
        %v993 = vshrl.u32 %v992, 7
        %v994 = vsub.s32 3, %v993
        %v995 = vrot.slane %v656, %v994
        %997 = vbcast.lane.b32.xlu0 %v995, 256
        %v998 = vpop.permute.xlu0 %997
        %s1000 = sor.u32 256, 8
        %1001 = vbcast.lane.b32.xlu0 %v995, %s1000
        %v1002 = vpop.permute.xlu0 %1001
        %s1004 = sor.u32 256, 16
        %1005 = vbcast.lane.b32.xlu0 %v995, %s1004
        %v1006 = vpop.permute.xlu0 %1005
        %s1008 = sor.u32 256, 24
        %1009 = vbcast.lane.b32.xlu0 %v995, %s1008
        %v1010 = vpop.permute.xlu0 %1009
        %v1011 = vlaneseq
        %v1012 = vshrl.u32 %v1011, 7
        %v1013 = vsub.s32 4, %v1012
        %v1014 = vrot.slane %v656, %v1013
        %1016 = vbcast.lane.b32.xlu0 %v1014, 256
        %v1017 = vpop.permute.xlu0 %1016
        %s1019 = sor.u32 256, 8
        %1020 = vbcast.lane.b32.xlu0 %v1014, %s1019
        %v1021 = vpop.permute.xlu0 %1020
        %s1023 = sor.u32 256, 16
        %1024 = vbcast.lane.b32.xlu0 %v1014, %s1023
        %v1025 = vpop.permute.xlu0 %1024
        %s1027 = sor.u32 256, 24
        %1028 = vbcast.lane.b32.xlu0 %v1014, %s1027
        %v1029 = vpop.permute.xlu0 %1028
        %v1030 = vlaneseq
        %v1031 = vshrl.u32 %v1030, 7
        %v1032 = vsub.s32 5, %v1031
        %v1033 = vrot.slane %v656, %v1032
        %1035 = vbcast.lane.b32.xlu0 %v1033, 256
        %v1036 = vpop.permute.xlu0 %1035
        %s1038 = sor.u32 256, 8
        %1039 = vbcast.lane.b32.xlu0 %v1033, %s1038
        %v1040 = vpop.permute.xlu0 %1039
        %s1042 = sor.u32 256, 16
        %1043 = vbcast.lane.b32.xlu0 %v1033, %s1042
        %v1044 = vpop.permute.xlu0 %1043
        %s1046 = sor.u32 256, 24
        %1047 = vbcast.lane.b32.xlu0 %v1033, %s1046
        %v1048 = vpop.permute.xlu0 %1047
        %v1049 = vlaneseq
        %v1050 = vshrl.u32 %v1049, 7
        %v1051 = vsub.s32 6, %v1050
        %v1052 = vrot.slane %v656, %v1051
        %1054 = vbcast.lane.b32.xlu0 %v1052, 256
        %v1055 = vpop.permute.xlu0 %1054
        %s1057 = sor.u32 256, 8
        %1058 = vbcast.lane.b32.xlu0 %v1052, %s1057
        %v1059 = vpop.permute.xlu0 %1058
        %s1061 = sor.u32 256, 16
        %1062 = vbcast.lane.b32.xlu0 %v1052, %s1061
        %v1063 = vpop.permute.xlu0 %1062
        %s1065 = sor.u32 256, 24
        %1066 = vbcast.lane.b32.xlu0 %v1052, %s1065
        %v1067 = vpop.permute.xlu0 %1066
        %v1068 = vlaneseq
        %v1069 = vshrl.u32 %v1068, 7
        %v1070 = vsub.s32 7, %v1069
        %v1071 = vrot.slane %v656, %v1070
        %1073 = vbcast.lane.b32.xlu0 %v1071, 256
        %v1074 = vpop.permute.xlu0 %1073
        %s1076 = sor.u32 256, 8
        %1077 = vbcast.lane.b32.xlu0 %v1071, %s1076
        %v1078 = vpop.permute.xlu0 %1077
        %s1080 = sor.u32 256, 16
        %1081 = vbcast.lane.b32.xlu0 %v1071, %s1080
        %v1082 = vpop.permute.xlu0 %1081
        %s1084 = sor.u32 256, 24
        %1085 = vbcast.lane.b32.xlu0 %v1071, %s1084
        %v1086 = vpop.permute.xlu0 %1085
        %v1087 = vlaneseq
        %v1088 = vshrl.u32 %v1087, 7
        %v1089 = vsub.s32 0, %v1088
        %v1090 = vrot.slane %v738, %v1089
        %1092 = vbcast.lane.b32.xlu0 %v1090, 256
        %v1093 = vpop.permute.xlu0 %1092
        %s1095 = sor.u32 256, 8
        %1096 = vbcast.lane.b32.xlu0 %v1090, %s1095
        %v1097 = vpop.permute.xlu0 %1096
        %s1099 = sor.u32 256, 16
        %1100 = vbcast.lane.b32.xlu0 %v1090, %s1099
        %v1101 = vpop.permute.xlu0 %1100
        %s1103 = sor.u32 256, 24
        %1104 = vbcast.lane.b32.xlu0 %v1090, %s1103
        %v1105 = vpop.permute.xlu0 %1104
        %v1106 = vlaneseq
        %v1107 = vshrl.u32 %v1106, 7
        %v1108 = vsub.s32 1, %v1107
        %v1109 = vrot.slane %v738, %v1108
        %1111 = vbcast.lane.b32.xlu0 %v1109, 256
        %v1112 = vpop.permute.xlu0 %1111
        %s1114 = sor.u32 256, 8
        %1115 = vbcast.lane.b32.xlu0 %v1109, %s1114
        %v1116 = vpop.permute.xlu0 %1115
        %s1118 = sor.u32 256, 16
        %1119 = vbcast.lane.b32.xlu0 %v1109, %s1118
        %v1120 = vpop.permute.xlu0 %1119
        %s1122 = sor.u32 256, 24
        %1123 = vbcast.lane.b32.xlu0 %v1109, %s1122
        %v1124 = vpop.permute.xlu0 %1123
        %v1125 = vlaneseq
        %v1126 = vshrl.u32 %v1125, 7
        %v1127 = vsub.s32 2, %v1126
        %v1128 = vrot.slane %v738, %v1127
        %1130 = vbcast.lane.b32.xlu0 %v1128, 256
        %v1131 = vpop.permute.xlu0 %1130
        %s1133 = sor.u32 256, 8
        %1134 = vbcast.lane.b32.xlu0 %v1128, %s1133
        %v1135 = vpop.permute.xlu0 %1134
        %s1137 = sor.u32 256, 16
        %1138 = vbcast.lane.b32.xlu0 %v1128, %s1137
        %v1139 = vpop.permute.xlu0 %1138
        %s1141 = sor.u32 256, 24
        %1142 = vbcast.lane.b32.xlu0 %v1128, %s1141
        %v1143 = vpop.permute.xlu0 %1142
        %v1144 = vlaneseq
        %v1145 = vshrl.u32 %v1144, 7
        %v1146 = vsub.s32 3, %v1145
        %v1147 = vrot.slane %v738, %v1146
        %1149 = vbcast.lane.b32.xlu0 %v1147, 256
        %v1150 = vpop.permute.xlu0 %1149
        %s1152 = sor.u32 256, 8
        %1153 = vbcast.lane.b32.xlu0 %v1147, %s1152
        %v1154 = vpop.permute.xlu0 %1153
        %s1156 = sor.u32 256, 16
        %1157 = vbcast.lane.b32.xlu0 %v1147, %s1156
        %v1158 = vpop.permute.xlu0 %1157
        %s1160 = sor.u32 256, 24
        %1161 = vbcast.lane.b32.xlu0 %v1147, %s1160
        %v1162 = vpop.permute.xlu0 %1161
        %v1163 = vlaneseq
        %v1164 = vshrl.u32 %v1163, 7
        %v1165 = vsub.s32 4, %v1164
        %v1166 = vrot.slane %v738, %v1165
        %1168 = vbcast.lane.b32.xlu0 %v1166, 256
        %v1169 = vpop.permute.xlu0 %1168
        %s1171 = sor.u32 256, 8
        %1172 = vbcast.lane.b32.xlu0 %v1166, %s1171
        %v1173 = vpop.permute.xlu0 %1172
        %s1175 = sor.u32 256, 16
        %1176 = vbcast.lane.b32.xlu0 %v1166, %s1175
        %v1177 = vpop.permute.xlu0 %1176
        %s1179 = sor.u32 256, 24
        %1180 = vbcast.lane.b32.xlu0 %v1166, %s1179
        %v1181 = vpop.permute.xlu0 %1180
        %v1182 = vlaneseq
        %v1183 = vshrl.u32 %v1182, 7
        %v1184 = vsub.s32 5, %v1183
        %v1185 = vrot.slane %v738, %v1184
        %1187 = vbcast.lane.b32.xlu0 %v1185, 256
        %v1188 = vpop.permute.xlu0 %1187
        %s1190 = sor.u32 256, 8
        %1191 = vbcast.lane.b32.xlu0 %v1185, %s1190
        %v1192 = vpop.permute.xlu0 %1191
        %s1194 = sor.u32 256, 16
        %1195 = vbcast.lane.b32.xlu0 %v1185, %s1194
        %v1196 = vpop.permute.xlu0 %1195
        %s1198 = sor.u32 256, 24
        %1199 = vbcast.lane.b32.xlu0 %v1185, %s1198
        %v1200 = vpop.permute.xlu0 %1199
        %v1201 = vlaneseq
        %v1202 = vshrl.u32 %v1201, 7
        %v1203 = vsub.s32 6, %v1202
        %v1204 = vrot.slane %v738, %v1203
        %1206 = vbcast.lane.b32.xlu0 %v1204, 256
        %v1207 = vpop.permute.xlu0 %1206
        %s1209 = sor.u32 256, 8
        %1210 = vbcast.lane.b32.xlu0 %v1204, %s1209
        %v1211 = vpop.permute.xlu0 %1210
        %s1213 = sor.u32 256, 16
        %1214 = vbcast.lane.b32.xlu0 %v1204, %s1213
        %v1215 = vpop.permute.xlu0 %1214
        %s1217 = sor.u32 256, 24
        %1218 = vbcast.lane.b32.xlu0 %v1204, %s1217
        %v1219 = vpop.permute.xlu0 %1218
        %v1220 = vlaneseq
        %v1221 = vshrl.u32 %v1220, 7
        %v1222 = vsub.s32 7, %v1221
        %v1223 = vrot.slane %v738, %v1222
        %1225 = vbcast.lane.b32.xlu0 %v1223, 256
        %v1226 = vpop.permute.xlu0 %1225
        %s1228 = sor.u32 256, 8
        %1229 = vbcast.lane.b32.xlu0 %v1223, %s1228
        %v1230 = vpop.permute.xlu0 %1229
        %s1232 = sor.u32 256, 16
        %1233 = vbcast.lane.b32.xlu0 %v1223, %s1232
        %v1234 = vpop.permute.xlu0 %1233
        %s1236 = sor.u32 256, 24
        %1237 = vbcast.lane.b32.xlu0 %v1223, %s1236
        %v1238 = vpop.permute.xlu0 %1237
        %v1239 = vlaneseq
        %v1240 = vshrl.u32 %v1239, 7
        %v1241 = vsub.s32 0, %v1240
        %v1242 = vrot.slane %v740, %v1241
        %1244 = vbcast.lane.b32.xlu0 %v1242, 256
        %v1245 = vpop.permute.xlu0 %1244
        %s1247 = sor.u32 256, 8
        %1248 = vbcast.lane.b32.xlu0 %v1242, %s1247
        %v1249 = vpop.permute.xlu0 %1248
        %s1251 = sor.u32 256, 16
        %1252 = vbcast.lane.b32.xlu0 %v1242, %s1251
        %v1253 = vpop.permute.xlu0 %1252
        %s1255 = sor.u32 256, 24
        %1256 = vbcast.lane.b32.xlu0 %v1242, %s1255
        %v1257 = vpop.permute.xlu0 %1256
        %v1258 = vlaneseq
        %v1259 = vshrl.u32 %v1258, 7
        %v1260 = vsub.s32 1, %v1259
        %v1261 = vrot.slane %v740, %v1260
        %1263 = vbcast.lane.b32.xlu0 %v1261, 256
        %v1264 = vpop.permute.xlu0 %1263
        %s1266 = sor.u32 256, 8
        %1267 = vbcast.lane.b32.xlu0 %v1261, %s1266
        %v1268 = vpop.permute.xlu0 %1267
        %s1270 = sor.u32 256, 16
        %1271 = vbcast.lane.b32.xlu0 %v1261, %s1270
        %v1272 = vpop.permute.xlu0 %1271
        %s1274 = sor.u32 256, 24
        %1275 = vbcast.lane.b32.xlu0 %v1261, %s1274
        %v1276 = vpop.permute.xlu0 %1275
        %v1277 = vlaneseq
        %v1278 = vshrl.u32 %v1277, 7
        %v1279 = vsub.s32 2, %v1278
        %v1280 = vrot.slane %v740, %v1279
        %1282 = vbcast.lane.b32.xlu0 %v1280, 256
        %v1283 = vpop.permute.xlu0 %1282
        %s1285 = sor.u32 256, 8
        %1286 = vbcast.lane.b32.xlu0 %v1280, %s1285
        %v1287 = vpop.permute.xlu0 %1286
        %s1289 = sor.u32 256, 16
        %1290 = vbcast.lane.b32.xlu0 %v1280, %s1289
        %v1291 = vpop.permute.xlu0 %1290
        %s1293 = sor.u32 256, 24
        %1294 = vbcast.lane.b32.xlu0 %v1280, %s1293
        %v1295 = vpop.permute.xlu0 %1294
        %v1296 = vlaneseq
        %v1297 = vshrl.u32 %v1296, 7
        %v1298 = vsub.s32 3, %v1297
        %v1299 = vrot.slane %v740, %v1298
        %1301 = vbcast.lane.b32.xlu0 %v1299, 256
        %v1302 = vpop.permute.xlu0 %1301
        %s1304 = sor.u32 256, 8
        %1305 = vbcast.lane.b32.xlu0 %v1299, %s1304
        %v1306 = vpop.permute.xlu0 %1305
        %s1308 = sor.u32 256, 16
        %1309 = vbcast.lane.b32.xlu0 %v1299, %s1308
        %v1310 = vpop.permute.xlu0 %1309
        %s1312 = sor.u32 256, 24
        %1313 = vbcast.lane.b32.xlu0 %v1299, %s1312
        %v1314 = vpop.permute.xlu0 %1313
        %v1315 = vlaneseq
        %v1316 = vshrl.u32 %v1315, 7
        %v1317 = vsub.s32 4, %v1316
        %v1318 = vrot.slane %v740, %v1317
        %1320 = vbcast.lane.b32.xlu0 %v1318, 256
        %v1321 = vpop.permute.xlu0 %1320
        %s1323 = sor.u32 256, 8
        %1324 = vbcast.lane.b32.xlu0 %v1318, %s1323
        %v1325 = vpop.permute.xlu0 %1324
        %s1327 = sor.u32 256, 16
        %1328 = vbcast.lane.b32.xlu0 %v1318, %s1327
        %v1329 = vpop.permute.xlu0 %1328
        %s1331 = sor.u32 256, 24
        %1332 = vbcast.lane.b32.xlu0 %v1318, %s1331
        %v1333 = vpop.permute.xlu0 %1332
        %v1334 = vlaneseq
        %v1335 = vshrl.u32 %v1334, 7
        %v1336 = vsub.s32 5, %v1335
        %v1337 = vrot.slane %v740, %v1336
        %1339 = vbcast.lane.b32.xlu0 %v1337, 256
        %v1340 = vpop.permute.xlu0 %1339
        %s1342 = sor.u32 256, 8
        %1343 = vbcast.lane.b32.xlu0 %v1337, %s1342
        %v1344 = vpop.permute.xlu0 %1343
        %s1346 = sor.u32 256, 16
        %1347 = vbcast.lane.b32.xlu0 %v1337, %s1346
        %v1348 = vpop.permute.xlu0 %1347
        %s1350 = sor.u32 256, 24
        %1351 = vbcast.lane.b32.xlu0 %v1337, %s1350
        %v1352 = vpop.permute.xlu0 %1351
        %v1353 = vlaneseq
        %v1354 = vshrl.u32 %v1353, 7
        %v1355 = vsub.s32 6, %v1354
        %v1356 = vrot.slane %v740, %v1355
        %1358 = vbcast.lane.b32.xlu0 %v1356, 256
        %v1359 = vpop.permute.xlu0 %1358
        %s1361 = sor.u32 256, 8
        %1362 = vbcast.lane.b32.xlu0 %v1356, %s1361
        %v1363 = vpop.permute.xlu0 %1362
        %s1365 = sor.u32 256, 16
        %1366 = vbcast.lane.b32.xlu0 %v1356, %s1365
        %v1367 = vpop.permute.xlu0 %1366
        %s1369 = sor.u32 256, 24
        %1370 = vbcast.lane.b32.xlu0 %v1356, %s1369
        %v1371 = vpop.permute.xlu0 %1370
        %v1372 = vlaneseq
        %v1373 = vshrl.u32 %v1372, 7
        %v1374 = vsub.s32 7, %v1373
        %v1375 = vrot.slane %v740, %v1374
        %1377 = vbcast.lane.b32.xlu0 %v1375, 256
        %v1378 = vpop.permute.xlu0 %1377
        %s1380 = sor.u32 256, 8
        %1381 = vbcast.lane.b32.xlu0 %v1375, %s1380
        %v1382 = vpop.permute.xlu0 %1381
        %s1384 = sor.u32 256, 16
        %1385 = vbcast.lane.b32.xlu0 %v1375, %s1384
        %v1386 = vpop.permute.xlu0 %1385
        %s1388 = sor.u32 256, 24
        %1389 = vbcast.lane.b32.xlu0 %v1375, %s1388
        %v1390 = vpop.permute.xlu0 %1389
        %v1391 = vlaneseq
        %v1392 = vshrl.u32 %v1391, 7
        %v1393 = vsub.s32 0, %v1392
        %v1394 = vrot.slane %v744, %v1393
        %1396 = vbcast.lane.b32.xlu0 %v1394, 256
        %v1397 = vpop.permute.xlu0 %1396
        %s1399 = sor.u32 256, 8
        %1400 = vbcast.lane.b32.xlu0 %v1394, %s1399
        %v1401 = vpop.permute.xlu0 %1400
        %s1403 = sor.u32 256, 16
        %1404 = vbcast.lane.b32.xlu0 %v1394, %s1403
        %v1405 = vpop.permute.xlu0 %1404
        %s1407 = sor.u32 256, 24
        %1408 = vbcast.lane.b32.xlu0 %v1394, %s1407
        %v1409 = vpop.permute.xlu0 %1408
        %v1410 = vlaneseq
        %v1411 = vshrl.u32 %v1410, 7
        %v1412 = vsub.s32 1, %v1411
        %v1413 = vrot.slane %v744, %v1412
        %1415 = vbcast.lane.b32.xlu0 %v1413, 256
        %v1416 = vpop.permute.xlu0 %1415
        %s1418 = sor.u32 256, 8
        %1419 = vbcast.lane.b32.xlu0 %v1413, %s1418
        %v1420 = vpop.permute.xlu0 %1419
        %s1422 = sor.u32 256, 16
        %1423 = vbcast.lane.b32.xlu0 %v1413, %s1422
        %v1424 = vpop.permute.xlu0 %1423
        %s1426 = sor.u32 256, 24
        %1427 = vbcast.lane.b32.xlu0 %v1413, %s1426
        %v1428 = vpop.permute.xlu0 %1427
        %v1429 = vlaneseq
        %v1430 = vshrl.u32 %v1429, 7
        %v1431 = vsub.s32 2, %v1430
        %v1432 = vrot.slane %v744, %v1431
        %1434 = vbcast.lane.b32.xlu0 %v1432, 256
        %v1435 = vpop.permute.xlu0 %1434
        %s1437 = sor.u32 256, 8
        %1438 = vbcast.lane.b32.xlu0 %v1432, %s1437
        %v1439 = vpop.permute.xlu0 %1438
        %s1441 = sor.u32 256, 16
        %1442 = vbcast.lane.b32.xlu0 %v1432, %s1441
        %v1443 = vpop.permute.xlu0 %1442
        %s1445 = sor.u32 256, 24
        %1446 = vbcast.lane.b32.xlu0 %v1432, %s1445
        %v1447 = vpop.permute.xlu0 %1446
        %v1448 = vlaneseq
        %v1449 = vshrl.u32 %v1448, 7
        %v1450 = vsub.s32 3, %v1449
        %v1451 = vrot.slane %v744, %v1450
        %1453 = vbcast.lane.b32.xlu0 %v1451, 256
        %v1454 = vpop.permute.xlu0 %1453
        %s1456 = sor.u32 256, 8
        %1457 = vbcast.lane.b32.xlu0 %v1451, %s1456
        %v1458 = vpop.permute.xlu0 %1457
        %s1460 = sor.u32 256, 16
        %1461 = vbcast.lane.b32.xlu0 %v1451, %s1460
        %v1462 = vpop.permute.xlu0 %1461
        %s1464 = sor.u32 256, 24
        %1465 = vbcast.lane.b32.xlu0 %v1451, %s1464
        %v1466 = vpop.permute.xlu0 %1465
        %v1467 = vlaneseq
        %v1468 = vshrl.u32 %v1467, 7
        %v1469 = vsub.s32 4, %v1468
        %v1470 = vrot.slane %v744, %v1469
        %1472 = vbcast.lane.b32.xlu0 %v1470, 256
        %v1473 = vpop.permute.xlu0 %1472
        %s1475 = sor.u32 256, 8
        %1476 = vbcast.lane.b32.xlu0 %v1470, %s1475
        %v1477 = vpop.permute.xlu0 %1476
        %s1479 = sor.u32 256, 16
        %1480 = vbcast.lane.b32.xlu0 %v1470, %s1479
        %v1481 = vpop.permute.xlu0 %1480
        %s1483 = sor.u32 256, 24
        %1484 = vbcast.lane.b32.xlu0 %v1470, %s1483
        %v1485 = vpop.permute.xlu0 %1484
        %v1486 = vlaneseq
        %v1487 = vshrl.u32 %v1486, 7
        %v1488 = vsub.s32 5, %v1487
        %v1489 = vrot.slane %v744, %v1488
        %1491 = vbcast.lane.b32.xlu0 %v1489, 256
        %v1492 = vpop.permute.xlu0 %1491
        %s1494 = sor.u32 256, 8
        %1495 = vbcast.lane.b32.xlu0 %v1489, %s1494
        %v1496 = vpop.permute.xlu0 %1495
        %s1498 = sor.u32 256, 16
        %1499 = vbcast.lane.b32.xlu0 %v1489, %s1498
        %v1500 = vpop.permute.xlu0 %1499
        %s1502 = sor.u32 256, 24
        %1503 = vbcast.lane.b32.xlu0 %v1489, %s1502
        %v1504 = vpop.permute.xlu0 %1503
        %v1505 = vlaneseq
        %v1506 = vshrl.u32 %v1505, 7
        %v1507 = vsub.s32 6, %v1506
        %v1508 = vrot.slane %v744, %v1507
        %1510 = vbcast.lane.b32.xlu0 %v1508, 256
        %v1511 = vpop.permute.xlu0 %1510
        %s1513 = sor.u32 256, 8
        %1514 = vbcast.lane.b32.xlu0 %v1508, %s1513
        %v1515 = vpop.permute.xlu0 %1514
        %s1517 = sor.u32 256, 16
        %1518 = vbcast.lane.b32.xlu0 %v1508, %s1517
        %v1519 = vpop.permute.xlu0 %1518
        %s1521 = sor.u32 256, 24
        %1522 = vbcast.lane.b32.xlu0 %v1508, %s1521
        %v1523 = vpop.permute.xlu0 %1522
        %v1524 = vlaneseq
        %v1525 = vshrl.u32 %v1524, 7
        %v1526 = vsub.s32 7, %v1525
        %v1527 = vrot.slane %v744, %v1526
        %1529 = vbcast.lane.b32.xlu0 %v1527, 256
        %v1530 = vpop.permute.xlu0 %1529
        %s1532 = sor.u32 256, 8
        %1533 = vbcast.lane.b32.xlu0 %v1527, %s1532
        %v1534 = vpop.permute.xlu0 %1533
        %s1536 = sor.u32 256, 16
        %1537 = vbcast.lane.b32.xlu0 %v1527, %s1536
        %v1538 = vpop.permute.xlu0 %1537
        %s1540 = sor.u32 256, 24
        %1541 = vbcast.lane.b32.xlu0 %v1527, %s1540
        %v1542 = vpop.permute.xlu0 %1541
        %v1543 = vlaneseq
        %v1544 = vshrl.u32 %v1543, 7
        %v1545 = vsub.s32 0, %v1544
        %v1546 = vrot.slane %v746, %v1545
        %1548 = vbcast.lane.b32.xlu0 %v1546, 256
        %v1549 = vpop.permute.xlu0 %1548
        %s1551 = sor.u32 256, 8
        %1552 = vbcast.lane.b32.xlu0 %v1546, %s1551
        %v1553 = vpop.permute.xlu0 %1552
        %s1555 = sor.u32 256, 16
        %1556 = vbcast.lane.b32.xlu0 %v1546, %s1555
        %v1557 = vpop.permute.xlu0 %1556
        %s1559 = sor.u32 256, 24
        %1560 = vbcast.lane.b32.xlu0 %v1546, %s1559
        %v1561 = vpop.permute.xlu0 %1560
        %v1562 = vlaneseq
        %v1563 = vshrl.u32 %v1562, 7
        %v1564 = vsub.s32 1, %v1563
        %v1565 = vrot.slane %v746, %v1564
        %1567 = vbcast.lane.b32.xlu0 %v1565, 256
        %v1568 = vpop.permute.xlu0 %1567
        %s1570 = sor.u32 256, 8
        %1571 = vbcast.lane.b32.xlu0 %v1565, %s1570
        %v1572 = vpop.permute.xlu0 %1571
        %s1574 = sor.u32 256, 16
        %1575 = vbcast.lane.b32.xlu0 %v1565, %s1574
        %v1576 = vpop.permute.xlu0 %1575
        %s1578 = sor.u32 256, 24
        %1579 = vbcast.lane.b32.xlu0 %v1565, %s1578
        %v1580 = vpop.permute.xlu0 %1579
        %v1581 = vlaneseq
        %v1582 = vshrl.u32 %v1581, 7
        %v1583 = vsub.s32 2, %v1582
        %v1584 = vrot.slane %v746, %v1583
        %1586 = vbcast.lane.b32.xlu0 %v1584, 256
        %v1587 = vpop.permute.xlu0 %1586
        %s1589 = sor.u32 256, 8
        %1590 = vbcast.lane.b32.xlu0 %v1584, %s1589
        %v1591 = vpop.permute.xlu0 %1590
        %s1593 = sor.u32 256, 16
        %1594 = vbcast.lane.b32.xlu0 %v1584, %s1593
        %v1595 = vpop.permute.xlu0 %1594
        %s1597 = sor.u32 256, 24
        %1598 = vbcast.lane.b32.xlu0 %v1584, %s1597
        %v1599 = vpop.permute.xlu0 %1598
        %v1600 = vlaneseq
        %v1601 = vshrl.u32 %v1600, 7
        %v1602 = vsub.s32 3, %v1601
        %v1603 = vrot.slane %v746, %v1602
        %1605 = vbcast.lane.b32.xlu0 %v1603, 256
        %v1606 = vpop.permute.xlu0 %1605
        %s1608 = sor.u32 256, 8
        %1609 = vbcast.lane.b32.xlu0 %v1603, %s1608
        %v1610 = vpop.permute.xlu0 %1609
        %s1612 = sor.u32 256, 16
        %1613 = vbcast.lane.b32.xlu0 %v1603, %s1612
        %v1614 = vpop.permute.xlu0 %1613
        %s1616 = sor.u32 256, 24
        %1617 = vbcast.lane.b32.xlu0 %v1603, %s1616
        %v1618 = vpop.permute.xlu0 %1617
        %v1619 = vlaneseq
        %v1620 = vshrl.u32 %v1619, 7
        %v1621 = vsub.s32 4, %v1620
        %v1622 = vrot.slane %v746, %v1621
        %1624 = vbcast.lane.b32.xlu0 %v1622, 256
        %v1625 = vpop.permute.xlu0 %1624
        %s1627 = sor.u32 256, 8
        %1628 = vbcast.lane.b32.xlu0 %v1622, %s1627
        %v1629 = vpop.permute.xlu0 %1628
        %s1631 = sor.u32 256, 16
        %1632 = vbcast.lane.b32.xlu0 %v1622, %s1631
        %v1633 = vpop.permute.xlu0 %1632
        %s1635 = sor.u32 256, 24
        %1636 = vbcast.lane.b32.xlu0 %v1622, %s1635
        %v1637 = vpop.permute.xlu0 %1636
        %v1638 = vlaneseq
        %v1639 = vshrl.u32 %v1638, 7
        %v1640 = vsub.s32 5, %v1639
        %v1641 = vrot.slane %v746, %v1640
        %1643 = vbcast.lane.b32.xlu0 %v1641, 256
        %v1644 = vpop.permute.xlu0 %1643
        %s1646 = sor.u32 256, 8
        %1647 = vbcast.lane.b32.xlu0 %v1641, %s1646
        %v1648 = vpop.permute.xlu0 %1647
        %s1650 = sor.u32 256, 16
        %1651 = vbcast.lane.b32.xlu0 %v1641, %s1650
        %v1652 = vpop.permute.xlu0 %1651
        %s1654 = sor.u32 256, 24
        %1655 = vbcast.lane.b32.xlu0 %v1641, %s1654
        %v1656 = vpop.permute.xlu0 %1655
        %v1657 = vlaneseq
        %v1658 = vshrl.u32 %v1657, 7
        %v1659 = vsub.s32 6, %v1658
        %v1660 = vrot.slane %v746, %v1659
        %1662 = vbcast.lane.b32.xlu0 %v1660, 256
        %v1663 = vpop.permute.xlu0 %1662
        %s1665 = sor.u32 256, 8
        %1666 = vbcast.lane.b32.xlu0 %v1660, %s1665
        %v1667 = vpop.permute.xlu0 %1666
        %s1669 = sor.u32 256, 16
        %1670 = vbcast.lane.b32.xlu0 %v1660, %s1669
        %v1671 = vpop.permute.xlu0 %1670
        %s1673 = sor.u32 256, 24
        %1674 = vbcast.lane.b32.xlu0 %v1660, %s1673
        %v1675 = vpop.permute.xlu0 %1674
        %v1676 = vlaneseq
        %v1677 = vshrl.u32 %v1676, 7
        %v1678 = vsub.s32 7, %v1677
        %v1679 = vrot.slane %v746, %v1678
        %1681 = vbcast.lane.b32.xlu0 %v1679, 256
        %v1682 = vpop.permute.xlu0 %1681
        %s1684 = sor.u32 256, 8
        %1685 = vbcast.lane.b32.xlu0 %v1679, %s1684
        %v1686 = vpop.permute.xlu0 %1685
        %s1688 = sor.u32 256, 16
        %1689 = vbcast.lane.b32.xlu0 %v1679, %s1688
        %v1690 = vpop.permute.xlu0 %1689
        %s1692 = sor.u32 256, 24
        %1693 = vbcast.lane.b32.xlu0 %v1679, %s1692
        %v1694 = vpop.permute.xlu0 %1693
        %v1695 = vlaneseq
        %v1696 = vshrl.u32 %v1695, 7
        %v1697 = vsub.s32 0, %v1696
        %v1698 = vrot.slane %v750, %v1697
        %1700 = vbcast.lane.b32.xlu0 %v1698, 256
        %v1701 = vpop.permute.xlu0 %1700
        %s1703 = sor.u32 256, 8
        %1704 = vbcast.lane.b32.xlu0 %v1698, %s1703
        %v1705 = vpop.permute.xlu0 %1704
        %s1707 = sor.u32 256, 16
        %1708 = vbcast.lane.b32.xlu0 %v1698, %s1707
        %v1709 = vpop.permute.xlu0 %1708
        %s1711 = sor.u32 256, 24
        %1712 = vbcast.lane.b32.xlu0 %v1698, %s1711
        %v1713 = vpop.permute.xlu0 %1712
        %v1714 = vlaneseq
        %v1715 = vshrl.u32 %v1714, 7
        %v1716 = vsub.s32 1, %v1715
        %v1717 = vrot.slane %v750, %v1716
        %1719 = vbcast.lane.b32.xlu0 %v1717, 256
        %v1720 = vpop.permute.xlu0 %1719
        %s1722 = sor.u32 256, 8
        %1723 = vbcast.lane.b32.xlu0 %v1717, %s1722
        %v1724 = vpop.permute.xlu0 %1723
        %s1726 = sor.u32 256, 16
        %1727 = vbcast.lane.b32.xlu0 %v1717, %s1726
        %v1728 = vpop.permute.xlu0 %1727
        %s1730 = sor.u32 256, 24
        %1731 = vbcast.lane.b32.xlu0 %v1717, %s1730
        %v1732 = vpop.permute.xlu0 %1731
        %v1733 = vlaneseq
        %v1734 = vshrl.u32 %v1733, 7
        %v1735 = vsub.s32 2, %v1734
        %v1736 = vrot.slane %v750, %v1735
        %1738 = vbcast.lane.b32.xlu0 %v1736, 256
        %v1739 = vpop.permute.xlu0 %1738
        %s1741 = sor.u32 256, 8
        %1742 = vbcast.lane.b32.xlu0 %v1736, %s1741
        %v1743 = vpop.permute.xlu0 %1742
        %s1745 = sor.u32 256, 16
        %1746 = vbcast.lane.b32.xlu0 %v1736, %s1745
        %v1747 = vpop.permute.xlu0 %1746
        %s1749 = sor.u32 256, 24
        %1750 = vbcast.lane.b32.xlu0 %v1736, %s1749
        %v1751 = vpop.permute.xlu0 %1750
        %v1752 = vlaneseq
        %v1753 = vshrl.u32 %v1752, 7
        %v1754 = vsub.s32 3, %v1753
        %v1755 = vrot.slane %v750, %v1754
        %1757 = vbcast.lane.b32.xlu0 %v1755, 256
        %v1758 = vpop.permute.xlu0 %1757
        %s1760 = sor.u32 256, 8
        %1761 = vbcast.lane.b32.xlu0 %v1755, %s1760
        %v1762 = vpop.permute.xlu0 %1761
        %s1764 = sor.u32 256, 16
        %1765 = vbcast.lane.b32.xlu0 %v1755, %s1764
        %v1766 = vpop.permute.xlu0 %1765
        %s1768 = sor.u32 256, 24
        %1769 = vbcast.lane.b32.xlu0 %v1755, %s1768
        %v1770 = vpop.permute.xlu0 %1769
        %v1771 = vlaneseq
        %v1772 = vshrl.u32 %v1771, 7
        %v1773 = vsub.s32 4, %v1772
        %v1774 = vrot.slane %v750, %v1773
        %1776 = vbcast.lane.b32.xlu0 %v1774, 256
        %v1777 = vpop.permute.xlu0 %1776
        %s1779 = sor.u32 256, 8
        %1780 = vbcast.lane.b32.xlu0 %v1774, %s1779
        %v1781 = vpop.permute.xlu0 %1780
        %s1783 = sor.u32 256, 16
        %1784 = vbcast.lane.b32.xlu0 %v1774, %s1783
        %v1785 = vpop.permute.xlu0 %1784
        %s1787 = sor.u32 256, 24
        %1788 = vbcast.lane.b32.xlu0 %v1774, %s1787
        %v1789 = vpop.permute.xlu0 %1788
        %v1790 = vlaneseq
        %v1791 = vshrl.u32 %v1790, 7
        %v1792 = vsub.s32 5, %v1791
        %v1793 = vrot.slane %v750, %v1792
        %1795 = vbcast.lane.b32.xlu0 %v1793, 256
        %v1796 = vpop.permute.xlu0 %1795
        %s1798 = sor.u32 256, 8
        %1799 = vbcast.lane.b32.xlu0 %v1793, %s1798
        %v1800 = vpop.permute.xlu0 %1799
        %s1802 = sor.u32 256, 16
        %1803 = vbcast.lane.b32.xlu0 %v1793, %s1802
        %v1804 = vpop.permute.xlu0 %1803
        %s1806 = sor.u32 256, 24
        %1807 = vbcast.lane.b32.xlu0 %v1793, %s1806
        %v1808 = vpop.permute.xlu0 %1807
        %v1809 = vlaneseq
        %v1810 = vshrl.u32 %v1809, 7
        %v1811 = vsub.s32 6, %v1810
        %v1812 = vrot.slane %v750, %v1811
        %1814 = vbcast.lane.b32.xlu0 %v1812, 256
        %v1815 = vpop.permute.xlu0 %1814
        %s1817 = sor.u32 256, 8
        %1818 = vbcast.lane.b32.xlu0 %v1812, %s1817
        %v1819 = vpop.permute.xlu0 %1818
        %s1821 = sor.u32 256, 16
        %1822 = vbcast.lane.b32.xlu0 %v1812, %s1821
        %v1823 = vpop.permute.xlu0 %1822
        %s1825 = sor.u32 256, 24
        %1826 = vbcast.lane.b32.xlu0 %v1812, %s1825
        %v1827 = vpop.permute.xlu0 %1826
        %v1828 = vlaneseq
        %v1829 = vshrl.u32 %v1828, 7
        %v1830 = vsub.s32 7, %v1829
        %v1831 = vrot.slane %v750, %v1830
        %1833 = vbcast.lane.b32.xlu0 %v1831, 256
        %v1834 = vpop.permute.xlu0 %1833
        %s1836 = sor.u32 256, 8
        %1837 = vbcast.lane.b32.xlu0 %v1831, %s1836
        %v1838 = vpop.permute.xlu0 %1837
        %s1840 = sor.u32 256, 16
        %1841 = vbcast.lane.b32.xlu0 %v1831, %s1840
        %v1842 = vpop.permute.xlu0 %1841
        %s1844 = sor.u32 256, 24
        %1845 = vbcast.lane.b32.xlu0 %v1831, %s1844
        %v1846 = vpop.permute.xlu0 %1845
        %v1847 = vlaneseq
        %v1848 = vshrl.u32 %v1847, 7
        %v1849 = vsub.s32 0, %v1848
        %v1850 = vrot.slane %v752, %v1849
        %1852 = vbcast.lane.b32.xlu0 %v1850, 256
        %v1853 = vpop.permute.xlu0 %1852
        %s1855 = sor.u32 256, 8
        %1856 = vbcast.lane.b32.xlu0 %v1850, %s1855
        %v1857 = vpop.permute.xlu0 %1856
        %s1859 = sor.u32 256, 16
        %1860 = vbcast.lane.b32.xlu0 %v1850, %s1859
        %v1861 = vpop.permute.xlu0 %1860
        %s1863 = sor.u32 256, 24
        %1864 = vbcast.lane.b32.xlu0 %v1850, %s1863
        %v1865 = vpop.permute.xlu0 %1864
        %v1866 = vlaneseq
        %v1867 = vshrl.u32 %v1866, 7
        %v1868 = vsub.s32 1, %v1867
        %v1869 = vrot.slane %v752, %v1868
        %1871 = vbcast.lane.b32.xlu0 %v1869, 256
        %v1872 = vpop.permute.xlu0 %1871
        %s1874 = sor.u32 256, 8
        %1875 = vbcast.lane.b32.xlu0 %v1869, %s1874
        %v1876 = vpop.permute.xlu0 %1875
        %s1878 = sor.u32 256, 16
        %1879 = vbcast.lane.b32.xlu0 %v1869, %s1878
        %v1880 = vpop.permute.xlu0 %1879
        %s1882 = sor.u32 256, 24
        %1883 = vbcast.lane.b32.xlu0 %v1869, %s1882
        %v1884 = vpop.permute.xlu0 %1883
        %v1885 = vlaneseq
        %v1886 = vshrl.u32 %v1885, 7
        %v1887 = vsub.s32 2, %v1886
        %v1888 = vrot.slane %v752, %v1887
        %1890 = vbcast.lane.b32.xlu0 %v1888, 256
        %v1891 = vpop.permute.xlu0 %1890
        %s1893 = sor.u32 256, 8
        %1894 = vbcast.lane.b32.xlu0 %v1888, %s1893
        %v1895 = vpop.permute.xlu0 %1894
        %s1897 = sor.u32 256, 16
        %1898 = vbcast.lane.b32.xlu0 %v1888, %s1897
        %v1899 = vpop.permute.xlu0 %1898
        %s1901 = sor.u32 256, 24
        %1902 = vbcast.lane.b32.xlu0 %v1888, %s1901
        %v1903 = vpop.permute.xlu0 %1902
        %v1904 = vlaneseq
        %v1905 = vshrl.u32 %v1904, 7
        %v1906 = vsub.s32 3, %v1905
        %v1907 = vrot.slane %v752, %v1906
        %1909 = vbcast.lane.b32.xlu0 %v1907, 256
        %v1910 = vpop.permute.xlu0 %1909
        %s1912 = sor.u32 256, 8
        %1913 = vbcast.lane.b32.xlu0 %v1907, %s1912
        %v1914 = vpop.permute.xlu0 %1913
        %s1916 = sor.u32 256, 16
        %1917 = vbcast.lane.b32.xlu0 %v1907, %s1916
        %v1918 = vpop.permute.xlu0 %1917
        %s1920 = sor.u32 256, 24
        %1921 = vbcast.lane.b32.xlu0 %v1907, %s1920
        %v1922 = vpop.permute.xlu0 %1921
        %v1923 = vlaneseq
        %v1924 = vshrl.u32 %v1923, 7
        %v1925 = vsub.s32 4, %v1924
        %v1926 = vrot.slane %v752, %v1925
        %1928 = vbcast.lane.b32.xlu0 %v1926, 256
        %v1929 = vpop.permute.xlu0 %1928
        %s1931 = sor.u32 256, 8
        %1932 = vbcast.lane.b32.xlu0 %v1926, %s1931
        %v1933 = vpop.permute.xlu0 %1932
        %s1935 = sor.u32 256, 16
        %1936 = vbcast.lane.b32.xlu0 %v1926, %s1935
        %v1937 = vpop.permute.xlu0 %1936
        %s1939 = sor.u32 256, 24
        %1940 = vbcast.lane.b32.xlu0 %v1926, %s1939
        %v1941 = vpop.permute.xlu0 %1940
        %v1942 = vlaneseq
        %v1943 = vshrl.u32 %v1942, 7
        %v1944 = vsub.s32 5, %v1943
        %v1945 = vrot.slane %v752, %v1944
        %1947 = vbcast.lane.b32.xlu0 %v1945, 256
        %v1948 = vpop.permute.xlu0 %1947
        %s1950 = sor.u32 256, 8
        %1951 = vbcast.lane.b32.xlu0 %v1945, %s1950
        %v1952 = vpop.permute.xlu0 %1951
        %s1954 = sor.u32 256, 16
        %1955 = vbcast.lane.b32.xlu0 %v1945, %s1954
        %v1956 = vpop.permute.xlu0 %1955
        %s1958 = sor.u32 256, 24
        %1959 = vbcast.lane.b32.xlu0 %v1945, %s1958
        %v1960 = vpop.permute.xlu0 %1959
        %v1961 = vlaneseq
        %v1962 = vshrl.u32 %v1961, 7
        %v1963 = vsub.s32 6, %v1962
        %v1964 = vrot.slane %v752, %v1963
        %1966 = vbcast.lane.b32.xlu0 %v1964, 256
        %v1967 = vpop.permute.xlu0 %1966
        %s1969 = sor.u32 256, 8
        %1970 = vbcast.lane.b32.xlu0 %v1964, %s1969
        %v1971 = vpop.permute.xlu0 %1970
        %s1973 = sor.u32 256, 16
        %1974 = vbcast.lane.b32.xlu0 %v1964, %s1973
        %v1975 = vpop.permute.xlu0 %1974
        %s1977 = sor.u32 256, 24
        %1978 = vbcast.lane.b32.xlu0 %v1964, %s1977
        %v1979 = vpop.permute.xlu0 %1978
        %v1980 = vlaneseq
        %v1981 = vshrl.u32 %v1980, 7
        %v1982 = vsub.s32 7, %v1981
        %v1983 = vrot.slane %v752, %v1982
        %1985 = vbcast.lane.b32.xlu0 %v1983, 256
        %v1986 = vpop.permute.xlu0 %1985
        %s1988 = sor.u32 256, 8
        %1989 = vbcast.lane.b32.xlu0 %v1983, %s1988
        %v1990 = vpop.permute.xlu0 %1989
        %s1992 = sor.u32 256, 16
        %1993 = vbcast.lane.b32.xlu0 %v1983, %s1992
        %v1994 = vpop.permute.xlu0 %1993
        %s1996 = sor.u32 256, 24
        %1997 = vbcast.lane.b32.xlu0 %v1983, %s1996
        %v1998 = vpop.permute.xlu0 %1997
        %v1999 = vcombine.high %v652, %v652
        %v2001 = vunpack.c.l.s4 1966171168
        %v2002 = vunpack.c.0.s8 %v2001
        %v2003 = vlaneseq
        %v2004 = vshrl.u32 %v2003, 7
        %v2005 = vsub.s32 %v2002, %v2004
        %v2006 = vrot.slane %v652, %v2005
        %v2008 = vunpack.c.l.s4 1966171168
        %v2009 = vunpack.c.0.s8 %v2008
        %v2010 = vlaneseq
        %v2011 = vshrl.u32 %v2010, 7
        %v2012 = vsub.s32 %v2009, %v2011
        %v2013 = vrot.slane %v1999, %v2012
        %v2014 = vcombine.high %v2006, %v2006
        %v2015 = vcombine.high %v2013, %v2013
        %v2017 = vunpack.c.l.s4 1966171168
        %v2018 = vunpack.c.0.s8 %v2017
        %v2019 = vlaneseq
        %v2020 = vshrl.u32 %v2019, 7
        %v2021 = vsub.s32 %v2018, %v2020
        %v2022 = vrot.slane %v2006, %v2021
        %v2024 = vunpack.c.l.s4 1966171168
        %v2025 = vunpack.c.0.s8 %v2024
        %v2026 = vlaneseq
        %v2027 = vshrl.u32 %v2026, 7
        %v2028 = vsub.s32 %v2025, %v2027
        %v2029 = vrot.slane %v2013, %v2028
        %v2031 = vunpack.c.l.s4 1966171168
        %v2032 = vunpack.c.0.s8 %v2031
        %v2033 = vlaneseq
        %v2034 = vshrl.u32 %v2033, 7
        %v2035 = vsub.s32 %v2032, %v2034
        %v2036 = vrot.slane %v2014, %v2035
        %v2038 = vunpack.c.l.s4 1966171168
        %v2039 = vunpack.c.0.s8 %v2038
        %v2040 = vlaneseq
        %v2041 = vshrl.u32 %v2040, 7
        %v2042 = vsub.s32 %v2039, %v2041
        %v2043 = vrot.slane %v2015, %v2042
        %v2044 = vcombine.high %v2022, %v2022
        %v2045 = vcombine.high %v2029, %v2029
        %v2046 = vcombine.high %v2036, %v2036
        %v2047 = vcombine.high %v2043, %v2043
        %v2048 = vcombine.high %v658, %v658
        %v2050 = vunpack.c.l.s4 1966171168
        %v2051 = vunpack.c.0.s8 %v2050
        %v2052 = vlaneseq
        %v2053 = vshrl.u32 %v2052, 7
        %v2054 = vsub.s32 %v2051, %v2053
        %v2055 = vrot.slane %v658, %v2054
        %v2057 = vunpack.c.l.s4 1966171168
        %v2058 = vunpack.c.0.s8 %v2057
        %v2059 = vlaneseq
        %v2060 = vshrl.u32 %v2059, 7
        %v2061 = vsub.s32 %v2058, %v2060
        %v2062 = vrot.slane %v2048, %v2061
        %v2063 = vcombine.high %v2055, %v2055
        %v2064 = vcombine.high %v2062, %v2062
        %v2066 = vunpack.c.l.s4 1966171168
        %v2067 = vunpack.c.0.s8 %v2066
        %v2068 = vlaneseq
        %v2069 = vshrl.u32 %v2068, 7
        %v2070 = vsub.s32 %v2067, %v2069
        %v2071 = vrot.slane %v2055, %v2070
        %v2073 = vunpack.c.l.s4 1966171168
        %v2074 = vunpack.c.0.s8 %v2073
        %v2075 = vlaneseq
        %v2076 = vshrl.u32 %v2075, 7
        %v2077 = vsub.s32 %v2074, %v2076
        %v2078 = vrot.slane %v2062, %v2077
        %v2080 = vunpack.c.l.s4 1966171168
        %v2081 = vunpack.c.0.s8 %v2080
        %v2082 = vlaneseq
        %v2083 = vshrl.u32 %v2082, 7
        %v2084 = vsub.s32 %v2081, %v2083
        %v2085 = vrot.slane %v2063, %v2084
        %v2087 = vunpack.c.l.s4 1966171168
        %v2088 = vunpack.c.0.s8 %v2087
        %v2089 = vlaneseq
        %v2090 = vshrl.u32 %v2089, 7
        %v2091 = vsub.s32 %v2088, %v2090
        %v2092 = vrot.slane %v2064, %v2091
        %v2093 = vcombine.high %v2071, %v2071
        %v2094 = vcombine.high %v2078, %v2078
        %v2095 = vcombine.high %v2085, %v2085
        %v2096 = vcombine.high %v2092, %v2092
        %v2097 = vcombine.high %v758, %v758
        %v2099 = vunpack.c.l.s4 1966171168
        %v2100 = vunpack.c.0.s8 %v2099
        %v2101 = vlaneseq
        %v2102 = vshrl.u32 %v2101, 7
        %v2103 = vsub.s32 %v2100, %v2102
        %v2104 = vrot.slane %v758, %v2103
        %v2106 = vunpack.c.l.s4 1966171168
        %v2107 = vunpack.c.0.s8 %v2106
        %v2108 = vlaneseq
        %v2109 = vshrl.u32 %v2108, 7
        %v2110 = vsub.s32 %v2107, %v2109
        %v2111 = vrot.slane %v2097, %v2110
        %v2112 = vcombine.high %v2104, %v2104
        %v2113 = vcombine.high %v2111, %v2111
        %v2115 = vunpack.c.l.s4 1966171168
        %v2116 = vunpack.c.0.s8 %v2115
        %v2117 = vlaneseq
        %v2118 = vshrl.u32 %v2117, 7
        %v2119 = vsub.s32 %v2116, %v2118
        %v2120 = vrot.slane %v2104, %v2119
        %v2122 = vunpack.c.l.s4 1966171168
        %v2123 = vunpack.c.0.s8 %v2122
        %v2124 = vlaneseq
        %v2125 = vshrl.u32 %v2124, 7
        %v2126 = vsub.s32 %v2123, %v2125
        %v2127 = vrot.slane %v2111, %v2126
        %v2129 = vunpack.c.l.s4 1966171168
        %v2130 = vunpack.c.0.s8 %v2129
        %v2131 = vlaneseq
        %v2132 = vshrl.u32 %v2131, 7
        %v2133 = vsub.s32 %v2130, %v2132
        %v2134 = vrot.slane %v2112, %v2133
        %v2136 = vunpack.c.l.s4 1966171168
        %v2137 = vunpack.c.0.s8 %v2136
        %v2138 = vlaneseq
        %v2139 = vshrl.u32 %v2138, 7
        %v2140 = vsub.s32 %v2137, %v2139
        %v2141 = vrot.slane %v2113, %v2140
        %v2142 = vcombine.high %v2120, %v2120
        %v2143 = vcombine.high %v2127, %v2127
        %v2144 = vcombine.high %v2134, %v2134
        %v2145 = vcombine.high %v2141, %v2141
        %v2146 = vcombine.high %v760, %v760
        %v2148 = vunpack.c.l.s4 1966171168
        %v2149 = vunpack.c.0.s8 %v2148
        %v2150 = vlaneseq
        %v2151 = vshrl.u32 %v2150, 7
        %v2152 = vsub.s32 %v2149, %v2151
        %v2153 = vrot.slane %v760, %v2152
        %v2155 = vunpack.c.l.s4 1966171168
        %v2156 = vunpack.c.0.s8 %v2155
        %v2157 = vlaneseq
        %v2158 = vshrl.u32 %v2157, 7
        %v2159 = vsub.s32 %v2156, %v2158
        %v2160 = vrot.slane %v2146, %v2159
        %v2161 = vcombine.high %v2153, %v2153
        %v2162 = vcombine.high %v2160, %v2160
        %v2164 = vunpack.c.l.s4 1966171168
        %v2165 = vunpack.c.0.s8 %v2164
        %v2166 = vlaneseq
        %v2167 = vshrl.u32 %v2166, 7
        %v2168 = vsub.s32 %v2165, %v2167
        %v2169 = vrot.slane %v2153, %v2168
        %v2171 = vunpack.c.l.s4 1966171168
        %v2172 = vunpack.c.0.s8 %v2171
        %v2173 = vlaneseq
        %v2174 = vshrl.u32 %v2173, 7
        %v2175 = vsub.s32 %v2172, %v2174
        %v2176 = vrot.slane %v2160, %v2175
        %v2178 = vunpack.c.l.s4 1966171168
        %v2179 = vunpack.c.0.s8 %v2178
        %v2180 = vlaneseq
        %v2181 = vshrl.u32 %v2180, 7
        %v2182 = vsub.s32 %v2179, %v2181
        %v2183 = vrot.slane %v2161, %v2182
        %v2185 = vunpack.c.l.s4 1966171168
        %v2186 = vunpack.c.0.s8 %v2185
        %v2187 = vlaneseq
        %v2188 = vshrl.u32 %v2187, 7
        %v2189 = vsub.s32 %v2186, %v2188
        %v2190 = vrot.slane %v2162, %v2189
        %v2191 = vcombine.high %v2169, %v2169
        %v2192 = vcombine.high %v2176, %v2176
        %v2193 = vcombine.high %v2183, %v2183
        %v2194 = vcombine.high %v2190, %v2190
        %v2195 = vcombine.high %v762, %v762
        %v2197 = vunpack.c.l.s4 1966171168
        %v2198 = vunpack.c.0.s8 %v2197
        %v2199 = vlaneseq
        %v2200 = vshrl.u32 %v2199, 7
        %v2201 = vsub.s32 %v2198, %v2200
        %v2202 = vrot.slane %v762, %v2201
        %v2204 = vunpack.c.l.s4 1966171168
        %v2205 = vunpack.c.0.s8 %v2204
        %v2206 = vlaneseq
        %v2207 = vshrl.u32 %v2206, 7
        %v2208 = vsub.s32 %v2205, %v2207
        %v2209 = vrot.slane %v2195, %v2208
        %v2210 = vcombine.high %v2202, %v2202
        %v2211 = vcombine.high %v2209, %v2209
        %v2213 = vunpack.c.l.s4 1966171168
        %v2214 = vunpack.c.0.s8 %v2213
        %v2215 = vlaneseq
        %v2216 = vshrl.u32 %v2215, 7
        %v2217 = vsub.s32 %v2214, %v2216
        %v2218 = vrot.slane %v2202, %v2217
        %v2220 = vunpack.c.l.s4 1966171168
        %v2221 = vunpack.c.0.s8 %v2220
        %v2222 = vlaneseq
        %v2223 = vshrl.u32 %v2222, 7
        %v2224 = vsub.s32 %v2221, %v2223
        %v2225 = vrot.slane %v2209, %v2224
        %v2227 = vunpack.c.l.s4 1966171168
        %v2228 = vunpack.c.0.s8 %v2227
        %v2229 = vlaneseq
        %v2230 = vshrl.u32 %v2229, 7
        %v2231 = vsub.s32 %v2228, %v2230
        %v2232 = vrot.slane %v2210, %v2231
        %v2234 = vunpack.c.l.s4 1966171168
        %v2235 = vunpack.c.0.s8 %v2234
        %v2236 = vlaneseq
        %v2237 = vshrl.u32 %v2236, 7
        %v2238 = vsub.s32 %v2235, %v2237
        %v2239 = vrot.slane %v2211, %v2238
        %v2240 = vcombine.high %v2218, %v2218
        %v2241 = vcombine.high %v2225, %v2225
        %v2242 = vcombine.high %v2232, %v2232
        %v2243 = vcombine.high %v2239, %v2239
        %v2244 = vcombine.high %v764, %v764
        %v2246 = vunpack.c.l.s4 1966171168
        %v2247 = vunpack.c.0.s8 %v2246
        %v2248 = vlaneseq
        %v2249 = vshrl.u32 %v2248, 7
        %v2250 = vsub.s32 %v2247, %v2249
        %v2251 = vrot.slane %v764, %v2250
        %v2253 = vunpack.c.l.s4 1966171168
        %v2254 = vunpack.c.0.s8 %v2253
        %v2255 = vlaneseq
        %v2256 = vshrl.u32 %v2255, 7
        %v2257 = vsub.s32 %v2254, %v2256
        %v2258 = vrot.slane %v2244, %v2257
        %v2259 = vcombine.high %v2251, %v2251
        %v2260 = vcombine.high %v2258, %v2258
        %v2262 = vunpack.c.l.s4 1966171168
        %v2263 = vunpack.c.0.s8 %v2262
        %v2264 = vlaneseq
        %v2265 = vshrl.u32 %v2264, 7
        %v2266 = vsub.s32 %v2263, %v2265
        %v2267 = vrot.slane %v2251, %v2266
        %v2269 = vunpack.c.l.s4 1966171168
        %v2270 = vunpack.c.0.s8 %v2269
        %v2271 = vlaneseq
        %v2272 = vshrl.u32 %v2271, 7
        %v2273 = vsub.s32 %v2270, %v2272
        %v2274 = vrot.slane %v2258, %v2273
        %v2276 = vunpack.c.l.s4 1966171168
        %v2277 = vunpack.c.0.s8 %v2276
        %v2278 = vlaneseq
        %v2279 = vshrl.u32 %v2278, 7
        %v2280 = vsub.s32 %v2277, %v2279
        %v2281 = vrot.slane %v2259, %v2280
        %v2283 = vunpack.c.l.s4 1966171168
        %v2284 = vunpack.c.0.s8 %v2283
        %v2285 = vlaneseq
        %v2286 = vshrl.u32 %v2285, 7
        %v2287 = vsub.s32 %v2284, %v2286
        %v2288 = vrot.slane %v2260, %v2287
        %v2289 = vcombine.high %v2267, %v2267
        %v2290 = vcombine.high %v2274, %v2274
        %v2291 = vcombine.high %v2281, %v2281
        %v2292 = vcombine.high %v2288, %v2288
        %v2293 = vcombine.high %v766, %v766
        %v2295 = vunpack.c.l.s4 1966171168
        %v2296 = vunpack.c.0.s8 %v2295
        %v2297 = vlaneseq
        %v2298 = vshrl.u32 %v2297, 7
        %v2299 = vsub.s32 %v2296, %v2298
        %v2300 = vrot.slane %v766, %v2299
        %v2302 = vunpack.c.l.s4 1966171168
        %v2303 = vunpack.c.0.s8 %v2302
        %v2304 = vlaneseq
        %v2305 = vshrl.u32 %v2304, 7
        %v2306 = vsub.s32 %v2303, %v2305
        %v2307 = vrot.slane %v2293, %v2306
        %v2308 = vcombine.high %v2300, %v2300
        %v2309 = vcombine.high %v2307, %v2307
        %v2311 = vunpack.c.l.s4 1966171168
        %v2312 = vunpack.c.0.s8 %v2311
        %v2313 = vlaneseq
        %v2314 = vshrl.u32 %v2313, 7
        %v2315 = vsub.s32 %v2312, %v2314
        %v2316 = vrot.slane %v2300, %v2315
        %v2318 = vunpack.c.l.s4 1966171168
        %v2319 = vunpack.c.0.s8 %v2318
        %v2320 = vlaneseq
        %v2321 = vshrl.u32 %v2320, 7
        %v2322 = vsub.s32 %v2319, %v2321
        %v2323 = vrot.slane %v2307, %v2322
        %v2325 = vunpack.c.l.s4 1966171168
        %v2326 = vunpack.c.0.s8 %v2325
        %v2327 = vlaneseq
        %v2328 = vshrl.u32 %v2327, 7
        %v2329 = vsub.s32 %v2326, %v2328
        %v2330 = vrot.slane %v2308, %v2329
        %v2332 = vunpack.c.l.s4 1966171168
        %v2333 = vunpack.c.0.s8 %v2332
        %v2334 = vlaneseq
        %v2335 = vshrl.u32 %v2334, 7
        %v2336 = vsub.s32 %v2333, %v2335
        %v2337 = vrot.slane %v2309, %v2336
        %v2338 = vcombine.high %v2316, %v2316
        %v2339 = vcombine.high %v2323, %v2323
        %v2340 = vcombine.high %v2330, %v2330
        %v2341 = vcombine.high %v2337, %v2337
        %v2342 = vcombine.high %v768, %v768
        %v2344 = vunpack.c.l.s4 1966171168
        %v2345 = vunpack.c.0.s8 %v2344
        %v2346 = vlaneseq
        %v2347 = vshrl.u32 %v2346, 7
        %v2348 = vsub.s32 %v2345, %v2347
        %v2349 = vrot.slane %v768, %v2348
        %v2351 = vunpack.c.l.s4 1966171168
        %v2352 = vunpack.c.0.s8 %v2351
        %v2353 = vlaneseq
        %v2354 = vshrl.u32 %v2353, 7
        %v2355 = vsub.s32 %v2352, %v2354
        %v2356 = vrot.slane %v2342, %v2355
        %v2357 = vcombine.high %v2349, %v2349
        %v2358 = vcombine.high %v2356, %v2356
        %v2360 = vunpack.c.l.s4 1966171168
        %v2361 = vunpack.c.0.s8 %v2360
        %v2362 = vlaneseq
        %v2363 = vshrl.u32 %v2362, 7
        %v2364 = vsub.s32 %v2361, %v2363
        %v2365 = vrot.slane %v2349, %v2364
        %v2367 = vunpack.c.l.s4 1966171168
        %v2368 = vunpack.c.0.s8 %v2367
        %v2369 = vlaneseq
        %v2370 = vshrl.u32 %v2369, 7
        %v2371 = vsub.s32 %v2368, %v2370
        %v2372 = vrot.slane %v2356, %v2371
        %v2374 = vunpack.c.l.s4 1966171168
        %v2375 = vunpack.c.0.s8 %v2374
        %v2376 = vlaneseq
        %v2377 = vshrl.u32 %v2376, 7
        %v2378 = vsub.s32 %v2375, %v2377
        %v2379 = vrot.slane %v2357, %v2378
        %v2381 = vunpack.c.l.s4 1966171168
        %v2382 = vunpack.c.0.s8 %v2381
        %v2383 = vlaneseq
        %v2384 = vshrl.u32 %v2383, 7
        %v2385 = vsub.s32 %v2382, %v2384
        %v2386 = vrot.slane %v2358, %v2385
        %v2387 = vcombine.high %v2365, %v2365
        %v2388 = vcombine.high %v2372, %v2372
        %v2389 = vcombine.high %v2379, %v2379
        %v2390 = vcombine.high %v2386, %v2386
        %v2391 = vlaneseq
        %v2392 = vshrl.u32 %v2391, 7
        %v2393 = vsub.s32 0, %v2392
        %v2394 = vrot.slane %v2022, %v2393
        %v2395 = vlaneseq
        %v2396 = vshrl.u32 %v2395, 7
        %v2397 = vsub.s32 0, %v2396
        %v2398 = vrot.slane %v2036, %v2397
        %v2399 = vlaneseq
        %v2400 = vshrl.u32 %v2399, 7
        %v2401 = vsub.s32 0, %v2400
        %v2402 = vrot.slane %v2044, %v2401
        %v2403 = vlaneseq
        %v2404 = vshrl.u32 %v2403, 7
        %v2405 = vsub.s32 0, %v2404
        %v2406 = vrot.slane %v2046, %v2405
        %v2407 = vlaneseq
        %v2408 = vshrl.u32 %v2407, 7
        %v2409 = vsub.s32 0, %v2408
        %v2410 = vrot.slane %v2029, %v2409
        %v2411 = vlaneseq
        %v2412 = vshrl.u32 %v2411, 7
        %v2413 = vsub.s32 0, %v2412
        %v2414 = vrot.slane %v2043, %v2413
        %v2415 = vlaneseq
        %v2416 = vshrl.u32 %v2415, 7
        %v2417 = vsub.s32 0, %v2416
        %v2418 = vrot.slane %v2045, %v2417
        %v2419 = vlaneseq
        %v2420 = vshrl.u32 %v2419, 7
        %v2421 = vsub.s32 0, %v2420
        %v2422 = vrot.slane %v2047, %v2421
        %v2423 = vlaneseq
        %v2424 = vshrl.u32 %v2423, 7
        %v2425 = vsub.s32 0, %v2424
        %v2426 = vrot.slane %v2071, %v2425
        %v2427 = vlaneseq
        %v2428 = vshrl.u32 %v2427, 7
        %v2429 = vsub.s32 0, %v2428
        %v2430 = vrot.slane %v2085, %v2429
        %v2431 = vlaneseq
        %v2432 = vshrl.u32 %v2431, 7
        %v2433 = vsub.s32 0, %v2432
        %v2434 = vrot.slane %v2093, %v2433
        %v2435 = vlaneseq
        %v2436 = vshrl.u32 %v2435, 7
        %v2437 = vsub.s32 0, %v2436
        %v2438 = vrot.slane %v2095, %v2437
        %v2439 = vlaneseq
        %v2440 = vshrl.u32 %v2439, 7
        %v2441 = vsub.s32 0, %v2440
        %v2442 = vrot.slane %v2078, %v2441
        %v2443 = vlaneseq
        %v2444 = vshrl.u32 %v2443, 7
        %v2445 = vsub.s32 0, %v2444
        %v2446 = vrot.slane %v2092, %v2445
        %v2447 = vlaneseq
        %v2448 = vshrl.u32 %v2447, 7
        %v2449 = vsub.s32 0, %v2448
        %v2450 = vrot.slane %v2094, %v2449
        %v2451 = vlaneseq
        %v2452 = vshrl.u32 %v2451, 7
        %v2453 = vsub.s32 0, %v2452
        %v2454 = vrot.slane %v2096, %v2453
        %v2455 = vlaneseq
        %v2456 = vshrl.u32 %v2455, 7
        %v2457 = vsub.s32 0, %v2456
        %v2458 = vrot.slane %v2120, %v2457
        %v2459 = vlaneseq
        %v2460 = vshrl.u32 %v2459, 7
        %v2461 = vsub.s32 0, %v2460
        %v2462 = vrot.slane %v2134, %v2461
        %v2463 = vlaneseq
        %v2464 = vshrl.u32 %v2463, 7
        %v2465 = vsub.s32 0, %v2464
        %v2466 = vrot.slane %v2142, %v2465
        %v2467 = vlaneseq
        %v2468 = vshrl.u32 %v2467, 7
        %v2469 = vsub.s32 0, %v2468
        %v2470 = vrot.slane %v2144, %v2469
        %v2471 = vlaneseq
        %v2472 = vshrl.u32 %v2471, 7
        %v2473 = vsub.s32 0, %v2472
        %v2474 = vrot.slane %v2127, %v2473
        %v2475 = vlaneseq
        %v2476 = vshrl.u32 %v2475, 7
        %v2477 = vsub.s32 0, %v2476
        %v2478 = vrot.slane %v2141, %v2477
        %v2479 = vlaneseq
        %v2480 = vshrl.u32 %v2479, 7
        %v2481 = vsub.s32 0, %v2480
        %v2482 = vrot.slane %v2143, %v2481
        %v2483 = vlaneseq
        %v2484 = vshrl.u32 %v2483, 7
        %v2485 = vsub.s32 0, %v2484
        %v2486 = vrot.slane %v2145, %v2485
        %v2487 = vlaneseq
        %v2488 = vshrl.u32 %v2487, 7
        %v2489 = vsub.s32 0, %v2488
        %v2490 = vrot.slane %v2169, %v2489
        %v2491 = vlaneseq
        %v2492 = vshrl.u32 %v2491, 7
        %v2493 = vsub.s32 0, %v2492
        %v2494 = vrot.slane %v2183, %v2493
        %v2495 = vlaneseq
        %v2496 = vshrl.u32 %v2495, 7
        %v2497 = vsub.s32 0, %v2496
        %v2498 = vrot.slane %v2191, %v2497
        %v2499 = vlaneseq
        %v2500 = vshrl.u32 %v2499, 7
        %v2501 = vsub.s32 0, %v2500
        %v2502 = vrot.slane %v2193, %v2501
        %v2503 = vlaneseq
        %v2504 = vshrl.u32 %v2503, 7
        %v2505 = vsub.s32 0, %v2504
        %v2506 = vrot.slane %v2176, %v2505
        %v2507 = vlaneseq
        %v2508 = vshrl.u32 %v2507, 7
        %v2509 = vsub.s32 0, %v2508
        %v2510 = vrot.slane %v2190, %v2509
        %v2511 = vlaneseq
        %v2512 = vshrl.u32 %v2511, 7
        %v2513 = vsub.s32 0, %v2512
        %v2514 = vrot.slane %v2192, %v2513
        %v2515 = vlaneseq
        %v2516 = vshrl.u32 %v2515, 7
        %v2517 = vsub.s32 0, %v2516
        %v2518 = vrot.slane %v2194, %v2517
        %v2519 = vlaneseq
        %v2520 = vshrl.u32 %v2519, 7
        %v2521 = vsub.s32 0, %v2520
        %v2522 = vrot.slane %v2218, %v2521
        %v2523 = vlaneseq
        %v2524 = vshrl.u32 %v2523, 7
        %v2525 = vsub.s32 0, %v2524
        %v2526 = vrot.slane %v2232, %v2525
        %v2527 = vlaneseq
        %v2528 = vshrl.u32 %v2527, 7
        %v2529 = vsub.s32 0, %v2528
        %v2530 = vrot.slane %v2240, %v2529
        %v2531 = vlaneseq
        %v2532 = vshrl.u32 %v2531, 7
        %v2533 = vsub.s32 0, %v2532
        %v2534 = vrot.slane %v2242, %v2533
        %v2535 = vlaneseq
        %v2536 = vshrl.u32 %v2535, 7
        %v2537 = vsub.s32 0, %v2536
        %v2538 = vrot.slane %v2225, %v2537
        %v2539 = vlaneseq
        %v2540 = vshrl.u32 %v2539, 7
        %v2541 = vsub.s32 0, %v2540
        %v2542 = vrot.slane %v2239, %v2541
        %v2543 = vlaneseq
        %v2544 = vshrl.u32 %v2543, 7
        %v2545 = vsub.s32 0, %v2544
        %v2546 = vrot.slane %v2241, %v2545
        %v2547 = vlaneseq
        %v2548 = vshrl.u32 %v2547, 7
        %v2549 = vsub.s32 0, %v2548
        %v2550 = vrot.slane %v2243, %v2549
        %v2551 = vlaneseq
        %v2552 = vshrl.u32 %v2551, 7
        %v2553 = vsub.s32 0, %v2552
        %v2554 = vrot.slane %v2267, %v2553
        %v2555 = vlaneseq
        %v2556 = vshrl.u32 %v2555, 7
        %v2557 = vsub.s32 0, %v2556
        %v2558 = vrot.slane %v2281, %v2557
        %v2559 = vlaneseq
        %v2560 = vshrl.u32 %v2559, 7
        %v2561 = vsub.s32 0, %v2560
        %v2562 = vrot.slane %v2289, %v2561
        %v2563 = vlaneseq
        %v2564 = vshrl.u32 %v2563, 7
        %v2565 = vsub.s32 0, %v2564
        %v2566 = vrot.slane %v2291, %v2565
        %v2567 = vlaneseq
        %v2568 = vshrl.u32 %v2567, 7
        %v2569 = vsub.s32 0, %v2568
        %v2570 = vrot.slane %v2274, %v2569
        %v2571 = vlaneseq
        %v2572 = vshrl.u32 %v2571, 7
        %v2573 = vsub.s32 0, %v2572
        %v2574 = vrot.slane %v2288, %v2573
        %v2575 = vlaneseq
        %v2576 = vshrl.u32 %v2575, 7
        %v2577 = vsub.s32 0, %v2576
        %v2578 = vrot.slane %v2290, %v2577
        %v2579 = vlaneseq
        %v2580 = vshrl.u32 %v2579, 7
        %v2581 = vsub.s32 0, %v2580
        %v2582 = vrot.slane %v2292, %v2581
        %v2583 = vlaneseq
        %v2584 = vshrl.u32 %v2583, 7
        %v2585 = vsub.s32 0, %v2584
        %v2586 = vrot.slane %v2316, %v2585
        %v2587 = vlaneseq
        %v2588 = vshrl.u32 %v2587, 7
        %v2589 = vsub.s32 0, %v2588
        %v2590 = vrot.slane %v2330, %v2589
        %v2591 = vlaneseq
        %v2592 = vshrl.u32 %v2591, 7
        %v2593 = vsub.s32 0, %v2592
        %v2594 = vrot.slane %v2338, %v2593
        %v2595 = vlaneseq
        %v2596 = vshrl.u32 %v2595, 7
        %v2597 = vsub.s32 0, %v2596
        %v2598 = vrot.slane %v2340, %v2597
        %v2599 = vlaneseq
        %v2600 = vshrl.u32 %v2599, 7
        %v2601 = vsub.s32 0, %v2600
        %v2602 = vrot.slane %v2323, %v2601
        %v2603 = vlaneseq
        %v2604 = vshrl.u32 %v2603, 7
        %v2605 = vsub.s32 0, %v2604
        %v2606 = vrot.slane %v2337, %v2605
        %v2607 = vlaneseq
        %v2608 = vshrl.u32 %v2607, 7
        %v2609 = vsub.s32 0, %v2608
        %v2610 = vrot.slane %v2339, %v2609
        %v2611 = vlaneseq
        %v2612 = vshrl.u32 %v2611, 7
        %v2613 = vsub.s32 0, %v2612
        %v2614 = vrot.slane %v2341, %v2613
        %v2615 = vlaneseq
        %v2616 = vshrl.u32 %v2615, 7
        %v2617 = vsub.s32 0, %v2616
        %v2618 = vrot.slane %v2365, %v2617
        %v2619 = vlaneseq
        %v2620 = vshrl.u32 %v2619, 7
        %v2621 = vsub.s32 0, %v2620
        %v2622 = vrot.slane %v2379, %v2621
        %v2623 = vlaneseq
        %v2624 = vshrl.u32 %v2623, 7
        %v2625 = vsub.s32 0, %v2624
        %v2626 = vrot.slane %v2387, %v2625
        %v2627 = vlaneseq
        %v2628 = vshrl.u32 %v2627, 7
        %v2629 = vsub.s32 0, %v2628
        %v2630 = vrot.slane %v2389, %v2629
        %v2631 = vlaneseq
        %v2632 = vshrl.u32 %v2631, 7
        %v2633 = vsub.s32 0, %v2632
        %v2634 = vrot.slane %v2372, %v2633
        %v2635 = vlaneseq
        %v2636 = vshrl.u32 %v2635, 7
        %v2637 = vsub.s32 0, %v2636
        %v2638 = vrot.slane %v2386, %v2637
        %v2639 = vlaneseq
        %v2640 = vshrl.u32 %v2639, 7
        %v2641 = vsub.s32 0, %v2640
        %v2642 = vrot.slane %v2388, %v2641
        %v2643 = vlaneseq
        %v2644 = vshrl.u32 %v2643, 7
        %v2645 = vsub.s32 0, %v2644
        %v2646 = vrot.slane %v2390, %v2645
        %v2711 = vmul.f32 %v789, %v2394
        %v2712 = vmul.f32 %v793, %v2394
        %v2713 = vmul.f32 %v797, %v2394
        %v2714 = vmul.f32 %v801, %v2394
        %v2715 = vmul.f32 %v808, %v2398
        %v2716 = vmul.f32 %v812, %v2398
        %v2717 = vmul.f32 %v816, %v2398
        %v2718 = vmul.f32 %v820, %v2398
        %v2719 = vmul.f32 %v827, %v2402
        %v2720 = vmul.f32 %v831, %v2402
        %v2721 = vmul.f32 %v835, %v2402
        %v2722 = vmul.f32 %v839, %v2402
        %v2723 = vmul.f32 %v846, %v2406
        %v2724 = vmul.f32 %v850, %v2406
        %v2725 = vmul.f32 %v854, %v2406
        %v2726 = vmul.f32 %v858, %v2406
        %v2727 = vmul.f32 %v865, %v2410
        %v2728 = vmul.f32 %v869, %v2410
        %v2729 = vmul.f32 %v873, %v2410
        %v2730 = vmul.f32 %v877, %v2410
        %v2731 = vmul.f32 %v884, %v2414
        %v2732 = vmul.f32 %v888, %v2414
        %v2733 = vmul.f32 %v892, %v2414
        %v2734 = vmul.f32 %v896, %v2414
        %v2735 = vmul.f32 %v903, %v2418
        %v2736 = vmul.f32 %v907, %v2418
        %v2737 = vmul.f32 %v911, %v2418
        %v2738 = vmul.f32 %v915, %v2418
        %v2739 = vmul.f32 %v922, %v2422
        %v2740 = vmul.f32 %v926, %v2422
        %v2741 = vmul.f32 %v930, %v2422
        %v2742 = vmul.f32 %v934, %v2422
        %v2743 = vmul.f32 %v941, %v2426
        %v2744 = vmul.f32 %v945, %v2426
        %v2745 = vmul.f32 %v949, %v2426
        %v2746 = vmul.f32 %v953, %v2426
        %v2747 = vmul.f32 %v960, %v2430
        %v2748 = vmul.f32 %v964, %v2430
        %v2749 = vmul.f32 %v968, %v2430
        %v2750 = vmul.f32 %v972, %v2430
        %v2751 = vmul.f32 %v979, %v2434
        %v2752 = vmul.f32 %v983, %v2434
        %v2753 = vmul.f32 %v987, %v2434
        %v2754 = vmul.f32 %v991, %v2434
        %v2755 = vmul.f32 %v998, %v2438
        %v2756 = vmul.f32 %v1002, %v2438
        %v2757 = vmul.f32 %v1006, %v2438
        %v2758 = vmul.f32 %v1010, %v2438
        %v2759 = vmul.f32 %v1017, %v2442
        %v2760 = vmul.f32 %v1021, %v2442
        %v2761 = vmul.f32 %v1025, %v2442
        %v2762 = vmul.f32 %v1029, %v2442
        %v2763 = vmul.f32 %v1036, %v2446
        %v2764 = vmul.f32 %v1040, %v2446
        %v2765 = vmul.f32 %v1044, %v2446
        %v2766 = vmul.f32 %v1048, %v2446
        %v2767 = vmul.f32 %v1055, %v2450
        %v2768 = vmul.f32 %v1059, %v2450
        %v2769 = vmul.f32 %v1063, %v2450
        %v2770 = vmul.f32 %v1067, %v2450
        %v2771 = vmul.f32 %v1074, %v2454
        %v2772 = vmul.f32 %v1078, %v2454
        %v2773 = vmul.f32 %v1082, %v2454
        %v2774 = vmul.f32 %v1086, %v2454
        %v2775 = vmul.f32 %v1093, %v2458
        %v2776 = vmul.f32 %v1097, %v2458
        %v2777 = vmul.f32 %v1101, %v2458
        %v2778 = vmul.f32 %v1105, %v2458
        %v2779 = vmul.f32 %v1112, %v2462
        %v2780 = vmul.f32 %v1116, %v2462
        %v2781 = vmul.f32 %v1120, %v2462
        %v2782 = vmul.f32 %v1124, %v2462
        %v2783 = vmul.f32 %v1131, %v2466
        %v2784 = vmul.f32 %v1135, %v2466
        %v2785 = vmul.f32 %v1139, %v2466
        %v2786 = vmul.f32 %v1143, %v2466
        %v2787 = vmul.f32 %v1150, %v2470
        %v2788 = vmul.f32 %v1154, %v2470
        %v2789 = vmul.f32 %v1158, %v2470
        %v2790 = vmul.f32 %v1162, %v2470
        %v2791 = vmul.f32 %v1169, %v2474
        %v2792 = vmul.f32 %v1173, %v2474
        %v2793 = vmul.f32 %v1177, %v2474
        %v2794 = vmul.f32 %v1181, %v2474
        %v2795 = vmul.f32 %v1188, %v2478
        %v2796 = vmul.f32 %v1192, %v2478
        %v2797 = vmul.f32 %v1196, %v2478
        %v2798 = vmul.f32 %v1200, %v2478
        %v2799 = vmul.f32 %v1207, %v2482
        %v2800 = vmul.f32 %v1211, %v2482
        %v2801 = vmul.f32 %v1215, %v2482
        %v2802 = vmul.f32 %v1219, %v2482
        %v2803 = vmul.f32 %v1226, %v2486
        %v2804 = vmul.f32 %v1230, %v2486
        %v2805 = vmul.f32 %v1234, %v2486
        %v2806 = vmul.f32 %v1238, %v2486
        %v2807 = vmul.f32 %v1245, %v2490
        %v2808 = vmul.f32 %v1249, %v2490
        %v2809 = vmul.f32 %v1253, %v2490
        %v2810 = vmul.f32 %v1257, %v2490
        %v2811 = vmul.f32 %v1264, %v2494
        %v2812 = vmul.f32 %v1268, %v2494
        %v2813 = vmul.f32 %v1272, %v2494
        %v2814 = vmul.f32 %v1276, %v2494
        %v2815 = vmul.f32 %v1283, %v2498
        %v2816 = vmul.f32 %v1287, %v2498
        %v2817 = vmul.f32 %v1291, %v2498
        %v2818 = vmul.f32 %v1295, %v2498
        %v2819 = vmul.f32 %v1302, %v2502
        %v2820 = vmul.f32 %v1306, %v2502
        %v2821 = vmul.f32 %v1310, %v2502
        %v2822 = vmul.f32 %v1314, %v2502
        %v2823 = vmul.f32 %v1321, %v2506
        %v2824 = vmul.f32 %v1325, %v2506
        %v2825 = vmul.f32 %v1329, %v2506
        %v2826 = vmul.f32 %v1333, %v2506
        %v2827 = vmul.f32 %v1340, %v2510
        %v2828 = vmul.f32 %v1344, %v2510
        %v2829 = vmul.f32 %v1348, %v2510
        %v2830 = vmul.f32 %v1352, %v2510
        %v2831 = vmul.f32 %v1359, %v2514
        %v2832 = vmul.f32 %v1363, %v2514
        %v2833 = vmul.f32 %v1367, %v2514
        %v2834 = vmul.f32 %v1371, %v2514
        %v2835 = vmul.f32 %v1378, %v2518
        %v2836 = vmul.f32 %v1382, %v2518
        %v2837 = vmul.f32 %v1386, %v2518
        %v2838 = vmul.f32 %v1390, %v2518
        %v2839 = vmul.f32 %v1397, %v2522
        %v2840 = vmul.f32 %v1401, %v2522
        %v2841 = vmul.f32 %v1405, %v2522
        %v2842 = vmul.f32 %v1409, %v2522
        %v2843 = vmul.f32 %v1416, %v2526
        %v2844 = vmul.f32 %v1420, %v2526
        %v2845 = vmul.f32 %v1424, %v2526
        %v2846 = vmul.f32 %v1428, %v2526
        %v2847 = vmul.f32 %v1435, %v2530
        %v2848 = vmul.f32 %v1439, %v2530
        %v2849 = vmul.f32 %v1443, %v2530
        %v2850 = vmul.f32 %v1447, %v2530
        %v2851 = vmul.f32 %v1454, %v2534
        %v2852 = vmul.f32 %v1458, %v2534
        %v2853 = vmul.f32 %v1462, %v2534
        %v2854 = vmul.f32 %v1466, %v2534
        %v2855 = vmul.f32 %v1473, %v2538
        %v2856 = vmul.f32 %v1477, %v2538
        %v2857 = vmul.f32 %v1481, %v2538
        %v2858 = vmul.f32 %v1485, %v2538
        %v2859 = vmul.f32 %v1492, %v2542
        %v2860 = vmul.f32 %v1496, %v2542
        %v2861 = vmul.f32 %v1500, %v2542
        %v2862 = vmul.f32 %v1504, %v2542
        %v2863 = vmul.f32 %v1511, %v2546
        %v2864 = vmul.f32 %v1515, %v2546
        %v2865 = vmul.f32 %v1519, %v2546
        %v2866 = vmul.f32 %v1523, %v2546
        %v2867 = vmul.f32 %v1530, %v2550
        %v2868 = vmul.f32 %v1534, %v2550
        %v2869 = vmul.f32 %v1538, %v2550
        %v2870 = vmul.f32 %v1542, %v2550
        %v2871 = vmul.f32 %v1549, %v2554
        %v2872 = vmul.f32 %v1553, %v2554
        %v2873 = vmul.f32 %v1557, %v2554
        %v2874 = vmul.f32 %v1561, %v2554
        %v2875 = vmul.f32 %v1568, %v2558
        %v2876 = vmul.f32 %v1572, %v2558
        %v2877 = vmul.f32 %v1576, %v2558
        %v2878 = vmul.f32 %v1580, %v2558
        %v2879 = vmul.f32 %v1587, %v2562
        %v2880 = vmul.f32 %v1591, %v2562
        %v2881 = vmul.f32 %v1595, %v2562
        %v2882 = vmul.f32 %v1599, %v2562
        %v2883 = vmul.f32 %v1606, %v2566
        %v2884 = vmul.f32 %v1610, %v2566
        %v2885 = vmul.f32 %v1614, %v2566
        %v2886 = vmul.f32 %v1618, %v2566
        %v2887 = vmul.f32 %v1625, %v2570
        %v2888 = vmul.f32 %v1629, %v2570
        %v2889 = vmul.f32 %v1633, %v2570
        %v2890 = vmul.f32 %v1637, %v2570
        %v2891 = vmul.f32 %v1644, %v2574
        %v2892 = vmul.f32 %v1648, %v2574
        %v2893 = vmul.f32 %v1652, %v2574
        %v2894 = vmul.f32 %v1656, %v2574
        %v2895 = vmul.f32 %v1663, %v2578
        %v2896 = vmul.f32 %v1667, %v2578
        %v2897 = vmul.f32 %v1671, %v2578
        %v2898 = vmul.f32 %v1675, %v2578
        %v2899 = vmul.f32 %v1682, %v2582
        %v2900 = vmul.f32 %v1686, %v2582
        %v2901 = vmul.f32 %v1690, %v2582
        %v2902 = vmul.f32 %v1694, %v2582
        %v2903 = vmul.f32 %v1701, %v2586
        %v2904 = vmul.f32 %v1705, %v2586
        %v2905 = vmul.f32 %v1709, %v2586
        %v2906 = vmul.f32 %v1713, %v2586
        %v2907 = vmul.f32 %v1720, %v2590
        %v2908 = vmul.f32 %v1724, %v2590
        %v2909 = vmul.f32 %v1728, %v2590
        %v2910 = vmul.f32 %v1732, %v2590
        %v2911 = vmul.f32 %v1739, %v2594
        %v2912 = vmul.f32 %v1743, %v2594
        %v2913 = vmul.f32 %v1747, %v2594
        %v2914 = vmul.f32 %v1751, %v2594
        %v2915 = vmul.f32 %v1758, %v2598
        %v2916 = vmul.f32 %v1762, %v2598
        %v2917 = vmul.f32 %v1766, %v2598
        %v2918 = vmul.f32 %v1770, %v2598
        %v2919 = vmul.f32 %v1777, %v2602
        %v2920 = vmul.f32 %v1781, %v2602
        %v2921 = vmul.f32 %v1785, %v2602
        %v2922 = vmul.f32 %v1789, %v2602
        %v2923 = vmul.f32 %v1796, %v2606
        %v2924 = vmul.f32 %v1800, %v2606
        %v2925 = vmul.f32 %v1804, %v2606
        %v2926 = vmul.f32 %v1808, %v2606
        %v2927 = vmul.f32 %v1815, %v2610
        %v2928 = vmul.f32 %v1819, %v2610
        %v2929 = vmul.f32 %v1823, %v2610
        %v2930 = vmul.f32 %v1827, %v2610
        %v2931 = vmul.f32 %v1834, %v2614
        %v2932 = vmul.f32 %v1838, %v2614
        %v2933 = vmul.f32 %v1842, %v2614
        %v2934 = vmul.f32 %v1846, %v2614
        %v2935 = vmul.f32 %v1853, %v2618
        %v2936 = vmul.f32 %v1857, %v2618
        %v2937 = vmul.f32 %v1861, %v2618
        %v2938 = vmul.f32 %v1865, %v2618
        %v2939 = vmul.f32 %v1872, %v2622
        %v2940 = vmul.f32 %v1876, %v2622
        %v2941 = vmul.f32 %v1880, %v2622
        %v2942 = vmul.f32 %v1884, %v2622
        %v2943 = vmul.f32 %v1891, %v2626
        %v2944 = vmul.f32 %v1895, %v2626
        %v2945 = vmul.f32 %v1899, %v2626
        %v2946 = vmul.f32 %v1903, %v2626
        %v2947 = vmul.f32 %v1910, %v2630
        %v2948 = vmul.f32 %v1914, %v2630
        %v2949 = vmul.f32 %v1918, %v2630
        %v2950 = vmul.f32 %v1922, %v2630
        %v2951 = vmul.f32 %v1929, %v2634
        %v2952 = vmul.f32 %v1933, %v2634
        %v2953 = vmul.f32 %v1937, %v2634
        %v2954 = vmul.f32 %v1941, %v2634
        %v2955 = vmul.f32 %v1948, %v2638
        %v2956 = vmul.f32 %v1952, %v2638
        %v2957 = vmul.f32 %v1956, %v2638
        %v2958 = vmul.f32 %v1960, %v2638
        %v2959 = vmul.f32 %v1967, %v2642
        %v2960 = vmul.f32 %v1971, %v2642
        %v2961 = vmul.f32 %v1975, %v2642
        %v2962 = vmul.f32 %v1979, %v2642
        %v2963 = vmul.f32 %v1986, %v2646
        %v2964 = vmul.f32 %v1990, %v2646
        %v2965 = vmul.f32 %v1994, %v2646
        %v2966 = vmul.f32 %v1998, %v2646
        %v2967 = vmul.f32 %v2711, 0.088388346
        %v2968 = vmul.f32 %v2712, 0.088388346
        %v2969 = vmul.f32 %v2713, 0.088388346
        %v2970 = vmul.f32 %v2714, 0.088388346
        %v2971 = vmul.f32 %v2715, 0.088388346
        %v2972 = vmul.f32 %v2716, 0.088388346
        %v2973 = vmul.f32 %v2717, 0.088388346
        %v2974 = vmul.f32 %v2718, 0.088388346
        %v2975 = vmul.f32 %v2719, 0.088388346
        %v2976 = vmul.f32 %v2720, 0.088388346
        %v2977 = vmul.f32 %v2721, 0.088388346
        %v2978 = vmul.f32 %v2722, 0.088388346
        %v2979 = vmul.f32 %v2723, 0.088388346
        %v2980 = vmul.f32 %v2724, 0.088388346
        %v2981 = vmul.f32 %v2725, 0.088388346
        %v2982 = vmul.f32 %v2726, 0.088388346
        %v2983 = vmul.f32 %v2727, 0.088388346
        %v2984 = vmul.f32 %v2728, 0.088388346
        %v2985 = vmul.f32 %v2729, 0.088388346
        %v2986 = vmul.f32 %v2730, 0.088388346
        %v2987 = vmul.f32 %v2731, 0.088388346
        %v2988 = vmul.f32 %v2732, 0.088388346
        %v2989 = vmul.f32 %v2733, 0.088388346
        %v2990 = vmul.f32 %v2734, 0.088388346
        %v2991 = vmul.f32 %v2735, 0.088388346
        %v2992 = vmul.f32 %v2736, 0.088388346
        %v2993 = vmul.f32 %v2737, 0.088388346
        %v2994 = vmul.f32 %v2738, 0.088388346
        %v2995 = vmul.f32 %v2739, 0.088388346
        %v2996 = vmul.f32 %v2740, 0.088388346
        %v2997 = vmul.f32 %v2741, 0.088388346
        %v2998 = vmul.f32 %v2742, 0.088388346
        %v2999 = vmul.f32 %v2743, 0.088388346
        %v3000 = vmul.f32 %v2744, 0.088388346
        %v3001 = vmul.f32 %v2745, 0.088388346
        %v3002 = vmul.f32 %v2746, 0.088388346
        %v3003 = vmul.f32 %v2747, 0.088388346
        %v3004 = vmul.f32 %v2748, 0.088388346
        %v3005 = vmul.f32 %v2749, 0.088388346
        %v3006 = vmul.f32 %v2750, 0.088388346
        %v3007 = vmul.f32 %v2751, 0.088388346
        %v3008 = vmul.f32 %v2752, 0.088388346
        %v3009 = vmul.f32 %v2753, 0.088388346
        %v3010 = vmul.f32 %v2754, 0.088388346
        %v3011 = vmul.f32 %v2755, 0.088388346
        %v3012 = vmul.f32 %v2756, 0.088388346
        %v3013 = vmul.f32 %v2757, 0.088388346
        %v3014 = vmul.f32 %v2758, 0.088388346
        %v3015 = vmul.f32 %v2759, 0.088388346
        %v3016 = vmul.f32 %v2760, 0.088388346
        %v3017 = vmul.f32 %v2761, 0.088388346
        %v3018 = vmul.f32 %v2762, 0.088388346
        %v3019 = vmul.f32 %v2763, 0.088388346
        %v3020 = vmul.f32 %v2764, 0.088388346
        %v3021 = vmul.f32 %v2765, 0.088388346
        %v3022 = vmul.f32 %v2766, 0.088388346
        %v3023 = vmul.f32 %v2767, 0.088388346
        %v3024 = vmul.f32 %v2768, 0.088388346
        %v3025 = vmul.f32 %v2769, 0.088388346
        %v3026 = vmul.f32 %v2770, 0.088388346
        %v3027 = vmul.f32 %v2771, 0.088388346
        %v3028 = vmul.f32 %v2772, 0.088388346
        %v3029 = vmul.f32 %v2773, 0.088388346
        %v3030 = vmul.f32 %v2774, 0.088388346
        %v3031 = vmul.f32 %v2775, 0.088388346
        %v3032 = vmul.f32 %v2776, 0.088388346
        %v3033 = vmul.f32 %v2777, 0.088388346
        %v3034 = vmul.f32 %v2778, 0.088388346
        %v3035 = vmul.f32 %v2779, 0.088388346
        %v3036 = vmul.f32 %v2780, 0.088388346
        %v3037 = vmul.f32 %v2781, 0.088388346
        %v3038 = vmul.f32 %v2782, 0.088388346
        %v3039 = vmul.f32 %v2783, 0.088388346
        %v3040 = vmul.f32 %v2784, 0.088388346
        %v3041 = vmul.f32 %v2785, 0.088388346
        %v3042 = vmul.f32 %v2786, 0.088388346
        %v3043 = vmul.f32 %v2787, 0.088388346
        %v3044 = vmul.f32 %v2788, 0.088388346
        %v3045 = vmul.f32 %v2789, 0.088388346
        %v3046 = vmul.f32 %v2790, 0.088388346
        %v3047 = vmul.f32 %v2791, 0.088388346
        %v3048 = vmul.f32 %v2792, 0.088388346
        %v3049 = vmul.f32 %v2793, 0.088388346
        %v3050 = vmul.f32 %v2794, 0.088388346
        %v3051 = vmul.f32 %v2795, 0.088388346
        %v3052 = vmul.f32 %v2796, 0.088388346
        %v3053 = vmul.f32 %v2797, 0.088388346
        %v3054 = vmul.f32 %v2798, 0.088388346
        %v3055 = vmul.f32 %v2799, 0.088388346
        %v3056 = vmul.f32 %v2800, 0.088388346
        %v3057 = vmul.f32 %v2801, 0.088388346
        %v3058 = vmul.f32 %v2802, 0.088388346
        %v3059 = vmul.f32 %v2803, 0.088388346
        %v3060 = vmul.f32 %v2804, 0.088388346
        %v3061 = vmul.f32 %v2805, 0.088388346
        %v3062 = vmul.f32 %v2806, 0.088388346
        %v3063 = vmul.f32 %v2807, 0.088388346
        %v3064 = vmul.f32 %v2808, 0.088388346
        %v3065 = vmul.f32 %v2809, 0.088388346
        %v3066 = vmul.f32 %v2810, 0.088388346
        %v3067 = vmul.f32 %v2811, 0.088388346
        %v3068 = vmul.f32 %v2812, 0.088388346
        %v3069 = vmul.f32 %v2813, 0.088388346
        %v3070 = vmul.f32 %v2814, 0.088388346
        %v3071 = vmul.f32 %v2815, 0.088388346
        %v3072 = vmul.f32 %v2816, 0.088388346
        %v3073 = vmul.f32 %v2817, 0.088388346
        %v3074 = vmul.f32 %v2818, 0.088388346
        %v3075 = vmul.f32 %v2819, 0.088388346
        %v3076 = vmul.f32 %v2820, 0.088388346
        %v3077 = vmul.f32 %v2821, 0.088388346
        %v3078 = vmul.f32 %v2822, 0.088388346
        %v3079 = vmul.f32 %v2823, 0.088388346
        %v3080 = vmul.f32 %v2824, 0.088388346
        %v3081 = vmul.f32 %v2825, 0.088388346
        %v3082 = vmul.f32 %v2826, 0.088388346
        %v3083 = vmul.f32 %v2827, 0.088388346
        %v3084 = vmul.f32 %v2828, 0.088388346
        %v3085 = vmul.f32 %v2829, 0.088388346
        %v3086 = vmul.f32 %v2830, 0.088388346
        %v3087 = vmul.f32 %v2831, 0.088388346
        %v3088 = vmul.f32 %v2832, 0.088388346
        %v3089 = vmul.f32 %v2833, 0.088388346
        %v3090 = vmul.f32 %v2834, 0.088388346
        %v3091 = vmul.f32 %v2835, 0.088388346
        %v3092 = vmul.f32 %v2836, 0.088388346
        %v3093 = vmul.f32 %v2837, 0.088388346
        %v3094 = vmul.f32 %v2838, 0.088388346
        %v3095 = vmul.f32 %v2839, 0.088388346
        %v3096 = vmul.f32 %v2840, 0.088388346
        %v3097 = vmul.f32 %v2841, 0.088388346
        %v3098 = vmul.f32 %v2842, 0.088388346
        %v3099 = vmul.f32 %v2843, 0.088388346
        %v3100 = vmul.f32 %v2844, 0.088388346
        %v3101 = vmul.f32 %v2845, 0.088388346
        %v3102 = vmul.f32 %v2846, 0.088388346
        %v3103 = vmul.f32 %v2847, 0.088388346
        %v3104 = vmul.f32 %v2848, 0.088388346
        %v3105 = vmul.f32 %v2849, 0.088388346
        %v3106 = vmul.f32 %v2850, 0.088388346
        %v3107 = vmul.f32 %v2851, 0.088388346
        %v3108 = vmul.f32 %v2852, 0.088388346
        %v3109 = vmul.f32 %v2853, 0.088388346
        %v3110 = vmul.f32 %v2854, 0.088388346
        %v3111 = vmul.f32 %v2855, 0.088388346
        %v3112 = vmul.f32 %v2856, 0.088388346
        %v3113 = vmul.f32 %v2857, 0.088388346
        %v3114 = vmul.f32 %v2858, 0.088388346
        %v3115 = vmul.f32 %v2859, 0.088388346
        %v3116 = vmul.f32 %v2860, 0.088388346
        %v3117 = vmul.f32 %v2861, 0.088388346
        %v3118 = vmul.f32 %v2862, 0.088388346
        %v3119 = vmul.f32 %v2863, 0.088388346
        %v3120 = vmul.f32 %v2864, 0.088388346
        %v3121 = vmul.f32 %v2865, 0.088388346
        %v3122 = vmul.f32 %v2866, 0.088388346
        %v3123 = vmul.f32 %v2867, 0.088388346
        %v3124 = vmul.f32 %v2868, 0.088388346
        %v3125 = vmul.f32 %v2869, 0.088388346
        %v3126 = vmul.f32 %v2870, 0.088388346
        %v3127 = vmul.f32 %v2871, 0.088388346
        %v3128 = vmul.f32 %v2872, 0.088388346
        %v3129 = vmul.f32 %v2873, 0.088388346
        %v3130 = vmul.f32 %v2874, 0.088388346
        %v3131 = vmul.f32 %v2875, 0.088388346
        %v3132 = vmul.f32 %v2876, 0.088388346
        %v3133 = vmul.f32 %v2877, 0.088388346
        %v3134 = vmul.f32 %v2878, 0.088388346
        %v3135 = vmul.f32 %v2879, 0.088388346
        %v3136 = vmul.f32 %v2880, 0.088388346
        %v3137 = vmul.f32 %v2881, 0.088388346
        %v3138 = vmul.f32 %v2882, 0.088388346
        %v3139 = vmul.f32 %v2883, 0.088388346
        %v3140 = vmul.f32 %v2884, 0.088388346
        %v3141 = vmul.f32 %v2885, 0.088388346
        %v3142 = vmul.f32 %v2886, 0.088388346
        %v3143 = vmul.f32 %v2887, 0.088388346
        %v3144 = vmul.f32 %v2888, 0.088388346
        %v3145 = vmul.f32 %v2889, 0.088388346
        %v3146 = vmul.f32 %v2890, 0.088388346
        %v3147 = vmul.f32 %v2891, 0.088388346
        %v3148 = vmul.f32 %v2892, 0.088388346
        %v3149 = vmul.f32 %v2893, 0.088388346
        %v3150 = vmul.f32 %v2894, 0.088388346
        %v3151 = vmul.f32 %v2895, 0.088388346
        %v3152 = vmul.f32 %v2896, 0.088388346
        %v3153 = vmul.f32 %v2897, 0.088388346
        %v3154 = vmul.f32 %v2898, 0.088388346
        %v3155 = vmul.f32 %v2899, 0.088388346
        %v3156 = vmul.f32 %v2900, 0.088388346
        %v3157 = vmul.f32 %v2901, 0.088388346
        %v3158 = vmul.f32 %v2902, 0.088388346
        %v3159 = vmul.f32 %v2903, 0.088388346
        %v3160 = vmul.f32 %v2904, 0.088388346
        %v3161 = vmul.f32 %v2905, 0.088388346
        %v3162 = vmul.f32 %v2906, 0.088388346
        %v3163 = vmul.f32 %v2907, 0.088388346
        %v3164 = vmul.f32 %v2908, 0.088388346
        %v3165 = vmul.f32 %v2909, 0.088388346
        %v3166 = vmul.f32 %v2910, 0.088388346
        %v3167 = vmul.f32 %v2911, 0.088388346
        %v3168 = vmul.f32 %v2912, 0.088388346
        %v3169 = vmul.f32 %v2913, 0.088388346
        %v3170 = vmul.f32 %v2914, 0.088388346
        %v3171 = vmul.f32 %v2915, 0.088388346
        %v3172 = vmul.f32 %v2916, 0.088388346
        %v3173 = vmul.f32 %v2917, 0.088388346
        %v3174 = vmul.f32 %v2918, 0.088388346
        %v3175 = vmul.f32 %v2919, 0.088388346
        %v3176 = vmul.f32 %v2920, 0.088388346
        %v3177 = vmul.f32 %v2921, 0.088388346
        %v3178 = vmul.f32 %v2922, 0.088388346
        %v3179 = vmul.f32 %v2923, 0.088388346
        %v3180 = vmul.f32 %v2924, 0.088388346
        %v3181 = vmul.f32 %v2925, 0.088388346
        %v3182 = vmul.f32 %v2926, 0.088388346
        %v3183 = vmul.f32 %v2927, 0.088388346
        %v3184 = vmul.f32 %v2928, 0.088388346
        %v3185 = vmul.f32 %v2929, 0.088388346
        %v3186 = vmul.f32 %v2930, 0.088388346
        %v3187 = vmul.f32 %v2931, 0.088388346
        %v3188 = vmul.f32 %v2932, 0.088388346
        %v3189 = vmul.f32 %v2933, 0.088388346
        %v3190 = vmul.f32 %v2934, 0.088388346
        %v3191 = vmul.f32 %v2935, 0.088388346
        %v3192 = vmul.f32 %v2936, 0.088388346
        %v3193 = vmul.f32 %v2937, 0.088388346
        %v3194 = vmul.f32 %v2938, 0.088388346
        %v3195 = vmul.f32 %v2939, 0.088388346
        %v3196 = vmul.f32 %v2940, 0.088388346
        %v3197 = vmul.f32 %v2941, 0.088388346
        %v3198 = vmul.f32 %v2942, 0.088388346
        %v3199 = vmul.f32 %v2943, 0.088388346
        %v3200 = vmul.f32 %v2944, 0.088388346
        %v3201 = vmul.f32 %v2945, 0.088388346
        %v3202 = vmul.f32 %v2946, 0.088388346
        %v3203 = vmul.f32 %v2947, 0.088388346
        %v3204 = vmul.f32 %v2948, 0.088388346
        %v3205 = vmul.f32 %v2949, 0.088388346
        %v3206 = vmul.f32 %v2950, 0.088388346
        %v3207 = vmul.f32 %v2951, 0.088388346
        %v3208 = vmul.f32 %v2952, 0.088388346
        %v3209 = vmul.f32 %v2953, 0.088388346
        %v3210 = vmul.f32 %v2954, 0.088388346
        %v3211 = vmul.f32 %v2955, 0.088388346
        %v3212 = vmul.f32 %v2956, 0.088388346
        %v3213 = vmul.f32 %v2957, 0.088388346
        %v3214 = vmul.f32 %v2958, 0.088388346
        %v3215 = vmul.f32 %v2959, 0.088388346
        %v3216 = vmul.f32 %v2960, 0.088388346
        %v3217 = vmul.f32 %v2961, 0.088388346
        %v3218 = vmul.f32 %v2962, 0.088388346
        %v3219 = vmul.f32 %v2963, 0.088388346
        %v3220 = vmul.f32 %v2964, 0.088388346
        %v3221 = vmul.f32 %v2965, 0.088388346
        %v3222 = vmul.f32 %v2966, 0.088388346
        %vm3223 = vcmask 261120
        %v3224 = vsel %vm3223, %v2967, -inf
        %3225 = vmax.xlane.f32.xlu0 %v3224
        %v3226 = vpop.xlane.xlu0 %3225
        %v3227 = vsel %vm3223, %v2968, -inf
        %3228 = vmax.xlane.f32.xlu0 %v3227
        %v3229 = vpop.xlane.xlu0 %3228
        %v3230 = vsel %vm3223, %v2969, -inf
        %3231 = vmax.xlane.f32.xlu0 %v3230
        %v3232 = vpop.xlane.xlu0 %3231
        %v3233 = vsel %vm3223, %v2970, -inf
        %3234 = vmax.xlane.f32.xlu0 %v3233
        %v3235 = vpop.xlane.xlu0 %3234
        %v3236 = vsel %vm3223, %v2971, -inf
        %3237 = vmax.xlane.f32.xlu0 %v3236
        %v3238 = vpop.xlane.xlu0 %3237
        %v3239 = vsel %vm3223, %v2972, -inf
        %3240 = vmax.xlane.f32.xlu0 %v3239
        %v3241 = vpop.xlane.xlu0 %3240
        %v3242 = vsel %vm3223, %v2973, -inf
        %3243 = vmax.xlane.f32.xlu0 %v3242
        %v3244 = vpop.xlane.xlu0 %3243
        %v3245 = vsel %vm3223, %v2974, -inf
        %3246 = vmax.xlane.f32.xlu0 %v3245
        %v3247 = vpop.xlane.xlu0 %3246
        %v3248 = vsel %vm3223, %v2975, -inf
        %3249 = vmax.xlane.f32.xlu0 %v3248
        %v3250 = vpop.xlane.xlu0 %3249
        %v3251 = vsel %vm3223, %v2976, -inf
        %3252 = vmax.xlane.f32.xlu0 %v3251
        %v3253 = vpop.xlane.xlu0 %3252
        %v3254 = vsel %vm3223, %v2977, -inf
        %3255 = vmax.xlane.f32.xlu0 %v3254
        %v3256 = vpop.xlane.xlu0 %3255
        %v3257 = vsel %vm3223, %v2978, -inf
        %3258 = vmax.xlane.f32.xlu0 %v3257
        %v3259 = vpop.xlane.xlu0 %3258
        %v3260 = vsel %vm3223, %v2979, -inf
        %3261 = vmax.xlane.f32.xlu0 %v3260
        %v3262 = vpop.xlane.xlu0 %3261
        %v3263 = vsel %vm3223, %v2980, -inf
        %3264 = vmax.xlane.f32.xlu0 %v3263
        %v3265 = vpop.xlane.xlu0 %3264
        %v3266 = vsel %vm3223, %v2981, -inf
        %3267 = vmax.xlane.f32.xlu0 %v3266
        %v3268 = vpop.xlane.xlu0 %3267
        %v3269 = vsel %vm3223, %v2982, -inf
        %3270 = vmax.xlane.f32.xlu0 %v3269
        %v3271 = vpop.xlane.xlu0 %3270
        %v3272 = vsel %vm3223, %v2983, -inf
        %3273 = vmax.xlane.f32.xlu0 %v3272
        %v3274 = vpop.xlane.xlu0 %3273
        %v3275 = vsel %vm3223, %v2984, -inf
        %3276 = vmax.xlane.f32.xlu0 %v3275
        %v3277 = vpop.xlane.xlu0 %3276
        %v3278 = vsel %vm3223, %v2985, -inf
        %3279 = vmax.xlane.f32.xlu0 %v3278
        %v3280 = vpop.xlane.xlu0 %3279
        %v3281 = vsel %vm3223, %v2986, -inf
        %3282 = vmax.xlane.f32.xlu0 %v3281
        %v3283 = vpop.xlane.xlu0 %3282
        %v3284 = vsel %vm3223, %v2987, -inf
        %3285 = vmax.xlane.f32.xlu0 %v3284
        %v3286 = vpop.xlane.xlu0 %3285
        %v3287 = vsel %vm3223, %v2988, -inf
        %3288 = vmax.xlane.f32.xlu0 %v3287
        %v3289 = vpop.xlane.xlu0 %3288
        %v3290 = vsel %vm3223, %v2989, -inf
        %3291 = vmax.xlane.f32.xlu0 %v3290
        %v3292 = vpop.xlane.xlu0 %3291
        %v3293 = vsel %vm3223, %v2990, -inf
        %3294 = vmax.xlane.f32.xlu0 %v3293
        %v3295 = vpop.xlane.xlu0 %3294
        %v3296 = vsel %vm3223, %v2991, -inf
        %3297 = vmax.xlane.f32.xlu0 %v3296
        %v3298 = vpop.xlane.xlu0 %3297
        %v3299 = vsel %vm3223, %v2992, -inf
        %3300 = vmax.xlane.f32.xlu0 %v3299
        %v3301 = vpop.xlane.xlu0 %3300
        %v3302 = vsel %vm3223, %v2993, -inf
        %3303 = vmax.xlane.f32.xlu0 %v3302
        %v3304 = vpop.xlane.xlu0 %3303
        %v3305 = vsel %vm3223, %v2994, -inf
        %3306 = vmax.xlane.f32.xlu0 %v3305
        %v3307 = vpop.xlane.xlu0 %3306
        %v3308 = vsel %vm3223, %v2995, -inf
        %3309 = vmax.xlane.f32.xlu0 %v3308
        %v3310 = vpop.xlane.xlu0 %3309
        %v3311 = vsel %vm3223, %v2996, -inf
        %3312 = vmax.xlane.f32.xlu0 %v3311
        %v3313 = vpop.xlane.xlu0 %3312
        %v3314 = vsel %vm3223, %v2997, -inf
        %3315 = vmax.xlane.f32.xlu0 %v3314
        %v3316 = vpop.xlane.xlu0 %3315
        %v3317 = vsel %vm3223, %v2998, -inf
        %3318 = vmax.xlane.f32.xlu0 %v3317
        %v3319 = vpop.xlane.xlu0 %3318
        %v3320 = vsel %vm3223, %v2999, -inf
        %3321 = vmax.xlane.f32.xlu0 %v3320
        %v3322 = vpop.xlane.xlu0 %3321
        %v3323 = vsel %vm3223, %v3000, -inf
        %3324 = vmax.xlane.f32.xlu0 %v3323
        %v3325 = vpop.xlane.xlu0 %3324
        %v3326 = vsel %vm3223, %v3001, -inf
        %3327 = vmax.xlane.f32.xlu0 %v3326
        %v3328 = vpop.xlane.xlu0 %3327
        %v3329 = vsel %vm3223, %v3002, -inf
        %3330 = vmax.xlane.f32.xlu0 %v3329
        %v3331 = vpop.xlane.xlu0 %3330
        %v3332 = vsel %vm3223, %v3003, -inf
        %3333 = vmax.xlane.f32.xlu0 %v3332
        %v3334 = vpop.xlane.xlu0 %3333
        %v3335 = vsel %vm3223, %v3004, -inf
        %3336 = vmax.xlane.f32.xlu0 %v3335
        %v3337 = vpop.xlane.xlu0 %3336
        %v3338 = vsel %vm3223, %v3005, -inf
        %3339 = vmax.xlane.f32.xlu0 %v3338
        %v3340 = vpop.xlane.xlu0 %3339
        %v3341 = vsel %vm3223, %v3006, -inf
        %3342 = vmax.xlane.f32.xlu0 %v3341
        %v3343 = vpop.xlane.xlu0 %3342
        %v3344 = vsel %vm3223, %v3007, -inf
        %3345 = vmax.xlane.f32.xlu0 %v3344
        %v3346 = vpop.xlane.xlu0 %3345
        %v3347 = vsel %vm3223, %v3008, -inf
        %3348 = vmax.xlane.f32.xlu0 %v3347
        %v3349 = vpop.xlane.xlu0 %3348
        %v3350 = vsel %vm3223, %v3009, -inf
        %3351 = vmax.xlane.f32.xlu0 %v3350
        %v3352 = vpop.xlane.xlu0 %3351
        %v3353 = vsel %vm3223, %v3010, -inf
        %3354 = vmax.xlane.f32.xlu0 %v3353
        %v3355 = vpop.xlane.xlu0 %3354
        %v3356 = vsel %vm3223, %v3011, -inf
        %3357 = vmax.xlane.f32.xlu0 %v3356
        %v3358 = vpop.xlane.xlu0 %3357
        %v3359 = vsel %vm3223, %v3012, -inf
        %3360 = vmax.xlane.f32.xlu0 %v3359
        %v3361 = vpop.xlane.xlu0 %3360
        %v3362 = vsel %vm3223, %v3013, -inf
        %3363 = vmax.xlane.f32.xlu0 %v3362
        %v3364 = vpop.xlane.xlu0 %3363
        %v3365 = vsel %vm3223, %v3014, -inf
        %3366 = vmax.xlane.f32.xlu0 %v3365
        %v3367 = vpop.xlane.xlu0 %3366
        %v3368 = vsel %vm3223, %v3015, -inf
        %3369 = vmax.xlane.f32.xlu0 %v3368
        %v3370 = vpop.xlane.xlu0 %3369
        %v3371 = vsel %vm3223, %v3016, -inf
        %3372 = vmax.xlane.f32.xlu0 %v3371
        %v3373 = vpop.xlane.xlu0 %3372
        %v3374 = vsel %vm3223, %v3017, -inf
        %3375 = vmax.xlane.f32.xlu0 %v3374
        %v3376 = vpop.xlane.xlu0 %3375
        %v3377 = vsel %vm3223, %v3018, -inf
        %3378 = vmax.xlane.f32.xlu0 %v3377
        %v3379 = vpop.xlane.xlu0 %3378
        %v3380 = vsel %vm3223, %v3019, -inf
        %3381 = vmax.xlane.f32.xlu0 %v3380
        %v3382 = vpop.xlane.xlu0 %3381
        %v3383 = vsel %vm3223, %v3020, -inf
        %3384 = vmax.xlane.f32.xlu0 %v3383
        %v3385 = vpop.xlane.xlu0 %3384
        %v3386 = vsel %vm3223, %v3021, -inf
        %3387 = vmax.xlane.f32.xlu0 %v3386
        %v3388 = vpop.xlane.xlu0 %3387
        %v3389 = vsel %vm3223, %v3022, -inf
        %3390 = vmax.xlane.f32.xlu0 %v3389
        %v3391 = vpop.xlane.xlu0 %3390
        %v3392 = vsel %vm3223, %v3023, -inf
        %3393 = vmax.xlane.f32.xlu0 %v3392
        %v3394 = vpop.xlane.xlu0 %3393
        %v3395 = vsel %vm3223, %v3024, -inf
        %3396 = vmax.xlane.f32.xlu0 %v3395
        %v3397 = vpop.xlane.xlu0 %3396
        %v3398 = vsel %vm3223, %v3025, -inf
        %3399 = vmax.xlane.f32.xlu0 %v3398
        %v3400 = vpop.xlane.xlu0 %3399
        %v3401 = vsel %vm3223, %v3026, -inf
        %3402 = vmax.xlane.f32.xlu0 %v3401
        %v3403 = vpop.xlane.xlu0 %3402
        %v3404 = vsel %vm3223, %v3027, -inf
        %3405 = vmax.xlane.f32.xlu0 %v3404
        %v3406 = vpop.xlane.xlu0 %3405
        %v3407 = vsel %vm3223, %v3028, -inf
        %3408 = vmax.xlane.f32.xlu0 %v3407
        %v3409 = vpop.xlane.xlu0 %3408
        %v3410 = vsel %vm3223, %v3029, -inf
        %3411 = vmax.xlane.f32.xlu0 %v3410
        %v3412 = vpop.xlane.xlu0 %3411
        %v3413 = vsel %vm3223, %v3030, -inf
        %3414 = vmax.xlane.f32.xlu0 %v3413
        %v3415 = vpop.xlane.xlu0 %3414
        %v3416 = vsel %vm3223, %v3031, -inf
        %3417 = vmax.xlane.f32.xlu0 %v3416
        %v3418 = vpop.xlane.xlu0 %3417
        %v3419 = vsel %vm3223, %v3032, -inf
        %3420 = vmax.xlane.f32.xlu0 %v3419
        %v3421 = vpop.xlane.xlu0 %3420
        %v3422 = vsel %vm3223, %v3033, -inf
        %3423 = vmax.xlane.f32.xlu0 %v3422
        %v3424 = vpop.xlane.xlu0 %3423
        %v3425 = vsel %vm3223, %v3034, -inf
        %3426 = vmax.xlane.f32.xlu0 %v3425
        %v3427 = vpop.xlane.xlu0 %3426
        %v3428 = vsel %vm3223, %v3035, -inf
        %3429 = vmax.xlane.f32.xlu0 %v3428
        %v3430 = vpop.xlane.xlu0 %3429
        %v3431 = vsel %vm3223, %v3036, -inf
        %3432 = vmax.xlane.f32.xlu0 %v3431
        %v3433 = vpop.xlane.xlu0 %3432
        %v3434 = vsel %vm3223, %v3037, -inf
        %3435 = vmax.xlane.f32.xlu0 %v3434
        %v3436 = vpop.xlane.xlu0 %3435
        %v3437 = vsel %vm3223, %v3038, -inf
        %3438 = vmax.xlane.f32.xlu0 %v3437
        %v3439 = vpop.xlane.xlu0 %3438
        %v3440 = vsel %vm3223, %v3039, -inf
        %3441 = vmax.xlane.f32.xlu0 %v3440
        %v3442 = vpop.xlane.xlu0 %3441
        %v3443 = vsel %vm3223, %v3040, -inf
        %3444 = vmax.xlane.f32.xlu0 %v3443
        %v3445 = vpop.xlane.xlu0 %3444
        %v3446 = vsel %vm3223, %v3041, -inf
        %3447 = vmax.xlane.f32.xlu0 %v3446
        %v3448 = vpop.xlane.xlu0 %3447
        %v3449 = vsel %vm3223, %v3042, -inf
        %3450 = vmax.xlane.f32.xlu0 %v3449
        %v3451 = vpop.xlane.xlu0 %3450
        %v3452 = vsel %vm3223, %v3043, -inf
        %3453 = vmax.xlane.f32.xlu0 %v3452
        %v3454 = vpop.xlane.xlu0 %3453
        %v3455 = vsel %vm3223, %v3044, -inf
        %3456 = vmax.xlane.f32.xlu0 %v3455
        %v3457 = vpop.xlane.xlu0 %3456
        %v3458 = vsel %vm3223, %v3045, -inf
        %3459 = vmax.xlane.f32.xlu0 %v3458
        %v3460 = vpop.xlane.xlu0 %3459
        %v3461 = vsel %vm3223, %v3046, -inf
        %3462 = vmax.xlane.f32.xlu0 %v3461
        %v3463 = vpop.xlane.xlu0 %3462
        %v3464 = vsel %vm3223, %v3047, -inf
        %3465 = vmax.xlane.f32.xlu0 %v3464
        %v3466 = vpop.xlane.xlu0 %3465
        %v3467 = vsel %vm3223, %v3048, -inf
        %3468 = vmax.xlane.f32.xlu0 %v3467
        %v3469 = vpop.xlane.xlu0 %3468
        %v3470 = vsel %vm3223, %v3049, -inf
        %3471 = vmax.xlane.f32.xlu0 %v3470
        %v3472 = vpop.xlane.xlu0 %3471
        %v3473 = vsel %vm3223, %v3050, -inf
        %3474 = vmax.xlane.f32.xlu0 %v3473
        %v3475 = vpop.xlane.xlu0 %3474
        %v3476 = vsel %vm3223, %v3051, -inf
        %3477 = vmax.xlane.f32.xlu0 %v3476
        %v3478 = vpop.xlane.xlu0 %3477
        %v3479 = vsel %vm3223, %v3052, -inf
        %3480 = vmax.xlane.f32.xlu0 %v3479
        %v3481 = vpop.xlane.xlu0 %3480
        %v3482 = vsel %vm3223, %v3053, -inf
        %3483 = vmax.xlane.f32.xlu0 %v3482
        %v3484 = vpop.xlane.xlu0 %3483
        %v3485 = vsel %vm3223, %v3054, -inf
        %3486 = vmax.xlane.f32.xlu0 %v3485
        %v3487 = vpop.xlane.xlu0 %3486
        %v3488 = vsel %vm3223, %v3055, -inf
        %3489 = vmax.xlane.f32.xlu0 %v3488
        %v3490 = vpop.xlane.xlu0 %3489
        %v3491 = vsel %vm3223, %v3056, -inf
        %3492 = vmax.xlane.f32.xlu0 %v3491
        %v3493 = vpop.xlane.xlu0 %3492
        %v3494 = vsel %vm3223, %v3057, -inf
        %3495 = vmax.xlane.f32.xlu0 %v3494
        %v3496 = vpop.xlane.xlu0 %3495
        %v3497 = vsel %vm3223, %v3058, -inf
        %3498 = vmax.xlane.f32.xlu0 %v3497
        %v3499 = vpop.xlane.xlu0 %3498
        %v3500 = vsel %vm3223, %v3059, -inf
        %3501 = vmax.xlane.f32.xlu0 %v3500
        %v3502 = vpop.xlane.xlu0 %3501
        %v3503 = vsel %vm3223, %v3060, -inf
        %3504 = vmax.xlane.f32.xlu0 %v3503
        %v3505 = vpop.xlane.xlu0 %3504
        %v3506 = vsel %vm3223, %v3061, -inf
        %3507 = vmax.xlane.f32.xlu0 %v3506
        %v3508 = vpop.xlane.xlu0 %3507
        %v3509 = vsel %vm3223, %v3062, -inf
        %3510 = vmax.xlane.f32.xlu0 %v3509
        %v3511 = vpop.xlane.xlu0 %3510
        %v3512 = vsel %vm3223, %v3063, -inf
        %3513 = vmax.xlane.f32.xlu0 %v3512
        %v3514 = vpop.xlane.xlu0 %3513
        %v3515 = vsel %vm3223, %v3064, -inf
        %3516 = vmax.xlane.f32.xlu0 %v3515
        %v3517 = vpop.xlane.xlu0 %3516
        %v3518 = vsel %vm3223, %v3065, -inf
        %3519 = vmax.xlane.f32.xlu0 %v3518
        %v3520 = vpop.xlane.xlu0 %3519
        %v3521 = vsel %vm3223, %v3066, -inf
        %3522 = vmax.xlane.f32.xlu0 %v3521
        %v3523 = vpop.xlane.xlu0 %3522
        %v3524 = vsel %vm3223, %v3067, -inf
        %3525 = vmax.xlane.f32.xlu0 %v3524
        %v3526 = vpop.xlane.xlu0 %3525
        %v3527 = vsel %vm3223, %v3068, -inf
        %3528 = vmax.xlane.f32.xlu0 %v3527
        %v3529 = vpop.xlane.xlu0 %3528
        %v3530 = vsel %vm3223, %v3069, -inf
        %3531 = vmax.xlane.f32.xlu0 %v3530
        %v3532 = vpop.xlane.xlu0 %3531
        %v3533 = vsel %vm3223, %v3070, -inf
        %3534 = vmax.xlane.f32.xlu0 %v3533
        %v3535 = vpop.xlane.xlu0 %3534
        %v3536 = vsel %vm3223, %v3071, -inf
        %3537 = vmax.xlane.f32.xlu0 %v3536
        %v3538 = vpop.xlane.xlu0 %3537
        %v3539 = vsel %vm3223, %v3072, -inf
        %3540 = vmax.xlane.f32.xlu0 %v3539
        %v3541 = vpop.xlane.xlu0 %3540
        %v3542 = vsel %vm3223, %v3073, -inf
        %3543 = vmax.xlane.f32.xlu0 %v3542
        %v3544 = vpop.xlane.xlu0 %3543
        %v3545 = vsel %vm3223, %v3074, -inf
        %3546 = vmax.xlane.f32.xlu0 %v3545
        %v3547 = vpop.xlane.xlu0 %3546
        %v3548 = vsel %vm3223, %v3075, -inf
        %3549 = vmax.xlane.f32.xlu0 %v3548
        %v3550 = vpop.xlane.xlu0 %3549
        %v3551 = vsel %vm3223, %v3076, -inf
        %3552 = vmax.xlane.f32.xlu0 %v3551
        %v3553 = vpop.xlane.xlu0 %3552
        %v3554 = vsel %vm3223, %v3077, -inf
        %3555 = vmax.xlane.f32.xlu0 %v3554
        %v3556 = vpop.xlane.xlu0 %3555
        %v3557 = vsel %vm3223, %v3078, -inf
        %3558 = vmax.xlane.f32.xlu0 %v3557
        %v3559 = vpop.xlane.xlu0 %3558
        %v3560 = vsel %vm3223, %v3079, -inf
        %3561 = vmax.xlane.f32.xlu0 %v3560
        %v3562 = vpop.xlane.xlu0 %3561
        %v3563 = vsel %vm3223, %v3080, -inf
        %3564 = vmax.xlane.f32.xlu0 %v3563
        %v3565 = vpop.xlane.xlu0 %3564
        %v3566 = vsel %vm3223, %v3081, -inf
        %3567 = vmax.xlane.f32.xlu0 %v3566
        %v3568 = vpop.xlane.xlu0 %3567
        %v3569 = vsel %vm3223, %v3082, -inf
        %3570 = vmax.xlane.f32.xlu0 %v3569
        %v3571 = vpop.xlane.xlu0 %3570
        %v3572 = vsel %vm3223, %v3083, -inf
        %3573 = vmax.xlane.f32.xlu0 %v3572
        %v3574 = vpop.xlane.xlu0 %3573
        %v3575 = vsel %vm3223, %v3084, -inf
        %3576 = vmax.xlane.f32.xlu0 %v3575
        %v3577 = vpop.xlane.xlu0 %3576
        %v3578 = vsel %vm3223, %v3085, -inf
        %3579 = vmax.xlane.f32.xlu0 %v3578
        %v3580 = vpop.xlane.xlu0 %3579
        %v3581 = vsel %vm3223, %v3086, -inf
        %3582 = vmax.xlane.f32.xlu0 %v3581
        %v3583 = vpop.xlane.xlu0 %3582
        %v3584 = vsel %vm3223, %v3087, -inf
        %3585 = vmax.xlane.f32.xlu0 %v3584
        %v3586 = vpop.xlane.xlu0 %3585
        %v3587 = vsel %vm3223, %v3088, -inf
        %3588 = vmax.xlane.f32.xlu0 %v3587
        %v3589 = vpop.xlane.xlu0 %3588
        %v3590 = vsel %vm3223, %v3089, -inf
        %3591 = vmax.xlane.f32.xlu0 %v3590
        %v3592 = vpop.xlane.xlu0 %3591
        %v3593 = vsel %vm3223, %v3090, -inf
        %3594 = vmax.xlane.f32.xlu0 %v3593
        %v3595 = vpop.xlane.xlu0 %3594
        %v3596 = vsel %vm3223, %v3091, -inf
        %3597 = vmax.xlane.f32.xlu0 %v3596
        %v3598 = vpop.xlane.xlu0 %3597
        %v3599 = vsel %vm3223, %v3092, -inf
        %3600 = vmax.xlane.f32.xlu0 %v3599
        %v3601 = vpop.xlane.xlu0 %3600
        %v3602 = vsel %vm3223, %v3093, -inf
        %3603 = vmax.xlane.f32.xlu0 %v3602
        %v3604 = vpop.xlane.xlu0 %3603
        %v3605 = vsel %vm3223, %v3094, -inf
        %3606 = vmax.xlane.f32.xlu0 %v3605
        %v3607 = vpop.xlane.xlu0 %3606
        %v3608 = vsel %vm3223, %v3095, -inf
        %3609 = vmax.xlane.f32.xlu0 %v3608
        %v3610 = vpop.xlane.xlu0 %3609
        %v3611 = vsel %vm3223, %v3096, -inf
        %3612 = vmax.xlane.f32.xlu0 %v3611
        %v3613 = vpop.xlane.xlu0 %3612
        %v3614 = vsel %vm3223, %v3097, -inf
        %3615 = vmax.xlane.f32.xlu0 %v3614
        %v3616 = vpop.xlane.xlu0 %3615
        %v3617 = vsel %vm3223, %v3098, -inf
        %3618 = vmax.xlane.f32.xlu0 %v3617
        %v3619 = vpop.xlane.xlu0 %3618
        %v3620 = vsel %vm3223, %v3099, -inf
        %3621 = vmax.xlane.f32.xlu0 %v3620
        %v3622 = vpop.xlane.xlu0 %3621
        %v3623 = vsel %vm3223, %v3100, -inf
        %3624 = vmax.xlane.f32.xlu0 %v3623
        %v3625 = vpop.xlane.xlu0 %3624
        %v3626 = vsel %vm3223, %v3101, -inf
        %3627 = vmax.xlane.f32.xlu0 %v3626
        %v3628 = vpop.xlane.xlu0 %3627
        %v3629 = vsel %vm3223, %v3102, -inf
        %3630 = vmax.xlane.f32.xlu0 %v3629
        %v3631 = vpop.xlane.xlu0 %3630
        %v3632 = vsel %vm3223, %v3103, -inf
        %3633 = vmax.xlane.f32.xlu0 %v3632
        %v3634 = vpop.xlane.xlu0 %3633
        %v3635 = vsel %vm3223, %v3104, -inf
        %3636 = vmax.xlane.f32.xlu0 %v3635
        %v3637 = vpop.xlane.xlu0 %3636
        %v3638 = vsel %vm3223, %v3105, -inf
        %3639 = vmax.xlane.f32.xlu0 %v3638
        %v3640 = vpop.xlane.xlu0 %3639
        %v3641 = vsel %vm3223, %v3106, -inf
        %3642 = vmax.xlane.f32.xlu0 %v3641
        %v3643 = vpop.xlane.xlu0 %3642
        %v3644 = vsel %vm3223, %v3107, -inf
        %3645 = vmax.xlane.f32.xlu0 %v3644
        %v3646 = vpop.xlane.xlu0 %3645
        %v3647 = vsel %vm3223, %v3108, -inf
        %3648 = vmax.xlane.f32.xlu0 %v3647
        %v3649 = vpop.xlane.xlu0 %3648
        %v3650 = vsel %vm3223, %v3109, -inf
        %3651 = vmax.xlane.f32.xlu0 %v3650
        %v3652 = vpop.xlane.xlu0 %3651
        %v3653 = vsel %vm3223, %v3110, -inf
        %3654 = vmax.xlane.f32.xlu0 %v3653
        %v3655 = vpop.xlane.xlu0 %3654
        %v3656 = vsel %vm3223, %v3111, -inf
        %3657 = vmax.xlane.f32.xlu0 %v3656
        %v3658 = vpop.xlane.xlu0 %3657
        %v3659 = vsel %vm3223, %v3112, -inf
        %3660 = vmax.xlane.f32.xlu0 %v3659
        %v3661 = vpop.xlane.xlu0 %3660
        %v3662 = vsel %vm3223, %v3113, -inf
        %3663 = vmax.xlane.f32.xlu0 %v3662
        %v3664 = vpop.xlane.xlu0 %3663
        %v3665 = vsel %vm3223, %v3114, -inf
        %3666 = vmax.xlane.f32.xlu0 %v3665
        %v3667 = vpop.xlane.xlu0 %3666
        %v3668 = vsel %vm3223, %v3115, -inf
        %3669 = vmax.xlane.f32.xlu0 %v3668
        %v3670 = vpop.xlane.xlu0 %3669
        %v3671 = vsel %vm3223, %v3116, -inf
        %3672 = vmax.xlane.f32.xlu0 %v3671
        %v3673 = vpop.xlane.xlu0 %3672
        %v3674 = vsel %vm3223, %v3117, -inf
        %3675 = vmax.xlane.f32.xlu0 %v3674
        %v3676 = vpop.xlane.xlu0 %3675
        %v3677 = vsel %vm3223, %v3118, -inf
        %3678 = vmax.xlane.f32.xlu0 %v3677
        %v3679 = vpop.xlane.xlu0 %3678
        %v3680 = vsel %vm3223, %v3119, -inf
        %3681 = vmax.xlane.f32.xlu0 %v3680
        %v3682 = vpop.xlane.xlu0 %3681
        %v3683 = vsel %vm3223, %v3120, -inf
        %3684 = vmax.xlane.f32.xlu0 %v3683
        %v3685 = vpop.xlane.xlu0 %3684
        %v3686 = vsel %vm3223, %v3121, -inf
        %3687 = vmax.xlane.f32.xlu0 %v3686
        %v3688 = vpop.xlane.xlu0 %3687
        %v3689 = vsel %vm3223, %v3122, -inf
        %3690 = vmax.xlane.f32.xlu0 %v3689
        %v3691 = vpop.xlane.xlu0 %3690
        %v3692 = vsel %vm3223, %v3123, -inf
        %3693 = vmax.xlane.f32.xlu0 %v3692
        %v3694 = vpop.xlane.xlu0 %3693
        %v3695 = vsel %vm3223, %v3124, -inf
        %3696 = vmax.xlane.f32.xlu0 %v3695
        %v3697 = vpop.xlane.xlu0 %3696
        %v3698 = vsel %vm3223, %v3125, -inf
        %3699 = vmax.xlane.f32.xlu0 %v3698
        %v3700 = vpop.xlane.xlu0 %3699
        %v3701 = vsel %vm3223, %v3126, -inf
        %3702 = vmax.xlane.f32.xlu0 %v3701
        %v3703 = vpop.xlane.xlu0 %3702
        %v3704 = vsel %vm3223, %v3127, -inf
        %3705 = vmax.xlane.f32.xlu0 %v3704
        %v3706 = vpop.xlane.xlu0 %3705
        %v3707 = vsel %vm3223, %v3128, -inf
        %3708 = vmax.xlane.f32.xlu0 %v3707
        %v3709 = vpop.xlane.xlu0 %3708
        %v3710 = vsel %vm3223, %v3129, -inf
        %3711 = vmax.xlane.f32.xlu0 %v3710
        %v3712 = vpop.xlane.xlu0 %3711
        %v3713 = vsel %vm3223, %v3130, -inf
        %3714 = vmax.xlane.f32.xlu0 %v3713
        %v3715 = vpop.xlane.xlu0 %3714
        %v3716 = vsel %vm3223, %v3131, -inf
        %3717 = vmax.xlane.f32.xlu0 %v3716
        %v3718 = vpop.xlane.xlu0 %3717
        %v3719 = vsel %vm3223, %v3132, -inf
        %3720 = vmax.xlane.f32.xlu0 %v3719
        %v3721 = vpop.xlane.xlu0 %3720
        %v3722 = vsel %vm3223, %v3133, -inf
        %3723 = vmax.xlane.f32.xlu0 %v3722
        %v3724 = vpop.xlane.xlu0 %3723
        %v3725 = vsel %vm3223, %v3134, -inf
        %3726 = vmax.xlane.f32.xlu0 %v3725
        %v3727 = vpop.xlane.xlu0 %3726
        %v3728 = vsel %vm3223, %v3135, -inf
        %3729 = vmax.xlane.f32.xlu0 %v3728
        %v3730 = vpop.xlane.xlu0 %3729
        %v3731 = vsel %vm3223, %v3136, -inf
        %3732 = vmax.xlane.f32.xlu0 %v3731
        %v3733 = vpop.xlane.xlu0 %3732
        %v3734 = vsel %vm3223, %v3137, -inf
        %3735 = vmax.xlane.f32.xlu0 %v3734
        %v3736 = vpop.xlane.xlu0 %3735
        %v3737 = vsel %vm3223, %v3138, -inf
        %3738 = vmax.xlane.f32.xlu0 %v3737
        %v3739 = vpop.xlane.xlu0 %3738
        %v3740 = vsel %vm3223, %v3139, -inf
        %3741 = vmax.xlane.f32.xlu0 %v3740
        %v3742 = vpop.xlane.xlu0 %3741
        %v3743 = vsel %vm3223, %v3140, -inf
        %3744 = vmax.xlane.f32.xlu0 %v3743
        %v3745 = vpop.xlane.xlu0 %3744
        %v3746 = vsel %vm3223, %v3141, -inf
        %3747 = vmax.xlane.f32.xlu0 %v3746
        %v3748 = vpop.xlane.xlu0 %3747
        %v3749 = vsel %vm3223, %v3142, -inf
        %3750 = vmax.xlane.f32.xlu0 %v3749
        %v3751 = vpop.xlane.xlu0 %3750
        %v3752 = vsel %vm3223, %v3143, -inf
        %3753 = vmax.xlane.f32.xlu0 %v3752
        %v3754 = vpop.xlane.xlu0 %3753
        %v3755 = vsel %vm3223, %v3144, -inf
        %3756 = vmax.xlane.f32.xlu0 %v3755
        %v3757 = vpop.xlane.xlu0 %3756
        %v3758 = vsel %vm3223, %v3145, -inf
        %3759 = vmax.xlane.f32.xlu0 %v3758
        %v3760 = vpop.xlane.xlu0 %3759
        %v3761 = vsel %vm3223, %v3146, -inf
        %3762 = vmax.xlane.f32.xlu0 %v3761
        %v3763 = vpop.xlane.xlu0 %3762
        %v3764 = vsel %vm3223, %v3147, -inf
        %3765 = vmax.xlane.f32.xlu0 %v3764
        %v3766 = vpop.xlane.xlu0 %3765
        %v3767 = vsel %vm3223, %v3148, -inf
        %3768 = vmax.xlane.f32.xlu0 %v3767
        %v3769 = vpop.xlane.xlu0 %3768
        %v3770 = vsel %vm3223, %v3149, -inf
        %3771 = vmax.xlane.f32.xlu0 %v3770
        %v3772 = vpop.xlane.xlu0 %3771
        %v3773 = vsel %vm3223, %v3150, -inf
        %3774 = vmax.xlane.f32.xlu0 %v3773
        %v3775 = vpop.xlane.xlu0 %3774
        %v3776 = vsel %vm3223, %v3151, -inf
        %3777 = vmax.xlane.f32.xlu0 %v3776
        %v3778 = vpop.xlane.xlu0 %3777
        %v3779 = vsel %vm3223, %v3152, -inf
        %3780 = vmax.xlane.f32.xlu0 %v3779
        %v3781 = vpop.xlane.xlu0 %3780
        %v3782 = vsel %vm3223, %v3153, -inf
        %3783 = vmax.xlane.f32.xlu0 %v3782
        %v3784 = vpop.xlane.xlu0 %3783
        %v3785 = vsel %vm3223, %v3154, -inf
        %3786 = vmax.xlane.f32.xlu0 %v3785
        %v3787 = vpop.xlane.xlu0 %3786
        %v3788 = vsel %vm3223, %v3155, -inf
        %3789 = vmax.xlane.f32.xlu0 %v3788
        %v3790 = vpop.xlane.xlu0 %3789
        %v3791 = vsel %vm3223, %v3156, -inf
        %3792 = vmax.xlane.f32.xlu0 %v3791
        %v3793 = vpop.xlane.xlu0 %3792
        %v3794 = vsel %vm3223, %v3157, -inf
        %3795 = vmax.xlane.f32.xlu0 %v3794
        %v3796 = vpop.xlane.xlu0 %3795
        %v3797 = vsel %vm3223, %v3158, -inf
        %3798 = vmax.xlane.f32.xlu0 %v3797
        %v3799 = vpop.xlane.xlu0 %3798
        %v3800 = vsel %vm3223, %v3159, -inf
        %3801 = vmax.xlane.f32.xlu0 %v3800
        %v3802 = vpop.xlane.xlu0 %3801
        %v3803 = vsel %vm3223, %v3160, -inf
        %3804 = vmax.xlane.f32.xlu0 %v3803
        %v3805 = vpop.xlane.xlu0 %3804
        %v3806 = vsel %vm3223, %v3161, -inf
        %3807 = vmax.xlane.f32.xlu0 %v3806
        %v3808 = vpop.xlane.xlu0 %3807
        %v3809 = vsel %vm3223, %v3162, -inf
        %3810 = vmax.xlane.f32.xlu0 %v3809
        %v3811 = vpop.xlane.xlu0 %3810
        %v3812 = vsel %vm3223, %v3163, -inf
        %3813 = vmax.xlane.f32.xlu0 %v3812
        %v3814 = vpop.xlane.xlu0 %3813
        %v3815 = vsel %vm3223, %v3164, -inf
        %3816 = vmax.xlane.f32.xlu0 %v3815
        %v3817 = vpop.xlane.xlu0 %3816
        %v3818 = vsel %vm3223, %v3165, -inf
        %3819 = vmax.xlane.f32.xlu0 %v3818
        %v3820 = vpop.xlane.xlu0 %3819
        %v3821 = vsel %vm3223, %v3166, -inf
        %3822 = vmax.xlane.f32.xlu0 %v3821
        %v3823 = vpop.xlane.xlu0 %3822
        %v3824 = vsel %vm3223, %v3167, -inf
        %3825 = vmax.xlane.f32.xlu0 %v3824
        %v3826 = vpop.xlane.xlu0 %3825
        %v3827 = vsel %vm3223, %v3168, -inf
        %3828 = vmax.xlane.f32.xlu0 %v3827
        %v3829 = vpop.xlane.xlu0 %3828
        %v3830 = vsel %vm3223, %v3169, -inf
        %3831 = vmax.xlane.f32.xlu0 %v3830
        %v3832 = vpop.xlane.xlu0 %3831
        %v3833 = vsel %vm3223, %v3170, -inf
        %3834 = vmax.xlane.f32.xlu0 %v3833
        %v3835 = vpop.xlane.xlu0 %3834
        %v3836 = vsel %vm3223, %v3171, -inf
        %3837 = vmax.xlane.f32.xlu0 %v3836
        %v3838 = vpop.xlane.xlu0 %3837
        %v3839 = vsel %vm3223, %v3172, -inf
        %3840 = vmax.xlane.f32.xlu0 %v3839
        %v3841 = vpop.xlane.xlu0 %3840
        %v3842 = vsel %vm3223, %v3173, -inf
        %3843 = vmax.xlane.f32.xlu0 %v3842
        %v3844 = vpop.xlane.xlu0 %3843
        %v3845 = vsel %vm3223, %v3174, -inf
        %3846 = vmax.xlane.f32.xlu0 %v3845
        %v3847 = vpop.xlane.xlu0 %3846
        %v3848 = vsel %vm3223, %v3175, -inf
        %3849 = vmax.xlane.f32.xlu0 %v3848
        %v3850 = vpop.xlane.xlu0 %3849
        %v3851 = vsel %vm3223, %v3176, -inf
        %3852 = vmax.xlane.f32.xlu0 %v3851
        %v3853 = vpop.xlane.xlu0 %3852
        %v3854 = vsel %vm3223, %v3177, -inf
        %3855 = vmax.xlane.f32.xlu0 %v3854
        %v3856 = vpop.xlane.xlu0 %3855
        %v3857 = vsel %vm3223, %v3178, -inf
        %3858 = vmax.xlane.f32.xlu0 %v3857
        %v3859 = vpop.xlane.xlu0 %3858
        %v3860 = vsel %vm3223, %v3179, -inf
        %3861 = vmax.xlane.f32.xlu0 %v3860
        %v3862 = vpop.xlane.xlu0 %3861
        %v3863 = vsel %vm3223, %v3180, -inf
        %3864 = vmax.xlane.f32.xlu0 %v3863
        %v3865 = vpop.xlane.xlu0 %3864
        %v3866 = vsel %vm3223, %v3181, -inf
        %3867 = vmax.xlane.f32.xlu0 %v3866
        %v3868 = vpop.xlane.xlu0 %3867
        %v3869 = vsel %vm3223, %v3182, -inf
        %3870 = vmax.xlane.f32.xlu0 %v3869
        %v3871 = vpop.xlane.xlu0 %3870
        %v3872 = vsel %vm3223, %v3183, -inf
        %3873 = vmax.xlane.f32.xlu0 %v3872
        %v3874 = vpop.xlane.xlu0 %3873
        %v3875 = vsel %vm3223, %v3184, -inf
        %3876 = vmax.xlane.f32.xlu0 %v3875
        %v3877 = vpop.xlane.xlu0 %3876
        %v3878 = vsel %vm3223, %v3185, -inf
        %3879 = vmax.xlane.f32.xlu0 %v3878
        %v3880 = vpop.xlane.xlu0 %3879
        %v3881 = vsel %vm3223, %v3186, -inf
        %3882 = vmax.xlane.f32.xlu0 %v3881
        %v3883 = vpop.xlane.xlu0 %3882
        %v3884 = vsel %vm3223, %v3187, -inf
        %3885 = vmax.xlane.f32.xlu0 %v3884
        %v3886 = vpop.xlane.xlu0 %3885
        %v3887 = vsel %vm3223, %v3188, -inf
        %3888 = vmax.xlane.f32.xlu0 %v3887
        %v3889 = vpop.xlane.xlu0 %3888
        %v3890 = vsel %vm3223, %v3189, -inf
        %3891 = vmax.xlane.f32.xlu0 %v3890
        %v3892 = vpop.xlane.xlu0 %3891
        %v3893 = vsel %vm3223, %v3190, -inf
        %3894 = vmax.xlane.f32.xlu0 %v3893
        %v3895 = vpop.xlane.xlu0 %3894
        %v3896 = vsel %vm3223, %v3191, -inf
        %3897 = vmax.xlane.f32.xlu0 %v3896
        %v3898 = vpop.xlane.xlu0 %3897
        %v3899 = vsel %vm3223, %v3192, -inf
        %3900 = vmax.xlane.f32.xlu0 %v3899
        %v3901 = vpop.xlane.xlu0 %3900
        %v3902 = vsel %vm3223, %v3193, -inf
        %3903 = vmax.xlane.f32.xlu0 %v3902
        %v3904 = vpop.xlane.xlu0 %3903
        %v3905 = vsel %vm3223, %v3194, -inf
        %3906 = vmax.xlane.f32.xlu0 %v3905
        %v3907 = vpop.xlane.xlu0 %3906
        %v3908 = vsel %vm3223, %v3195, -inf
        %3909 = vmax.xlane.f32.xlu0 %v3908
        %v3910 = vpop.xlane.xlu0 %3909
        %v3911 = vsel %vm3223, %v3196, -inf
        %3912 = vmax.xlane.f32.xlu0 %v3911
        %v3913 = vpop.xlane.xlu0 %3912
        %v3914 = vsel %vm3223, %v3197, -inf
        %3915 = vmax.xlane.f32.xlu0 %v3914
        %v3916 = vpop.xlane.xlu0 %3915
        %v3917 = vsel %vm3223, %v3198, -inf
        %3918 = vmax.xlane.f32.xlu0 %v3917
        %v3919 = vpop.xlane.xlu0 %3918
        %v3920 = vsel %vm3223, %v3199, -inf
        %3921 = vmax.xlane.f32.xlu0 %v3920
        %v3922 = vpop.xlane.xlu0 %3921
        %v3923 = vsel %vm3223, %v3200, -inf
        %3924 = vmax.xlane.f32.xlu0 %v3923
        %v3925 = vpop.xlane.xlu0 %3924
        %v3926 = vsel %vm3223, %v3201, -inf
        %3927 = vmax.xlane.f32.xlu0 %v3926
        %v3928 = vpop.xlane.xlu0 %3927
        %v3929 = vsel %vm3223, %v3202, -inf
        %3930 = vmax.xlane.f32.xlu0 %v3929
        %v3931 = vpop.xlane.xlu0 %3930
        %v3932 = vsel %vm3223, %v3203, -inf
        %3933 = vmax.xlane.f32.xlu0 %v3932
        %v3934 = vpop.xlane.xlu0 %3933
        %v3935 = vsel %vm3223, %v3204, -inf
        %3936 = vmax.xlane.f32.xlu0 %v3935
        %v3937 = vpop.xlane.xlu0 %3936
        %v3938 = vsel %vm3223, %v3205, -inf
        %3939 = vmax.xlane.f32.xlu0 %v3938
        %v3940 = vpop.xlane.xlu0 %3939
        %v3941 = vsel %vm3223, %v3206, -inf
        %3942 = vmax.xlane.f32.xlu0 %v3941
        %v3943 = vpop.xlane.xlu0 %3942
        %v3944 = vsel %vm3223, %v3207, -inf
        %3945 = vmax.xlane.f32.xlu0 %v3944
        %v3946 = vpop.xlane.xlu0 %3945
        %v3947 = vsel %vm3223, %v3208, -inf
        %3948 = vmax.xlane.f32.xlu0 %v3947
        %v3949 = vpop.xlane.xlu0 %3948
        %v3950 = vsel %vm3223, %v3209, -inf
        %3951 = vmax.xlane.f32.xlu0 %v3950
        %v3952 = vpop.xlane.xlu0 %3951
        %v3953 = vsel %vm3223, %v3210, -inf
        %3954 = vmax.xlane.f32.xlu0 %v3953
        %v3955 = vpop.xlane.xlu0 %3954
        %v3956 = vsel %vm3223, %v3211, -inf
        %3957 = vmax.xlane.f32.xlu0 %v3956
        %v3958 = vpop.xlane.xlu0 %3957
        %v3959 = vsel %vm3223, %v3212, -inf
        %3960 = vmax.xlane.f32.xlu0 %v3959
        %v3961 = vpop.xlane.xlu0 %3960
        %v3962 = vsel %vm3223, %v3213, -inf
        %3963 = vmax.xlane.f32.xlu0 %v3962
        %v3964 = vpop.xlane.xlu0 %3963
        %v3965 = vsel %vm3223, %v3214, -inf
        %3966 = vmax.xlane.f32.xlu0 %v3965
        %v3967 = vpop.xlane.xlu0 %3966
        %v3968 = vsel %vm3223, %v3215, -inf
        %3969 = vmax.xlane.f32.xlu0 %v3968
        %v3970 = vpop.xlane.xlu0 %3969
        %v3971 = vsel %vm3223, %v3216, -inf
        %3972 = vmax.xlane.f32.xlu0 %v3971
        %v3973 = vpop.xlane.xlu0 %3972
        %v3974 = vsel %vm3223, %v3217, -inf
        %3975 = vmax.xlane.f32.xlu0 %v3974
        %v3976 = vpop.xlane.xlu0 %3975
        %v3977 = vsel %vm3223, %v3218, -inf
        %3978 = vmax.xlane.f32.xlu0 %v3977
        %v3979 = vpop.xlane.xlu0 %3978
        %v3980 = vsel %vm3223, %v3219, -inf
        %3981 = vmax.xlane.f32.xlu0 %v3980
        %v3982 = vpop.xlane.xlu0 %3981
        %v3983 = vsel %vm3223, %v3220, -inf
        %3984 = vmax.xlane.f32.xlu0 %v3983
        %v3985 = vpop.xlane.xlu0 %3984
        %v3986 = vsel %vm3223, %v3221, -inf
        %3987 = vmax.xlane.f32.xlu0 %v3986
        %v3988 = vpop.xlane.xlu0 %3987
        %v3989 = vsel %vm3223, %v3222, -inf
        %3990 = vmax.xlane.f32.xlu0 %v3989
        %v3991 = vpop.xlane.xlu0 %3990
        %v3992 = vsub.f32 %v2967, %v3226
        %v3993 = vsub.f32 %v2968, %v3229
        %v3994 = vsub.f32 %v2969, %v3232
        %v3995 = vsub.f32 %v2970, %v3235
        %v3996 = vsub.f32 %v2971, %v3238
        %v3997 = vsub.f32 %v2972, %v3241
        %v3998 = vsub.f32 %v2973, %v3244
        %v3999 = vsub.f32 %v2974, %v3247
        %v4000 = vsub.f32 %v2975, %v3250
        %v4001 = vsub.f32 %v2976, %v3253
        %v4002 = vsub.f32 %v2977, %v3256
        %v4003 = vsub.f32 %v2978, %v3259
        %v4004 = vsub.f32 %v2979, %v3262
        %v4005 = vsub.f32 %v2980, %v3265
        %v4006 = vsub.f32 %v2981, %v3268
        %v4007 = vsub.f32 %v2982, %v3271
        %v4008 = vsub.f32 %v2983, %v3274
        %v4009 = vsub.f32 %v2984, %v3277
        %v4010 = vsub.f32 %v2985, %v3280
        %v4011 = vsub.f32 %v2986, %v3283
        %v4012 = vsub.f32 %v2987, %v3286
        %v4013 = vsub.f32 %v2988, %v3289
        %v4014 = vsub.f32 %v2989, %v3292
        %v4015 = vsub.f32 %v2990, %v3295
        %v4016 = vsub.f32 %v2991, %v3298
        %v4017 = vsub.f32 %v2992, %v3301
        %v4018 = vsub.f32 %v2993, %v3304
        %v4019 = vsub.f32 %v2994, %v3307
        %v4020 = vsub.f32 %v2995, %v3310
        %v4021 = vsub.f32 %v2996, %v3313
        %v4022 = vsub.f32 %v2997, %v3316
        %v4023 = vsub.f32 %v2998, %v3319
        %v4024 = vsub.f32 %v2999, %v3322
        %v4025 = vsub.f32 %v3000, %v3325
        %v4026 = vsub.f32 %v3001, %v3328
        %v4027 = vsub.f32 %v3002, %v3331
        %v4028 = vsub.f32 %v3003, %v3334
        %v4029 = vsub.f32 %v3004, %v3337
        %v4030 = vsub.f32 %v3005, %v3340
        %v4031 = vsub.f32 %v3006, %v3343
        %v4032 = vsub.f32 %v3007, %v3346
        %v4033 = vsub.f32 %v3008, %v3349
        %v4034 = vsub.f32 %v3009, %v3352
        %v4035 = vsub.f32 %v3010, %v3355
        %v4036 = vsub.f32 %v3011, %v3358
        %v4037 = vsub.f32 %v3012, %v3361
        %v4038 = vsub.f32 %v3013, %v3364
        %v4039 = vsub.f32 %v3014, %v3367
        %v4040 = vsub.f32 %v3015, %v3370
        %v4041 = vsub.f32 %v3016, %v3373
        %v4042 = vsub.f32 %v3017, %v3376
        %v4043 = vsub.f32 %v3018, %v3379
        %v4044 = vsub.f32 %v3019, %v3382
        %v4045 = vsub.f32 %v3020, %v3385
        %v4046 = vsub.f32 %v3021, %v3388
        %v4047 = vsub.f32 %v3022, %v3391
        %v4048 = vsub.f32 %v3023, %v3394
        %v4049 = vsub.f32 %v3024, %v3397
        %v4050 = vsub.f32 %v3025, %v3400
        %v4051 = vsub.f32 %v3026, %v3403
        %v4052 = vsub.f32 %v3027, %v3406
        %v4053 = vsub.f32 %v3028, %v3409
        %v4054 = vsub.f32 %v3029, %v3412
        %v4055 = vsub.f32 %v3030, %v3415
        %v4056 = vsub.f32 %v3031, %v3418
        %v4057 = vsub.f32 %v3032, %v3421
        %v4058 = vsub.f32 %v3033, %v3424
        %v4059 = vsub.f32 %v3034, %v3427
        %v4060 = vsub.f32 %v3035, %v3430
        %v4061 = vsub.f32 %v3036, %v3433
        %v4062 = vsub.f32 %v3037, %v3436
        %v4063 = vsub.f32 %v3038, %v3439
        %v4064 = vsub.f32 %v3039, %v3442
        %v4065 = vsub.f32 %v3040, %v3445
        %v4066 = vsub.f32 %v3041, %v3448
        %v4067 = vsub.f32 %v3042, %v3451
        %v4068 = vsub.f32 %v3043, %v3454
        %v4069 = vsub.f32 %v3044, %v3457
        %v4070 = vsub.f32 %v3045, %v3460
        %v4071 = vsub.f32 %v3046, %v3463
        %v4072 = vsub.f32 %v3047, %v3466
        %v4073 = vsub.f32 %v3048, %v3469
        %v4074 = vsub.f32 %v3049, %v3472
        %v4075 = vsub.f32 %v3050, %v3475
        %v4076 = vsub.f32 %v3051, %v3478
        %v4077 = vsub.f32 %v3052, %v3481
        %v4078 = vsub.f32 %v3053, %v3484
        %v4079 = vsub.f32 %v3054, %v3487
        %v4080 = vsub.f32 %v3055, %v3490
        %v4081 = vsub.f32 %v3056, %v3493
        %v4082 = vsub.f32 %v3057, %v3496
        %v4083 = vsub.f32 %v3058, %v3499
        %v4084 = vsub.f32 %v3059, %v3502
        %v4085 = vsub.f32 %v3060, %v3505
        %v4086 = vsub.f32 %v3061, %v3508
        %v4087 = vsub.f32 %v3062, %v3511
        %v4088 = vsub.f32 %v3063, %v3514
        %v4089 = vsub.f32 %v3064, %v3517
        %v4090 = vsub.f32 %v3065, %v3520
        %v4091 = vsub.f32 %v3066, %v3523
        %v4092 = vsub.f32 %v3067, %v3526
        %v4093 = vsub.f32 %v3068, %v3529
        %v4094 = vsub.f32 %v3069, %v3532
        %v4095 = vsub.f32 %v3070, %v3535
        %v4096 = vsub.f32 %v3071, %v3538
        %v4097 = vsub.f32 %v3072, %v3541
        %v4098 = vsub.f32 %v3073, %v3544
        %v4099 = vsub.f32 %v3074, %v3547
        %v4100 = vsub.f32 %v3075, %v3550
        %v4101 = vsub.f32 %v3076, %v3553
        %v4102 = vsub.f32 %v3077, %v3556
        %v4103 = vsub.f32 %v3078, %v3559
        %v4104 = vsub.f32 %v3079, %v3562
        %v4105 = vsub.f32 %v3080, %v3565
        %v4106 = vsub.f32 %v3081, %v3568
        %v4107 = vsub.f32 %v3082, %v3571
        %v4108 = vsub.f32 %v3083, %v3574
        %v4109 = vsub.f32 %v3084, %v3577
        %v4110 = vsub.f32 %v3085, %v3580
        %v4111 = vsub.f32 %v3086, %v3583
        %v4112 = vsub.f32 %v3087, %v3586
        %v4113 = vsub.f32 %v3088, %v3589
        %v4114 = vsub.f32 %v3089, %v3592
        %v4115 = vsub.f32 %v3090, %v3595
        %v4116 = vsub.f32 %v3091, %v3598
        %v4117 = vsub.f32 %v3092, %v3601
        %v4118 = vsub.f32 %v3093, %v3604
        %v4119 = vsub.f32 %v3094, %v3607
        %v4120 = vsub.f32 %v3095, %v3610
        %v4121 = vsub.f32 %v3096, %v3613
        %v4122 = vsub.f32 %v3097, %v3616
        %v4123 = vsub.f32 %v3098, %v3619
        %v4124 = vsub.f32 %v3099, %v3622
        %v4125 = vsub.f32 %v3100, %v3625
        %v4126 = vsub.f32 %v3101, %v3628
        %v4127 = vsub.f32 %v3102, %v3631
        %v4128 = vsub.f32 %v3103, %v3634
        %v4129 = vsub.f32 %v3104, %v3637
        %v4130 = vsub.f32 %v3105, %v3640
        %v4131 = vsub.f32 %v3106, %v3643
        %v4132 = vsub.f32 %v3107, %v3646
        %v4133 = vsub.f32 %v3108, %v3649
        %v4134 = vsub.f32 %v3109, %v3652
        %v4135 = vsub.f32 %v3110, %v3655
        %v4136 = vsub.f32 %v3111, %v3658
        %v4137 = vsub.f32 %v3112, %v3661
        %v4138 = vsub.f32 %v3113, %v3664
        %v4139 = vsub.f32 %v3114, %v3667
        %v4140 = vsub.f32 %v3115, %v3670
        %v4141 = vsub.f32 %v3116, %v3673
        %v4142 = vsub.f32 %v3117, %v3676
        %v4143 = vsub.f32 %v3118, %v3679
        %v4144 = vsub.f32 %v3119, %v3682
        %v4145 = vsub.f32 %v3120, %v3685
        %v4146 = vsub.f32 %v3121, %v3688
        %v4147 = vsub.f32 %v3122, %v3691
        %v4148 = vsub.f32 %v3123, %v3694
        %v4149 = vsub.f32 %v3124, %v3697
        %v4150 = vsub.f32 %v3125, %v3700
        %v4151 = vsub.f32 %v3126, %v3703
        %v4152 = vsub.f32 %v3127, %v3706
        %v4153 = vsub.f32 %v3128, %v3709
        %v4154 = vsub.f32 %v3129, %v3712
        %v4155 = vsub.f32 %v3130, %v3715
        %v4156 = vsub.f32 %v3131, %v3718
        %v4157 = vsub.f32 %v3132, %v3721
        %v4158 = vsub.f32 %v3133, %v3724
        %v4159 = vsub.f32 %v3134, %v3727
        %v4160 = vsub.f32 %v3135, %v3730
        %v4161 = vsub.f32 %v3136, %v3733
        %v4162 = vsub.f32 %v3137, %v3736
        %v4163 = vsub.f32 %v3138, %v3739
        %v4164 = vsub.f32 %v3139, %v3742
        %v4165 = vsub.f32 %v3140, %v3745
        %v4166 = vsub.f32 %v3141, %v3748
        %v4167 = vsub.f32 %v3142, %v3751
        %v4168 = vsub.f32 %v3143, %v3754
        %v4169 = vsub.f32 %v3144, %v3757
        %v4170 = vsub.f32 %v3145, %v3760
        %v4171 = vsub.f32 %v3146, %v3763
        %v4172 = vsub.f32 %v3147, %v3766
        %v4173 = vsub.f32 %v3148, %v3769
        %v4174 = vsub.f32 %v3149, %v3772
        %v4175 = vsub.f32 %v3150, %v3775
        %v4176 = vsub.f32 %v3151, %v3778
        %v4177 = vsub.f32 %v3152, %v3781
        %v4178 = vsub.f32 %v3153, %v3784
        %v4179 = vsub.f32 %v3154, %v3787
        %v4180 = vsub.f32 %v3155, %v3790
        %v4181 = vsub.f32 %v3156, %v3793
        %v4182 = vsub.f32 %v3157, %v3796
        %v4183 = vsub.f32 %v3158, %v3799
        %v4184 = vsub.f32 %v3159, %v3802
        %v4185 = vsub.f32 %v3160, %v3805
        %v4186 = vsub.f32 %v3161, %v3808
        %v4187 = vsub.f32 %v3162, %v3811
        %v4188 = vsub.f32 %v3163, %v3814
        %v4189 = vsub.f32 %v3164, %v3817
        %v4190 = vsub.f32 %v3165, %v3820
        %v4191 = vsub.f32 %v3166, %v3823
        %v4192 = vsub.f32 %v3167, %v3826
        %v4193 = vsub.f32 %v3168, %v3829
        %v4194 = vsub.f32 %v3169, %v3832
        %v4195 = vsub.f32 %v3170, %v3835
        %v4196 = vsub.f32 %v3171, %v3838
        %v4197 = vsub.f32 %v3172, %v3841
        %v4198 = vsub.f32 %v3173, %v3844
        %v4199 = vsub.f32 %v3174, %v3847
        %v4200 = vsub.f32 %v3175, %v3850
        %v4201 = vsub.f32 %v3176, %v3853
        %v4202 = vsub.f32 %v3177, %v3856
        %v4203 = vsub.f32 %v3178, %v3859
        %v4204 = vsub.f32 %v3179, %v3862
        %v4205 = vsub.f32 %v3180, %v3865
        %v4206 = vsub.f32 %v3181, %v3868
        %v4207 = vsub.f32 %v3182, %v3871
        %v4208 = vsub.f32 %v3183, %v3874
        %v4209 = vsub.f32 %v3184, %v3877
        %v4210 = vsub.f32 %v3185, %v3880
        %v4211 = vsub.f32 %v3186, %v3883
        %v4212 = vsub.f32 %v3187, %v3886
        %v4213 = vsub.f32 %v3188, %v3889
        %v4214 = vsub.f32 %v3189, %v3892
        %v4215 = vsub.f32 %v3190, %v3895
        %v4216 = vsub.f32 %v3191, %v3898
        %v4217 = vsub.f32 %v3192, %v3901
        %v4218 = vsub.f32 %v3193, %v3904
        %v4219 = vsub.f32 %v3194, %v3907
        %v4220 = vsub.f32 %v3195, %v3910
        %v4221 = vsub.f32 %v3196, %v3913
        %v4222 = vsub.f32 %v3197, %v3916
        %v4223 = vsub.f32 %v3198, %v3919
        %v4224 = vsub.f32 %v3199, %v3922
        %v4225 = vsub.f32 %v3200, %v3925
        %v4226 = vsub.f32 %v3201, %v3928
        %v4227 = vsub.f32 %v3202, %v3931
        %v4228 = vsub.f32 %v3203, %v3934
        %v4229 = vsub.f32 %v3204, %v3937
        %v4230 = vsub.f32 %v3205, %v3940
        %v4231 = vsub.f32 %v3206, %v3943
        %v4232 = vsub.f32 %v3207, %v3946
        %v4233 = vsub.f32 %v3208, %v3949
        %v4234 = vsub.f32 %v3209, %v3952
        %v4235 = vsub.f32 %v3210, %v3955
        %v4236 = vsub.f32 %v3211, %v3958
        %v4237 = vsub.f32 %v3212, %v3961
        %v4238 = vsub.f32 %v3213, %v3964
        %v4239 = vsub.f32 %v3214, %v3967
        %v4240 = vsub.f32 %v3215, %v3970
        %v4241 = vsub.f32 %v3216, %v3973
        %v4242 = vsub.f32 %v3217, %v3976
        %v4243 = vsub.f32 %v3218, %v3979
        %v4244 = vsub.f32 %v3219, %v3982
        %v4245 = vsub.f32 %v3220, %v3985
        %v4246 = vsub.f32 %v3221, %v3988
        %v4247 = vsub.f32 %v3222, %v3991
        %v4248 = vmul.f32 %v3992, 1.442695
        %v4249 = vpow.pop %v4248
        %v4250 = vmul.f32 %v3993, 1.442695
        %v4251 = vpow.pop %v4250
        %v4252 = vmul.f32 %v3994, 1.442695
        %v4253 = vpow.pop %v4252
        %v4254 = vmul.f32 %v3995, 1.442695
        %v4255 = vpow.pop %v4254
        %v4256 = vmul.f32 %v3996, 1.442695
        %v4257 = vpow.pop %v4256
        %v4258 = vmul.f32 %v3997, 1.442695
        %v4259 = vpow.pop %v4258
        %v4260 = vmul.f32 %v3998, 1.442695
        %v4261 = vpow.pop %v4260
        %v4262 = vmul.f32 %v3999, 1.442695
        %v4263 = vpow.pop %v4262
        %v4264 = vmul.f32 %v4000, 1.442695
        %v4265 = vpow.pop %v4264
        %v4266 = vmul.f32 %v4001, 1.442695
        %v4267 = vpow.pop %v4266
        %v4268 = vmul.f32 %v4002, 1.442695
        %v4269 = vpow.pop %v4268
        %v4270 = vmul.f32 %v4003, 1.442695
        %v4271 = vpow.pop %v4270
        %v4272 = vmul.f32 %v4004, 1.442695
        %v4273 = vpow.pop %v4272
        %v4274 = vmul.f32 %v4005, 1.442695
        %v4275 = vpow.pop %v4274
        %v4276 = vmul.f32 %v4006, 1.442695
        %v4277 = vpow.pop %v4276
        %v4278 = vmul.f32 %v4007, 1.442695
        %v4279 = vpow.pop %v4278
        %v4280 = vmul.f32 %v4008, 1.442695
        %v4281 = vpow.pop %v4280
        %v4282 = vmul.f32 %v4009, 1.442695
        %v4283 = vpow.pop %v4282
        %v4284 = vmul.f32 %v4010, 1.442695
        %v4285 = vpow.pop %v4284
        %v4286 = vmul.f32 %v4011, 1.442695
        %v4287 = vpow.pop %v4286
        %v4288 = vmul.f32 %v4012, 1.442695
        %v4289 = vpow.pop %v4288
        %v4290 = vmul.f32 %v4013, 1.442695
        %v4291 = vpow.pop %v4290
        %v4292 = vmul.f32 %v4014, 1.442695
        %v4293 = vpow.pop %v4292
        %v4294 = vmul.f32 %v4015, 1.442695
        %v4295 = vpow.pop %v4294
        %v4296 = vmul.f32 %v4016, 1.442695
        %v4297 = vpow.pop %v4296
        %v4298 = vmul.f32 %v4017, 1.442695
        %v4299 = vpow.pop %v4298
        %v4300 = vmul.f32 %v4018, 1.442695
        %v4301 = vpow.pop %v4300
        %v4302 = vmul.f32 %v4019, 1.442695
        %v4303 = vpow.pop %v4302
        %v4304 = vmul.f32 %v4020, 1.442695
        %v4305 = vpow.pop %v4304
        %v4306 = vmul.f32 %v4021, 1.442695
        %v4307 = vpow.pop %v4306
        %v4308 = vmul.f32 %v4022, 1.442695
        %v4309 = vpow.pop %v4308
        %v4310 = vmul.f32 %v4023, 1.442695
        %v4311 = vpow.pop %v4310
        %v4312 = vmul.f32 %v4024, 1.442695
        %v4313 = vpow.pop %v4312
        %v4314 = vmul.f32 %v4025, 1.442695
        %v4315 = vpow.pop %v4314
        %v4316 = vmul.f32 %v4026, 1.442695
        %v4317 = vpow.pop %v4316
        %v4318 = vmul.f32 %v4027, 1.442695
        %v4319 = vpow.pop %v4318
        %v4320 = vmul.f32 %v4028, 1.442695
        %v4321 = vpow.pop %v4320
        %v4322 = vmul.f32 %v4029, 1.442695
        %v4323 = vpow.pop %v4322
        %v4324 = vmul.f32 %v4030, 1.442695
        %v4325 = vpow.pop %v4324
        %v4326 = vmul.f32 %v4031, 1.442695
        %v4327 = vpow.pop %v4326
        %v4328 = vmul.f32 %v4032, 1.442695
        %v4329 = vpow.pop %v4328
        %v4330 = vmul.f32 %v4033, 1.442695
        %v4331 = vpow.pop %v4330
        %v4332 = vmul.f32 %v4034, 1.442695
        %v4333 = vpow.pop %v4332
        %v4334 = vmul.f32 %v4035, 1.442695
        %v4335 = vpow.pop %v4334
        %v4336 = vmul.f32 %v4036, 1.442695
        %v4337 = vpow.pop %v4336
        %v4338 = vmul.f32 %v4037, 1.442695
        %v4339 = vpow.pop %v4338
        %v4340 = vmul.f32 %v4038, 1.442695
        %v4341 = vpow.pop %v4340
        %v4342 = vmul.f32 %v4039, 1.442695
        %v4343 = vpow.pop %v4342
        %v4344 = vmul.f32 %v4040, 1.442695
        %v4345 = vpow.pop %v4344
        %v4346 = vmul.f32 %v4041, 1.442695
        %v4347 = vpow.pop %v4346
        %v4348 = vmul.f32 %v4042, 1.442695
        %v4349 = vpow.pop %v4348
        %v4350 = vmul.f32 %v4043, 1.442695
        %v4351 = vpow.pop %v4350
        %v4352 = vmul.f32 %v4044, 1.442695
        %v4353 = vpow.pop %v4352
        %v4354 = vmul.f32 %v4045, 1.442695
        %v4355 = vpow.pop %v4354
        %v4356 = vmul.f32 %v4046, 1.442695
        %v4357 = vpow.pop %v4356
        %v4358 = vmul.f32 %v4047, 1.442695
        %v4359 = vpow.pop %v4358
        %v4360 = vmul.f32 %v4048, 1.442695
        %v4361 = vpow.pop %v4360
        %v4362 = vmul.f32 %v4049, 1.442695
        %v4363 = vpow.pop %v4362
        %v4364 = vmul.f32 %v4050, 1.442695
        %v4365 = vpow.pop %v4364
        %v4366 = vmul.f32 %v4051, 1.442695
        %v4367 = vpow.pop %v4366
        %v4368 = vmul.f32 %v4052, 1.442695
        %v4369 = vpow.pop %v4368
        %v4370 = vmul.f32 %v4053, 1.442695
        %v4371 = vpow.pop %v4370
        %v4372 = vmul.f32 %v4054, 1.442695
        %v4373 = vpow.pop %v4372
        %v4374 = vmul.f32 %v4055, 1.442695
        %v4375 = vpow.pop %v4374
        %v4376 = vmul.f32 %v4056, 1.442695
        %v4377 = vpow.pop %v4376
        %v4378 = vmul.f32 %v4057, 1.442695
        %v4379 = vpow.pop %v4378
        %v4380 = vmul.f32 %v4058, 1.442695
        %v4381 = vpow.pop %v4380
        %v4382 = vmul.f32 %v4059, 1.442695
        %v4383 = vpow.pop %v4382
        %v4384 = vmul.f32 %v4060, 1.442695
        %v4385 = vpow.pop %v4384
        %v4386 = vmul.f32 %v4061, 1.442695
        %v4387 = vpow.pop %v4386
        %v4388 = vmul.f32 %v4062, 1.442695
        %v4389 = vpow.pop %v4388
        %v4390 = vmul.f32 %v4063, 1.442695
        %v4391 = vpow.pop %v4390
        %v4392 = vmul.f32 %v4064, 1.442695
        %v4393 = vpow.pop %v4392
        %v4394 = vmul.f32 %v4065, 1.442695
        %v4395 = vpow.pop %v4394
        %v4396 = vmul.f32 %v4066, 1.442695
        %v4397 = vpow.pop %v4396
        %v4398 = vmul.f32 %v4067, 1.442695
        %v4399 = vpow.pop %v4398
        %v4400 = vmul.f32 %v4068, 1.442695
        %v4401 = vpow.pop %v4400
        %v4402 = vmul.f32 %v4069, 1.442695
        %v4403 = vpow.pop %v4402
        %v4404 = vmul.f32 %v4070, 1.442695
        %v4405 = vpow.pop %v4404
        %v4406 = vmul.f32 %v4071, 1.442695
        %v4407 = vpow.pop %v4406
        %v4408 = vmul.f32 %v4072, 1.442695
        %v4409 = vpow.pop %v4408
        %v4410 = vmul.f32 %v4073, 1.442695
        %v4411 = vpow.pop %v4410
        %v4412 = vmul.f32 %v4074, 1.442695
        %v4413 = vpow.pop %v4412
        %v4414 = vmul.f32 %v4075, 1.442695
        %v4415 = vpow.pop %v4414
        %v4416 = vmul.f32 %v4076, 1.442695
        %v4417 = vpow.pop %v4416
        %v4418 = vmul.f32 %v4077, 1.442695
        %v4419 = vpow.pop %v4418
        %v4420 = vmul.f32 %v4078, 1.442695
        %v4421 = vpow.pop %v4420
        %v4422 = vmul.f32 %v4079, 1.442695
        %v4423 = vpow.pop %v4422
        %v4424 = vmul.f32 %v4080, 1.442695
        %v4425 = vpow.pop %v4424
        %v4426 = vmul.f32 %v4081, 1.442695
        %v4427 = vpow.pop %v4426
        %v4428 = vmul.f32 %v4082, 1.442695
        %v4429 = vpow.pop %v4428
        %v4430 = vmul.f32 %v4083, 1.442695
        %v4431 = vpow.pop %v4430
        %v4432 = vmul.f32 %v4084, 1.442695
        %v4433 = vpow.pop %v4432
        %v4434 = vmul.f32 %v4085, 1.442695
        %v4435 = vpow.pop %v4434
        %v4436 = vmul.f32 %v4086, 1.442695
        %v4437 = vpow.pop %v4436
        %v4438 = vmul.f32 %v4087, 1.442695
        %v4439 = vpow.pop %v4438
        %v4440 = vmul.f32 %v4088, 1.442695
        %v4441 = vpow.pop %v4440
        %v4442 = vmul.f32 %v4089, 1.442695
        %v4443 = vpow.pop %v4442
        %v4444 = vmul.f32 %v4090, 1.442695
        %v4445 = vpow.pop %v4444
        %v4446 = vmul.f32 %v4091, 1.442695
        %v4447 = vpow.pop %v4446
        %v4448 = vmul.f32 %v4092, 1.442695
        %v4449 = vpow.pop %v4448
        %v4450 = vmul.f32 %v4093, 1.442695
        %v4451 = vpow.pop %v4450
        %v4452 = vmul.f32 %v4094, 1.442695
        %v4453 = vpow.pop %v4452
        %v4454 = vmul.f32 %v4095, 1.442695
        %v4455 = vpow.pop %v4454
        %v4456 = vmul.f32 %v4096, 1.442695
        %v4457 = vpow.pop %v4456
        %v4458 = vmul.f32 %v4097, 1.442695
        %v4459 = vpow.pop %v4458
        %v4460 = vmul.f32 %v4098, 1.442695
        %v4461 = vpow.pop %v4460
        %v4462 = vmul.f32 %v4099, 1.442695
        %v4463 = vpow.pop %v4462
        %v4464 = vmul.f32 %v4100, 1.442695
        %v4465 = vpow.pop %v4464
        %v4466 = vmul.f32 %v4101, 1.442695
        %v4467 = vpow.pop %v4466
        %v4468 = vmul.f32 %v4102, 1.442695
        %v4469 = vpow.pop %v4468
        %v4470 = vmul.f32 %v4103, 1.442695
        %v4471 = vpow.pop %v4470
        %v4472 = vmul.f32 %v4104, 1.442695
        %v4473 = vpow.pop %v4472
        %v4474 = vmul.f32 %v4105, 1.442695
        %v4475 = vpow.pop %v4474
        %v4476 = vmul.f32 %v4106, 1.442695
        %v4477 = vpow.pop %v4476
        %v4478 = vmul.f32 %v4107, 1.442695
        %v4479 = vpow.pop %v4478
        %v4480 = vmul.f32 %v4108, 1.442695
        %v4481 = vpow.pop %v4480
        %v4482 = vmul.f32 %v4109, 1.442695
        %v4483 = vpow.pop %v4482
        %v4484 = vmul.f32 %v4110, 1.442695
        %v4485 = vpow.pop %v4484
        %v4486 = vmul.f32 %v4111, 1.442695
        %v4487 = vpow.pop %v4486
        %v4488 = vmul.f32 %v4112, 1.442695
        %v4489 = vpow.pop %v4488
        %v4490 = vmul.f32 %v4113, 1.442695
        %v4491 = vpow.pop %v4490
        %v4492 = vmul.f32 %v4114, 1.442695
        %v4493 = vpow.pop %v4492
        %v4494 = vmul.f32 %v4115, 1.442695
        %v4495 = vpow.pop %v4494
        %v4496 = vmul.f32 %v4116, 1.442695
        %v4497 = vpow.pop %v4496
        %v4498 = vmul.f32 %v4117, 1.442695
        %v4499 = vpow.pop %v4498
        %v4500 = vmul.f32 %v4118, 1.442695
        %v4501 = vpow.pop %v4500
        %v4502 = vmul.f32 %v4119, 1.442695
        %v4503 = vpow.pop %v4502
        %v4504 = vmul.f32 %v4120, 1.442695
        %v4505 = vpow.pop %v4504
        %v4506 = vmul.f32 %v4121, 1.442695
        %v4507 = vpow.pop %v4506
        %v4508 = vmul.f32 %v4122, 1.442695
        %v4509 = vpow.pop %v4508
        %v4510 = vmul.f32 %v4123, 1.442695
        %v4511 = vpow.pop %v4510
        %v4512 = vmul.f32 %v4124, 1.442695
        %v4513 = vpow.pop %v4512
        %v4514 = vmul.f32 %v4125, 1.442695
        %v4515 = vpow.pop %v4514
        %v4516 = vmul.f32 %v4126, 1.442695
        %v4517 = vpow.pop %v4516
        %v4518 = vmul.f32 %v4127, 1.442695
        %v4519 = vpow.pop %v4518
        %v4520 = vmul.f32 %v4128, 1.442695
        %v4521 = vpow.pop %v4520
        %v4522 = vmul.f32 %v4129, 1.442695
        %v4523 = vpow.pop %v4522
        %v4524 = vmul.f32 %v4130, 1.442695
        %v4525 = vpow.pop %v4524
        %v4526 = vmul.f32 %v4131, 1.442695
        %v4527 = vpow.pop %v4526
        %v4528 = vmul.f32 %v4132, 1.442695
        %v4529 = vpow.pop %v4528
        %v4530 = vmul.f32 %v4133, 1.442695
        %v4531 = vpow.pop %v4530
        %v4532 = vmul.f32 %v4134, 1.442695
        %v4533 = vpow.pop %v4532
        %v4534 = vmul.f32 %v4135, 1.442695
        %v4535 = vpow.pop %v4534
        %v4536 = vmul.f32 %v4136, 1.442695
        %v4537 = vpow.pop %v4536
        %v4538 = vmul.f32 %v4137, 1.442695
        %v4539 = vpow.pop %v4538
        %v4540 = vmul.f32 %v4138, 1.442695
        %v4541 = vpow.pop %v4540
        %v4542 = vmul.f32 %v4139, 1.442695
        %v4543 = vpow.pop %v4542
        %v4544 = vmul.f32 %v4140, 1.442695
        %v4545 = vpow.pop %v4544
        %v4546 = vmul.f32 %v4141, 1.442695
        %v4547 = vpow.pop %v4546
        %v4548 = vmul.f32 %v4142, 1.442695
        %v4549 = vpow.pop %v4548
        %v4550 = vmul.f32 %v4143, 1.442695
        %v4551 = vpow.pop %v4550
        %v4552 = vmul.f32 %v4144, 1.442695
        %v4553 = vpow.pop %v4552
        %v4554 = vmul.f32 %v4145, 1.442695
        %v4555 = vpow.pop %v4554
        %v4556 = vmul.f32 %v4146, 1.442695
        %v4557 = vpow.pop %v4556
        %v4558 = vmul.f32 %v4147, 1.442695
        %v4559 = vpow.pop %v4558
        %v4560 = vmul.f32 %v4148, 1.442695
        %v4561 = vpow.pop %v4560
        %v4562 = vmul.f32 %v4149, 1.442695
        %v4563 = vpow.pop %v4562
        %v4564 = vmul.f32 %v4150, 1.442695
        %v4565 = vpow.pop %v4564
        %v4566 = vmul.f32 %v4151, 1.442695
        %v4567 = vpow.pop %v4566
        %v4568 = vmul.f32 %v4152, 1.442695
        %v4569 = vpow.pop %v4568
        %v4570 = vmul.f32 %v4153, 1.442695
        %v4571 = vpow.pop %v4570
        %v4572 = vmul.f32 %v4154, 1.442695
        %v4573 = vpow.pop %v4572
        %v4574 = vmul.f32 %v4155, 1.442695
        %v4575 = vpow.pop %v4574
        %v4576 = vmul.f32 %v4156, 1.442695
        %v4577 = vpow.pop %v4576
        %v4578 = vmul.f32 %v4157, 1.442695
        %v4579 = vpow.pop %v4578
        %v4580 = vmul.f32 %v4158, 1.442695
        %v4581 = vpow.pop %v4580
        %v4582 = vmul.f32 %v4159, 1.442695
        %v4583 = vpow.pop %v4582
        %v4584 = vmul.f32 %v4160, 1.442695
        %v4585 = vpow.pop %v4584
        %v4586 = vmul.f32 %v4161, 1.442695
        %v4587 = vpow.pop %v4586
        %v4588 = vmul.f32 %v4162, 1.442695
        %v4589 = vpow.pop %v4588
        %v4590 = vmul.f32 %v4163, 1.442695
        %v4591 = vpow.pop %v4590
        %v4592 = vmul.f32 %v4164, 1.442695
        %v4593 = vpow.pop %v4592
        %v4594 = vmul.f32 %v4165, 1.442695
        %v4595 = vpow.pop %v4594
        %v4596 = vmul.f32 %v4166, 1.442695
        %v4597 = vpow.pop %v4596
        %v4598 = vmul.f32 %v4167, 1.442695
        %v4599 = vpow.pop %v4598
        %v4600 = vmul.f32 %v4168, 1.442695
        %v4601 = vpow.pop %v4600
        %v4602 = vmul.f32 %v4169, 1.442695
        %v4603 = vpow.pop %v4602
        %v4604 = vmul.f32 %v4170, 1.442695
        %v4605 = vpow.pop %v4604
        %v4606 = vmul.f32 %v4171, 1.442695
        %v4607 = vpow.pop %v4606
        %v4608 = vmul.f32 %v4172, 1.442695
        %v4609 = vpow.pop %v4608
        %v4610 = vmul.f32 %v4173, 1.442695
        %v4611 = vpow.pop %v4610
        %v4612 = vmul.f32 %v4174, 1.442695
        %v4613 = vpow.pop %v4612
        %v4614 = vmul.f32 %v4175, 1.442695
        %v4615 = vpow.pop %v4614
        %v4616 = vmul.f32 %v4176, 1.442695
        %v4617 = vpow.pop %v4616
        %v4618 = vmul.f32 %v4177, 1.442695
        %v4619 = vpow.pop %v4618
        %v4620 = vmul.f32 %v4178, 1.442695
        %v4621 = vpow.pop %v4620
        %v4622 = vmul.f32 %v4179, 1.442695
        %v4623 = vpow.pop %v4622
        %v4624 = vmul.f32 %v4180, 1.442695
        %v4625 = vpow.pop %v4624
        %v4626 = vmul.f32 %v4181, 1.442695
        %v4627 = vpow.pop %v4626
        %v4628 = vmul.f32 %v4182, 1.442695
        %v4629 = vpow.pop %v4628
        %v4630 = vmul.f32 %v4183, 1.442695
        %v4631 = vpow.pop %v4630
        %v4632 = vmul.f32 %v4184, 1.442695
        %v4633 = vpow.pop %v4632
        %v4634 = vmul.f32 %v4185, 1.442695
        %v4635 = vpow.pop %v4634
        %v4636 = vmul.f32 %v4186, 1.442695
        %v4637 = vpow.pop %v4636
        %v4638 = vmul.f32 %v4187, 1.442695
        %v4639 = vpow.pop %v4638
        %v4640 = vmul.f32 %v4188, 1.442695
        %v4641 = vpow.pop %v4640
        %v4642 = vmul.f32 %v4189, 1.442695
        %v4643 = vpow.pop %v4642
        %v4644 = vmul.f32 %v4190, 1.442695
        %v4645 = vpow.pop %v4644
        %v4646 = vmul.f32 %v4191, 1.442695
        %v4647 = vpow.pop %v4646
        %v4648 = vmul.f32 %v4192, 1.442695
        %v4649 = vpow.pop %v4648
        %v4650 = vmul.f32 %v4193, 1.442695
        %v4651 = vpow.pop %v4650
        %v4652 = vmul.f32 %v4194, 1.442695
        %v4653 = vpow.pop %v4652
        %v4654 = vmul.f32 %v4195, 1.442695
        %v4655 = vpow.pop %v4654
        %v4656 = vmul.f32 %v4196, 1.442695
        %v4657 = vpow.pop %v4656
        %v4658 = vmul.f32 %v4197, 1.442695
        %v4659 = vpow.pop %v4658
        %v4660 = vmul.f32 %v4198, 1.442695
        %v4661 = vpow.pop %v4660
        %v4662 = vmul.f32 %v4199, 1.442695
        %v4663 = vpow.pop %v4662
        %v4664 = vmul.f32 %v4200, 1.442695
        %v4665 = vpow.pop %v4664
        %v4666 = vmul.f32 %v4201, 1.442695
        %v4667 = vpow.pop %v4666
        %v4668 = vmul.f32 %v4202, 1.442695
        %v4669 = vpow.pop %v4668
        %v4670 = vmul.f32 %v4203, 1.442695
        %v4671 = vpow.pop %v4670
        %v4672 = vmul.f32 %v4204, 1.442695
        %v4673 = vpow.pop %v4672
        %v4674 = vmul.f32 %v4205, 1.442695
        %v4675 = vpow.pop %v4674
        %v4676 = vmul.f32 %v4206, 1.442695
        %v4677 = vpow.pop %v4676
        %v4678 = vmul.f32 %v4207, 1.442695
        %v4679 = vpow.pop %v4678
        %v4680 = vmul.f32 %v4208, 1.442695
        %v4681 = vpow.pop %v4680
        %v4682 = vmul.f32 %v4209, 1.442695
        %v4683 = vpow.pop %v4682
        %v4684 = vmul.f32 %v4210, 1.442695
        %v4685 = vpow.pop %v4684
        %v4686 = vmul.f32 %v4211, 1.442695
        %v4687 = vpow.pop %v4686
        %v4688 = vmul.f32 %v4212, 1.442695
        %v4689 = vpow.pop %v4688
        %v4690 = vmul.f32 %v4213, 1.442695
        %v4691 = vpow.pop %v4690
        %v4692 = vmul.f32 %v4214, 1.442695
        %v4693 = vpow.pop %v4692
        %v4694 = vmul.f32 %v4215, 1.442695
        %v4695 = vpow.pop %v4694
        %v4696 = vmul.f32 %v4216, 1.442695
        %v4697 = vpow.pop %v4696
        %v4698 = vmul.f32 %v4217, 1.442695
        %v4699 = vpow.pop %v4698
        %v4700 = vmul.f32 %v4218, 1.442695
        %v4701 = vpow.pop %v4700
        %v4702 = vmul.f32 %v4219, 1.442695
        %v4703 = vpow.pop %v4702
        %v4704 = vmul.f32 %v4220, 1.442695
        %v4705 = vpow.pop %v4704
        %v4706 = vmul.f32 %v4221, 1.442695
        %v4707 = vpow.pop %v4706
        %v4708 = vmul.f32 %v4222, 1.442695
        %v4709 = vpow.pop %v4708
        %v4710 = vmul.f32 %v4223, 1.442695
        %v4711 = vpow.pop %v4710
        %v4712 = vmul.f32 %v4224, 1.442695
        %v4713 = vpow.pop %v4712
        %v4714 = vmul.f32 %v4225, 1.442695
        %v4715 = vpow.pop %v4714
        %v4716 = vmul.f32 %v4226, 1.442695
        %v4717 = vpow.pop %v4716
        %v4718 = vmul.f32 %v4227, 1.442695
        %v4719 = vpow.pop %v4718
        %v4720 = vmul.f32 %v4228, 1.442695
        %v4721 = vpow.pop %v4720
        %v4722 = vmul.f32 %v4229, 1.442695
        %v4723 = vpow.pop %v4722
        %v4724 = vmul.f32 %v4230, 1.442695
        %v4725 = vpow.pop %v4724
        %v4726 = vmul.f32 %v4231, 1.442695
        %v4727 = vpow.pop %v4726
        %v4728 = vmul.f32 %v4232, 1.442695
        %v4729 = vpow.pop %v4728
        %v4730 = vmul.f32 %v4233, 1.442695
        %v4731 = vpow.pop %v4730
        %v4732 = vmul.f32 %v4234, 1.442695
        %v4733 = vpow.pop %v4732
        %v4734 = vmul.f32 %v4235, 1.442695
        %v4735 = vpow.pop %v4734
        %v4736 = vmul.f32 %v4236, 1.442695
        %v4737 = vpow.pop %v4736
        %v4738 = vmul.f32 %v4237, 1.442695
        %v4739 = vpow.pop %v4738
        %v4740 = vmul.f32 %v4238, 1.442695
        %v4741 = vpow.pop %v4740
        %v4742 = vmul.f32 %v4239, 1.442695
        %v4743 = vpow.pop %v4742
        %v4744 = vmul.f32 %v4240, 1.442695
        %v4745 = vpow.pop %v4744
        %v4746 = vmul.f32 %v4241, 1.442695
        %v4747 = vpow.pop %v4746
        %v4748 = vmul.f32 %v4242, 1.442695
        %v4749 = vpow.pop %v4748
        %v4750 = vmul.f32 %v4243, 1.442695
        %v4751 = vpow.pop %v4750
        %v4752 = vmul.f32 %v4244, 1.442695
        %v4753 = vpow.pop %v4752
        %v4754 = vmul.f32 %v4245, 1.442695
        %v4755 = vpow.pop %v4754
        %v4756 = vmul.f32 %v4246, 1.442695
        %v4757 = vpow.pop %v4756
        %v4758 = vmul.f32 %v4247, 1.442695
        %v4759 = vpow.pop %v4758
        %v4760 = vsel %vm3223, %v4249, 0.0
        %4761 = vadd.xlane.f32.xlu0 %v4760
        %v4762 = vpop.xlane.xlu0 %4761
        %v4763 = vsel %vm3223, %v4251, 0.0
        %4764 = vadd.xlane.f32.xlu0 %v4763
        %v4765 = vpop.xlane.xlu0 %4764
        %v4766 = vsel %vm3223, %v4253, 0.0
        %4767 = vadd.xlane.f32.xlu0 %v4766
        %v4768 = vpop.xlane.xlu0 %4767
        %v4769 = vsel %vm3223, %v4255, 0.0
        %4770 = vadd.xlane.f32.xlu0 %v4769
        %v4771 = vpop.xlane.xlu0 %4770
        %v4772 = vsel %vm3223, %v4257, 0.0
        %4773 = vadd.xlane.f32.xlu0 %v4772
        %v4774 = vpop.xlane.xlu0 %4773
        %v4775 = vsel %vm3223, %v4259, 0.0
        %4776 = vadd.xlane.f32.xlu0 %v4775
        %v4777 = vpop.xlane.xlu0 %4776
        %v4778 = vsel %vm3223, %v4261, 0.0
        %4779 = vadd.xlane.f32.xlu0 %v4778
        %v4780 = vpop.xlane.xlu0 %4779
        %v4781 = vsel %vm3223, %v4263, 0.0
        %4782 = vadd.xlane.f32.xlu0 %v4781
        %v4783 = vpop.xlane.xlu0 %4782
        %v4784 = vsel %vm3223, %v4265, 0.0
        %4785 = vadd.xlane.f32.xlu0 %v4784
        %v4786 = vpop.xlane.xlu0 %4785
        %v4787 = vsel %vm3223, %v4267, 0.0
        %4788 = vadd.xlane.f32.xlu0 %v4787
        %v4789 = vpop.xlane.xlu0 %4788
        %v4790 = vsel %vm3223, %v4269, 0.0
        %4791 = vadd.xlane.f32.xlu0 %v4790
        %v4792 = vpop.xlane.xlu0 %4791
        %v4793 = vsel %vm3223, %v4271, 0.0
        %4794 = vadd.xlane.f32.xlu0 %v4793
        %v4795 = vpop.xlane.xlu0 %4794
        %v4796 = vsel %vm3223, %v4273, 0.0
        %4797 = vadd.xlane.f32.xlu0 %v4796
        %v4798 = vpop.xlane.xlu0 %4797
        %v4799 = vsel %vm3223, %v4275, 0.0
        %4800 = vadd.xlane.f32.xlu0 %v4799
        %v4801 = vpop.xlane.xlu0 %4800
        %v4802 = vsel %vm3223, %v4277, 0.0
        %4803 = vadd.xlane.f32.xlu0 %v4802
        %v4804 = vpop.xlane.xlu0 %4803
        %v4805 = vsel %vm3223, %v4279, 0.0
        %4806 = vadd.xlane.f32.xlu0 %v4805
        %v4807 = vpop.xlane.xlu0 %4806
        %v4808 = vsel %vm3223, %v4281, 0.0
        %4809 = vadd.xlane.f32.xlu0 %v4808
        %v4810 = vpop.xlane.xlu0 %4809
        %v4811 = vsel %vm3223, %v4283, 0.0
        %4812 = vadd.xlane.f32.xlu0 %v4811
        %v4813 = vpop.xlane.xlu0 %4812
        %v4814 = vsel %vm3223, %v4285, 0.0
        %4815 = vadd.xlane.f32.xlu0 %v4814
        %v4816 = vpop.xlane.xlu0 %4815
        %v4817 = vsel %vm3223, %v4287, 0.0
        %4818 = vadd.xlane.f32.xlu0 %v4817
        %v4819 = vpop.xlane.xlu0 %4818
        %v4820 = vsel %vm3223, %v4289, 0.0
        %4821 = vadd.xlane.f32.xlu0 %v4820
        %v4822 = vpop.xlane.xlu0 %4821
        %v4823 = vsel %vm3223, %v4291, 0.0
        %4824 = vadd.xlane.f32.xlu0 %v4823
        %v4825 = vpop.xlane.xlu0 %4824
        %v4826 = vsel %vm3223, %v4293, 0.0
        %4827 = vadd.xlane.f32.xlu0 %v4826
        %v4828 = vpop.xlane.xlu0 %4827
        %v4829 = vsel %vm3223, %v4295, 0.0
        %4830 = vadd.xlane.f32.xlu0 %v4829
        %v4831 = vpop.xlane.xlu0 %4830
        %v4832 = vsel %vm3223, %v4297, 0.0
        %4833 = vadd.xlane.f32.xlu0 %v4832
        %v4834 = vpop.xlane.xlu0 %4833
        %v4835 = vsel %vm3223, %v4299, 0.0
        %4836 = vadd.xlane.f32.xlu0 %v4835
        %v4837 = vpop.xlane.xlu0 %4836
        %v4838 = vsel %vm3223, %v4301, 0.0
        %4839 = vadd.xlane.f32.xlu0 %v4838
        %v4840 = vpop.xlane.xlu0 %4839
        %v4841 = vsel %vm3223, %v4303, 0.0
        %4842 = vadd.xlane.f32.xlu0 %v4841
        %v4843 = vpop.xlane.xlu0 %4842
        %v4844 = vsel %vm3223, %v4305, 0.0
        %4845 = vadd.xlane.f32.xlu0 %v4844
        %v4846 = vpop.xlane.xlu0 %4845
        %v4847 = vsel %vm3223, %v4307, 0.0
        %4848 = vadd.xlane.f32.xlu0 %v4847
        %v4849 = vpop.xlane.xlu0 %4848
        %v4850 = vsel %vm3223, %v4309, 0.0
        %4851 = vadd.xlane.f32.xlu0 %v4850
        %v4852 = vpop.xlane.xlu0 %4851
        %v4853 = vsel %vm3223, %v4311, 0.0
        %4854 = vadd.xlane.f32.xlu0 %v4853
        %v4855 = vpop.xlane.xlu0 %4854
        %v4856 = vsel %vm3223, %v4313, 0.0
        %4857 = vadd.xlane.f32.xlu0 %v4856
        %v4858 = vpop.xlane.xlu0 %4857
        %v4859 = vsel %vm3223, %v4315, 0.0
        %4860 = vadd.xlane.f32.xlu0 %v4859
        %v4861 = vpop.xlane.xlu0 %4860
        %v4862 = vsel %vm3223, %v4317, 0.0
        %4863 = vadd.xlane.f32.xlu0 %v4862
        %v4864 = vpop.xlane.xlu0 %4863
        %v4865 = vsel %vm3223, %v4319, 0.0
        %4866 = vadd.xlane.f32.xlu0 %v4865
        %v4867 = vpop.xlane.xlu0 %4866
        %v4868 = vsel %vm3223, %v4321, 0.0
        %4869 = vadd.xlane.f32.xlu0 %v4868
        %v4870 = vpop.xlane.xlu0 %4869
        %v4871 = vsel %vm3223, %v4323, 0.0
        %4872 = vadd.xlane.f32.xlu0 %v4871
        %v4873 = vpop.xlane.xlu0 %4872
        %v4874 = vsel %vm3223, %v4325, 0.0
        %4875 = vadd.xlane.f32.xlu0 %v4874
        %v4876 = vpop.xlane.xlu0 %4875
        %v4877 = vsel %vm3223, %v4327, 0.0
        %4878 = vadd.xlane.f32.xlu0 %v4877
        %v4879 = vpop.xlane.xlu0 %4878
        %v4880 = vsel %vm3223, %v4329, 0.0
        %4881 = vadd.xlane.f32.xlu0 %v4880
        %v4882 = vpop.xlane.xlu0 %4881
        %v4883 = vsel %vm3223, %v4331, 0.0
        %4884 = vadd.xlane.f32.xlu0 %v4883
        %v4885 = vpop.xlane.xlu0 %4884
        %v4886 = vsel %vm3223, %v4333, 0.0
        %4887 = vadd.xlane.f32.xlu0 %v4886
        %v4888 = vpop.xlane.xlu0 %4887
        %v4889 = vsel %vm3223, %v4335, 0.0
        %4890 = vadd.xlane.f32.xlu0 %v4889
        %v4891 = vpop.xlane.xlu0 %4890
        %v4892 = vsel %vm3223, %v4337, 0.0
        %4893 = vadd.xlane.f32.xlu0 %v4892
        %v4894 = vpop.xlane.xlu0 %4893
        %v4895 = vsel %vm3223, %v4339, 0.0
        %4896 = vadd.xlane.f32.xlu0 %v4895
        %v4897 = vpop.xlane.xlu0 %4896
        %v4898 = vsel %vm3223, %v4341, 0.0
        %4899 = vadd.xlane.f32.xlu0 %v4898
        %v4900 = vpop.xlane.xlu0 %4899
        %v4901 = vsel %vm3223, %v4343, 0.0
        %4902 = vadd.xlane.f32.xlu0 %v4901
        %v4903 = vpop.xlane.xlu0 %4902
        %v4904 = vsel %vm3223, %v4345, 0.0
        %4905 = vadd.xlane.f32.xlu0 %v4904
        %v4906 = vpop.xlane.xlu0 %4905
        %v4907 = vsel %vm3223, %v4347, 0.0
        %4908 = vadd.xlane.f32.xlu0 %v4907
        %v4909 = vpop.xlane.xlu0 %4908
        %v4910 = vsel %vm3223, %v4349, 0.0
        %4911 = vadd.xlane.f32.xlu0 %v4910
        %v4912 = vpop.xlane.xlu0 %4911
        %v4913 = vsel %vm3223, %v4351, 0.0
        %4914 = vadd.xlane.f32.xlu0 %v4913
        %v4915 = vpop.xlane.xlu0 %4914
        %v4916 = vsel %vm3223, %v4353, 0.0
        %4917 = vadd.xlane.f32.xlu0 %v4916
        %v4918 = vpop.xlane.xlu0 %4917
        %v4919 = vsel %vm3223, %v4355, 0.0
        %4920 = vadd.xlane.f32.xlu0 %v4919
        %v4921 = vpop.xlane.xlu0 %4920
        %v4922 = vsel %vm3223, %v4357, 0.0
        %4923 = vadd.xlane.f32.xlu0 %v4922
        %v4924 = vpop.xlane.xlu0 %4923
        %v4925 = vsel %vm3223, %v4359, 0.0
        %4926 = vadd.xlane.f32.xlu0 %v4925
        %v4927 = vpop.xlane.xlu0 %4926
        %v4928 = vsel %vm3223, %v4361, 0.0
        %4929 = vadd.xlane.f32.xlu0 %v4928
        %v4930 = vpop.xlane.xlu0 %4929
        %v4931 = vsel %vm3223, %v4363, 0.0
        %4932 = vadd.xlane.f32.xlu0 %v4931
        %v4933 = vpop.xlane.xlu0 %4932
        %v4934 = vsel %vm3223, %v4365, 0.0
        %4935 = vadd.xlane.f32.xlu0 %v4934
        %v4936 = vpop.xlane.xlu0 %4935
        %v4937 = vsel %vm3223, %v4367, 0.0
        %4938 = vadd.xlane.f32.xlu0 %v4937
        %v4939 = vpop.xlane.xlu0 %4938
        %v4940 = vsel %vm3223, %v4369, 0.0
        %4941 = vadd.xlane.f32.xlu0 %v4940
        %v4942 = vpop.xlane.xlu0 %4941
        %v4943 = vsel %vm3223, %v4371, 0.0
        %4944 = vadd.xlane.f32.xlu0 %v4943
        %v4945 = vpop.xlane.xlu0 %4944
        %v4946 = vsel %vm3223, %v4373, 0.0
        %4947 = vadd.xlane.f32.xlu0 %v4946
        %v4948 = vpop.xlane.xlu0 %4947
        %v4949 = vsel %vm3223, %v4375, 0.0
        %4950 = vadd.xlane.f32.xlu0 %v4949
        %v4951 = vpop.xlane.xlu0 %4950
        %v4952 = vsel %vm3223, %v4377, 0.0
        %4953 = vadd.xlane.f32.xlu0 %v4952
        %v4954 = vpop.xlane.xlu0 %4953
        %v4955 = vsel %vm3223, %v4379, 0.0
        %4956 = vadd.xlane.f32.xlu0 %v4955
        %v4957 = vpop.xlane.xlu0 %4956
        %v4958 = vsel %vm3223, %v4381, 0.0
        %4959 = vadd.xlane.f32.xlu0 %v4958
        %v4960 = vpop.xlane.xlu0 %4959
        %v4961 = vsel %vm3223, %v4383, 0.0
        %4962 = vadd.xlane.f32.xlu0 %v4961
        %v4963 = vpop.xlane.xlu0 %4962
        %v4964 = vsel %vm3223, %v4385, 0.0
        %4965 = vadd.xlane.f32.xlu0 %v4964
        %v4966 = vpop.xlane.xlu0 %4965
        %v4967 = vsel %vm3223, %v4387, 0.0
        %4968 = vadd.xlane.f32.xlu0 %v4967
        %v4969 = vpop.xlane.xlu0 %4968
        %v4970 = vsel %vm3223, %v4389, 0.0
        %4971 = vadd.xlane.f32.xlu0 %v4970
        %v4972 = vpop.xlane.xlu0 %4971
        %v4973 = vsel %vm3223, %v4391, 0.0
        %4974 = vadd.xlane.f32.xlu0 %v4973
        %v4975 = vpop.xlane.xlu0 %4974
        %v4976 = vsel %vm3223, %v4393, 0.0
        %4977 = vadd.xlane.f32.xlu0 %v4976
        %v4978 = vpop.xlane.xlu0 %4977
        %v4979 = vsel %vm3223, %v4395, 0.0
        %4980 = vadd.xlane.f32.xlu0 %v4979
        %v4981 = vpop.xlane.xlu0 %4980
        %v4982 = vsel %vm3223, %v4397, 0.0
        %4983 = vadd.xlane.f32.xlu0 %v4982
        %v4984 = vpop.xlane.xlu0 %4983
        %v4985 = vsel %vm3223, %v4399, 0.0
        %4986 = vadd.xlane.f32.xlu0 %v4985
        %v4987 = vpop.xlane.xlu0 %4986
        %v4988 = vsel %vm3223, %v4401, 0.0
        %4989 = vadd.xlane.f32.xlu0 %v4988
        %v4990 = vpop.xlane.xlu0 %4989
        %v4991 = vsel %vm3223, %v4403, 0.0
        %4992 = vadd.xlane.f32.xlu0 %v4991
        %v4993 = vpop.xlane.xlu0 %4992
        %v4994 = vsel %vm3223, %v4405, 0.0
        %4995 = vadd.xlane.f32.xlu0 %v4994
        %v4996 = vpop.xlane.xlu0 %4995
        %v4997 = vsel %vm3223, %v4407, 0.0
        %4998 = vadd.xlane.f32.xlu0 %v4997
        %v4999 = vpop.xlane.xlu0 %4998
        %v5000 = vsel %vm3223, %v4409, 0.0
        %5001 = vadd.xlane.f32.xlu0 %v5000
        %v5002 = vpop.xlane.xlu0 %5001
        %v5003 = vsel %vm3223, %v4411, 0.0
        %5004 = vadd.xlane.f32.xlu0 %v5003
        %v5005 = vpop.xlane.xlu0 %5004
        %v5006 = vsel %vm3223, %v4413, 0.0
        %5007 = vadd.xlane.f32.xlu0 %v5006
        %v5008 = vpop.xlane.xlu0 %5007
        %v5009 = vsel %vm3223, %v4415, 0.0
        %5010 = vadd.xlane.f32.xlu0 %v5009
        %v5011 = vpop.xlane.xlu0 %5010
        %v5012 = vsel %vm3223, %v4417, 0.0
        %5013 = vadd.xlane.f32.xlu0 %v5012
        %v5014 = vpop.xlane.xlu0 %5013
        %v5015 = vsel %vm3223, %v4419, 0.0
        %5016 = vadd.xlane.f32.xlu0 %v5015
        %v5017 = vpop.xlane.xlu0 %5016
        %v5018 = vsel %vm3223, %v4421, 0.0
        %5019 = vadd.xlane.f32.xlu0 %v5018
        %v5020 = vpop.xlane.xlu0 %5019
        %v5021 = vsel %vm3223, %v4423, 0.0
        %5022 = vadd.xlane.f32.xlu0 %v5021
        %v5023 = vpop.xlane.xlu0 %5022
        %v5024 = vsel %vm3223, %v4425, 0.0
        %5025 = vadd.xlane.f32.xlu0 %v5024
        %v5026 = vpop.xlane.xlu0 %5025
        %v5027 = vsel %vm3223, %v4427, 0.0
        %5028 = vadd.xlane.f32.xlu0 %v5027
        %v5029 = vpop.xlane.xlu0 %5028
        %v5030 = vsel %vm3223, %v4429, 0.0
        %5031 = vadd.xlane.f32.xlu0 %v5030
        %v5032 = vpop.xlane.xlu0 %5031
        %v5033 = vsel %vm3223, %v4431, 0.0
        %5034 = vadd.xlane.f32.xlu0 %v5033
        %v5035 = vpop.xlane.xlu0 %5034
        %v5036 = vsel %vm3223, %v4433, 0.0
        %5037 = vadd.xlane.f32.xlu0 %v5036
        %v5038 = vpop.xlane.xlu0 %5037
        %v5039 = vsel %vm3223, %v4435, 0.0
        %5040 = vadd.xlane.f32.xlu0 %v5039
        %v5041 = vpop.xlane.xlu0 %5040
        %v5042 = vsel %vm3223, %v4437, 0.0
        %5043 = vadd.xlane.f32.xlu0 %v5042
        %v5044 = vpop.xlane.xlu0 %5043
        %v5045 = vsel %vm3223, %v4439, 0.0
        %5046 = vadd.xlane.f32.xlu0 %v5045
        %v5047 = vpop.xlane.xlu0 %5046
        %v5048 = vsel %vm3223, %v4441, 0.0
        %5049 = vadd.xlane.f32.xlu0 %v5048
        %v5050 = vpop.xlane.xlu0 %5049
        %v5051 = vsel %vm3223, %v4443, 0.0
        %5052 = vadd.xlane.f32.xlu0 %v5051
        %v5053 = vpop.xlane.xlu0 %5052
        %v5054 = vsel %vm3223, %v4445, 0.0
        %5055 = vadd.xlane.f32.xlu0 %v5054
        %v5056 = vpop.xlane.xlu0 %5055
        %v5057 = vsel %vm3223, %v4447, 0.0
        %5058 = vadd.xlane.f32.xlu0 %v5057
        %v5059 = vpop.xlane.xlu0 %5058
        %v5060 = vsel %vm3223, %v4449, 0.0
        %5061 = vadd.xlane.f32.xlu0 %v5060
        %v5062 = vpop.xlane.xlu0 %5061
        %v5063 = vsel %vm3223, %v4451, 0.0
        %5064 = vadd.xlane.f32.xlu0 %v5063
        %v5065 = vpop.xlane.xlu0 %5064
        %v5066 = vsel %vm3223, %v4453, 0.0
        %5067 = vadd.xlane.f32.xlu0 %v5066
        %v5068 = vpop.xlane.xlu0 %5067
        %v5069 = vsel %vm3223, %v4455, 0.0
        %5070 = vadd.xlane.f32.xlu0 %v5069
        %v5071 = vpop.xlane.xlu0 %5070
        %v5072 = vsel %vm3223, %v4457, 0.0
        %5073 = vadd.xlane.f32.xlu0 %v5072
        %v5074 = vpop.xlane.xlu0 %5073
        %v5075 = vsel %vm3223, %v4459, 0.0
        %5076 = vadd.xlane.f32.xlu0 %v5075
        %v5077 = vpop.xlane.xlu0 %5076
        %v5078 = vsel %vm3223, %v4461, 0.0
        %5079 = vadd.xlane.f32.xlu0 %v5078
        %v5080 = vpop.xlane.xlu0 %5079
        %v5081 = vsel %vm3223, %v4463, 0.0
        %5082 = vadd.xlane.f32.xlu0 %v5081
        %v5083 = vpop.xlane.xlu0 %5082
        %v5084 = vsel %vm3223, %v4465, 0.0
        %5085 = vadd.xlane.f32.xlu0 %v5084
        %v5086 = vpop.xlane.xlu0 %5085
        %v5087 = vsel %vm3223, %v4467, 0.0
        %5088 = vadd.xlane.f32.xlu0 %v5087
        %v5089 = vpop.xlane.xlu0 %5088
        %v5090 = vsel %vm3223, %v4469, 0.0
        %5091 = vadd.xlane.f32.xlu0 %v5090
        %v5092 = vpop.xlane.xlu0 %5091
        %v5093 = vsel %vm3223, %v4471, 0.0
        %5094 = vadd.xlane.f32.xlu0 %v5093
        %v5095 = vpop.xlane.xlu0 %5094
        %v5096 = vsel %vm3223, %v4473, 0.0
        %5097 = vadd.xlane.f32.xlu0 %v5096
        %v5098 = vpop.xlane.xlu0 %5097
        %v5099 = vsel %vm3223, %v4475, 0.0
        %5100 = vadd.xlane.f32.xlu0 %v5099
        %v5101 = vpop.xlane.xlu0 %5100
        %v5102 = vsel %vm3223, %v4477, 0.0
        %5103 = vadd.xlane.f32.xlu0 %v5102
        %v5104 = vpop.xlane.xlu0 %5103
        %v5105 = vsel %vm3223, %v4479, 0.0
        %5106 = vadd.xlane.f32.xlu0 %v5105
        %v5107 = vpop.xlane.xlu0 %5106
        %v5108 = vsel %vm3223, %v4481, 0.0
        %5109 = vadd.xlane.f32.xlu0 %v5108
        %v5110 = vpop.xlane.xlu0 %5109
        %v5111 = vsel %vm3223, %v4483, 0.0
        %5112 = vadd.xlane.f32.xlu0 %v5111
        %v5113 = vpop.xlane.xlu0 %5112
        %v5114 = vsel %vm3223, %v4485, 0.0
        %5115 = vadd.xlane.f32.xlu0 %v5114
        %v5116 = vpop.xlane.xlu0 %5115
        %v5117 = vsel %vm3223, %v4487, 0.0
        %5118 = vadd.xlane.f32.xlu0 %v5117
        %v5119 = vpop.xlane.xlu0 %5118
        %v5120 = vsel %vm3223, %v4489, 0.0
        %5121 = vadd.xlane.f32.xlu0 %v5120
        %v5122 = vpop.xlane.xlu0 %5121
        %v5123 = vsel %vm3223, %v4491, 0.0
        %5124 = vadd.xlane.f32.xlu0 %v5123
        %v5125 = vpop.xlane.xlu0 %5124
        %v5126 = vsel %vm3223, %v4493, 0.0
        %5127 = vadd.xlane.f32.xlu0 %v5126
        %v5128 = vpop.xlane.xlu0 %5127
        %v5129 = vsel %vm3223, %v4495, 0.0
        %5130 = vadd.xlane.f32.xlu0 %v5129
        %v5131 = vpop.xlane.xlu0 %5130
        %v5132 = vsel %vm3223, %v4497, 0.0
        %5133 = vadd.xlane.f32.xlu0 %v5132
        %v5134 = vpop.xlane.xlu0 %5133
        %v5135 = vsel %vm3223, %v4499, 0.0
        %5136 = vadd.xlane.f32.xlu0 %v5135
        %v5137 = vpop.xlane.xlu0 %5136
        %v5138 = vsel %vm3223, %v4501, 0.0
        %5139 = vadd.xlane.f32.xlu0 %v5138
        %v5140 = vpop.xlane.xlu0 %5139
        %v5141 = vsel %vm3223, %v4503, 0.0
        %5142 = vadd.xlane.f32.xlu0 %v5141
        %v5143 = vpop.xlane.xlu0 %5142
        %v5144 = vsel %vm3223, %v4505, 0.0
        %5145 = vadd.xlane.f32.xlu0 %v5144
        %v5146 = vpop.xlane.xlu0 %5145
        %v5147 = vsel %vm3223, %v4507, 0.0
        %5148 = vadd.xlane.f32.xlu0 %v5147
        %v5149 = vpop.xlane.xlu0 %5148
        %v5150 = vsel %vm3223, %v4509, 0.0
        %5151 = vadd.xlane.f32.xlu0 %v5150
        %v5152 = vpop.xlane.xlu0 %5151
        %v5153 = vsel %vm3223, %v4511, 0.0
        %5154 = vadd.xlane.f32.xlu0 %v5153
        %v5155 = vpop.xlane.xlu0 %5154
        %v5156 = vsel %vm3223, %v4513, 0.0
        %5157 = vadd.xlane.f32.xlu0 %v5156
        %v5158 = vpop.xlane.xlu0 %5157
        %v5159 = vsel %vm3223, %v4515, 0.0
        %5160 = vadd.xlane.f32.xlu0 %v5159
        %v5161 = vpop.xlane.xlu0 %5160
        %v5162 = vsel %vm3223, %v4517, 0.0
        %5163 = vadd.xlane.f32.xlu0 %v5162
        %v5164 = vpop.xlane.xlu0 %5163
        %v5165 = vsel %vm3223, %v4519, 0.0
        %5166 = vadd.xlane.f32.xlu0 %v5165
        %v5167 = vpop.xlane.xlu0 %5166
        %v5168 = vsel %vm3223, %v4521, 0.0
        %5169 = vadd.xlane.f32.xlu0 %v5168
        %v5170 = vpop.xlane.xlu0 %5169
        %v5171 = vsel %vm3223, %v4523, 0.0
        %5172 = vadd.xlane.f32.xlu0 %v5171
        %v5173 = vpop.xlane.xlu0 %5172
        %v5174 = vsel %vm3223, %v4525, 0.0
        %5175 = vadd.xlane.f32.xlu0 %v5174
        %v5176 = vpop.xlane.xlu0 %5175
        %v5177 = vsel %vm3223, %v4527, 0.0
        %5178 = vadd.xlane.f32.xlu0 %v5177
        %v5179 = vpop.xlane.xlu0 %5178
        %v5180 = vsel %vm3223, %v4529, 0.0
        %5181 = vadd.xlane.f32.xlu0 %v5180
        %v5182 = vpop.xlane.xlu0 %5181
        %v5183 = vsel %vm3223, %v4531, 0.0
        %5184 = vadd.xlane.f32.xlu0 %v5183
        %v5185 = vpop.xlane.xlu0 %5184
        %v5186 = vsel %vm3223, %v4533, 0.0
        %5187 = vadd.xlane.f32.xlu0 %v5186
        %v5188 = vpop.xlane.xlu0 %5187
        %v5189 = vsel %vm3223, %v4535, 0.0
        %5190 = vadd.xlane.f32.xlu0 %v5189
        %v5191 = vpop.xlane.xlu0 %5190
        %v5192 = vsel %vm3223, %v4537, 0.0
        %5193 = vadd.xlane.f32.xlu0 %v5192
        %v5194 = vpop.xlane.xlu0 %5193
        %v5195 = vsel %vm3223, %v4539, 0.0
        %5196 = vadd.xlane.f32.xlu0 %v5195
        %v5197 = vpop.xlane.xlu0 %5196
        %v5198 = vsel %vm3223, %v4541, 0.0
        %5199 = vadd.xlane.f32.xlu0 %v5198
        %v5200 = vpop.xlane.xlu0 %5199
        %v5201 = vsel %vm3223, %v4543, 0.0
        %5202 = vadd.xlane.f32.xlu0 %v5201
        %v5203 = vpop.xlane.xlu0 %5202
        %v5204 = vsel %vm3223, %v4545, 0.0
        %5205 = vadd.xlane.f32.xlu0 %v5204
        %v5206 = vpop.xlane.xlu0 %5205
        %v5207 = vsel %vm3223, %v4547, 0.0
        %5208 = vadd.xlane.f32.xlu0 %v5207
        %v5209 = vpop.xlane.xlu0 %5208
        %v5210 = vsel %vm3223, %v4549, 0.0
        %5211 = vadd.xlane.f32.xlu0 %v5210
        %v5212 = vpop.xlane.xlu0 %5211
        %v5213 = vsel %vm3223, %v4551, 0.0
        %5214 = vadd.xlane.f32.xlu0 %v5213
        %v5215 = vpop.xlane.xlu0 %5214
        %v5216 = vsel %vm3223, %v4553, 0.0
        %5217 = vadd.xlane.f32.xlu0 %v5216
        %v5218 = vpop.xlane.xlu0 %5217
        %v5219 = vsel %vm3223, %v4555, 0.0
        %5220 = vadd.xlane.f32.xlu0 %v5219
        %v5221 = vpop.xlane.xlu0 %5220
        %v5222 = vsel %vm3223, %v4557, 0.0
        %5223 = vadd.xlane.f32.xlu0 %v5222
        %v5224 = vpop.xlane.xlu0 %5223
        %v5225 = vsel %vm3223, %v4559, 0.0
        %5226 = vadd.xlane.f32.xlu0 %v5225
        %v5227 = vpop.xlane.xlu0 %5226
        %v5228 = vsel %vm3223, %v4561, 0.0
        %5229 = vadd.xlane.f32.xlu0 %v5228
        %v5230 = vpop.xlane.xlu0 %5229
        %v5231 = vsel %vm3223, %v4563, 0.0
        %5232 = vadd.xlane.f32.xlu0 %v5231
        %v5233 = vpop.xlane.xlu0 %5232
        %v5234 = vsel %vm3223, %v4565, 0.0
        %5235 = vadd.xlane.f32.xlu0 %v5234
        %v5236 = vpop.xlane.xlu0 %5235
        %v5237 = vsel %vm3223, %v4567, 0.0
        %5238 = vadd.xlane.f32.xlu0 %v5237
        %v5239 = vpop.xlane.xlu0 %5238
        %v5240 = vsel %vm3223, %v4569, 0.0
        %5241 = vadd.xlane.f32.xlu0 %v5240
        %v5242 = vpop.xlane.xlu0 %5241
        %v5243 = vsel %vm3223, %v4571, 0.0
        %5244 = vadd.xlane.f32.xlu0 %v5243
        %v5245 = vpop.xlane.xlu0 %5244
        %v5246 = vsel %vm3223, %v4573, 0.0
        %5247 = vadd.xlane.f32.xlu0 %v5246
        %v5248 = vpop.xlane.xlu0 %5247
        %v5249 = vsel %vm3223, %v4575, 0.0
        %5250 = vadd.xlane.f32.xlu0 %v5249
        %v5251 = vpop.xlane.xlu0 %5250
        %v5252 = vsel %vm3223, %v4577, 0.0
        %5253 = vadd.xlane.f32.xlu0 %v5252
        %v5254 = vpop.xlane.xlu0 %5253
        %v5255 = vsel %vm3223, %v4579, 0.0
        %5256 = vadd.xlane.f32.xlu0 %v5255
        %v5257 = vpop.xlane.xlu0 %5256
        %v5258 = vsel %vm3223, %v4581, 0.0
        %5259 = vadd.xlane.f32.xlu0 %v5258
        %v5260 = vpop.xlane.xlu0 %5259
        %v5261 = vsel %vm3223, %v4583, 0.0
        %5262 = vadd.xlane.f32.xlu0 %v5261
        %v5263 = vpop.xlane.xlu0 %5262
        %v5264 = vsel %vm3223, %v4585, 0.0
        %5265 = vadd.xlane.f32.xlu0 %v5264
        %v5266 = vpop.xlane.xlu0 %5265
        %v5267 = vsel %vm3223, %v4587, 0.0
        %5268 = vadd.xlane.f32.xlu0 %v5267
        %v5269 = vpop.xlane.xlu0 %5268
        %v5270 = vsel %vm3223, %v4589, 0.0
        %5271 = vadd.xlane.f32.xlu0 %v5270
        %v5272 = vpop.xlane.xlu0 %5271
        %v5273 = vsel %vm3223, %v4591, 0.0
        %5274 = vadd.xlane.f32.xlu0 %v5273
        %v5275 = vpop.xlane.xlu0 %5274
        %v5276 = vsel %vm3223, %v4593, 0.0
        %5277 = vadd.xlane.f32.xlu0 %v5276
        %v5278 = vpop.xlane.xlu0 %5277
        %v5279 = vsel %vm3223, %v4595, 0.0
        %5280 = vadd.xlane.f32.xlu0 %v5279
        %v5281 = vpop.xlane.xlu0 %5280
        %v5282 = vsel %vm3223, %v4597, 0.0
        %5283 = vadd.xlane.f32.xlu0 %v5282
        %v5284 = vpop.xlane.xlu0 %5283
        %v5285 = vsel %vm3223, %v4599, 0.0
        %5286 = vadd.xlane.f32.xlu0 %v5285
        %v5287 = vpop.xlane.xlu0 %5286
        %v5288 = vsel %vm3223, %v4601, 0.0
        %5289 = vadd.xlane.f32.xlu0 %v5288
        %v5290 = vpop.xlane.xlu0 %5289
        %v5291 = vsel %vm3223, %v4603, 0.0
        %5292 = vadd.xlane.f32.xlu0 %v5291
        %v5293 = vpop.xlane.xlu0 %5292
        %v5294 = vsel %vm3223, %v4605, 0.0
        %5295 = vadd.xlane.f32.xlu0 %v5294
        %v5296 = vpop.xlane.xlu0 %5295
        %v5297 = vsel %vm3223, %v4607, 0.0
        %5298 = vadd.xlane.f32.xlu0 %v5297
        %v5299 = vpop.xlane.xlu0 %5298
        %v5300 = vsel %vm3223, %v4609, 0.0
        %5301 = vadd.xlane.f32.xlu0 %v5300
        %v5302 = vpop.xlane.xlu0 %5301
        %v5303 = vsel %vm3223, %v4611, 0.0
        %5304 = vadd.xlane.f32.xlu0 %v5303
        %v5305 = vpop.xlane.xlu0 %5304
        %v5306 = vsel %vm3223, %v4613, 0.0
        %5307 = vadd.xlane.f32.xlu0 %v5306
        %v5308 = vpop.xlane.xlu0 %5307
        %v5309 = vsel %vm3223, %v4615, 0.0
        %5310 = vadd.xlane.f32.xlu0 %v5309
        %v5311 = vpop.xlane.xlu0 %5310
        %v5312 = vsel %vm3223, %v4617, 0.0
        %5313 = vadd.xlane.f32.xlu0 %v5312
        %v5314 = vpop.xlane.xlu0 %5313
        %v5315 = vsel %vm3223, %v4619, 0.0
        %5316 = vadd.xlane.f32.xlu0 %v5315
        %v5317 = vpop.xlane.xlu0 %5316
        %v5318 = vsel %vm3223, %v4621, 0.0
        %5319 = vadd.xlane.f32.xlu0 %v5318
        %v5320 = vpop.xlane.xlu0 %5319
        %v5321 = vsel %vm3223, %v4623, 0.0
        %5322 = vadd.xlane.f32.xlu0 %v5321
        %v5323 = vpop.xlane.xlu0 %5322
        %v5324 = vsel %vm3223, %v4625, 0.0
        %5325 = vadd.xlane.f32.xlu0 %v5324
        %v5326 = vpop.xlane.xlu0 %5325
        %v5327 = vsel %vm3223, %v4627, 0.0
        %5328 = vadd.xlane.f32.xlu0 %v5327
        %v5329 = vpop.xlane.xlu0 %5328
        %v5330 = vsel %vm3223, %v4629, 0.0
        %5331 = vadd.xlane.f32.xlu0 %v5330
        %v5332 = vpop.xlane.xlu0 %5331
        %v5333 = vsel %vm3223, %v4631, 0.0
        %5334 = vadd.xlane.f32.xlu0 %v5333
        %v5335 = vpop.xlane.xlu0 %5334
        %v5336 = vsel %vm3223, %v4633, 0.0
        %5337 = vadd.xlane.f32.xlu0 %v5336
        %v5338 = vpop.xlane.xlu0 %5337
        %v5339 = vsel %vm3223, %v4635, 0.0
        %5340 = vadd.xlane.f32.xlu0 %v5339
        %v5341 = vpop.xlane.xlu0 %5340
        %v5342 = vsel %vm3223, %v4637, 0.0
        %5343 = vadd.xlane.f32.xlu0 %v5342
        %v5344 = vpop.xlane.xlu0 %5343
        %v5345 = vsel %vm3223, %v4639, 0.0
        %5346 = vadd.xlane.f32.xlu0 %v5345
        %v5347 = vpop.xlane.xlu0 %5346
        %v5348 = vsel %vm3223, %v4641, 0.0
        %5349 = vadd.xlane.f32.xlu0 %v5348
        %v5350 = vpop.xlane.xlu0 %5349
        %v5351 = vsel %vm3223, %v4643, 0.0
        %5352 = vadd.xlane.f32.xlu0 %v5351
        %v5353 = vpop.xlane.xlu0 %5352
        %v5354 = vsel %vm3223, %v4645, 0.0
        %5355 = vadd.xlane.f32.xlu0 %v5354
        %v5356 = vpop.xlane.xlu0 %5355
        %v5357 = vsel %vm3223, %v4647, 0.0
        %5358 = vadd.xlane.f32.xlu0 %v5357
        %v5359 = vpop.xlane.xlu0 %5358
        %v5360 = vsel %vm3223, %v4649, 0.0
        %5361 = vadd.xlane.f32.xlu0 %v5360
        %v5362 = vpop.xlane.xlu0 %5361
        %v5363 = vsel %vm3223, %v4651, 0.0
        %5364 = vadd.xlane.f32.xlu0 %v5363
        %v5365 = vpop.xlane.xlu0 %5364
        %v5366 = vsel %vm3223, %v4653, 0.0
        %5367 = vadd.xlane.f32.xlu0 %v5366
        %v5368 = vpop.xlane.xlu0 %5367
        %v5369 = vsel %vm3223, %v4655, 0.0
        %5370 = vadd.xlane.f32.xlu0 %v5369
        %v5371 = vpop.xlane.xlu0 %5370
        %v5372 = vsel %vm3223, %v4657, 0.0
        %5373 = vadd.xlane.f32.xlu0 %v5372
        %v5374 = vpop.xlane.xlu0 %5373
        %v5375 = vsel %vm3223, %v4659, 0.0
        %5376 = vadd.xlane.f32.xlu0 %v5375
        %v5377 = vpop.xlane.xlu0 %5376
        %v5378 = vsel %vm3223, %v4661, 0.0
        %5379 = vadd.xlane.f32.xlu0 %v5378
        %v5380 = vpop.xlane.xlu0 %5379
        %v5381 = vsel %vm3223, %v4663, 0.0
        %5382 = vadd.xlane.f32.xlu0 %v5381
        %v5383 = vpop.xlane.xlu0 %5382
        %v5384 = vsel %vm3223, %v4665, 0.0
        %5385 = vadd.xlane.f32.xlu0 %v5384
        %v5386 = vpop.xlane.xlu0 %5385
        %v5387 = vsel %vm3223, %v4667, 0.0
        %5388 = vadd.xlane.f32.xlu0 %v5387
        %v5389 = vpop.xlane.xlu0 %5388
        %v5390 = vsel %vm3223, %v4669, 0.0
        %5391 = vadd.xlane.f32.xlu0 %v5390
        %v5392 = vpop.xlane.xlu0 %5391
        %v5393 = vsel %vm3223, %v4671, 0.0
        %5394 = vadd.xlane.f32.xlu0 %v5393
        %v5395 = vpop.xlane.xlu0 %5394
        %v5396 = vsel %vm3223, %v4673, 0.0
        %5397 = vadd.xlane.f32.xlu0 %v5396
        %v5398 = vpop.xlane.xlu0 %5397
        %v5399 = vsel %vm3223, %v4675, 0.0
        %5400 = vadd.xlane.f32.xlu0 %v5399
        %v5401 = vpop.xlane.xlu0 %5400
        %v5402 = vsel %vm3223, %v4677, 0.0
        %5403 = vadd.xlane.f32.xlu0 %v5402
        %v5404 = vpop.xlane.xlu0 %5403
        %v5405 = vsel %vm3223, %v4679, 0.0
        %5406 = vadd.xlane.f32.xlu0 %v5405
        %v5407 = vpop.xlane.xlu0 %5406
        %v5408 = vsel %vm3223, %v4681, 0.0
        %5409 = vadd.xlane.f32.xlu0 %v5408
        %v5410 = vpop.xlane.xlu0 %5409
        %v5411 = vsel %vm3223, %v4683, 0.0
        %5412 = vadd.xlane.f32.xlu0 %v5411
        %v5413 = vpop.xlane.xlu0 %5412
        %v5414 = vsel %vm3223, %v4685, 0.0
        %5415 = vadd.xlane.f32.xlu0 %v5414
        %v5416 = vpop.xlane.xlu0 %5415
        %v5417 = vsel %vm3223, %v4687, 0.0
        %5418 = vadd.xlane.f32.xlu0 %v5417
        %v5419 = vpop.xlane.xlu0 %5418
        %v5420 = vsel %vm3223, %v4689, 0.0
        %5421 = vadd.xlane.f32.xlu0 %v5420
        %v5422 = vpop.xlane.xlu0 %5421
        %v5423 = vsel %vm3223, %v4691, 0.0
        %5424 = vadd.xlane.f32.xlu0 %v5423
        %v5425 = vpop.xlane.xlu0 %5424
        %v5426 = vsel %vm3223, %v4693, 0.0
        %5427 = vadd.xlane.f32.xlu0 %v5426
        %v5428 = vpop.xlane.xlu0 %5427
        %v5429 = vsel %vm3223, %v4695, 0.0
        %5430 = vadd.xlane.f32.xlu0 %v5429
        %v5431 = vpop.xlane.xlu0 %5430
        %v5432 = vsel %vm3223, %v4697, 0.0
        %5433 = vadd.xlane.f32.xlu0 %v5432
        %v5434 = vpop.xlane.xlu0 %5433
        %v5435 = vsel %vm3223, %v4699, 0.0
        %5436 = vadd.xlane.f32.xlu0 %v5435
        %v5437 = vpop.xlane.xlu0 %5436
        %v5438 = vsel %vm3223, %v4701, 0.0
        %5439 = vadd.xlane.f32.xlu0 %v5438
        %v5440 = vpop.xlane.xlu0 %5439
        %v5441 = vsel %vm3223, %v4703, 0.0
        %5442 = vadd.xlane.f32.xlu0 %v5441
        %v5443 = vpop.xlane.xlu0 %5442
        %v5444 = vsel %vm3223, %v4705, 0.0
        %5445 = vadd.xlane.f32.xlu0 %v5444
        %v5446 = vpop.xlane.xlu0 %5445
        %v5447 = vsel %vm3223, %v4707, 0.0
        %5448 = vadd.xlane.f32.xlu0 %v5447
        %v5449 = vpop.xlane.xlu0 %5448
        %v5450 = vsel %vm3223, %v4709, 0.0
        %5451 = vadd.xlane.f32.xlu0 %v5450
        %v5452 = vpop.xlane.xlu0 %5451
        %v5453 = vsel %vm3223, %v4711, 0.0
        %5454 = vadd.xlane.f32.xlu0 %v5453
        %v5455 = vpop.xlane.xlu0 %5454
        %v5456 = vsel %vm3223, %v4713, 0.0
        %5457 = vadd.xlane.f32.xlu0 %v5456
        %v5458 = vpop.xlane.xlu0 %5457
        %v5459 = vsel %vm3223, %v4715, 0.0
        %5460 = vadd.xlane.f32.xlu0 %v5459
        %v5461 = vpop.xlane.xlu0 %5460
        %v5462 = vsel %vm3223, %v4717, 0.0
        %5463 = vadd.xlane.f32.xlu0 %v5462
        %v5464 = vpop.xlane.xlu0 %5463
        %v5465 = vsel %vm3223, %v4719, 0.0
        %5466 = vadd.xlane.f32.xlu0 %v5465
        %v5467 = vpop.xlane.xlu0 %5466
        %v5468 = vsel %vm3223, %v4721, 0.0
        %5469 = vadd.xlane.f32.xlu0 %v5468
        %v5470 = vpop.xlane.xlu0 %5469
        %v5471 = vsel %vm3223, %v4723, 0.0
        %5472 = vadd.xlane.f32.xlu0 %v5471
        %v5473 = vpop.xlane.xlu0 %5472
        %v5474 = vsel %vm3223, %v4725, 0.0
        %5475 = vadd.xlane.f32.xlu0 %v5474
        %v5476 = vpop.xlane.xlu0 %5475
        %v5477 = vsel %vm3223, %v4727, 0.0
        %5478 = vadd.xlane.f32.xlu0 %v5477
        %v5479 = vpop.xlane.xlu0 %5478
        %v5480 = vsel %vm3223, %v4729, 0.0
        %5481 = vadd.xlane.f32.xlu0 %v5480
        %v5482 = vpop.xlane.xlu0 %5481
        %v5483 = vsel %vm3223, %v4731, 0.0
        %5484 = vadd.xlane.f32.xlu0 %v5483
        %v5485 = vpop.xlane.xlu0 %5484
        %v5486 = vsel %vm3223, %v4733, 0.0
        %5487 = vadd.xlane.f32.xlu0 %v5486
        %v5488 = vpop.xlane.xlu0 %5487
        %v5489 = vsel %vm3223, %v4735, 0.0
        %5490 = vadd.xlane.f32.xlu0 %v5489
        %v5491 = vpop.xlane.xlu0 %5490
        %v5492 = vsel %vm3223, %v4737, 0.0
        %5493 = vadd.xlane.f32.xlu0 %v5492
        %v5494 = vpop.xlane.xlu0 %5493
        %v5495 = vsel %vm3223, %v4739, 0.0
        %5496 = vadd.xlane.f32.xlu0 %v5495
        %v5497 = vpop.xlane.xlu0 %5496
        %v5498 = vsel %vm3223, %v4741, 0.0
        %5499 = vadd.xlane.f32.xlu0 %v5498
        %v5500 = vpop.xlane.xlu0 %5499
        %v5501 = vsel %vm3223, %v4743, 0.0
        %5502 = vadd.xlane.f32.xlu0 %v5501
        %v5503 = vpop.xlane.xlu0 %5502
        %v5504 = vsel %vm3223, %v4745, 0.0
        %5505 = vadd.xlane.f32.xlu0 %v5504
        %v5506 = vpop.xlane.xlu0 %5505
        %v5507 = vsel %vm3223, %v4747, 0.0
        %5508 = vadd.xlane.f32.xlu0 %v5507
        %v5509 = vpop.xlane.xlu0 %5508
        %v5510 = vsel %vm3223, %v4749, 0.0
        %5511 = vadd.xlane.f32.xlu0 %v5510
        %v5512 = vpop.xlane.xlu0 %5511
        %v5513 = vsel %vm3223, %v4751, 0.0
        %5514 = vadd.xlane.f32.xlu0 %v5513
        %v5515 = vpop.xlane.xlu0 %5514
        %v5516 = vsel %vm3223, %v4753, 0.0
        %5517 = vadd.xlane.f32.xlu0 %v5516
        %v5518 = vpop.xlane.xlu0 %5517
        %v5519 = vsel %vm3223, %v4755, 0.0
        %5520 = vadd.xlane.f32.xlu0 %v5519
        %v5521 = vpop.xlane.xlu0 %5520
        %v5522 = vsel %vm3223, %v4757, 0.0
        %5523 = vadd.xlane.f32.xlu0 %v5522
        %v5524 = vpop.xlane.xlu0 %5523
        %v5525 = vsel %vm3223, %v4759, 0.0
        %5526 = vadd.xlane.f32.xlu0 %v5525
        %v5527 = vpop.xlane.xlu0 %5526
        %v5528 = vrcp.pop %v4762
        %v5529 = vrcp.pop %v4765
        %v5530 = vrcp.pop %v4768
        %v5531 = vrcp.pop %v4771
        %v5532 = vrcp.pop %v4774
        %v5533 = vrcp.pop %v4777
        %v5534 = vrcp.pop %v4780
        %v5535 = vrcp.pop %v4783
        %v5536 = vrcp.pop %v4786
        %v5537 = vrcp.pop %v4789
        %v5538 = vrcp.pop %v4792
        %v5539 = vrcp.pop %v4795
        %v5540 = vrcp.pop %v4798
        %v5541 = vrcp.pop %v4801
        %v5542 = vrcp.pop %v4804
        %v5543 = vrcp.pop %v4807
        %v5544 = vrcp.pop %v4810
        %v5545 = vrcp.pop %v4813
        %v5546 = vrcp.pop %v4816
        %v5547 = vrcp.pop %v4819
        %v5548 = vrcp.pop %v4822
        %v5549 = vrcp.pop %v4825
        %v5550 = vrcp.pop %v4828
        %v5551 = vrcp.pop %v4831
        %v5552 = vrcp.pop %v4834
        %v5553 = vrcp.pop %v4837
        %v5554 = vrcp.pop %v4840
        %v5555 = vrcp.pop %v4843
        %v5556 = vrcp.pop %v4846
        %v5557 = vrcp.pop %v4849
        %v5558 = vrcp.pop %v4852
        %v5559 = vrcp.pop %v4855
        %v5560 = vrcp.pop %v4858
        %v5561 = vrcp.pop %v4861
        %v5562 = vrcp.pop %v4864
        %v5563 = vrcp.pop %v4867
        %v5564 = vrcp.pop %v4870
        %v5565 = vrcp.pop %v4873
        %v5566 = vrcp.pop %v4876
        %v5567 = vrcp.pop %v4879
        %v5568 = vrcp.pop %v4882
        %v5569 = vrcp.pop %v4885
        %v5570 = vrcp.pop %v4888
        %v5571 = vrcp.pop %v4891
        %v5572 = vrcp.pop %v4894
        %v5573 = vrcp.pop %v4897
        %v5574 = vrcp.pop %v4900
        %v5575 = vrcp.pop %v4903
        %v5576 = vrcp.pop %v4906
        %v5577 = vrcp.pop %v4909
        %v5578 = vrcp.pop %v4912
        %v5579 = vrcp.pop %v4915
        %v5580 = vrcp.pop %v4918
        %v5581 = vrcp.pop %v4921
        %v5582 = vrcp.pop %v4924
        %v5583 = vrcp.pop %v4927
        %v5584 = vrcp.pop %v4930
        %v5585 = vrcp.pop %v4933
        %v5586 = vrcp.pop %v4936
        %v5587 = vrcp.pop %v4939
        %v5588 = vrcp.pop %v4942
        %v5589 = vrcp.pop %v4945
        %v5590 = vrcp.pop %v4948
        %v5591 = vrcp.pop %v4951
        %v5592 = vrcp.pop %v4954
        %v5593 = vrcp.pop %v4957
        %v5594 = vrcp.pop %v4960
        %v5595 = vrcp.pop %v4963
        %v5596 = vrcp.pop %v4966
        %v5597 = vrcp.pop %v4969
        %v5598 = vrcp.pop %v4972
        %v5599 = vrcp.pop %v4975
        %v5600 = vrcp.pop %v4978
        %v5601 = vrcp.pop %v4981
        %v5602 = vrcp.pop %v4984
        %v5603 = vrcp.pop %v4987
        %v5604 = vrcp.pop %v4990
        %v5605 = vrcp.pop %v4993
        %v5606 = vrcp.pop %v4996
        %v5607 = vrcp.pop %v4999
        %v5608 = vrcp.pop %v5002
        %v5609 = vrcp.pop %v5005
        %v5610 = vrcp.pop %v5008
        %v5611 = vrcp.pop %v5011
        %v5612 = vrcp.pop %v5014
        %v5613 = vrcp.pop %v5017
        %v5614 = vrcp.pop %v5020
        %v5615 = vrcp.pop %v5023
        %v5616 = vrcp.pop %v5026
        %v5617 = vrcp.pop %v5029
        %v5618 = vrcp.pop %v5032
        %v5619 = vrcp.pop %v5035
        %v5620 = vrcp.pop %v5038
        %v5621 = vrcp.pop %v5041
        %v5622 = vrcp.pop %v5044
        %v5623 = vrcp.pop %v5047
        %v5624 = vrcp.pop %v5050
        %v5625 = vrcp.pop %v5053
        %v5626 = vrcp.pop %v5056
        %v5627 = vrcp.pop %v5059
        %v5628 = vrcp.pop %v5062
        %v5629 = vrcp.pop %v5065
        %v5630 = vrcp.pop %v5068
        %v5631 = vrcp.pop %v5071
        %v5632 = vrcp.pop %v5074
        %v5633 = vrcp.pop %v5077
        %v5634 = vrcp.pop %v5080
        %v5635 = vrcp.pop %v5083
        %v5636 = vrcp.pop %v5086
        %v5637 = vrcp.pop %v5089
        %v5638 = vrcp.pop %v5092
        %v5639 = vrcp.pop %v5095
        %v5640 = vrcp.pop %v5098
        %v5641 = vrcp.pop %v5101
        %v5642 = vrcp.pop %v5104
        %v5643 = vrcp.pop %v5107
        %v5644 = vrcp.pop %v5110
        %v5645 = vrcp.pop %v5113
        %v5646 = vrcp.pop %v5116
        %v5647 = vrcp.pop %v5119
        %v5648 = vrcp.pop %v5122
        %v5649 = vrcp.pop %v5125
        %v5650 = vrcp.pop %v5128
        %v5651 = vrcp.pop %v5131
        %v5652 = vrcp.pop %v5134
        %v5653 = vrcp.pop %v5137
        %v5654 = vrcp.pop %v5140
        %v5655 = vrcp.pop %v5143
        %v5656 = vrcp.pop %v5146
        %v5657 = vrcp.pop %v5149
        %v5658 = vrcp.pop %v5152
        %v5659 = vrcp.pop %v5155
        %v5660 = vrcp.pop %v5158
        %v5661 = vrcp.pop %v5161
        %v5662 = vrcp.pop %v5164
        %v5663 = vrcp.pop %v5167
        %v5664 = vrcp.pop %v5170
        %v5665 = vrcp.pop %v5173
        %v5666 = vrcp.pop %v5176
        %v5667 = vrcp.pop %v5179
        %v5668 = vrcp.pop %v5182
        %v5669 = vrcp.pop %v5185
        %v5670 = vrcp.pop %v5188
        %v5671 = vrcp.pop %v5191
        %v5672 = vrcp.pop %v5194
        %v5673 = vrcp.pop %v5197
        %v5674 = vrcp.pop %v5200
        %v5675 = vrcp.pop %v5203
        %v5676 = vrcp.pop %v5206
        %v5677 = vrcp.pop %v5209
        %v5678 = vrcp.pop %v5212
        %v5679 = vrcp.pop %v5215
        %v5680 = vrcp.pop %v5218
        %v5681 = vrcp.pop %v5221
        %v5682 = vrcp.pop %v5224
        %v5683 = vrcp.pop %v5227
        %v5684 = vrcp.pop %v5230
        %v5685 = vrcp.pop %v5233
        %v5686 = vrcp.pop %v5236
        %v5687 = vrcp.pop %v5239
        %v5688 = vrcp.pop %v5242
        %v5689 = vrcp.pop %v5245
        %v5690 = vrcp.pop %v5248
        %v5691 = vrcp.pop %v5251
        %v5692 = vrcp.pop %v5254
        %v5693 = vrcp.pop %v5257
        %v5694 = vrcp.pop %v5260
        %v5695 = vrcp.pop %v5263
        %v5696 = vrcp.pop %v5266
        %v5697 = vrcp.pop %v5269
        %v5698 = vrcp.pop %v5272
        %v5699 = vrcp.pop %v5275
        %v5700 = vrcp.pop %v5278
        %v5701 = vrcp.pop %v5281
        %v5702 = vrcp.pop %v5284
        %v5703 = vrcp.pop %v5287
        %v5704 = vrcp.pop %v5290
        %v5705 = vrcp.pop %v5293
        %v5706 = vrcp.pop %v5296
        %v5707 = vrcp.pop %v5299
        %v5708 = vrcp.pop %v5302
        %v5709 = vrcp.pop %v5305
        %v5710 = vrcp.pop %v5308
        %v5711 = vrcp.pop %v5311
        %v5712 = vrcp.pop %v5314
        %v5713 = vrcp.pop %v5317
        %v5714 = vrcp.pop %v5320
        %v5715 = vrcp.pop %v5323
        %v5716 = vrcp.pop %v5326
        %v5717 = vrcp.pop %v5329
        %v5718 = vrcp.pop %v5332
        %v5719 = vrcp.pop %v5335
        %v5720 = vrcp.pop %v5338
        %v5721 = vrcp.pop %v5341
        %v5722 = vrcp.pop %v5344
        %v5723 = vrcp.pop %v5347
        %v5724 = vrcp.pop %v5350
        %v5725 = vrcp.pop %v5353
        %v5726 = vrcp.pop %v5356
        %v5727 = vrcp.pop %v5359
        %v5728 = vrcp.pop %v5362
        %v5729 = vrcp.pop %v5365
        %v5730 = vrcp.pop %v5368
        %v5731 = vrcp.pop %v5371
        %v5732 = vrcp.pop %v5374
        %v5733 = vrcp.pop %v5377
        %v5734 = vrcp.pop %v5380
        %v5735 = vrcp.pop %v5383
        %v5736 = vrcp.pop %v5386
        %v5737 = vrcp.pop %v5389
        %v5738 = vrcp.pop %v5392
        %v5739 = vrcp.pop %v5395
        %v5740 = vrcp.pop %v5398
        %v5741 = vrcp.pop %v5401
        %v5742 = vrcp.pop %v5404
        %v5743 = vrcp.pop %v5407
        %v5744 = vrcp.pop %v5410
        %v5745 = vrcp.pop %v5413
        %v5746 = vrcp.pop %v5416
        %v5747 = vrcp.pop %v5419
        %v5748 = vrcp.pop %v5422
        %v5749 = vrcp.pop %v5425
        %v5750 = vrcp.pop %v5428
        %v5751 = vrcp.pop %v5431
        %v5752 = vrcp.pop %v5434
        %v5753 = vrcp.pop %v5437
        %v5754 = vrcp.pop %v5440
        %v5755 = vrcp.pop %v5443
        %v5756 = vrcp.pop %v5446
        %v5757 = vrcp.pop %v5449
        %v5758 = vrcp.pop %v5452
        %v5759 = vrcp.pop %v5455
        %v5760 = vrcp.pop %v5458
        %v5761 = vrcp.pop %v5461
        %v5762 = vrcp.pop %v5464
        %v5763 = vrcp.pop %v5467
        %v5764 = vrcp.pop %v5470
        %v5765 = vrcp.pop %v5473
        %v5766 = vrcp.pop %v5476
        %v5767 = vrcp.pop %v5479
        %v5768 = vrcp.pop %v5482
        %v5769 = vrcp.pop %v5485
        %v5770 = vrcp.pop %v5488
        %v5771 = vrcp.pop %v5491
        %v5772 = vrcp.pop %v5494
        %v5773 = vrcp.pop %v5497
        %v5774 = vrcp.pop %v5500
        %v5775 = vrcp.pop %v5503
        %v5776 = vrcp.pop %v5506
        %v5777 = vrcp.pop %v5509
        %v5778 = vrcp.pop %v5512
        %v5779 = vrcp.pop %v5515
        %v5780 = vrcp.pop %v5518
        %v5781 = vrcp.pop %v5521
        %v5782 = vrcp.pop %v5524
        %v5783 = vrcp.pop %v5527
        %v5784 = vmul.f32 %v4249, %v5528
        %v5785 = vmul.f32 %v4251, %v5529
        %v5786 = vmul.f32 %v4253, %v5530
        %v5787 = vmul.f32 %v4255, %v5531
        %v5788 = vmul.f32 %v4257, %v5532
        %v5789 = vmul.f32 %v4259, %v5533
        %v5790 = vmul.f32 %v4261, %v5534
        %v5791 = vmul.f32 %v4263, %v5535
        %v5792 = vmul.f32 %v4265, %v5536
        %v5793 = vmul.f32 %v4267, %v5537
        %v5794 = vmul.f32 %v4269, %v5538
        %v5795 = vmul.f32 %v4271, %v5539
        %v5796 = vmul.f32 %v4273, %v5540
        %v5797 = vmul.f32 %v4275, %v5541
        %v5798 = vmul.f32 %v4277, %v5542
        %v5799 = vmul.f32 %v4279, %v5543
        %v5800 = vmul.f32 %v4281, %v5544
        %v5801 = vmul.f32 %v4283, %v5545
        %v5802 = vmul.f32 %v4285, %v5546
        %v5803 = vmul.f32 %v4287, %v5547
        %v5804 = vmul.f32 %v4289, %v5548
        %v5805 = vmul.f32 %v4291, %v5549
        %v5806 = vmul.f32 %v4293, %v5550
        %v5807 = vmul.f32 %v4295, %v5551
        %v5808 = vmul.f32 %v4297, %v5552
        %v5809 = vmul.f32 %v4299, %v5553
        %v5810 = vmul.f32 %v4301, %v5554
        %v5811 = vmul.f32 %v4303, %v5555
        %v5812 = vmul.f32 %v4305, %v5556
        %v5813 = vmul.f32 %v4307, %v5557
        %v5814 = vmul.f32 %v4309, %v5558
        %v5815 = vmul.f32 %v4311, %v5559
        %v5816 = vmul.f32 %v4313, %v5560
        %v5817 = vmul.f32 %v4315, %v5561
        %v5818 = vmul.f32 %v4317, %v5562
        %v5819 = vmul.f32 %v4319, %v5563
        %v5820 = vmul.f32 %v4321, %v5564
        %v5821 = vmul.f32 %v4323, %v5565
        %v5822 = vmul.f32 %v4325, %v5566
        %v5823 = vmul.f32 %v4327, %v5567
        %v5824 = vmul.f32 %v4329, %v5568
        %v5825 = vmul.f32 %v4331, %v5569
        %v5826 = vmul.f32 %v4333, %v5570
        %v5827 = vmul.f32 %v4335, %v5571
        %v5828 = vmul.f32 %v4337, %v5572
        %v5829 = vmul.f32 %v4339, %v5573
        %v5830 = vmul.f32 %v4341, %v5574
        %v5831 = vmul.f32 %v4343, %v5575
        %v5832 = vmul.f32 %v4345, %v5576
        %v5833 = vmul.f32 %v4347, %v5577
        %v5834 = vmul.f32 %v4349, %v5578
        %v5835 = vmul.f32 %v4351, %v5579
        %v5836 = vmul.f32 %v4353, %v5580
        %v5837 = vmul.f32 %v4355, %v5581
        %v5838 = vmul.f32 %v4357, %v5582
        %v5839 = vmul.f32 %v4359, %v5583
        %v5840 = vmul.f32 %v4361, %v5584
        %v5841 = vmul.f32 %v4363, %v5585
        %v5842 = vmul.f32 %v4365, %v5586
        %v5843 = vmul.f32 %v4367, %v5587
        %v5844 = vmul.f32 %v4369, %v5588
        %v5845 = vmul.f32 %v4371, %v5589
        %v5846 = vmul.f32 %v4373, %v5590
        %v5847 = vmul.f32 %v4375, %v5591
        %v5848 = vmul.f32 %v4377, %v5592
        %v5849 = vmul.f32 %v4379, %v5593
        %v5850 = vmul.f32 %v4381, %v5594
        %v5851 = vmul.f32 %v4383, %v5595
        %v5852 = vmul.f32 %v4385, %v5596
        %v5853 = vmul.f32 %v4387, %v5597
        %v5854 = vmul.f32 %v4389, %v5598
        %v5855 = vmul.f32 %v4391, %v5599
        %v5856 = vmul.f32 %v4393, %v5600
        %v5857 = vmul.f32 %v4395, %v5601
        %v5858 = vmul.f32 %v4397, %v5602
        %v5859 = vmul.f32 %v4399, %v5603
        %v5860 = vmul.f32 %v4401, %v5604
        %v5861 = vmul.f32 %v4403, %v5605
        %v5862 = vmul.f32 %v4405, %v5606
        %v5863 = vmul.f32 %v4407, %v5607
        %v5864 = vmul.f32 %v4409, %v5608
        %v5865 = vmul.f32 %v4411, %v5609
        %v5866 = vmul.f32 %v4413, %v5610
        %v5867 = vmul.f32 %v4415, %v5611
        %v5868 = vmul.f32 %v4417, %v5612
        %v5869 = vmul.f32 %v4419, %v5613
        %v5870 = vmul.f32 %v4421, %v5614
        %v5871 = vmul.f32 %v4423, %v5615
        %v5872 = vmul.f32 %v4425, %v5616
        %v5873 = vmul.f32 %v4427, %v5617
        %v5874 = vmul.f32 %v4429, %v5618
        %v5875 = vmul.f32 %v4431, %v5619
        %v5876 = vmul.f32 %v4433, %v5620
        %v5877 = vmul.f32 %v4435, %v5621
        %v5878 = vmul.f32 %v4437, %v5622
        %v5879 = vmul.f32 %v4439, %v5623
        %v5880 = vmul.f32 %v4441, %v5624
        %v5881 = vmul.f32 %v4443, %v5625
        %v5882 = vmul.f32 %v4445, %v5626
        %v5883 = vmul.f32 %v4447, %v5627
        %v5884 = vmul.f32 %v4449, %v5628
        %v5885 = vmul.f32 %v4451, %v5629
        %v5886 = vmul.f32 %v4453, %v5630
        %v5887 = vmul.f32 %v4455, %v5631
        %v5888 = vmul.f32 %v4457, %v5632
        %v5889 = vmul.f32 %v4459, %v5633
        %v5890 = vmul.f32 %v4461, %v5634
        %v5891 = vmul.f32 %v4463, %v5635
        %v5892 = vmul.f32 %v4465, %v5636
        %v5893 = vmul.f32 %v4467, %v5637
        %v5894 = vmul.f32 %v4469, %v5638
        %v5895 = vmul.f32 %v4471, %v5639
        %v5896 = vmul.f32 %v4473, %v5640
        %v5897 = vmul.f32 %v4475, %v5641
        %v5898 = vmul.f32 %v4477, %v5642
        %v5899 = vmul.f32 %v4479, %v5643
        %v5900 = vmul.f32 %v4481, %v5644
        %v5901 = vmul.f32 %v4483, %v5645
        %v5902 = vmul.f32 %v4485, %v5646
        %v5903 = vmul.f32 %v4487, %v5647
        %v5904 = vmul.f32 %v4489, %v5648
        %v5905 = vmul.f32 %v4491, %v5649
        %v5906 = vmul.f32 %v4493, %v5650
        %v5907 = vmul.f32 %v4495, %v5651
        %v5908 = vmul.f32 %v4497, %v5652
        %v5909 = vmul.f32 %v4499, %v5653
        %v5910 = vmul.f32 %v4501, %v5654
        %v5911 = vmul.f32 %v4503, %v5655
        %v5912 = vmul.f32 %v4505, %v5656
        %v5913 = vmul.f32 %v4507, %v5657
        %v5914 = vmul.f32 %v4509, %v5658
        %v5915 = vmul.f32 %v4511, %v5659
        %v5916 = vmul.f32 %v4513, %v5660
        %v5917 = vmul.f32 %v4515, %v5661
        %v5918 = vmul.f32 %v4517, %v5662
        %v5919 = vmul.f32 %v4519, %v5663
        %v5920 = vmul.f32 %v4521, %v5664
        %v5921 = vmul.f32 %v4523, %v5665
        %v5922 = vmul.f32 %v4525, %v5666
        %v5923 = vmul.f32 %v4527, %v5667
        %v5924 = vmul.f32 %v4529, %v5668
        %v5925 = vmul.f32 %v4531, %v5669
        %v5926 = vmul.f32 %v4533, %v5670
        %v5927 = vmul.f32 %v4535, %v5671
        %v5928 = vmul.f32 %v4537, %v5672
        %v5929 = vmul.f32 %v4539, %v5673
        %v5930 = vmul.f32 %v4541, %v5674
        %v5931 = vmul.f32 %v4543, %v5675
        %v5932 = vmul.f32 %v4545, %v5676
        %v5933 = vmul.f32 %v4547, %v5677
        %v5934 = vmul.f32 %v4549, %v5678
        %v5935 = vmul.f32 %v4551, %v5679
        %v5936 = vmul.f32 %v4553, %v5680
        %v5937 = vmul.f32 %v4555, %v5681
        %v5938 = vmul.f32 %v4557, %v5682
        %v5939 = vmul.f32 %v4559, %v5683
        %v5940 = vmul.f32 %v4561, %v5684
        %v5941 = vmul.f32 %v4563, %v5685
        %v5942 = vmul.f32 %v4565, %v5686
        %v5943 = vmul.f32 %v4567, %v5687
        %v5944 = vmul.f32 %v4569, %v5688
        %v5945 = vmul.f32 %v4571, %v5689
        %v5946 = vmul.f32 %v4573, %v5690
        %v5947 = vmul.f32 %v4575, %v5691
        %v5948 = vmul.f32 %v4577, %v5692
        %v5949 = vmul.f32 %v4579, %v5693
        %v5950 = vmul.f32 %v4581, %v5694
        %v5951 = vmul.f32 %v4583, %v5695
        %v5952 = vmul.f32 %v4585, %v5696
        %v5953 = vmul.f32 %v4587, %v5697
        %v5954 = vmul.f32 %v4589, %v5698
        %v5955 = vmul.f32 %v4591, %v5699
        %v5956 = vmul.f32 %v4593, %v5700
        %v5957 = vmul.f32 %v4595, %v5701
        %v5958 = vmul.f32 %v4597, %v5702
        %v5959 = vmul.f32 %v4599, %v5703
        %v5960 = vmul.f32 %v4601, %v5704
        %v5961 = vmul.f32 %v4603, %v5705
        %v5962 = vmul.f32 %v4605, %v5706
        %v5963 = vmul.f32 %v4607, %v5707
        %v5964 = vmul.f32 %v4609, %v5708
        %v5965 = vmul.f32 %v4611, %v5709
        %v5966 = vmul.f32 %v4613, %v5710
        %v5967 = vmul.f32 %v4615, %v5711
        %v5968 = vmul.f32 %v4617, %v5712
        %v5969 = vmul.f32 %v4619, %v5713
        %v5970 = vmul.f32 %v4621, %v5714
        %v5971 = vmul.f32 %v4623, %v5715
        %v5972 = vmul.f32 %v4625, %v5716
        %v5973 = vmul.f32 %v4627, %v5717
        %v5974 = vmul.f32 %v4629, %v5718
        %v5975 = vmul.f32 %v4631, %v5719
        %v5976 = vmul.f32 %v4633, %v5720
        %v5977 = vmul.f32 %v4635, %v5721
        %v5978 = vmul.f32 %v4637, %v5722
        %v5979 = vmul.f32 %v4639, %v5723
        %v5980 = vmul.f32 %v4641, %v5724
        %v5981 = vmul.f32 %v4643, %v5725
        %v5982 = vmul.f32 %v4645, %v5726
        %v5983 = vmul.f32 %v4647, %v5727
        %v5984 = vmul.f32 %v4649, %v5728
        %v5985 = vmul.f32 %v4651, %v5729
        %v5986 = vmul.f32 %v4653, %v5730
        %v5987 = vmul.f32 %v4655, %v5731
        %v5988 = vmul.f32 %v4657, %v5732
        %v5989 = vmul.f32 %v4659, %v5733
        %v5990 = vmul.f32 %v4661, %v5734
        %v5991 = vmul.f32 %v4663, %v5735
        %v5992 = vmul.f32 %v4665, %v5736
        %v5993 = vmul.f32 %v4667, %v5737
        %v5994 = vmul.f32 %v4669, %v5738
        %v5995 = vmul.f32 %v4671, %v5739
        %v5996 = vmul.f32 %v4673, %v5740
        %v5997 = vmul.f32 %v4675, %v5741
        %v5998 = vmul.f32 %v4677, %v5742
        %v5999 = vmul.f32 %v4679, %v5743
        %v6000 = vmul.f32 %v4681, %v5744
        %v6001 = vmul.f32 %v4683, %v5745
        %v6002 = vmul.f32 %v4685, %v5746
        %v6003 = vmul.f32 %v4687, %v5747
        %v6004 = vmul.f32 %v4689, %v5748
        %v6005 = vmul.f32 %v4691, %v5749
        %v6006 = vmul.f32 %v4693, %v5750
        %v6007 = vmul.f32 %v4695, %v5751
        %v6008 = vmul.f32 %v4697, %v5752
        %v6009 = vmul.f32 %v4699, %v5753
        %v6010 = vmul.f32 %v4701, %v5754
        %v6011 = vmul.f32 %v4703, %v5755
        %v6012 = vmul.f32 %v4705, %v5756
        %v6013 = vmul.f32 %v4707, %v5757
        %v6014 = vmul.f32 %v4709, %v5758
        %v6015 = vmul.f32 %v4711, %v5759
        %v6016 = vmul.f32 %v4713, %v5760
        %v6017 = vmul.f32 %v4715, %v5761
        %v6018 = vmul.f32 %v4717, %v5762
        %v6019 = vmul.f32 %v4719, %v5763
        %v6020 = vmul.f32 %v4721, %v5764
        %v6021 = vmul.f32 %v4723, %v5765
        %v6022 = vmul.f32 %v4725, %v5766
        %v6023 = vmul.f32 %v4727, %v5767
        %v6024 = vmul.f32 %v4729, %v5768
        %v6025 = vmul.f32 %v4731, %v5769
        %v6026 = vmul.f32 %v4733, %v5770
        %v6027 = vmul.f32 %v4735, %v5771
        %v6028 = vmul.f32 %v4737, %v5772
        %v6029 = vmul.f32 %v4739, %v5773
        %v6030 = vmul.f32 %v4741, %v5774
        %v6031 = vmul.f32 %v4743, %v5775
        %v6032 = vmul.f32 %v4745, %v5776
        %v6033 = vmul.f32 %v4747, %v5777
        %v6034 = vmul.f32 %v4749, %v5778
        %v6035 = vmul.f32 %v4751, %v5779
        %v6036 = vmul.f32 %v4753, %v5780
        %v6037 = vmul.f32 %v4755, %v5781
        %v6038 = vmul.f32 %v4757, %v5782
        %v6039 = vmul.f32 %v4759, %v5783
        %v6040 = vcombine.high %v727, %v727
        %v6042 = vunpack.c.l.s4 1966171168
        %v6043 = vunpack.c.0.s8 %v6042
        %v6044 = vlaneseq
        %v6045 = vshrl.u32 %v6044, 7
        %v6046 = vsub.s32 %v6043, %v6045
        %v6047 = vrot.slane %v727, %v6046
        %v6049 = vunpack.c.l.s4 1966171168
        %v6050 = vunpack.c.0.s8 %v6049
        %v6051 = vlaneseq
        %v6052 = vshrl.u32 %v6051, 7
        %v6053 = vsub.s32 %v6050, %v6052
        %v6054 = vrot.slane %v6040, %v6053
        %v6055 = vcombine.high %v6047, %v6047
        %v6056 = vcombine.high %v6054, %v6054
        %v6058 = vunpack.c.l.s4 1966171168
        %v6059 = vunpack.c.0.s8 %v6058
        %v6060 = vlaneseq
        %v6061 = vshrl.u32 %v6060, 7
        %v6062 = vsub.s32 %v6059, %v6061
        %v6063 = vrot.slane %v6047, %v6062
        %v6065 = vunpack.c.l.s4 1966171168
        %v6066 = vunpack.c.0.s8 %v6065
        %v6067 = vlaneseq
        %v6068 = vshrl.u32 %v6067, 7
        %v6069 = vsub.s32 %v6066, %v6068
        %v6070 = vrot.slane %v6054, %v6069
        %v6072 = vunpack.c.l.s4 1966171168
        %v6073 = vunpack.c.0.s8 %v6072
        %v6074 = vlaneseq
        %v6075 = vshrl.u32 %v6074, 7
        %v6076 = vsub.s32 %v6073, %v6075
        %v6077 = vrot.slane %v6055, %v6076
        %v6079 = vunpack.c.l.s4 1966171168
        %v6080 = vunpack.c.0.s8 %v6079
        %v6081 = vlaneseq
        %v6082 = vshrl.u32 %v6081, 7
        %v6083 = vsub.s32 %v6080, %v6082
        %v6084 = vrot.slane %v6056, %v6083
        %v6085 = vcombine.high %v6063, %v6063
        %v6086 = vcombine.high %v6070, %v6070
        %v6087 = vcombine.high %v6077, %v6077
        %v6088 = vcombine.high %v6084, %v6084
        %v6089 = vcombine.high %v732, %v732
        %v6091 = vunpack.c.l.s4 1966171168
        %v6092 = vunpack.c.0.s8 %v6091
        %v6093 = vlaneseq
        %v6094 = vshrl.u32 %v6093, 7
        %v6095 = vsub.s32 %v6092, %v6094
        %v6096 = vrot.slane %v732, %v6095
        %v6098 = vunpack.c.l.s4 1966171168
        %v6099 = vunpack.c.0.s8 %v6098
        %v6100 = vlaneseq
        %v6101 = vshrl.u32 %v6100, 7
        %v6102 = vsub.s32 %v6099, %v6101
        %v6103 = vrot.slane %v6089, %v6102
        %v6104 = vcombine.high %v6096, %v6096
        %v6105 = vcombine.high %v6103, %v6103
        %v6107 = vunpack.c.l.s4 1966171168
        %v6108 = vunpack.c.0.s8 %v6107
        %v6109 = vlaneseq
        %v6110 = vshrl.u32 %v6109, 7
        %v6111 = vsub.s32 %v6108, %v6110
        %v6112 = vrot.slane %v6096, %v6111
        %v6114 = vunpack.c.l.s4 1966171168
        %v6115 = vunpack.c.0.s8 %v6114
        %v6116 = vlaneseq
        %v6117 = vshrl.u32 %v6116, 7
        %v6118 = vsub.s32 %v6115, %v6117
        %v6119 = vrot.slane %v6103, %v6118
        %v6121 = vunpack.c.l.s4 1966171168
        %v6122 = vunpack.c.0.s8 %v6121
        %v6123 = vlaneseq
        %v6124 = vshrl.u32 %v6123, 7
        %v6125 = vsub.s32 %v6122, %v6124
        %v6126 = vrot.slane %v6104, %v6125
        %v6128 = vunpack.c.l.s4 1966171168
        %v6129 = vunpack.c.0.s8 %v6128
        %v6130 = vlaneseq
        %v6131 = vshrl.u32 %v6130, 7
        %v6132 = vsub.s32 %v6129, %v6131
        %v6133 = vrot.slane %v6105, %v6132
        %v6134 = vcombine.high %v6112, %v6112
        %v6135 = vcombine.high %v6119, %v6119
        %v6136 = vcombine.high %v6126, %v6126
        %v6137 = vcombine.high %v6133, %v6133
        %v6138 = vcombine.high %v772, %v772
        %v6140 = vunpack.c.l.s4 1966171168
        %v6141 = vunpack.c.0.s8 %v6140
        %v6142 = vlaneseq
        %v6143 = vshrl.u32 %v6142, 7
        %v6144 = vsub.s32 %v6141, %v6143
        %v6145 = vrot.slane %v772, %v6144
        %v6147 = vunpack.c.l.s4 1966171168
        %v6148 = vunpack.c.0.s8 %v6147
        %v6149 = vlaneseq
        %v6150 = vshrl.u32 %v6149, 7
        %v6151 = vsub.s32 %v6148, %v6150
        %v6152 = vrot.slane %v6138, %v6151
        %v6153 = vcombine.high %v6145, %v6145
        %v6154 = vcombine.high %v6152, %v6152
        %v6156 = vunpack.c.l.s4 1966171168
        %v6157 = vunpack.c.0.s8 %v6156
        %v6158 = vlaneseq
        %v6159 = vshrl.u32 %v6158, 7
        %v6160 = vsub.s32 %v6157, %v6159
        %v6161 = vrot.slane %v6145, %v6160
        %v6163 = vunpack.c.l.s4 1966171168
        %v6164 = vunpack.c.0.s8 %v6163
        %v6165 = vlaneseq
        %v6166 = vshrl.u32 %v6165, 7
        %v6167 = vsub.s32 %v6164, %v6166
        %v6168 = vrot.slane %v6152, %v6167
        %v6170 = vunpack.c.l.s4 1966171168
        %v6171 = vunpack.c.0.s8 %v6170
        %v6172 = vlaneseq
        %v6173 = vshrl.u32 %v6172, 7
        %v6174 = vsub.s32 %v6171, %v6173
        %v6175 = vrot.slane %v6153, %v6174
        %v6177 = vunpack.c.l.s4 1966171168
        %v6178 = vunpack.c.0.s8 %v6177
        %v6179 = vlaneseq
        %v6180 = vshrl.u32 %v6179, 7
        %v6181 = vsub.s32 %v6178, %v6180
        %v6182 = vrot.slane %v6154, %v6181
        %v6183 = vcombine.high %v6161, %v6161
        %v6184 = vcombine.high %v6168, %v6168
        %v6185 = vcombine.high %v6175, %v6175
        %v6186 = vcombine.high %v6182, %v6182
        %v6187 = vcombine.high %v774, %v774
        %v6189 = vunpack.c.l.s4 1966171168
        %v6190 = vunpack.c.0.s8 %v6189
        %v6191 = vlaneseq
        %v6192 = vshrl.u32 %v6191, 7
        %v6193 = vsub.s32 %v6190, %v6192
        %v6194 = vrot.slane %v774, %v6193
        %v6196 = vunpack.c.l.s4 1966171168
        %v6197 = vunpack.c.0.s8 %v6196
        %v6198 = vlaneseq
        %v6199 = vshrl.u32 %v6198, 7
        %v6200 = vsub.s32 %v6197, %v6199
        %v6201 = vrot.slane %v6187, %v6200
        %v6202 = vcombine.high %v6194, %v6194
        %v6203 = vcombine.high %v6201, %v6201
        %v6205 = vunpack.c.l.s4 1966171168
        %v6206 = vunpack.c.0.s8 %v6205
        %v6207 = vlaneseq
        %v6208 = vshrl.u32 %v6207, 7
        %v6209 = vsub.s32 %v6206, %v6208
        %v6210 = vrot.slane %v6194, %v6209
        %v6212 = vunpack.c.l.s4 1966171168
        %v6213 = vunpack.c.0.s8 %v6212
        %v6214 = vlaneseq
        %v6215 = vshrl.u32 %v6214, 7
        %v6216 = vsub.s32 %v6213, %v6215
        %v6217 = vrot.slane %v6201, %v6216
        %v6219 = vunpack.c.l.s4 1966171168
        %v6220 = vunpack.c.0.s8 %v6219
        %v6221 = vlaneseq
        %v6222 = vshrl.u32 %v6221, 7
        %v6223 = vsub.s32 %v6220, %v6222
        %v6224 = vrot.slane %v6202, %v6223
        %v6226 = vunpack.c.l.s4 1966171168
        %v6227 = vunpack.c.0.s8 %v6226
        %v6228 = vlaneseq
        %v6229 = vshrl.u32 %v6228, 7
        %v6230 = vsub.s32 %v6227, %v6229
        %v6231 = vrot.slane %v6203, %v6230
        %v6232 = vcombine.high %v6210, %v6210
        %v6233 = vcombine.high %v6217, %v6217
        %v6234 = vcombine.high %v6224, %v6224
        %v6235 = vcombine.high %v6231, %v6231
        %v6236 = vcombine.high %v776, %v776
        %v6238 = vunpack.c.l.s4 1966171168
        %v6239 = vunpack.c.0.s8 %v6238
        %v6240 = vlaneseq
        %v6241 = vshrl.u32 %v6240, 7
        %v6242 = vsub.s32 %v6239, %v6241
        %v6243 = vrot.slane %v776, %v6242
        %v6245 = vunpack.c.l.s4 1966171168
        %v6246 = vunpack.c.0.s8 %v6245
        %v6247 = vlaneseq
        %v6248 = vshrl.u32 %v6247, 7
        %v6249 = vsub.s32 %v6246, %v6248
        %v6250 = vrot.slane %v6236, %v6249
        %v6251 = vcombine.high %v6243, %v6243
        %v6252 = vcombine.high %v6250, %v6250
        %v6254 = vunpack.c.l.s4 1966171168
        %v6255 = vunpack.c.0.s8 %v6254
        %v6256 = vlaneseq
        %v6257 = vshrl.u32 %v6256, 7
        %v6258 = vsub.s32 %v6255, %v6257
        %v6259 = vrot.slane %v6243, %v6258
        %v6261 = vunpack.c.l.s4 1966171168
        %v6262 = vunpack.c.0.s8 %v6261
        %v6263 = vlaneseq
        %v6264 = vshrl.u32 %v6263, 7
        %v6265 = vsub.s32 %v6262, %v6264
        %v6266 = vrot.slane %v6250, %v6265
        %v6268 = vunpack.c.l.s4 1966171168
        %v6269 = vunpack.c.0.s8 %v6268
        %v6270 = vlaneseq
        %v6271 = vshrl.u32 %v6270, 7
        %v6272 = vsub.s32 %v6269, %v6271
        %v6273 = vrot.slane %v6251, %v6272
        %v6275 = vunpack.c.l.s4 1966171168
        %v6276 = vunpack.c.0.s8 %v6275
        %v6277 = vlaneseq
        %v6278 = vshrl.u32 %v6277, 7
        %v6279 = vsub.s32 %v6276, %v6278
        %v6280 = vrot.slane %v6252, %v6279
        %v6281 = vcombine.high %v6259, %v6259
        %v6282 = vcombine.high %v6266, %v6266
        %v6283 = vcombine.high %v6273, %v6273
        %v6284 = vcombine.high %v6280, %v6280
        %v6285 = vcombine.high %v778, %v778
        %v6287 = vunpack.c.l.s4 1966171168
        %v6288 = vunpack.c.0.s8 %v6287
        %v6289 = vlaneseq
        %v6290 = vshrl.u32 %v6289, 7
        %v6291 = vsub.s32 %v6288, %v6290
        %v6292 = vrot.slane %v778, %v6291
        %v6294 = vunpack.c.l.s4 1966171168
        %v6295 = vunpack.c.0.s8 %v6294
        %v6296 = vlaneseq
        %v6297 = vshrl.u32 %v6296, 7
        %v6298 = vsub.s32 %v6295, %v6297
        %v6299 = vrot.slane %v6285, %v6298
        %v6300 = vcombine.high %v6292, %v6292
        %v6301 = vcombine.high %v6299, %v6299
        %v6303 = vunpack.c.l.s4 1966171168
        %v6304 = vunpack.c.0.s8 %v6303
        %v6305 = vlaneseq
        %v6306 = vshrl.u32 %v6305, 7
        %v6307 = vsub.s32 %v6304, %v6306
        %v6308 = vrot.slane %v6292, %v6307
        %v6310 = vunpack.c.l.s4 1966171168
        %v6311 = vunpack.c.0.s8 %v6310
        %v6312 = vlaneseq
        %v6313 = vshrl.u32 %v6312, 7
        %v6314 = vsub.s32 %v6311, %v6313
        %v6315 = vrot.slane %v6299, %v6314
        %v6317 = vunpack.c.l.s4 1966171168
        %v6318 = vunpack.c.0.s8 %v6317
        %v6319 = vlaneseq
        %v6320 = vshrl.u32 %v6319, 7
        %v6321 = vsub.s32 %v6318, %v6320
        %v6322 = vrot.slane %v6300, %v6321
        %v6324 = vunpack.c.l.s4 1966171168
        %v6325 = vunpack.c.0.s8 %v6324
        %v6326 = vlaneseq
        %v6327 = vshrl.u32 %v6326, 7
        %v6328 = vsub.s32 %v6325, %v6327
        %v6329 = vrot.slane %v6301, %v6328
        %v6330 = vcombine.high %v6308, %v6308
        %v6331 = vcombine.high %v6315, %v6315
        %v6332 = vcombine.high %v6322, %v6322
        %v6333 = vcombine.high %v6329, %v6329
        %v6334 = vcombine.high %v780, %v780
        %v6336 = vunpack.c.l.s4 1966171168
        %v6337 = vunpack.c.0.s8 %v6336
        %v6338 = vlaneseq
        %v6339 = vshrl.u32 %v6338, 7
        %v6340 = vsub.s32 %v6337, %v6339
        %v6341 = vrot.slane %v780, %v6340
        %v6343 = vunpack.c.l.s4 1966171168
        %v6344 = vunpack.c.0.s8 %v6343
        %v6345 = vlaneseq
        %v6346 = vshrl.u32 %v6345, 7
        %v6347 = vsub.s32 %v6344, %v6346
        %v6348 = vrot.slane %v6334, %v6347
        %v6349 = vcombine.high %v6341, %v6341
        %v6350 = vcombine.high %v6348, %v6348
        %v6352 = vunpack.c.l.s4 1966171168
        %v6353 = vunpack.c.0.s8 %v6352
        %v6354 = vlaneseq
        %v6355 = vshrl.u32 %v6354, 7
        %v6356 = vsub.s32 %v6353, %v6355
        %v6357 = vrot.slane %v6341, %v6356
        %v6359 = vunpack.c.l.s4 1966171168
        %v6360 = vunpack.c.0.s8 %v6359
        %v6361 = vlaneseq
        %v6362 = vshrl.u32 %v6361, 7
        %v6363 = vsub.s32 %v6360, %v6362
        %v6364 = vrot.slane %v6348, %v6363
        %v6366 = vunpack.c.l.s4 1966171168
        %v6367 = vunpack.c.0.s8 %v6366
        %v6368 = vlaneseq
        %v6369 = vshrl.u32 %v6368, 7
        %v6370 = vsub.s32 %v6367, %v6369
        %v6371 = vrot.slane %v6349, %v6370
        %v6373 = vunpack.c.l.s4 1966171168
        %v6374 = vunpack.c.0.s8 %v6373
        %v6375 = vlaneseq
        %v6376 = vshrl.u32 %v6375, 7
        %v6377 = vsub.s32 %v6374, %v6376
        %v6378 = vrot.slane %v6350, %v6377
        %v6379 = vcombine.high %v6357, %v6357
        %v6380 = vcombine.high %v6364, %v6364
        %v6381 = vcombine.high %v6371, %v6371
        %v6382 = vcombine.high %v6378, %v6378
        %v6383 = vcombine.high %v782, %v782
        %v6385 = vunpack.c.l.s4 1966171168
        %v6386 = vunpack.c.0.s8 %v6385
        %v6387 = vlaneseq
        %v6388 = vshrl.u32 %v6387, 7
        %v6389 = vsub.s32 %v6386, %v6388
        %v6390 = vrot.slane %v782, %v6389
        %v6392 = vunpack.c.l.s4 1966171168
        %v6393 = vunpack.c.0.s8 %v6392
        %v6394 = vlaneseq
        %v6395 = vshrl.u32 %v6394, 7
        %v6396 = vsub.s32 %v6393, %v6395
        %v6397 = vrot.slane %v6383, %v6396
        %v6398 = vcombine.high %v6390, %v6390
        %v6399 = vcombine.high %v6397, %v6397
        %v6401 = vunpack.c.l.s4 1966171168
        %v6402 = vunpack.c.0.s8 %v6401
        %v6403 = vlaneseq
        %v6404 = vshrl.u32 %v6403, 7
        %v6405 = vsub.s32 %v6402, %v6404
        %v6406 = vrot.slane %v6390, %v6405
        %v6408 = vunpack.c.l.s4 1966171168
        %v6409 = vunpack.c.0.s8 %v6408
        %v6410 = vlaneseq
        %v6411 = vshrl.u32 %v6410, 7
        %v6412 = vsub.s32 %v6409, %v6411
        %v6413 = vrot.slane %v6397, %v6412
        %v6415 = vunpack.c.l.s4 1966171168
        %v6416 = vunpack.c.0.s8 %v6415
        %v6417 = vlaneseq
        %v6418 = vshrl.u32 %v6417, 7
        %v6419 = vsub.s32 %v6416, %v6418
        %v6420 = vrot.slane %v6398, %v6419
        %v6422 = vunpack.c.l.s4 1966171168
        %v6423 = vunpack.c.0.s8 %v6422
        %v6424 = vlaneseq
        %v6425 = vshrl.u32 %v6424, 7
        %v6426 = vsub.s32 %v6423, %v6425
        %v6427 = vrot.slane %v6399, %v6426
        %v6428 = vcombine.high %v6406, %v6406
        %v6429 = vcombine.high %v6413, %v6413
        %v6430 = vcombine.high %v6420, %v6420
        %v6431 = vcombine.high %v6427, %v6427
        %v6432 = vlaneseq
        %v6433 = vshrl.u32 %v6432, 7
        %v6434 = vsub.s32 0, %v6433
        %v6435 = vrot.slane %v6063, %v6434
        %v6436 = vlaneseq
        %v6437 = vshrl.u32 %v6436, 7
        %v6438 = vsub.s32 0, %v6437
        %v6439 = vrot.slane %v6077, %v6438
        %v6440 = vlaneseq
        %v6441 = vshrl.u32 %v6440, 7
        %v6442 = vsub.s32 0, %v6441
        %v6443 = vrot.slane %v6085, %v6442
        %v6444 = vlaneseq
        %v6445 = vshrl.u32 %v6444, 7
        %v6446 = vsub.s32 0, %v6445
        %v6447 = vrot.slane %v6087, %v6446
        %v6448 = vlaneseq
        %v6449 = vshrl.u32 %v6448, 7
        %v6450 = vsub.s32 0, %v6449
        %v6451 = vrot.slane %v6070, %v6450
        %v6452 = vlaneseq
        %v6453 = vshrl.u32 %v6452, 7
        %v6454 = vsub.s32 0, %v6453
        %v6455 = vrot.slane %v6084, %v6454
        %v6456 = vlaneseq
        %v6457 = vshrl.u32 %v6456, 7
        %v6458 = vsub.s32 0, %v6457
        %v6459 = vrot.slane %v6086, %v6458
        %v6460 = vlaneseq
        %v6461 = vshrl.u32 %v6460, 7
        %v6462 = vsub.s32 0, %v6461
        %v6463 = vrot.slane %v6088, %v6462
        %v6464 = vlaneseq
        %v6465 = vshrl.u32 %v6464, 7
        %v6466 = vsub.s32 0, %v6465
        %v6467 = vrot.slane %v6112, %v6466
        %v6468 = vlaneseq
        %v6469 = vshrl.u32 %v6468, 7
        %v6470 = vsub.s32 0, %v6469
        %v6471 = vrot.slane %v6126, %v6470
        %v6472 = vlaneseq
        %v6473 = vshrl.u32 %v6472, 7
        %v6474 = vsub.s32 0, %v6473
        %v6475 = vrot.slane %v6134, %v6474
        %v6476 = vlaneseq
        %v6477 = vshrl.u32 %v6476, 7
        %v6478 = vsub.s32 0, %v6477
        %v6479 = vrot.slane %v6136, %v6478
        %v6480 = vlaneseq
        %v6481 = vshrl.u32 %v6480, 7
        %v6482 = vsub.s32 0, %v6481
        %v6483 = vrot.slane %v6119, %v6482
        %v6484 = vlaneseq
        %v6485 = vshrl.u32 %v6484, 7
        %v6486 = vsub.s32 0, %v6485
        %v6487 = vrot.slane %v6133, %v6486
        %v6488 = vlaneseq
        %v6489 = vshrl.u32 %v6488, 7
        %v6490 = vsub.s32 0, %v6489
        %v6491 = vrot.slane %v6135, %v6490
        %v6492 = vlaneseq
        %v6493 = vshrl.u32 %v6492, 7
        %v6494 = vsub.s32 0, %v6493
        %v6495 = vrot.slane %v6137, %v6494
        %v6496 = vlaneseq
        %v6497 = vshrl.u32 %v6496, 7
        %v6498 = vsub.s32 0, %v6497
        %v6499 = vrot.slane %v6161, %v6498
        %v6500 = vlaneseq
        %v6501 = vshrl.u32 %v6500, 7
        %v6502 = vsub.s32 0, %v6501
        %v6503 = vrot.slane %v6175, %v6502
        %v6504 = vlaneseq
        %v6505 = vshrl.u32 %v6504, 7
        %v6506 = vsub.s32 0, %v6505
        %v6507 = vrot.slane %v6183, %v6506
        %v6508 = vlaneseq
        %v6509 = vshrl.u32 %v6508, 7
        %v6510 = vsub.s32 0, %v6509
        %v6511 = vrot.slane %v6185, %v6510
        %v6512 = vlaneseq
        %v6513 = vshrl.u32 %v6512, 7
        %v6514 = vsub.s32 0, %v6513
        %v6515 = vrot.slane %v6168, %v6514
        %v6516 = vlaneseq
        %v6517 = vshrl.u32 %v6516, 7
        %v6518 = vsub.s32 0, %v6517
        %v6519 = vrot.slane %v6182, %v6518
        %v6520 = vlaneseq
        %v6521 = vshrl.u32 %v6520, 7
        %v6522 = vsub.s32 0, %v6521
        %v6523 = vrot.slane %v6184, %v6522
        %v6524 = vlaneseq
        %v6525 = vshrl.u32 %v6524, 7
        %v6526 = vsub.s32 0, %v6525
        %v6527 = vrot.slane %v6186, %v6526
        %v6528 = vlaneseq
        %v6529 = vshrl.u32 %v6528, 7
        %v6530 = vsub.s32 0, %v6529
        %v6531 = vrot.slane %v6210, %v6530
        %v6532 = vlaneseq
        %v6533 = vshrl.u32 %v6532, 7
        %v6534 = vsub.s32 0, %v6533
        %v6535 = vrot.slane %v6224, %v6534
        %v6536 = vlaneseq
        %v6537 = vshrl.u32 %v6536, 7
        %v6538 = vsub.s32 0, %v6537
        %v6539 = vrot.slane %v6232, %v6538
        %v6540 = vlaneseq
        %v6541 = vshrl.u32 %v6540, 7
        %v6542 = vsub.s32 0, %v6541
        %v6543 = vrot.slane %v6234, %v6542
        %v6544 = vlaneseq
        %v6545 = vshrl.u32 %v6544, 7
        %v6546 = vsub.s32 0, %v6545
        %v6547 = vrot.slane %v6217, %v6546
        %v6548 = vlaneseq
        %v6549 = vshrl.u32 %v6548, 7
        %v6550 = vsub.s32 0, %v6549
        %v6551 = vrot.slane %v6231, %v6550
        %v6552 = vlaneseq
        %v6553 = vshrl.u32 %v6552, 7
        %v6554 = vsub.s32 0, %v6553
        %v6555 = vrot.slane %v6233, %v6554
        %v6556 = vlaneseq
        %v6557 = vshrl.u32 %v6556, 7
        %v6558 = vsub.s32 0, %v6557
        %v6559 = vrot.slane %v6235, %v6558
        %v6560 = vlaneseq
        %v6561 = vshrl.u32 %v6560, 7
        %v6562 = vsub.s32 0, %v6561
        %v6563 = vrot.slane %v6259, %v6562
        %v6564 = vlaneseq
        %v6565 = vshrl.u32 %v6564, 7
        %v6566 = vsub.s32 0, %v6565
        %v6567 = vrot.slane %v6273, %v6566
        %v6568 = vlaneseq
        %v6569 = vshrl.u32 %v6568, 7
        %v6570 = vsub.s32 0, %v6569
        %v6571 = vrot.slane %v6281, %v6570
        %v6572 = vlaneseq
        %v6573 = vshrl.u32 %v6572, 7
        %v6574 = vsub.s32 0, %v6573
        %v6575 = vrot.slane %v6283, %v6574
        %v6576 = vlaneseq
        %v6577 = vshrl.u32 %v6576, 7
        %v6578 = vsub.s32 0, %v6577
        %v6579 = vrot.slane %v6266, %v6578
        %v6580 = vlaneseq
        %v6581 = vshrl.u32 %v6580, 7
        %v6582 = vsub.s32 0, %v6581
        %v6583 = vrot.slane %v6280, %v6582
        %v6584 = vlaneseq
        %v6585 = vshrl.u32 %v6584, 7
        %v6586 = vsub.s32 0, %v6585
        %v6587 = vrot.slane %v6282, %v6586
        %v6588 = vlaneseq
        %v6589 = vshrl.u32 %v6588, 7
        %v6590 = vsub.s32 0, %v6589
        %v6591 = vrot.slane %v6284, %v6590
        %v6592 = vlaneseq
        %v6593 = vshrl.u32 %v6592, 7
        %v6594 = vsub.s32 0, %v6593
        %v6595 = vrot.slane %v6308, %v6594
        %v6596 = vlaneseq
        %v6597 = vshrl.u32 %v6596, 7
        %v6598 = vsub.s32 0, %v6597
        %v6599 = vrot.slane %v6322, %v6598
        %v6600 = vlaneseq
        %v6601 = vshrl.u32 %v6600, 7
        %v6602 = vsub.s32 0, %v6601
        %v6603 = vrot.slane %v6330, %v6602
        %v6604 = vlaneseq
        %v6605 = vshrl.u32 %v6604, 7
        %v6606 = vsub.s32 0, %v6605
        %v6607 = vrot.slane %v6332, %v6606
        %v6608 = vlaneseq
        %v6609 = vshrl.u32 %v6608, 7
        %v6610 = vsub.s32 0, %v6609
        %v6611 = vrot.slane %v6315, %v6610
        %v6612 = vlaneseq
        %v6613 = vshrl.u32 %v6612, 7
        %v6614 = vsub.s32 0, %v6613
        %v6615 = vrot.slane %v6329, %v6614
        %v6616 = vlaneseq
        %v6617 = vshrl.u32 %v6616, 7
        %v6618 = vsub.s32 0, %v6617
        %v6619 = vrot.slane %v6331, %v6618
        %v6620 = vlaneseq
        %v6621 = vshrl.u32 %v6620, 7
        %v6622 = vsub.s32 0, %v6621
        %v6623 = vrot.slane %v6333, %v6622
        %v6624 = vlaneseq
        %v6625 = vshrl.u32 %v6624, 7
        %v6626 = vsub.s32 0, %v6625
        %v6627 = vrot.slane %v6357, %v6626
        %v6628 = vlaneseq
        %v6629 = vshrl.u32 %v6628, 7
        %v6630 = vsub.s32 0, %v6629
        %v6631 = vrot.slane %v6371, %v6630
        %v6632 = vlaneseq
        %v6633 = vshrl.u32 %v6632, 7
        %v6634 = vsub.s32 0, %v6633
        %v6635 = vrot.slane %v6379, %v6634
        %v6636 = vlaneseq
        %v6637 = vshrl.u32 %v6636, 7
        %v6638 = vsub.s32 0, %v6637
        %v6639 = vrot.slane %v6381, %v6638
        %v6640 = vlaneseq
        %v6641 = vshrl.u32 %v6640, 7
        %v6642 = vsub.s32 0, %v6641
        %v6643 = vrot.slane %v6364, %v6642
        %v6644 = vlaneseq
        %v6645 = vshrl.u32 %v6644, 7
        %v6646 = vsub.s32 0, %v6645
        %v6647 = vrot.slane %v6378, %v6646
        %v6648 = vlaneseq
        %v6649 = vshrl.u32 %v6648, 7
        %v6650 = vsub.s32 0, %v6649
        %v6651 = vrot.slane %v6380, %v6650
        %v6652 = vlaneseq
        %v6653 = vshrl.u32 %v6652, 7
        %v6654 = vsub.s32 0, %v6653
        %v6655 = vrot.slane %v6382, %v6654
        %v6656 = vlaneseq
        %v6657 = vshrl.u32 %v6656, 7
        %v6658 = vsub.s32 0, %v6657
        %v6659 = vrot.slane %v6406, %v6658
        %v6660 = vlaneseq
        %v6661 = vshrl.u32 %v6660, 7
        %v6662 = vsub.s32 0, %v6661
        %v6663 = vrot.slane %v6420, %v6662
        %v6664 = vlaneseq
        %v6665 = vshrl.u32 %v6664, 7
        %v6666 = vsub.s32 0, %v6665
        %v6667 = vrot.slane %v6428, %v6666
        %v6668 = vlaneseq
        %v6669 = vshrl.u32 %v6668, 7
        %v6670 = vsub.s32 0, %v6669
        %v6671 = vrot.slane %v6430, %v6670
        %v6672 = vlaneseq
        %v6673 = vshrl.u32 %v6672, 7
        %v6674 = vsub.s32 0, %v6673
        %v6675 = vrot.slane %v6413, %v6674
        %v6676 = vlaneseq
        %v6677 = vshrl.u32 %v6676, 7
        %v6678 = vsub.s32 0, %v6677
        %v6679 = vrot.slane %v6427, %v6678
        %v6680 = vlaneseq
        %v6681 = vshrl.u32 %v6680, 7
        %v6682 = vsub.s32 0, %v6681
        %v6683 = vrot.slane %v6429, %v6682
        %v6684 = vlaneseq
        %v6685 = vshrl.u32 %v6684, 7
        %v6686 = vsub.s32 0, %v6685
        %v6687 = vrot.slane %v6431, %v6686
        %v6752 = vmul.f32 %v5784, %v6435
        %v6753 = vmul.f32 %v5785, %v6435
        %v6754 = vmul.f32 %v5786, %v6435
        %v6755 = vmul.f32 %v5787, %v6435
        %v6756 = vmul.f32 %v5788, %v6439
        %v6757 = vmul.f32 %v5789, %v6439
        %v6758 = vmul.f32 %v5790, %v6439
        %v6759 = vmul.f32 %v5791, %v6439
        %v6760 = vmul.f32 %v5792, %v6443
        %v6761 = vmul.f32 %v5793, %v6443
        %v6762 = vmul.f32 %v5794, %v6443
        %v6763 = vmul.f32 %v5795, %v6443
        %v6764 = vmul.f32 %v5796, %v6447
        %v6765 = vmul.f32 %v5797, %v6447
        %v6766 = vmul.f32 %v5798, %v6447
        %v6767 = vmul.f32 %v5799, %v6447
        %v6768 = vmul.f32 %v5800, %v6451
        %v6769 = vmul.f32 %v5801, %v6451
        %v6770 = vmul.f32 %v5802, %v6451
        %v6771 = vmul.f32 %v5803, %v6451
        %v6772 = vmul.f32 %v5804, %v6455
        %v6773 = vmul.f32 %v5805, %v6455
        %v6774 = vmul.f32 %v5806, %v6455
        %v6775 = vmul.f32 %v5807, %v6455
        %v6776 = vmul.f32 %v5808, %v6459
        %v6777 = vmul.f32 %v5809, %v6459
        %v6778 = vmul.f32 %v5810, %v6459
        %v6779 = vmul.f32 %v5811, %v6459
        %v6780 = vmul.f32 %v5812, %v6463
        %v6781 = vmul.f32 %v5813, %v6463
        %v6782 = vmul.f32 %v5814, %v6463
        %v6783 = vmul.f32 %v5815, %v6463
        %v6784 = vmul.f32 %v5816, %v6467
        %v6785 = vmul.f32 %v5817, %v6467
        %v6786 = vmul.f32 %v5818, %v6467
        %v6787 = vmul.f32 %v5819, %v6467
        %v6788 = vmul.f32 %v5820, %v6471
        %v6789 = vmul.f32 %v5821, %v6471
        %v6790 = vmul.f32 %v5822, %v6471
        %v6791 = vmul.f32 %v5823, %v6471
        %v6792 = vmul.f32 %v5824, %v6475
        %v6793 = vmul.f32 %v5825, %v6475
        %v6794 = vmul.f32 %v5826, %v6475
        %v6795 = vmul.f32 %v5827, %v6475
        %v6796 = vmul.f32 %v5828, %v6479
        %v6797 = vmul.f32 %v5829, %v6479
        %v6798 = vmul.f32 %v5830, %v6479
        %v6799 = vmul.f32 %v5831, %v6479
        %v6800 = vmul.f32 %v5832, %v6483
        %v6801 = vmul.f32 %v5833, %v6483
        %v6802 = vmul.f32 %v5834, %v6483
        %v6803 = vmul.f32 %v5835, %v6483
        %v6804 = vmul.f32 %v5836, %v6487
        %v6805 = vmul.f32 %v5837, %v6487
        %v6806 = vmul.f32 %v5838, %v6487
        %v6807 = vmul.f32 %v5839, %v6487
        %v6808 = vmul.f32 %v5840, %v6491
        %v6809 = vmul.f32 %v5841, %v6491
        %v6810 = vmul.f32 %v5842, %v6491
        %v6811 = vmul.f32 %v5843, %v6491
        %v6812 = vmul.f32 %v5844, %v6495
        %v6813 = vmul.f32 %v5845, %v6495
        %v6814 = vmul.f32 %v5846, %v6495
        %v6815 = vmul.f32 %v5847, %v6495
        %v6816 = vmul.f32 %v5848, %v6499
        %v6817 = vmul.f32 %v5849, %v6499
        %v6818 = vmul.f32 %v5850, %v6499
        %v6819 = vmul.f32 %v5851, %v6499
        %v6820 = vmul.f32 %v5852, %v6503
        %v6821 = vmul.f32 %v5853, %v6503
        %v6822 = vmul.f32 %v5854, %v6503
        %v6823 = vmul.f32 %v5855, %v6503
        %v6824 = vmul.f32 %v5856, %v6507
        %v6825 = vmul.f32 %v5857, %v6507
        %v6826 = vmul.f32 %v5858, %v6507
        %v6827 = vmul.f32 %v5859, %v6507
        %v6828 = vmul.f32 %v5860, %v6511
        %v6829 = vmul.f32 %v5861, %v6511
        %v6830 = vmul.f32 %v5862, %v6511
        %v6831 = vmul.f32 %v5863, %v6511
        %v6832 = vmul.f32 %v5864, %v6515
        %v6833 = vmul.f32 %v5865, %v6515
        %v6834 = vmul.f32 %v5866, %v6515
        %v6835 = vmul.f32 %v5867, %v6515
        %v6836 = vmul.f32 %v5868, %v6519
        %v6837 = vmul.f32 %v5869, %v6519
        %v6838 = vmul.f32 %v5870, %v6519
        %v6839 = vmul.f32 %v5871, %v6519
        %v6840 = vmul.f32 %v5872, %v6523
        %v6841 = vmul.f32 %v5873, %v6523
        %v6842 = vmul.f32 %v5874, %v6523
        %v6843 = vmul.f32 %v5875, %v6523
        %v6844 = vmul.f32 %v5876, %v6527
        %v6845 = vmul.f32 %v5877, %v6527
        %v6846 = vmul.f32 %v5878, %v6527
        %v6847 = vmul.f32 %v5879, %v6527
        %v6848 = vmul.f32 %v5880, %v6531
        %v6849 = vmul.f32 %v5881, %v6531
        %v6850 = vmul.f32 %v5882, %v6531
        %v6851 = vmul.f32 %v5883, %v6531
        %v6852 = vmul.f32 %v5884, %v6535
        %v6853 = vmul.f32 %v5885, %v6535
        %v6854 = vmul.f32 %v5886, %v6535
        %v6855 = vmul.f32 %v5887, %v6535
        %v6856 = vmul.f32 %v5888, %v6539
        %v6857 = vmul.f32 %v5889, %v6539
        %v6858 = vmul.f32 %v5890, %v6539
        %v6859 = vmul.f32 %v5891, %v6539
        %v6860 = vmul.f32 %v5892, %v6543
        %v6861 = vmul.f32 %v5893, %v6543
        %v6862 = vmul.f32 %v5894, %v6543
        %v6863 = vmul.f32 %v5895, %v6543
        %v6864 = vmul.f32 %v5896, %v6547
        %v6865 = vmul.f32 %v5897, %v6547
        %v6866 = vmul.f32 %v5898, %v6547
        %v6867 = vmul.f32 %v5899, %v6547
        %v6868 = vmul.f32 %v5900, %v6551
        %v6869 = vmul.f32 %v5901, %v6551
        %v6870 = vmul.f32 %v5902, %v6551
        %v6871 = vmul.f32 %v5903, %v6551
        %v6872 = vmul.f32 %v5904, %v6555
        %v6873 = vmul.f32 %v5905, %v6555
        %v6874 = vmul.f32 %v5906, %v6555
        %v6875 = vmul.f32 %v5907, %v6555
        %v6876 = vmul.f32 %v5908, %v6559
        %v6877 = vmul.f32 %v5909, %v6559
        %v6878 = vmul.f32 %v5910, %v6559
        %v6879 = vmul.f32 %v5911, %v6559
        %v6880 = vmul.f32 %v5912, %v6563
        %v6881 = vmul.f32 %v5913, %v6563
        %v6882 = vmul.f32 %v5914, %v6563
        %v6883 = vmul.f32 %v5915, %v6563
        %v6884 = vmul.f32 %v5916, %v6567
        %v6885 = vmul.f32 %v5917, %v6567
        %v6886 = vmul.f32 %v5918, %v6567
        %v6887 = vmul.f32 %v5919, %v6567
        %v6888 = vmul.f32 %v5920, %v6571
        %v6889 = vmul.f32 %v5921, %v6571
        %v6890 = vmul.f32 %v5922, %v6571
        %v6891 = vmul.f32 %v5923, %v6571
        %v6892 = vmul.f32 %v5924, %v6575
        %v6893 = vmul.f32 %v5925, %v6575
        %v6894 = vmul.f32 %v5926, %v6575
        %v6895 = vmul.f32 %v5927, %v6575
        %v6896 = vmul.f32 %v5928, %v6579
        %v6897 = vmul.f32 %v5929, %v6579
        %v6898 = vmul.f32 %v5930, %v6579
        %v6899 = vmul.f32 %v5931, %v6579
        %v6900 = vmul.f32 %v5932, %v6583
        %v6901 = vmul.f32 %v5933, %v6583
        %v6902 = vmul.f32 %v5934, %v6583
        %v6903 = vmul.f32 %v5935, %v6583
        %v6904 = vmul.f32 %v5936, %v6587
        %v6905 = vmul.f32 %v5937, %v6587
        %v6906 = vmul.f32 %v5938, %v6587
        %v6907 = vmul.f32 %v5939, %v6587
        %v6908 = vmul.f32 %v5940, %v6591
        %v6909 = vmul.f32 %v5941, %v6591
        %v6910 = vmul.f32 %v5942, %v6591
        %v6911 = vmul.f32 %v5943, %v6591
        %v6912 = vmul.f32 %v5944, %v6595
        %v6913 = vmul.f32 %v5945, %v6595
        %v6914 = vmul.f32 %v5946, %v6595
        %v6915 = vmul.f32 %v5947, %v6595
        %v6916 = vmul.f32 %v5948, %v6599
        %v6917 = vmul.f32 %v5949, %v6599
        %v6918 = vmul.f32 %v5950, %v6599
        %v6919 = vmul.f32 %v5951, %v6599
        %v6920 = vmul.f32 %v5952, %v6603
        %v6921 = vmul.f32 %v5953, %v6603
        %v6922 = vmul.f32 %v5954, %v6603
        %v6923 = vmul.f32 %v5955, %v6603
        %v6924 = vmul.f32 %v5956, %v6607
        %v6925 = vmul.f32 %v5957, %v6607
        %v6926 = vmul.f32 %v5958, %v6607
        %v6927 = vmul.f32 %v5959, %v6607
        %v6928 = vmul.f32 %v5960, %v6611
        %v6929 = vmul.f32 %v5961, %v6611
        %v6930 = vmul.f32 %v5962, %v6611
        %v6931 = vmul.f32 %v5963, %v6611
        %v6932 = vmul.f32 %v5964, %v6615
        %v6933 = vmul.f32 %v5965, %v6615
        %v6934 = vmul.f32 %v5966, %v6615
        %v6935 = vmul.f32 %v5967, %v6615
        %v6936 = vmul.f32 %v5968, %v6619
        %v6937 = vmul.f32 %v5969, %v6619
        %v6938 = vmul.f32 %v5970, %v6619
        %v6939 = vmul.f32 %v5971, %v6619
        %v6940 = vmul.f32 %v5972, %v6623
        %v6941 = vmul.f32 %v5973, %v6623
        %v6942 = vmul.f32 %v5974, %v6623
        %v6943 = vmul.f32 %v5975, %v6623
        %v6944 = vmul.f32 %v5976, %v6627
        %v6945 = vmul.f32 %v5977, %v6627
        %v6946 = vmul.f32 %v5978, %v6627
        %v6947 = vmul.f32 %v5979, %v6627
        %v6948 = vmul.f32 %v5980, %v6631
        %v6949 = vmul.f32 %v5981, %v6631
        %v6950 = vmul.f32 %v5982, %v6631
        %v6951 = vmul.f32 %v5983, %v6631
        %v6952 = vmul.f32 %v5984, %v6635
        %v6953 = vmul.f32 %v5985, %v6635
        %v6954 = vmul.f32 %v5986, %v6635
        %v6955 = vmul.f32 %v5987, %v6635
        %v6956 = vmul.f32 %v5988, %v6639
        %v6957 = vmul.f32 %v5989, %v6639
        %v6958 = vmul.f32 %v5990, %v6639
        %v6959 = vmul.f32 %v5991, %v6639
        %v6960 = vmul.f32 %v5992, %v6643
        %v6961 = vmul.f32 %v5993, %v6643
        %v6962 = vmul.f32 %v5994, %v6643
        %v6963 = vmul.f32 %v5995, %v6643
        %v6964 = vmul.f32 %v5996, %v6647
        %v6965 = vmul.f32 %v5997, %v6647
        %v6966 = vmul.f32 %v5998, %v6647
        %v6967 = vmul.f32 %v5999, %v6647
        %v6968 = vmul.f32 %v6000, %v6651
        %v6969 = vmul.f32 %v6001, %v6651
        %v6970 = vmul.f32 %v6002, %v6651
        %v6971 = vmul.f32 %v6003, %v6651
        %v6972 = vmul.f32 %v6004, %v6655
        %v6973 = vmul.f32 %v6005, %v6655
        %v6974 = vmul.f32 %v6006, %v6655
        %v6975 = vmul.f32 %v6007, %v6655
        %v6976 = vmul.f32 %v6008, %v6659
        %v6977 = vmul.f32 %v6009, %v6659
        %v6978 = vmul.f32 %v6010, %v6659
        %v6979 = vmul.f32 %v6011, %v6659
        %v6980 = vmul.f32 %v6012, %v6663
        %v6981 = vmul.f32 %v6013, %v6663
        %v6982 = vmul.f32 %v6014, %v6663
        %v6983 = vmul.f32 %v6015, %v6663
        %v6984 = vmul.f32 %v6016, %v6667
        %v6985 = vmul.f32 %v6017, %v6667
        %v6986 = vmul.f32 %v6018, %v6667
        %v6987 = vmul.f32 %v6019, %v6667
        %v6988 = vmul.f32 %v6020, %v6671
        %v6989 = vmul.f32 %v6021, %v6671
        %v6990 = vmul.f32 %v6022, %v6671
        %v6991 = vmul.f32 %v6023, %v6671
        %v6992 = vmul.f32 %v6024, %v6675
        %v6993 = vmul.f32 %v6025, %v6675
        %v6994 = vmul.f32 %v6026, %v6675
        %v6995 = vmul.f32 %v6027, %v6675
        %v6996 = vmul.f32 %v6028, %v6679
        %v6997 = vmul.f32 %v6029, %v6679
        %v6998 = vmul.f32 %v6030, %v6679
        %v6999 = vmul.f32 %v6031, %v6679
        %v7000 = vmul.f32 %v6032, %v6683
        %v7001 = vmul.f32 %v6033, %v6683
        %v7002 = vmul.f32 %v6034, %v6683
        %v7003 = vmul.f32 %v6035, %v6683
        %v7004 = vmul.f32 %v6036, %v6687
        %v7005 = vmul.f32 %v6037, %v6687
        %v7006 = vmul.f32 %v6038, %v6687
        %v7007 = vmul.f32 %v6039, %v6687
        %v7008 = vsel %vm3223, %v6752, 0.0
        %7009 = vadd.xlane.f32.xlu0 %v7008
        %v7010 = vpop.xlane.xlu0 %7009
        %v7011 = vsel %vm3223, %v6753, 0.0
        %7012 = vadd.xlane.f32.xlu0 %v7011
        %v7013 = vpop.xlane.xlu0 %7012
        %v7014 = vsel %vm3223, %v6754, 0.0
        %7015 = vadd.xlane.f32.xlu0 %v7014
        %v7016 = vpop.xlane.xlu0 %7015
        %v7017 = vsel %vm3223, %v6755, 0.0
        %7018 = vadd.xlane.f32.xlu0 %v7017
        %v7019 = vpop.xlane.xlu0 %7018
        %v7020 = vsel %vm3223, %v6756, 0.0
        %7021 = vadd.xlane.f32.xlu0 %v7020
        %v7022 = vpop.xlane.xlu0 %7021
        %v7023 = vsel %vm3223, %v6757, 0.0
        %7024 = vadd.xlane.f32.xlu0 %v7023
        %v7025 = vpop.xlane.xlu0 %7024
        %v7026 = vsel %vm3223, %v6758, 0.0
        %7027 = vadd.xlane.f32.xlu0 %v7026
        %v7028 = vpop.xlane.xlu0 %7027
        %v7029 = vsel %vm3223, %v6759, 0.0
        %7030 = vadd.xlane.f32.xlu0 %v7029
        %v7031 = vpop.xlane.xlu0 %7030
        %v7032 = vsel %vm3223, %v6760, 0.0
        %7033 = vadd.xlane.f32.xlu0 %v7032
        %v7034 = vpop.xlane.xlu0 %7033
        %v7035 = vsel %vm3223, %v6761, 0.0
        %7036 = vadd.xlane.f32.xlu0 %v7035
        %v7037 = vpop.xlane.xlu0 %7036
        %v7038 = vsel %vm3223, %v6762, 0.0
        %7039 = vadd.xlane.f32.xlu0 %v7038
        %v7040 = vpop.xlane.xlu0 %7039
        %v7041 = vsel %vm3223, %v6763, 0.0
        %7042 = vadd.xlane.f32.xlu0 %v7041
        %v7043 = vpop.xlane.xlu0 %7042
        %v7044 = vsel %vm3223, %v6764, 0.0
        %7045 = vadd.xlane.f32.xlu0 %v7044
        %v7046 = vpop.xlane.xlu0 %7045
        %v7047 = vsel %vm3223, %v6765, 0.0
        %7048 = vadd.xlane.f32.xlu0 %v7047
        %v7049 = vpop.xlane.xlu0 %7048
        %v7050 = vsel %vm3223, %v6766, 0.0
        %7051 = vadd.xlane.f32.xlu0 %v7050
        %v7052 = vpop.xlane.xlu0 %7051
        %v7053 = vsel %vm3223, %v6767, 0.0
        %7054 = vadd.xlane.f32.xlu0 %v7053
        %v7055 = vpop.xlane.xlu0 %7054
        %v7056 = vsel %vm3223, %v6768, 0.0
        %7057 = vadd.xlane.f32.xlu0 %v7056
        %v7058 = vpop.xlane.xlu0 %7057
        %v7059 = vsel %vm3223, %v6769, 0.0
        %7060 = vadd.xlane.f32.xlu0 %v7059
        %v7061 = vpop.xlane.xlu0 %7060
        %v7062 = vsel %vm3223, %v6770, 0.0
        %7063 = vadd.xlane.f32.xlu0 %v7062
        %v7064 = vpop.xlane.xlu0 %7063
        %v7065 = vsel %vm3223, %v6771, 0.0
        %7066 = vadd.xlane.f32.xlu0 %v7065
        %v7067 = vpop.xlane.xlu0 %7066
        %v7068 = vsel %vm3223, %v6772, 0.0
        %7069 = vadd.xlane.f32.xlu0 %v7068
        %v7070 = vpop.xlane.xlu0 %7069
        %v7071 = vsel %vm3223, %v6773, 0.0
        %7072 = vadd.xlane.f32.xlu0 %v7071
        %v7073 = vpop.xlane.xlu0 %7072
        %v7074 = vsel %vm3223, %v6774, 0.0
        %7075 = vadd.xlane.f32.xlu0 %v7074
        %v7076 = vpop.xlane.xlu0 %7075
        %v7077 = vsel %vm3223, %v6775, 0.0
        %7078 = vadd.xlane.f32.xlu0 %v7077
        %v7079 = vpop.xlane.xlu0 %7078
        %v7080 = vsel %vm3223, %v6776, 0.0
        %7081 = vadd.xlane.f32.xlu0 %v7080
        %v7082 = vpop.xlane.xlu0 %7081
        %v7083 = vsel %vm3223, %v6777, 0.0
        %7084 = vadd.xlane.f32.xlu0 %v7083
        %v7085 = vpop.xlane.xlu0 %7084
        %v7086 = vsel %vm3223, %v6778, 0.0
        %7087 = vadd.xlane.f32.xlu0 %v7086
        %v7088 = vpop.xlane.xlu0 %7087
        %v7089 = vsel %vm3223, %v6779, 0.0
        %7090 = vadd.xlane.f32.xlu0 %v7089
        %v7091 = vpop.xlane.xlu0 %7090
        %v7092 = vsel %vm3223, %v6780, 0.0
        %7093 = vadd.xlane.f32.xlu0 %v7092
        %v7094 = vpop.xlane.xlu0 %7093
        %v7095 = vsel %vm3223, %v6781, 0.0
        %7096 = vadd.xlane.f32.xlu0 %v7095
        %v7097 = vpop.xlane.xlu0 %7096
        %v7098 = vsel %vm3223, %v6782, 0.0
        %7099 = vadd.xlane.f32.xlu0 %v7098
        %v7100 = vpop.xlane.xlu0 %7099
        %v7101 = vsel %vm3223, %v6783, 0.0
        %7102 = vadd.xlane.f32.xlu0 %v7101
        %v7103 = vpop.xlane.xlu0 %7102
        %v7104 = vsel %vm3223, %v6784, 0.0
        %7105 = vadd.xlane.f32.xlu0 %v7104
        %v7106 = vpop.xlane.xlu0 %7105
        %v7107 = vsel %vm3223, %v6785, 0.0
        %7108 = vadd.xlane.f32.xlu0 %v7107
        %v7109 = vpop.xlane.xlu0 %7108
        %v7110 = vsel %vm3223, %v6786, 0.0
        %7111 = vadd.xlane.f32.xlu0 %v7110
        %v7112 = vpop.xlane.xlu0 %7111
        %v7113 = vsel %vm3223, %v6787, 0.0
        %7114 = vadd.xlane.f32.xlu0 %v7113
        %v7115 = vpop.xlane.xlu0 %7114
        %v7116 = vsel %vm3223, %v6788, 0.0
        %7117 = vadd.xlane.f32.xlu0 %v7116
        %v7118 = vpop.xlane.xlu0 %7117
        %v7119 = vsel %vm3223, %v6789, 0.0
        %7120 = vadd.xlane.f32.xlu0 %v7119
        %v7121 = vpop.xlane.xlu0 %7120
        %v7122 = vsel %vm3223, %v6790, 0.0
        %7123 = vadd.xlane.f32.xlu0 %v7122
        %v7124 = vpop.xlane.xlu0 %7123
        %v7125 = vsel %vm3223, %v6791, 0.0
        %7126 = vadd.xlane.f32.xlu0 %v7125
        %v7127 = vpop.xlane.xlu0 %7126
        %v7128 = vsel %vm3223, %v6792, 0.0
        %7129 = vadd.xlane.f32.xlu0 %v7128
        %v7130 = vpop.xlane.xlu0 %7129
        %v7131 = vsel %vm3223, %v6793, 0.0
        %7132 = vadd.xlane.f32.xlu0 %v7131
        %v7133 = vpop.xlane.xlu0 %7132
        %v7134 = vsel %vm3223, %v6794, 0.0
        %7135 = vadd.xlane.f32.xlu0 %v7134
        %v7136 = vpop.xlane.xlu0 %7135
        %v7137 = vsel %vm3223, %v6795, 0.0
        %7138 = vadd.xlane.f32.xlu0 %v7137
        %v7139 = vpop.xlane.xlu0 %7138
        %v7140 = vsel %vm3223, %v6796, 0.0
        %7141 = vadd.xlane.f32.xlu0 %v7140
        %v7142 = vpop.xlane.xlu0 %7141
        %v7143 = vsel %vm3223, %v6797, 0.0
        %7144 = vadd.xlane.f32.xlu0 %v7143
        %v7145 = vpop.xlane.xlu0 %7144
        %v7146 = vsel %vm3223, %v6798, 0.0
        %7147 = vadd.xlane.f32.xlu0 %v7146
        %v7148 = vpop.xlane.xlu0 %7147
        %v7149 = vsel %vm3223, %v6799, 0.0
        %7150 = vadd.xlane.f32.xlu0 %v7149
        %v7151 = vpop.xlane.xlu0 %7150
        %v7152 = vsel %vm3223, %v6800, 0.0
        %7153 = vadd.xlane.f32.xlu0 %v7152
        %v7154 = vpop.xlane.xlu0 %7153
        %v7155 = vsel %vm3223, %v6801, 0.0
        %7156 = vadd.xlane.f32.xlu0 %v7155
        %v7157 = vpop.xlane.xlu0 %7156
        %v7158 = vsel %vm3223, %v6802, 0.0
        %7159 = vadd.xlane.f32.xlu0 %v7158
        %v7160 = vpop.xlane.xlu0 %7159
        %v7161 = vsel %vm3223, %v6803, 0.0
        %7162 = vadd.xlane.f32.xlu0 %v7161
        %v7163 = vpop.xlane.xlu0 %7162
        %v7164 = vsel %vm3223, %v6804, 0.0
        %7165 = vadd.xlane.f32.xlu0 %v7164
        %v7166 = vpop.xlane.xlu0 %7165
        %v7167 = vsel %vm3223, %v6805, 0.0
        %7168 = vadd.xlane.f32.xlu0 %v7167
        %v7169 = vpop.xlane.xlu0 %7168
        %v7170 = vsel %vm3223, %v6806, 0.0
        %7171 = vadd.xlane.f32.xlu0 %v7170
        %v7172 = vpop.xlane.xlu0 %7171
        %v7173 = vsel %vm3223, %v6807, 0.0
        %7174 = vadd.xlane.f32.xlu0 %v7173
        %v7175 = vpop.xlane.xlu0 %7174
        %v7176 = vsel %vm3223, %v6808, 0.0
        %7177 = vadd.xlane.f32.xlu0 %v7176
        %v7178 = vpop.xlane.xlu0 %7177
        %v7179 = vsel %vm3223, %v6809, 0.0
        %7180 = vadd.xlane.f32.xlu0 %v7179
        %v7181 = vpop.xlane.xlu0 %7180
        %v7182 = vsel %vm3223, %v6810, 0.0
        %7183 = vadd.xlane.f32.xlu0 %v7182
        %v7184 = vpop.xlane.xlu0 %7183
        %v7185 = vsel %vm3223, %v6811, 0.0
        %7186 = vadd.xlane.f32.xlu0 %v7185
        %v7187 = vpop.xlane.xlu0 %7186
        %v7188 = vsel %vm3223, %v6812, 0.0
        %7189 = vadd.xlane.f32.xlu0 %v7188
        %v7190 = vpop.xlane.xlu0 %7189
        %v7191 = vsel %vm3223, %v6813, 0.0
        %7192 = vadd.xlane.f32.xlu0 %v7191
        %v7193 = vpop.xlane.xlu0 %7192
        %v7194 = vsel %vm3223, %v6814, 0.0
        %7195 = vadd.xlane.f32.xlu0 %v7194
        %v7196 = vpop.xlane.xlu0 %7195
        %v7197 = vsel %vm3223, %v6815, 0.0
        %7198 = vadd.xlane.f32.xlu0 %v7197
        %v7199 = vpop.xlane.xlu0 %7198
        %v7200 = vsel %vm3223, %v6816, 0.0
        %7201 = vadd.xlane.f32.xlu0 %v7200
        %v7202 = vpop.xlane.xlu0 %7201
        %v7203 = vsel %vm3223, %v6817, 0.0
        %7204 = vadd.xlane.f32.xlu0 %v7203
        %v7205 = vpop.xlane.xlu0 %7204
        %v7206 = vsel %vm3223, %v6818, 0.0
        %7207 = vadd.xlane.f32.xlu0 %v7206
        %v7208 = vpop.xlane.xlu0 %7207
        %v7209 = vsel %vm3223, %v6819, 0.0
        %7210 = vadd.xlane.f32.xlu0 %v7209
        %v7211 = vpop.xlane.xlu0 %7210
        %v7212 = vsel %vm3223, %v6820, 0.0
        %7213 = vadd.xlane.f32.xlu0 %v7212
        %v7214 = vpop.xlane.xlu0 %7213
        %v7215 = vsel %vm3223, %v6821, 0.0
        %7216 = vadd.xlane.f32.xlu0 %v7215
        %v7217 = vpop.xlane.xlu0 %7216
        %v7218 = vsel %vm3223, %v6822, 0.0
        %7219 = vadd.xlane.f32.xlu0 %v7218
        %v7220 = vpop.xlane.xlu0 %7219
        %v7221 = vsel %vm3223, %v6823, 0.0
        %7222 = vadd.xlane.f32.xlu0 %v7221
        %v7223 = vpop.xlane.xlu0 %7222
        %v7224 = vsel %vm3223, %v6824, 0.0
        %7225 = vadd.xlane.f32.xlu0 %v7224
        %v7226 = vpop.xlane.xlu0 %7225
        %v7227 = vsel %vm3223, %v6825, 0.0
        %7228 = vadd.xlane.f32.xlu0 %v7227
        %v7229 = vpop.xlane.xlu0 %7228
        %v7230 = vsel %vm3223, %v6826, 0.0
        %7231 = vadd.xlane.f32.xlu0 %v7230
        %v7232 = vpop.xlane.xlu0 %7231
        %v7233 = vsel %vm3223, %v6827, 0.0
        %7234 = vadd.xlane.f32.xlu0 %v7233
        %v7235 = vpop.xlane.xlu0 %7234
        %v7236 = vsel %vm3223, %v6828, 0.0
        %7237 = vadd.xlane.f32.xlu0 %v7236
        %v7238 = vpop.xlane.xlu0 %7237
        %v7239 = vsel %vm3223, %v6829, 0.0
        %7240 = vadd.xlane.f32.xlu0 %v7239
        %v7241 = vpop.xlane.xlu0 %7240
        %v7242 = vsel %vm3223, %v6830, 0.0
        %7243 = vadd.xlane.f32.xlu0 %v7242
        %v7244 = vpop.xlane.xlu0 %7243
        %v7245 = vsel %vm3223, %v6831, 0.0
        %7246 = vadd.xlane.f32.xlu0 %v7245
        %v7247 = vpop.xlane.xlu0 %7246
        %v7248 = vsel %vm3223, %v6832, 0.0
        %7249 = vadd.xlane.f32.xlu0 %v7248
        %v7250 = vpop.xlane.xlu0 %7249
        %v7251 = vsel %vm3223, %v6833, 0.0
        %7252 = vadd.xlane.f32.xlu0 %v7251
        %v7253 = vpop.xlane.xlu0 %7252
        %v7254 = vsel %vm3223, %v6834, 0.0
        %7255 = vadd.xlane.f32.xlu0 %v7254
        %v7256 = vpop.xlane.xlu0 %7255
        %v7257 = vsel %vm3223, %v6835, 0.0
        %7258 = vadd.xlane.f32.xlu0 %v7257
        %v7259 = vpop.xlane.xlu0 %7258
        %v7260 = vsel %vm3223, %v6836, 0.0
        %7261 = vadd.xlane.f32.xlu0 %v7260
        %v7262 = vpop.xlane.xlu0 %7261
        %v7263 = vsel %vm3223, %v6837, 0.0
        %7264 = vadd.xlane.f32.xlu0 %v7263
        %v7265 = vpop.xlane.xlu0 %7264
        %v7266 = vsel %vm3223, %v6838, 0.0
        %7267 = vadd.xlane.f32.xlu0 %v7266
        %v7268 = vpop.xlane.xlu0 %7267
        %v7269 = vsel %vm3223, %v6839, 0.0
        %7270 = vadd.xlane.f32.xlu0 %v7269
        %v7271 = vpop.xlane.xlu0 %7270
        %v7272 = vsel %vm3223, %v6840, 0.0
        %7273 = vadd.xlane.f32.xlu0 %v7272
        %v7274 = vpop.xlane.xlu0 %7273
        %v7275 = vsel %vm3223, %v6841, 0.0
        %7276 = vadd.xlane.f32.xlu0 %v7275
        %v7277 = vpop.xlane.xlu0 %7276
        %v7278 = vsel %vm3223, %v6842, 0.0
        %7279 = vadd.xlane.f32.xlu0 %v7278
        %v7280 = vpop.xlane.xlu0 %7279
        %v7281 = vsel %vm3223, %v6843, 0.0
        %7282 = vadd.xlane.f32.xlu0 %v7281
        %v7283 = vpop.xlane.xlu0 %7282
        %v7284 = vsel %vm3223, %v6844, 0.0
        %7285 = vadd.xlane.f32.xlu0 %v7284
        %v7286 = vpop.xlane.xlu0 %7285
        %v7287 = vsel %vm3223, %v6845, 0.0
        %7288 = vadd.xlane.f32.xlu0 %v7287
        %v7289 = vpop.xlane.xlu0 %7288
        %v7290 = vsel %vm3223, %v6846, 0.0
        %7291 = vadd.xlane.f32.xlu0 %v7290
        %v7292 = vpop.xlane.xlu0 %7291
        %v7293 = vsel %vm3223, %v6847, 0.0
        %7294 = vadd.xlane.f32.xlu0 %v7293
        %v7295 = vpop.xlane.xlu0 %7294
        %v7296 = vsel %vm3223, %v6848, 0.0
        %7297 = vadd.xlane.f32.xlu0 %v7296
        %v7298 = vpop.xlane.xlu0 %7297
        %v7299 = vsel %vm3223, %v6849, 0.0
        %7300 = vadd.xlane.f32.xlu0 %v7299
        %v7301 = vpop.xlane.xlu0 %7300
        %v7302 = vsel %vm3223, %v6850, 0.0
        %7303 = vadd.xlane.f32.xlu0 %v7302
        %v7304 = vpop.xlane.xlu0 %7303
        %v7305 = vsel %vm3223, %v6851, 0.0
        %7306 = vadd.xlane.f32.xlu0 %v7305
        %v7307 = vpop.xlane.xlu0 %7306
        %v7308 = vsel %vm3223, %v6852, 0.0
        %7309 = vadd.xlane.f32.xlu0 %v7308
        %v7310 = vpop.xlane.xlu0 %7309
        %v7311 = vsel %vm3223, %v6853, 0.0
        %7312 = vadd.xlane.f32.xlu0 %v7311
        %v7313 = vpop.xlane.xlu0 %7312
        %v7314 = vsel %vm3223, %v6854, 0.0
        %7315 = vadd.xlane.f32.xlu0 %v7314
        %v7316 = vpop.xlane.xlu0 %7315
        %v7317 = vsel %vm3223, %v6855, 0.0
        %7318 = vadd.xlane.f32.xlu0 %v7317
        %v7319 = vpop.xlane.xlu0 %7318
        %v7320 = vsel %vm3223, %v6856, 0.0
        %7321 = vadd.xlane.f32.xlu0 %v7320
        %v7322 = vpop.xlane.xlu0 %7321
        %v7323 = vsel %vm3223, %v6857, 0.0
        %7324 = vadd.xlane.f32.xlu0 %v7323
        %v7325 = vpop.xlane.xlu0 %7324
        %v7326 = vsel %vm3223, %v6858, 0.0
        %7327 = vadd.xlane.f32.xlu0 %v7326
        %v7328 = vpop.xlane.xlu0 %7327
        %v7329 = vsel %vm3223, %v6859, 0.0
        %7330 = vadd.xlane.f32.xlu0 %v7329
        %v7331 = vpop.xlane.xlu0 %7330
        %v7332 = vsel %vm3223, %v6860, 0.0
        %7333 = vadd.xlane.f32.xlu0 %v7332
        %v7334 = vpop.xlane.xlu0 %7333
        %v7335 = vsel %vm3223, %v6861, 0.0
        %7336 = vadd.xlane.f32.xlu0 %v7335
        %v7337 = vpop.xlane.xlu0 %7336
        %v7338 = vsel %vm3223, %v6862, 0.0
        %7339 = vadd.xlane.f32.xlu0 %v7338
        %v7340 = vpop.xlane.xlu0 %7339
        %v7341 = vsel %vm3223, %v6863, 0.0
        %7342 = vadd.xlane.f32.xlu0 %v7341
        %v7343 = vpop.xlane.xlu0 %7342
        %v7344 = vsel %vm3223, %v6864, 0.0
        %7345 = vadd.xlane.f32.xlu0 %v7344
        %v7346 = vpop.xlane.xlu0 %7345
        %v7347 = vsel %vm3223, %v6865, 0.0
        %7348 = vadd.xlane.f32.xlu0 %v7347
        %v7349 = vpop.xlane.xlu0 %7348
        %v7350 = vsel %vm3223, %v6866, 0.0
        %7351 = vadd.xlane.f32.xlu0 %v7350
        %v7352 = vpop.xlane.xlu0 %7351
        %v7353 = vsel %vm3223, %v6867, 0.0
        %7354 = vadd.xlane.f32.xlu0 %v7353
        %v7355 = vpop.xlane.xlu0 %7354
        %v7356 = vsel %vm3223, %v6868, 0.0
        %7357 = vadd.xlane.f32.xlu0 %v7356
        %v7358 = vpop.xlane.xlu0 %7357
        %v7359 = vsel %vm3223, %v6869, 0.0
        %7360 = vadd.xlane.f32.xlu0 %v7359
        %v7361 = vpop.xlane.xlu0 %7360
        %v7362 = vsel %vm3223, %v6870, 0.0
        %7363 = vadd.xlane.f32.xlu0 %v7362
        %v7364 = vpop.xlane.xlu0 %7363
        %v7365 = vsel %vm3223, %v6871, 0.0
        %7366 = vadd.xlane.f32.xlu0 %v7365
        %v7367 = vpop.xlane.xlu0 %7366
        %v7368 = vsel %vm3223, %v6872, 0.0
        %7369 = vadd.xlane.f32.xlu0 %v7368
        %v7370 = vpop.xlane.xlu0 %7369
        %v7371 = vsel %vm3223, %v6873, 0.0
        %7372 = vadd.xlane.f32.xlu0 %v7371
        %v7373 = vpop.xlane.xlu0 %7372
        %v7374 = vsel %vm3223, %v6874, 0.0
        %7375 = vadd.xlane.f32.xlu0 %v7374
        %v7376 = vpop.xlane.xlu0 %7375
        %v7377 = vsel %vm3223, %v6875, 0.0
        %7378 = vadd.xlane.f32.xlu0 %v7377
        %v7379 = vpop.xlane.xlu0 %7378
        %v7380 = vsel %vm3223, %v6876, 0.0
        %7381 = vadd.xlane.f32.xlu0 %v7380
        %v7382 = vpop.xlane.xlu0 %7381
        %v7383 = vsel %vm3223, %v6877, 0.0
        %7384 = vadd.xlane.f32.xlu0 %v7383
        %v7385 = vpop.xlane.xlu0 %7384
        %v7386 = vsel %vm3223, %v6878, 0.0
        %7387 = vadd.xlane.f32.xlu0 %v7386
        %v7388 = vpop.xlane.xlu0 %7387
        %v7389 = vsel %vm3223, %v6879, 0.0
        %7390 = vadd.xlane.f32.xlu0 %v7389
        %v7391 = vpop.xlane.xlu0 %7390
        %v7392 = vsel %vm3223, %v6880, 0.0
        %7393 = vadd.xlane.f32.xlu0 %v7392
        %v7394 = vpop.xlane.xlu0 %7393
        %v7395 = vsel %vm3223, %v6881, 0.0
        %7396 = vadd.xlane.f32.xlu0 %v7395
        %v7397 = vpop.xlane.xlu0 %7396
        %v7398 = vsel %vm3223, %v6882, 0.0
        %7399 = vadd.xlane.f32.xlu0 %v7398
        %v7400 = vpop.xlane.xlu0 %7399
        %v7401 = vsel %vm3223, %v6883, 0.0
        %7402 = vadd.xlane.f32.xlu0 %v7401
        %v7403 = vpop.xlane.xlu0 %7402
        %v7404 = vsel %vm3223, %v6884, 0.0
        %7405 = vadd.xlane.f32.xlu0 %v7404
        %v7406 = vpop.xlane.xlu0 %7405
        %v7407 = vsel %vm3223, %v6885, 0.0
        %7408 = vadd.xlane.f32.xlu0 %v7407
        %v7409 = vpop.xlane.xlu0 %7408
        %v7410 = vsel %vm3223, %v6886, 0.0
        %7411 = vadd.xlane.f32.xlu0 %v7410
        %v7412 = vpop.xlane.xlu0 %7411
        %v7413 = vsel %vm3223, %v6887, 0.0
        %7414 = vadd.xlane.f32.xlu0 %v7413
        %v7415 = vpop.xlane.xlu0 %7414
        %v7416 = vsel %vm3223, %v6888, 0.0
        %7417 = vadd.xlane.f32.xlu0 %v7416
        %v7418 = vpop.xlane.xlu0 %7417
        %v7419 = vsel %vm3223, %v6889, 0.0
        %7420 = vadd.xlane.f32.xlu0 %v7419
        %v7421 = vpop.xlane.xlu0 %7420
        %v7422 = vsel %vm3223, %v6890, 0.0
        %7423 = vadd.xlane.f32.xlu0 %v7422
        %v7424 = vpop.xlane.xlu0 %7423
        %v7425 = vsel %vm3223, %v6891, 0.0
        %7426 = vadd.xlane.f32.xlu0 %v7425
        %v7427 = vpop.xlane.xlu0 %7426
        %v7428 = vsel %vm3223, %v6892, 0.0
        %7429 = vadd.xlane.f32.xlu0 %v7428
        %v7430 = vpop.xlane.xlu0 %7429
        %v7431 = vsel %vm3223, %v6893, 0.0
        %7432 = vadd.xlane.f32.xlu0 %v7431
        %v7433 = vpop.xlane.xlu0 %7432
        %v7434 = vsel %vm3223, %v6894, 0.0
        %7435 = vadd.xlane.f32.xlu0 %v7434
        %v7436 = vpop.xlane.xlu0 %7435
        %v7437 = vsel %vm3223, %v6895, 0.0
        %7438 = vadd.xlane.f32.xlu0 %v7437
        %v7439 = vpop.xlane.xlu0 %7438
        %v7440 = vsel %vm3223, %v6896, 0.0
        %7441 = vadd.xlane.f32.xlu0 %v7440
        %v7442 = vpop.xlane.xlu0 %7441
        %v7443 = vsel %vm3223, %v6897, 0.0
        %7444 = vadd.xlane.f32.xlu0 %v7443
        %v7445 = vpop.xlane.xlu0 %7444
        %v7446 = vsel %vm3223, %v6898, 0.0
        %7447 = vadd.xlane.f32.xlu0 %v7446
        %v7448 = vpop.xlane.xlu0 %7447
        %v7449 = vsel %vm3223, %v6899, 0.0
        %7450 = vadd.xlane.f32.xlu0 %v7449
        %v7451 = vpop.xlane.xlu0 %7450
        %v7452 = vsel %vm3223, %v6900, 0.0
        %7453 = vadd.xlane.f32.xlu0 %v7452
        %v7454 = vpop.xlane.xlu0 %7453
        %v7455 = vsel %vm3223, %v6901, 0.0
        %7456 = vadd.xlane.f32.xlu0 %v7455
        %v7457 = vpop.xlane.xlu0 %7456
        %v7458 = vsel %vm3223, %v6902, 0.0
        %7459 = vadd.xlane.f32.xlu0 %v7458
        %v7460 = vpop.xlane.xlu0 %7459
        %v7461 = vsel %vm3223, %v6903, 0.0
        %7462 = vadd.xlane.f32.xlu0 %v7461
        %v7463 = vpop.xlane.xlu0 %7462
        %v7464 = vsel %vm3223, %v6904, 0.0
        %7465 = vadd.xlane.f32.xlu0 %v7464
        %v7466 = vpop.xlane.xlu0 %7465
        %v7467 = vsel %vm3223, %v6905, 0.0
        %7468 = vadd.xlane.f32.xlu0 %v7467
        %v7469 = vpop.xlane.xlu0 %7468
        %v7470 = vsel %vm3223, %v6906, 0.0
        %7471 = vadd.xlane.f32.xlu0 %v7470
        %v7472 = vpop.xlane.xlu0 %7471
        %v7473 = vsel %vm3223, %v6907, 0.0
        %7474 = vadd.xlane.f32.xlu0 %v7473
        %v7475 = vpop.xlane.xlu0 %7474
        %v7476 = vsel %vm3223, %v6908, 0.0
        %7477 = vadd.xlane.f32.xlu0 %v7476
        %v7478 = vpop.xlane.xlu0 %7477
        %v7479 = vsel %vm3223, %v6909, 0.0
        %7480 = vadd.xlane.f32.xlu0 %v7479
        %v7481 = vpop.xlane.xlu0 %7480
        %v7482 = vsel %vm3223, %v6910, 0.0
        %7483 = vadd.xlane.f32.xlu0 %v7482
        %v7484 = vpop.xlane.xlu0 %7483
        %v7485 = vsel %vm3223, %v6911, 0.0
        %7486 = vadd.xlane.f32.xlu0 %v7485
        %v7487 = vpop.xlane.xlu0 %7486
        %v7488 = vsel %vm3223, %v6912, 0.0
        %7489 = vadd.xlane.f32.xlu0 %v7488
        %v7490 = vpop.xlane.xlu0 %7489
        %v7491 = vsel %vm3223, %v6913, 0.0
        %7492 = vadd.xlane.f32.xlu0 %v7491
        %v7493 = vpop.xlane.xlu0 %7492
        %v7494 = vsel %vm3223, %v6914, 0.0
        %7495 = vadd.xlane.f32.xlu0 %v7494
        %v7496 = vpop.xlane.xlu0 %7495
        %v7497 = vsel %vm3223, %v6915, 0.0
        %7498 = vadd.xlane.f32.xlu0 %v7497
        %v7499 = vpop.xlane.xlu0 %7498
        %v7500 = vsel %vm3223, %v6916, 0.0
        %7501 = vadd.xlane.f32.xlu0 %v7500
        %v7502 = vpop.xlane.xlu0 %7501
        %v7503 = vsel %vm3223, %v6917, 0.0
        %7504 = vadd.xlane.f32.xlu0 %v7503
        %v7505 = vpop.xlane.xlu0 %7504
        %v7506 = vsel %vm3223, %v6918, 0.0
        %7507 = vadd.xlane.f32.xlu0 %v7506
        %v7508 = vpop.xlane.xlu0 %7507
        %v7509 = vsel %vm3223, %v6919, 0.0
        %7510 = vadd.xlane.f32.xlu0 %v7509
        %v7511 = vpop.xlane.xlu0 %7510
        %v7512 = vsel %vm3223, %v6920, 0.0
        %7513 = vadd.xlane.f32.xlu0 %v7512
        %v7514 = vpop.xlane.xlu0 %7513
        %v7515 = vsel %vm3223, %v6921, 0.0
        %7516 = vadd.xlane.f32.xlu0 %v7515
        %v7517 = vpop.xlane.xlu0 %7516
        %v7518 = vsel %vm3223, %v6922, 0.0
        %7519 = vadd.xlane.f32.xlu0 %v7518
        %v7520 = vpop.xlane.xlu0 %7519
        %v7521 = vsel %vm3223, %v6923, 0.0
        %7522 = vadd.xlane.f32.xlu0 %v7521
        %v7523 = vpop.xlane.xlu0 %7522
        %v7524 = vsel %vm3223, %v6924, 0.0
        %7525 = vadd.xlane.f32.xlu0 %v7524
        %v7526 = vpop.xlane.xlu0 %7525
        %v7527 = vsel %vm3223, %v6925, 0.0
        %7528 = vadd.xlane.f32.xlu0 %v7527
        %v7529 = vpop.xlane.xlu0 %7528
        %v7530 = vsel %vm3223, %v6926, 0.0
        %7531 = vadd.xlane.f32.xlu0 %v7530
        %v7532 = vpop.xlane.xlu0 %7531
        %v7533 = vsel %vm3223, %v6927, 0.0
        %7534 = vadd.xlane.f32.xlu0 %v7533
        %v7535 = vpop.xlane.xlu0 %7534
        %v7536 = vsel %vm3223, %v6928, 0.0
        %7537 = vadd.xlane.f32.xlu0 %v7536
        %v7538 = vpop.xlane.xlu0 %7537
        %v7539 = vsel %vm3223, %v6929, 0.0
        %7540 = vadd.xlane.f32.xlu0 %v7539
        %v7541 = vpop.xlane.xlu0 %7540
        %v7542 = vsel %vm3223, %v6930, 0.0
        %7543 = vadd.xlane.f32.xlu0 %v7542
        %v7544 = vpop.xlane.xlu0 %7543
        %v7545 = vsel %vm3223, %v6931, 0.0
        %7546 = vadd.xlane.f32.xlu0 %v7545
        %v7547 = vpop.xlane.xlu0 %7546
        %v7548 = vsel %vm3223, %v6932, 0.0
        %7549 = vadd.xlane.f32.xlu0 %v7548
        %v7550 = vpop.xlane.xlu0 %7549
        %v7551 = vsel %vm3223, %v6933, 0.0
        %7552 = vadd.xlane.f32.xlu0 %v7551
        %v7553 = vpop.xlane.xlu0 %7552
        %v7554 = vsel %vm3223, %v6934, 0.0
        %7555 = vadd.xlane.f32.xlu0 %v7554
        %v7556 = vpop.xlane.xlu0 %7555
        %v7557 = vsel %vm3223, %v6935, 0.0
        %7558 = vadd.xlane.f32.xlu0 %v7557
        %v7559 = vpop.xlane.xlu0 %7558
        %v7560 = vsel %vm3223, %v6936, 0.0
        %7561 = vadd.xlane.f32.xlu0 %v7560
        %v7562 = vpop.xlane.xlu0 %7561
        %v7563 = vsel %vm3223, %v6937, 0.0
        %7564 = vadd.xlane.f32.xlu0 %v7563
        %v7565 = vpop.xlane.xlu0 %7564
        %v7566 = vsel %vm3223, %v6938, 0.0
        %7567 = vadd.xlane.f32.xlu0 %v7566
        %v7568 = vpop.xlane.xlu0 %7567
        %v7569 = vsel %vm3223, %v6939, 0.0
        %7570 = vadd.xlane.f32.xlu0 %v7569
        %v7571 = vpop.xlane.xlu0 %7570
        %v7572 = vsel %vm3223, %v6940, 0.0
        %7573 = vadd.xlane.f32.xlu0 %v7572
        %v7574 = vpop.xlane.xlu0 %7573
        %v7575 = vsel %vm3223, %v6941, 0.0
        %7576 = vadd.xlane.f32.xlu0 %v7575
        %v7577 = vpop.xlane.xlu0 %7576
        %v7578 = vsel %vm3223, %v6942, 0.0
        %7579 = vadd.xlane.f32.xlu0 %v7578
        %v7580 = vpop.xlane.xlu0 %7579
        %v7581 = vsel %vm3223, %v6943, 0.0
        %7582 = vadd.xlane.f32.xlu0 %v7581
        %v7583 = vpop.xlane.xlu0 %7582
        %v7584 = vsel %vm3223, %v6944, 0.0
        %7585 = vadd.xlane.f32.xlu0 %v7584
        %v7586 = vpop.xlane.xlu0 %7585
        %v7587 = vsel %vm3223, %v6945, 0.0
        %7588 = vadd.xlane.f32.xlu0 %v7587
        %v7589 = vpop.xlane.xlu0 %7588
        %v7590 = vsel %vm3223, %v6946, 0.0
        %7591 = vadd.xlane.f32.xlu0 %v7590
        %v7592 = vpop.xlane.xlu0 %7591
        %v7593 = vsel %vm3223, %v6947, 0.0
        %7594 = vadd.xlane.f32.xlu0 %v7593
        %v7595 = vpop.xlane.xlu0 %7594
        %v7596 = vsel %vm3223, %v6948, 0.0
        %7597 = vadd.xlane.f32.xlu0 %v7596
        %v7598 = vpop.xlane.xlu0 %7597
        %v7599 = vsel %vm3223, %v6949, 0.0
        %7600 = vadd.xlane.f32.xlu0 %v7599
        %v7601 = vpop.xlane.xlu0 %7600
        %v7602 = vsel %vm3223, %v6950, 0.0
        %7603 = vadd.xlane.f32.xlu0 %v7602
        %v7604 = vpop.xlane.xlu0 %7603
        %v7605 = vsel %vm3223, %v6951, 0.0
        %7606 = vadd.xlane.f32.xlu0 %v7605
        %v7607 = vpop.xlane.xlu0 %7606
        %v7608 = vsel %vm3223, %v6952, 0.0
        %7609 = vadd.xlane.f32.xlu0 %v7608
        %v7610 = vpop.xlane.xlu0 %7609
        %v7611 = vsel %vm3223, %v6953, 0.0
        %7612 = vadd.xlane.f32.xlu0 %v7611
        %v7613 = vpop.xlane.xlu0 %7612
        %v7614 = vsel %vm3223, %v6954, 0.0
        %7615 = vadd.xlane.f32.xlu0 %v7614
        %v7616 = vpop.xlane.xlu0 %7615
        %v7617 = vsel %vm3223, %v6955, 0.0
        %7618 = vadd.xlane.f32.xlu0 %v7617
        %v7619 = vpop.xlane.xlu0 %7618
        %v7620 = vsel %vm3223, %v6956, 0.0
        %7621 = vadd.xlane.f32.xlu0 %v7620
        %v7622 = vpop.xlane.xlu0 %7621
        %v7623 = vsel %vm3223, %v6957, 0.0
        %7624 = vadd.xlane.f32.xlu0 %v7623
        %v7625 = vpop.xlane.xlu0 %7624
        %v7626 = vsel %vm3223, %v6958, 0.0
        %7627 = vadd.xlane.f32.xlu0 %v7626
        %v7628 = vpop.xlane.xlu0 %7627
        %v7629 = vsel %vm3223, %v6959, 0.0
        %7630 = vadd.xlane.f32.xlu0 %v7629
        %v7631 = vpop.xlane.xlu0 %7630
        %v7632 = vsel %vm3223, %v6960, 0.0
        %7633 = vadd.xlane.f32.xlu0 %v7632
        %v7634 = vpop.xlane.xlu0 %7633
        %v7635 = vsel %vm3223, %v6961, 0.0
        %7636 = vadd.xlane.f32.xlu0 %v7635
        %v7637 = vpop.xlane.xlu0 %7636
        %v7638 = vsel %vm3223, %v6962, 0.0
        %7639 = vadd.xlane.f32.xlu0 %v7638
        %v7640 = vpop.xlane.xlu0 %7639
        %v7641 = vsel %vm3223, %v6963, 0.0
        %7642 = vadd.xlane.f32.xlu0 %v7641
        %v7643 = vpop.xlane.xlu0 %7642
        %v7644 = vsel %vm3223, %v6964, 0.0
        %7645 = vadd.xlane.f32.xlu0 %v7644
        %v7646 = vpop.xlane.xlu0 %7645
        %v7647 = vsel %vm3223, %v6965, 0.0
        %7648 = vadd.xlane.f32.xlu0 %v7647
        %v7649 = vpop.xlane.xlu0 %7648
        %v7650 = vsel %vm3223, %v6966, 0.0
        %7651 = vadd.xlane.f32.xlu0 %v7650
        %v7652 = vpop.xlane.xlu0 %7651
        %v7653 = vsel %vm3223, %v6967, 0.0
        %7654 = vadd.xlane.f32.xlu0 %v7653
        %v7655 = vpop.xlane.xlu0 %7654
        %v7656 = vsel %vm3223, %v6968, 0.0
        %7657 = vadd.xlane.f32.xlu0 %v7656
        %v7658 = vpop.xlane.xlu0 %7657
        %v7659 = vsel %vm3223, %v6969, 0.0
        %7660 = vadd.xlane.f32.xlu0 %v7659
        %v7661 = vpop.xlane.xlu0 %7660
        %v7662 = vsel %vm3223, %v6970, 0.0
        %7663 = vadd.xlane.f32.xlu0 %v7662
        %v7664 = vpop.xlane.xlu0 %7663
        %v7665 = vsel %vm3223, %v6971, 0.0
        %7666 = vadd.xlane.f32.xlu0 %v7665
        %v7667 = vpop.xlane.xlu0 %7666
        %v7668 = vsel %vm3223, %v6972, 0.0
        %7669 = vadd.xlane.f32.xlu0 %v7668
        %v7670 = vpop.xlane.xlu0 %7669
        %v7671 = vsel %vm3223, %v6973, 0.0
        %7672 = vadd.xlane.f32.xlu0 %v7671
        %v7673 = vpop.xlane.xlu0 %7672
        %v7674 = vsel %vm3223, %v6974, 0.0
        %7675 = vadd.xlane.f32.xlu0 %v7674
        %v7676 = vpop.xlane.xlu0 %7675
        %v7677 = vsel %vm3223, %v6975, 0.0
        %7678 = vadd.xlane.f32.xlu0 %v7677
        %v7679 = vpop.xlane.xlu0 %7678
        %v7680 = vsel %vm3223, %v6976, 0.0
        %7681 = vadd.xlane.f32.xlu0 %v7680
        %v7682 = vpop.xlane.xlu0 %7681
        %v7683 = vsel %vm3223, %v6977, 0.0
        %7684 = vadd.xlane.f32.xlu0 %v7683
        %v7685 = vpop.xlane.xlu0 %7684
        %v7686 = vsel %vm3223, %v6978, 0.0
        %7687 = vadd.xlane.f32.xlu0 %v7686
        %v7688 = vpop.xlane.xlu0 %7687
        %v7689 = vsel %vm3223, %v6979, 0.0
        %7690 = vadd.xlane.f32.xlu0 %v7689
        %v7691 = vpop.xlane.xlu0 %7690
        %v7692 = vsel %vm3223, %v6980, 0.0
        %7693 = vadd.xlane.f32.xlu0 %v7692
        %v7694 = vpop.xlane.xlu0 %7693
        %v7695 = vsel %vm3223, %v6981, 0.0
        %7696 = vadd.xlane.f32.xlu0 %v7695
        %v7697 = vpop.xlane.xlu0 %7696
        %v7698 = vsel %vm3223, %v6982, 0.0
        %7699 = vadd.xlane.f32.xlu0 %v7698
        %v7700 = vpop.xlane.xlu0 %7699
        %v7701 = vsel %vm3223, %v6983, 0.0
        %7702 = vadd.xlane.f32.xlu0 %v7701
        %v7703 = vpop.xlane.xlu0 %7702
        %v7704 = vsel %vm3223, %v6984, 0.0
        %7705 = vadd.xlane.f32.xlu0 %v7704
        %v7706 = vpop.xlane.xlu0 %7705
        %v7707 = vsel %vm3223, %v6985, 0.0
        %7708 = vadd.xlane.f32.xlu0 %v7707
        %v7709 = vpop.xlane.xlu0 %7708
        %v7710 = vsel %vm3223, %v6986, 0.0
        %7711 = vadd.xlane.f32.xlu0 %v7710
        %v7712 = vpop.xlane.xlu0 %7711
        %v7713 = vsel %vm3223, %v6987, 0.0
        %7714 = vadd.xlane.f32.xlu0 %v7713
        %v7715 = vpop.xlane.xlu0 %7714
        %v7716 = vsel %vm3223, %v6988, 0.0
        %7717 = vadd.xlane.f32.xlu0 %v7716
        %v7718 = vpop.xlane.xlu0 %7717
        %v7719 = vsel %vm3223, %v6989, 0.0
        %7720 = vadd.xlane.f32.xlu0 %v7719
        %v7721 = vpop.xlane.xlu0 %7720
        %v7722 = vsel %vm3223, %v6990, 0.0
        %7723 = vadd.xlane.f32.xlu0 %v7722
        %v7724 = vpop.xlane.xlu0 %7723
        %v7725 = vsel %vm3223, %v6991, 0.0
        %7726 = vadd.xlane.f32.xlu0 %v7725
        %v7727 = vpop.xlane.xlu0 %7726
        %v7728 = vsel %vm3223, %v6992, 0.0
        %7729 = vadd.xlane.f32.xlu0 %v7728
        %v7730 = vpop.xlane.xlu0 %7729
        %v7731 = vsel %vm3223, %v6993, 0.0
        %7732 = vadd.xlane.f32.xlu0 %v7731
        %v7733 = vpop.xlane.xlu0 %7732
        %v7734 = vsel %vm3223, %v6994, 0.0
        %7735 = vadd.xlane.f32.xlu0 %v7734
        %v7736 = vpop.xlane.xlu0 %7735
        %v7737 = vsel %vm3223, %v6995, 0.0
        %7738 = vadd.xlane.f32.xlu0 %v7737
        %v7739 = vpop.xlane.xlu0 %7738
        %v7740 = vsel %vm3223, %v6996, 0.0
        %7741 = vadd.xlane.f32.xlu0 %v7740
        %v7742 = vpop.xlane.xlu0 %7741
        %v7743 = vsel %vm3223, %v6997, 0.0
        %7744 = vadd.xlane.f32.xlu0 %v7743
        %v7745 = vpop.xlane.xlu0 %7744
        %v7746 = vsel %vm3223, %v6998, 0.0
        %7747 = vadd.xlane.f32.xlu0 %v7746
        %v7748 = vpop.xlane.xlu0 %7747
        %v7749 = vsel %vm3223, %v6999, 0.0
        %7750 = vadd.xlane.f32.xlu0 %v7749
        %v7751 = vpop.xlane.xlu0 %7750
        %v7752 = vsel %vm3223, %v7000, 0.0
        %7753 = vadd.xlane.f32.xlu0 %v7752
        %v7754 = vpop.xlane.xlu0 %7753
        %v7755 = vsel %vm3223, %v7001, 0.0
        %7756 = vadd.xlane.f32.xlu0 %v7755
        %v7757 = vpop.xlane.xlu0 %7756
        %v7758 = vsel %vm3223, %v7002, 0.0
        %7759 = vadd.xlane.f32.xlu0 %v7758
        %v7760 = vpop.xlane.xlu0 %7759
        %v7761 = vsel %vm3223, %v7003, 0.0
        %7762 = vadd.xlane.f32.xlu0 %v7761
        %v7763 = vpop.xlane.xlu0 %7762
        %v7764 = vsel %vm3223, %v7004, 0.0
        %7765 = vadd.xlane.f32.xlu0 %v7764
        %v7766 = vpop.xlane.xlu0 %7765
        %v7767 = vsel %vm3223, %v7005, 0.0
        %7768 = vadd.xlane.f32.xlu0 %v7767
        %v7769 = vpop.xlane.xlu0 %7768
        %v7770 = vsel %vm3223, %v7006, 0.0
        %7771 = vadd.xlane.f32.xlu0 %v7770
        %v7772 = vpop.xlane.xlu0 %7771
        %v7773 = vsel %vm3223, %v7007, 0.0
        %7774 = vadd.xlane.f32.xlu0 %v7773
        %v7775 = vpop.xlane.xlu0 %7774
        %v7840 = vlaneseq
        %v7841 = vand.u32 %v7840, 127
        %v7842 = vlaneseq
        %v7843 = vshrl.u32 %v7842, 7
        %v7844 = vsub.s32 %v7841, %v7843
        %v7845 = vrot.slane %v7010, %v7844
        %v7846 = vadd.s32 %v7841, 4294967288
        %v7847 = vlaneseq
        %v7848 = vshrl.u32 %v7847, 7
        %v7849 = vsub.s32 %v7846, %v7848
        %v7850 = vrot.slane %v7013, %v7849
        %vm7851 = vcmask 130112
        %v7852 = vsel %vm7851, %v7850, %v7845
        %v7853 = vadd.s32 %v7841, 4294967280
        %v7854 = vlaneseq
        %v7855 = vshrl.u32 %v7854, 7
        %v7856 = vsub.s32 %v7853, %v7855
        %v7857 = vrot.slane %v7016, %v7856
        %vm7858 = vcmask 195712
        %v7859 = vsel %vm7858, %v7857, %v7852
        %v7860 = vadd.s32 %v7841, 4294967272
        %v7861 = vlaneseq
        %v7862 = vshrl.u32 %v7861, 7
        %v7863 = vsub.s32 %v7860, %v7862
        %v7864 = vrot.slane %v7019, %v7863
        %vm7865 = vcmask 261312
        %v7866 = vsel %vm7865, %v7864, %v7859
        %v7867 = vlaneseq
        %v7868 = vshrl.u32 %v7867, 7
        %v7869 = vsub.s32 %v7841, %v7868
        %v7870 = vrot.slane %v7022, %v7869
        %v7871 = vlaneseq
        %v7872 = vshrl.u32 %v7871, 7
        %v7873 = vsub.s32 %v7846, %v7872
        %v7874 = vrot.slane %v7025, %v7873
        %v7875 = vsel %vm7851, %v7874, %v7870
        %v7876 = vlaneseq
        %v7877 = vshrl.u32 %v7876, 7
        %v7878 = vsub.s32 %v7853, %v7877
        %v7879 = vrot.slane %v7028, %v7878
        %v7880 = vsel %vm7858, %v7879, %v7875
        %v7881 = vlaneseq
        %v7882 = vshrl.u32 %v7881, 7
        %v7883 = vsub.s32 %v7860, %v7882
        %v7884 = vrot.slane %v7031, %v7883
        %v7885 = vsel %vm7865, %v7884, %v7880
        %v7886 = vlaneseq
        %v7887 = vshrl.u32 %v7886, 7
        %v7888 = vsub.s32 %v7841, %v7887
        %v7889 = vrot.slane %v7034, %v7888
        %v7890 = vlaneseq
        %v7891 = vshrl.u32 %v7890, 7
        %v7892 = vsub.s32 %v7846, %v7891
        %v7893 = vrot.slane %v7037, %v7892
        %v7894 = vsel %vm7851, %v7893, %v7889
        %v7895 = vlaneseq
        %v7896 = vshrl.u32 %v7895, 7
        %v7897 = vsub.s32 %v7853, %v7896
        %v7898 = vrot.slane %v7040, %v7897
        %v7899 = vsel %vm7858, %v7898, %v7894
        %v7900 = vlaneseq
        %v7901 = vshrl.u32 %v7900, 7
        %v7902 = vsub.s32 %v7860, %v7901
        %v7903 = vrot.slane %v7043, %v7902
        %v7904 = vsel %vm7865, %v7903, %v7899
        %v7905 = vlaneseq
        %v7906 = vshrl.u32 %v7905, 7
        %v7907 = vsub.s32 %v7841, %v7906
        %v7908 = vrot.slane %v7046, %v7907
        %v7909 = vlaneseq
        %v7910 = vshrl.u32 %v7909, 7
        %v7911 = vsub.s32 %v7846, %v7910
        %v7912 = vrot.slane %v7049, %v7911
        %v7913 = vsel %vm7851, %v7912, %v7908
        %v7914 = vlaneseq
        %v7915 = vshrl.u32 %v7914, 7
        %v7916 = vsub.s32 %v7853, %v7915
        %v7917 = vrot.slane %v7052, %v7916
        %v7918 = vsel %vm7858, %v7917, %v7913
        %v7919 = vlaneseq
        %v7920 = vshrl.u32 %v7919, 7
        %v7921 = vsub.s32 %v7860, %v7920
        %v7922 = vrot.slane %v7055, %v7921
        %v7923 = vsel %vm7865, %v7922, %v7918
        %v7924 = vlaneseq
        %v7925 = vshrl.u32 %v7924, 7
        %v7926 = vsub.s32 %v7841, %v7925
        %v7927 = vrot.slane %v7058, %v7926
        %v7928 = vlaneseq
        %v7929 = vshrl.u32 %v7928, 7
        %v7930 = vsub.s32 %v7846, %v7929
        %v7931 = vrot.slane %v7061, %v7930
        %v7932 = vsel %vm7851, %v7931, %v7927
        %v7933 = vlaneseq
        %v7934 = vshrl.u32 %v7933, 7
        %v7935 = vsub.s32 %v7853, %v7934
        %v7936 = vrot.slane %v7064, %v7935
        %v7937 = vsel %vm7858, %v7936, %v7932
        %v7938 = vlaneseq
        %v7939 = vshrl.u32 %v7938, 7
        %v7940 = vsub.s32 %v7860, %v7939
        %v7941 = vrot.slane %v7067, %v7940
        %v7942 = vsel %vm7865, %v7941, %v7937
        %v7943 = vlaneseq
        %v7944 = vshrl.u32 %v7943, 7
        %v7945 = vsub.s32 %v7841, %v7944
        %v7946 = vrot.slane %v7070, %v7945
        %v7947 = vlaneseq
        %v7948 = vshrl.u32 %v7947, 7
        %v7949 = vsub.s32 %v7846, %v7948
        %v7950 = vrot.slane %v7073, %v7949
        %v7951 = vsel %vm7851, %v7950, %v7946
        %v7952 = vlaneseq
        %v7953 = vshrl.u32 %v7952, 7
        %v7954 = vsub.s32 %v7853, %v7953
        %v7955 = vrot.slane %v7076, %v7954
        %v7956 = vsel %vm7858, %v7955, %v7951
        %v7957 = vlaneseq
        %v7958 = vshrl.u32 %v7957, 7
        %v7959 = vsub.s32 %v7860, %v7958
        %v7960 = vrot.slane %v7079, %v7959
        %v7961 = vsel %vm7865, %v7960, %v7956
        %v7962 = vlaneseq
        %v7963 = vshrl.u32 %v7962, 7
        %v7964 = vsub.s32 %v7841, %v7963
        %v7965 = vrot.slane %v7082, %v7964
        %v7966 = vlaneseq
        %v7967 = vshrl.u32 %v7966, 7
        %v7968 = vsub.s32 %v7846, %v7967
        %v7969 = vrot.slane %v7085, %v7968
        %v7970 = vsel %vm7851, %v7969, %v7965
        %v7971 = vlaneseq
        %v7972 = vshrl.u32 %v7971, 7
        %v7973 = vsub.s32 %v7853, %v7972
        %v7974 = vrot.slane %v7088, %v7973
        %v7975 = vsel %vm7858, %v7974, %v7970
        %v7976 = vlaneseq
        %v7977 = vshrl.u32 %v7976, 7
        %v7978 = vsub.s32 %v7860, %v7977
        %v7979 = vrot.slane %v7091, %v7978
        %v7980 = vsel %vm7865, %v7979, %v7975
        %v7981 = vlaneseq
        %v7982 = vshrl.u32 %v7981, 7
        %v7983 = vsub.s32 %v7841, %v7982
        %v7984 = vrot.slane %v7094, %v7983
        %v7985 = vlaneseq
        %v7986 = vshrl.u32 %v7985, 7
        %v7987 = vsub.s32 %v7846, %v7986
        %v7988 = vrot.slane %v7097, %v7987
        %v7989 = vsel %vm7851, %v7988, %v7984
        %v7990 = vlaneseq
        %v7991 = vshrl.u32 %v7990, 7
        %v7992 = vsub.s32 %v7853, %v7991
        %v7993 = vrot.slane %v7100, %v7992
        %v7994 = vsel %vm7858, %v7993, %v7989
        %v7995 = vlaneseq
        %v7996 = vshrl.u32 %v7995, 7
        %v7997 = vsub.s32 %v7860, %v7996
        %v7998 = vrot.slane %v7103, %v7997
        %v7999 = vsel %vm7865, %v7998, %v7994
        %v8000 = vlaneseq
        %v8001 = vshrl.u32 %v8000, 7
        %v8002 = vsub.s32 %v7841, %v8001
        %v8003 = vrot.slane %v7106, %v8002
        %v8004 = vlaneseq
        %v8005 = vshrl.u32 %v8004, 7
        %v8006 = vsub.s32 %v7846, %v8005
        %v8007 = vrot.slane %v7109, %v8006
        %v8008 = vsel %vm7851, %v8007, %v8003
        %v8009 = vlaneseq
        %v8010 = vshrl.u32 %v8009, 7
        %v8011 = vsub.s32 %v7853, %v8010
        %v8012 = vrot.slane %v7112, %v8011
        %v8013 = vsel %vm7858, %v8012, %v8008
        %v8014 = vlaneseq
        %v8015 = vshrl.u32 %v8014, 7
        %v8016 = vsub.s32 %v7860, %v8015
        %v8017 = vrot.slane %v7115, %v8016
        %v8018 = vsel %vm7865, %v8017, %v8013
        %v8019 = vlaneseq
        %v8020 = vshrl.u32 %v8019, 7
        %v8021 = vsub.s32 %v7841, %v8020
        %v8022 = vrot.slane %v7118, %v8021
        %v8023 = vlaneseq
        %v8024 = vshrl.u32 %v8023, 7
        %v8025 = vsub.s32 %v7846, %v8024
        %v8026 = vrot.slane %v7121, %v8025
        %v8027 = vsel %vm7851, %v8026, %v8022
        %v8028 = vlaneseq
        %v8029 = vshrl.u32 %v8028, 7
        %v8030 = vsub.s32 %v7853, %v8029
        %v8031 = vrot.slane %v7124, %v8030
        %v8032 = vsel %vm7858, %v8031, %v8027
        %v8033 = vlaneseq
        %v8034 = vshrl.u32 %v8033, 7
        %v8035 = vsub.s32 %v7860, %v8034
        %v8036 = vrot.slane %v7127, %v8035
        %v8037 = vsel %vm7865, %v8036, %v8032
        %v8038 = vlaneseq
        %v8039 = vshrl.u32 %v8038, 7
        %v8040 = vsub.s32 %v7841, %v8039
        %v8041 = vrot.slane %v7130, %v8040
        %v8042 = vlaneseq
        %v8043 = vshrl.u32 %v8042, 7
        %v8044 = vsub.s32 %v7846, %v8043
        %v8045 = vrot.slane %v7133, %v8044
        %v8046 = vsel %vm7851, %v8045, %v8041
        %v8047 = vlaneseq
        %v8048 = vshrl.u32 %v8047, 7
        %v8049 = vsub.s32 %v7853, %v8048
        %v8050 = vrot.slane %v7136, %v8049
        %v8051 = vsel %vm7858, %v8050, %v8046
        %v8052 = vlaneseq
        %v8053 = vshrl.u32 %v8052, 7
        %v8054 = vsub.s32 %v7860, %v8053
        %v8055 = vrot.slane %v7139, %v8054
        %v8056 = vsel %vm7865, %v8055, %v8051
        %v8057 = vlaneseq
        %v8058 = vshrl.u32 %v8057, 7
        %v8059 = vsub.s32 %v7841, %v8058
        %v8060 = vrot.slane %v7142, %v8059
        %v8061 = vlaneseq
        %v8062 = vshrl.u32 %v8061, 7
        %v8063 = vsub.s32 %v7846, %v8062
        %v8064 = vrot.slane %v7145, %v8063
        %v8065 = vsel %vm7851, %v8064, %v8060
        %v8066 = vlaneseq
        %v8067 = vshrl.u32 %v8066, 7
        %v8068 = vsub.s32 %v7853, %v8067
        %v8069 = vrot.slane %v7148, %v8068
        %v8070 = vsel %vm7858, %v8069, %v8065
        %v8071 = vlaneseq
        %v8072 = vshrl.u32 %v8071, 7
        %v8073 = vsub.s32 %v7860, %v8072
        %v8074 = vrot.slane %v7151, %v8073
        %v8075 = vsel %vm7865, %v8074, %v8070
        %v8076 = vlaneseq
        %v8077 = vshrl.u32 %v8076, 7
        %v8078 = vsub.s32 %v7841, %v8077
        %v8079 = vrot.slane %v7154, %v8078
        %v8080 = vlaneseq
        %v8081 = vshrl.u32 %v8080, 7
        %v8082 = vsub.s32 %v7846, %v8081
        %v8083 = vrot.slane %v7157, %v8082
        %v8084 = vsel %vm7851, %v8083, %v8079
        %v8085 = vlaneseq
        %v8086 = vshrl.u32 %v8085, 7
        %v8087 = vsub.s32 %v7853, %v8086
        %v8088 = vrot.slane %v7160, %v8087
        %v8089 = vsel %vm7858, %v8088, %v8084
        %v8090 = vlaneseq
        %v8091 = vshrl.u32 %v8090, 7
        %v8092 = vsub.s32 %v7860, %v8091
        %v8093 = vrot.slane %v7163, %v8092
        %v8094 = vsel %vm7865, %v8093, %v8089
        %v8095 = vlaneseq
        %v8096 = vshrl.u32 %v8095, 7
        %v8097 = vsub.s32 %v7841, %v8096
        %v8098 = vrot.slane %v7166, %v8097
        %v8099 = vlaneseq
        %v8100 = vshrl.u32 %v8099, 7
        %v8101 = vsub.s32 %v7846, %v8100
        %v8102 = vrot.slane %v7169, %v8101
        %v8103 = vsel %vm7851, %v8102, %v8098
        %v8104 = vlaneseq
        %v8105 = vshrl.u32 %v8104, 7
        %v8106 = vsub.s32 %v7853, %v8105
        %v8107 = vrot.slane %v7172, %v8106
        %v8108 = vsel %vm7858, %v8107, %v8103
        %v8109 = vlaneseq
        %v8110 = vshrl.u32 %v8109, 7
        %v8111 = vsub.s32 %v7860, %v8110
        %v8112 = vrot.slane %v7175, %v8111
        %v8113 = vsel %vm7865, %v8112, %v8108
        %v8114 = vlaneseq
        %v8115 = vshrl.u32 %v8114, 7
        %v8116 = vsub.s32 %v7841, %v8115
        %v8117 = vrot.slane %v7178, %v8116
        %v8118 = vlaneseq
        %v8119 = vshrl.u32 %v8118, 7
        %v8120 = vsub.s32 %v7846, %v8119
        %v8121 = vrot.slane %v7181, %v8120
        %v8122 = vsel %vm7851, %v8121, %v8117
        %v8123 = vlaneseq
        %v8124 = vshrl.u32 %v8123, 7
        %v8125 = vsub.s32 %v7853, %v8124
        %v8126 = vrot.slane %v7184, %v8125
        %v8127 = vsel %vm7858, %v8126, %v8122
        %v8128 = vlaneseq
        %v8129 = vshrl.u32 %v8128, 7
        %v8130 = vsub.s32 %v7860, %v8129
        %v8131 = vrot.slane %v7187, %v8130
        %v8132 = vsel %vm7865, %v8131, %v8127
        %v8133 = vlaneseq
        %v8134 = vshrl.u32 %v8133, 7
        %v8135 = vsub.s32 %v7841, %v8134
        %v8136 = vrot.slane %v7190, %v8135
        %v8137 = vlaneseq
        %v8138 = vshrl.u32 %v8137, 7
        %v8139 = vsub.s32 %v7846, %v8138
        %v8140 = vrot.slane %v7193, %v8139
        %v8141 = vsel %vm7851, %v8140, %v8136
        %v8142 = vlaneseq
        %v8143 = vshrl.u32 %v8142, 7
        %v8144 = vsub.s32 %v7853, %v8143
        %v8145 = vrot.slane %v7196, %v8144
        %v8146 = vsel %vm7858, %v8145, %v8141
        %v8147 = vlaneseq
        %v8148 = vshrl.u32 %v8147, 7
        %v8149 = vsub.s32 %v7860, %v8148
        %v8150 = vrot.slane %v7199, %v8149
        %v8151 = vsel %vm7865, %v8150, %v8146
        %vm8152 = vcmask 1041409
        %v8153 = vsel %vm8152, %v7885, %v7866
        %vm8154 = vcmask 1042434
        %v8155 = vsel %vm8154, %v7904, %v8153
        %vm8156 = vcmask 1043459
        %v8157 = vsel %vm8156, %v7923, %v8155
        %vm8158 = vcmask 1044484
        %v8159 = vsel %vm8158, %v7942, %v8157
        %vm8160 = vcmask 1045509
        %v8161 = vsel %vm8160, %v7961, %v8159
        %vm8162 = vcmask 1046534
        %v8163 = vsel %vm8162, %v7980, %v8161
        %vm8164 = vcmask 1047559
        %v8165 = vsel %vm8164, %v7999, %v8163
        %v8166 = vsel %vm8152, %v8037, %v8018
        %v8167 = vsel %vm8154, %v8056, %v8166
        %v8168 = vsel %vm8156, %v8075, %v8167
        %v8169 = vsel %vm8158, %v8094, %v8168
        %v8170 = vsel %vm8160, %v8113, %v8169
        %v8171 = vsel %vm8162, %v8132, %v8170
        %v8172 = vsel %vm8164, %v8151, %v8171
        %v8239 = vadd.s32 %v7841, 4294967264
        %v8240 = vlaneseq
        %v8241 = vshrl.u32 %v8240, 7
        %v8242 = vsub.s32 %v8239, %v8241
        %v8243 = vrot.slane %v7202, %v8242
        %v8244 = vadd.s32 %v7841, 4294967256
        %v8245 = vlaneseq
        %v8246 = vshrl.u32 %v8245, 7
        %v8247 = vsub.s32 %v8244, %v8246
        %v8248 = vrot.slane %v7205, %v8247
        %vm8249 = vcmask 392512
        %v8250 = vsel %vm8249, %v8248, %v8243
        %v8251 = vadd.s32 %v7841, 4294967248
        %v8252 = vlaneseq
        %v8253 = vshrl.u32 %v8252, 7
        %v8254 = vsub.s32 %v8251, %v8253
        %v8255 = vrot.slane %v7208, %v8254
        %vm8256 = vcmask 458112
        %v8257 = vsel %vm8256, %v8255, %v8250
        %v8258 = vadd.s32 %v7841, 4294967240
        %v8259 = vlaneseq
        %v8260 = vshrl.u32 %v8259, 7
        %v8261 = vsub.s32 %v8258, %v8260
        %v8262 = vrot.slane %v7211, %v8261
        %vm8263 = vcmask 523712
        %v8264 = vsel %vm8263, %v8262, %v8257
        %v8265 = vlaneseq
        %v8266 = vshrl.u32 %v8265, 7
        %v8267 = vsub.s32 %v8239, %v8266
        %v8268 = vrot.slane %v7214, %v8267
        %v8269 = vlaneseq
        %v8270 = vshrl.u32 %v8269, 7
        %v8271 = vsub.s32 %v8244, %v8270
        %v8272 = vrot.slane %v7217, %v8271
        %v8273 = vsel %vm8249, %v8272, %v8268
        %v8274 = vlaneseq
        %v8275 = vshrl.u32 %v8274, 7
        %v8276 = vsub.s32 %v8251, %v8275
        %v8277 = vrot.slane %v7220, %v8276
        %v8278 = vsel %vm8256, %v8277, %v8273
        %v8279 = vlaneseq
        %v8280 = vshrl.u32 %v8279, 7
        %v8281 = vsub.s32 %v8258, %v8280
        %v8282 = vrot.slane %v7223, %v8281
        %v8283 = vsel %vm8263, %v8282, %v8278
        %v8284 = vlaneseq
        %v8285 = vshrl.u32 %v8284, 7
        %v8286 = vsub.s32 %v8239, %v8285
        %v8287 = vrot.slane %v7226, %v8286
        %v8288 = vlaneseq
        %v8289 = vshrl.u32 %v8288, 7
        %v8290 = vsub.s32 %v8244, %v8289
        %v8291 = vrot.slane %v7229, %v8290
        %v8292 = vsel %vm8249, %v8291, %v8287
        %v8293 = vlaneseq
        %v8294 = vshrl.u32 %v8293, 7
        %v8295 = vsub.s32 %v8251, %v8294
        %v8296 = vrot.slane %v7232, %v8295
        %v8297 = vsel %vm8256, %v8296, %v8292
        %v8298 = vlaneseq
        %v8299 = vshrl.u32 %v8298, 7
        %v8300 = vsub.s32 %v8258, %v8299
        %v8301 = vrot.slane %v7235, %v8300
        %v8302 = vsel %vm8263, %v8301, %v8297
        %v8303 = vlaneseq
        %v8304 = vshrl.u32 %v8303, 7
        %v8305 = vsub.s32 %v8239, %v8304
        %v8306 = vrot.slane %v7238, %v8305
        %v8307 = vlaneseq
        %v8308 = vshrl.u32 %v8307, 7
        %v8309 = vsub.s32 %v8244, %v8308
        %v8310 = vrot.slane %v7241, %v8309
        %v8311 = vsel %vm8249, %v8310, %v8306
        %v8312 = vlaneseq
        %v8313 = vshrl.u32 %v8312, 7
        %v8314 = vsub.s32 %v8251, %v8313
        %v8315 = vrot.slane %v7244, %v8314
        %v8316 = vsel %vm8256, %v8315, %v8311
        %v8317 = vlaneseq
        %v8318 = vshrl.u32 %v8317, 7
        %v8319 = vsub.s32 %v8258, %v8318
        %v8320 = vrot.slane %v7247, %v8319
        %v8321 = vsel %vm8263, %v8320, %v8316
        %v8322 = vlaneseq
        %v8323 = vshrl.u32 %v8322, 7
        %v8324 = vsub.s32 %v8239, %v8323
        %v8325 = vrot.slane %v7250, %v8324
        %v8326 = vlaneseq
        %v8327 = vshrl.u32 %v8326, 7
        %v8328 = vsub.s32 %v8244, %v8327
        %v8329 = vrot.slane %v7253, %v8328
        %v8330 = vsel %vm8249, %v8329, %v8325
        %v8331 = vlaneseq
        %v8332 = vshrl.u32 %v8331, 7
        %v8333 = vsub.s32 %v8251, %v8332
        %v8334 = vrot.slane %v7256, %v8333
        %v8335 = vsel %vm8256, %v8334, %v8330
        %v8336 = vlaneseq
        %v8337 = vshrl.u32 %v8336, 7
        %v8338 = vsub.s32 %v8258, %v8337
        %v8339 = vrot.slane %v7259, %v8338
        %v8340 = vsel %vm8263, %v8339, %v8335
        %v8341 = vlaneseq
        %v8342 = vshrl.u32 %v8341, 7
        %v8343 = vsub.s32 %v8239, %v8342
        %v8344 = vrot.slane %v7262, %v8343
        %v8345 = vlaneseq
        %v8346 = vshrl.u32 %v8345, 7
        %v8347 = vsub.s32 %v8244, %v8346
        %v8348 = vrot.slane %v7265, %v8347
        %v8349 = vsel %vm8249, %v8348, %v8344
        %v8350 = vlaneseq
        %v8351 = vshrl.u32 %v8350, 7
        %v8352 = vsub.s32 %v8251, %v8351
        %v8353 = vrot.slane %v7268, %v8352
        %v8354 = vsel %vm8256, %v8353, %v8349
        %v8355 = vlaneseq
        %v8356 = vshrl.u32 %v8355, 7
        %v8357 = vsub.s32 %v8258, %v8356
        %v8358 = vrot.slane %v7271, %v8357
        %v8359 = vsel %vm8263, %v8358, %v8354
        %v8360 = vlaneseq
        %v8361 = vshrl.u32 %v8360, 7
        %v8362 = vsub.s32 %v8239, %v8361
        %v8363 = vrot.slane %v7274, %v8362
        %v8364 = vlaneseq
        %v8365 = vshrl.u32 %v8364, 7
        %v8366 = vsub.s32 %v8244, %v8365
        %v8367 = vrot.slane %v7277, %v8366
        %v8368 = vsel %vm8249, %v8367, %v8363
        %v8369 = vlaneseq
        %v8370 = vshrl.u32 %v8369, 7
        %v8371 = vsub.s32 %v8251, %v8370
        %v8372 = vrot.slane %v7280, %v8371
        %v8373 = vsel %vm8256, %v8372, %v8368
        %v8374 = vlaneseq
        %v8375 = vshrl.u32 %v8374, 7
        %v8376 = vsub.s32 %v8258, %v8375
        %v8377 = vrot.slane %v7283, %v8376
        %v8378 = vsel %vm8263, %v8377, %v8373
        %v8379 = vlaneseq
        %v8380 = vshrl.u32 %v8379, 7
        %v8381 = vsub.s32 %v8239, %v8380
        %v8382 = vrot.slane %v7286, %v8381
        %v8383 = vlaneseq
        %v8384 = vshrl.u32 %v8383, 7
        %v8385 = vsub.s32 %v8244, %v8384
        %v8386 = vrot.slane %v7289, %v8385
        %v8387 = vsel %vm8249, %v8386, %v8382
        %v8388 = vlaneseq
        %v8389 = vshrl.u32 %v8388, 7
        %v8390 = vsub.s32 %v8251, %v8389
        %v8391 = vrot.slane %v7292, %v8390
        %v8392 = vsel %vm8256, %v8391, %v8387
        %v8393 = vlaneseq
        %v8394 = vshrl.u32 %v8393, 7
        %v8395 = vsub.s32 %v8258, %v8394
        %v8396 = vrot.slane %v7295, %v8395
        %v8397 = vsel %vm8263, %v8396, %v8392
        %v8398 = vlaneseq
        %v8399 = vshrl.u32 %v8398, 7
        %v8400 = vsub.s32 %v8239, %v8399
        %v8401 = vrot.slane %v7298, %v8400
        %v8402 = vlaneseq
        %v8403 = vshrl.u32 %v8402, 7
        %v8404 = vsub.s32 %v8244, %v8403
        %v8405 = vrot.slane %v7301, %v8404
        %v8406 = vsel %vm8249, %v8405, %v8401
        %v8407 = vlaneseq
        %v8408 = vshrl.u32 %v8407, 7
        %v8409 = vsub.s32 %v8251, %v8408
        %v8410 = vrot.slane %v7304, %v8409
        %v8411 = vsel %vm8256, %v8410, %v8406
        %v8412 = vlaneseq
        %v8413 = vshrl.u32 %v8412, 7
        %v8414 = vsub.s32 %v8258, %v8413
        %v8415 = vrot.slane %v7307, %v8414
        %v8416 = vsel %vm8263, %v8415, %v8411
        %v8417 = vlaneseq
        %v8418 = vshrl.u32 %v8417, 7
        %v8419 = vsub.s32 %v8239, %v8418
        %v8420 = vrot.slane %v7310, %v8419
        %v8421 = vlaneseq
        %v8422 = vshrl.u32 %v8421, 7
        %v8423 = vsub.s32 %v8244, %v8422
        %v8424 = vrot.slane %v7313, %v8423
        %v8425 = vsel %vm8249, %v8424, %v8420
        %v8426 = vlaneseq
        %v8427 = vshrl.u32 %v8426, 7
        %v8428 = vsub.s32 %v8251, %v8427
        %v8429 = vrot.slane %v7316, %v8428
        %v8430 = vsel %vm8256, %v8429, %v8425
        %v8431 = vlaneseq
        %v8432 = vshrl.u32 %v8431, 7
        %v8433 = vsub.s32 %v8258, %v8432
        %v8434 = vrot.slane %v7319, %v8433
        %v8435 = vsel %vm8263, %v8434, %v8430
        %v8436 = vlaneseq
        %v8437 = vshrl.u32 %v8436, 7
        %v8438 = vsub.s32 %v8239, %v8437
        %v8439 = vrot.slane %v7322, %v8438
        %v8440 = vlaneseq
        %v8441 = vshrl.u32 %v8440, 7
        %v8442 = vsub.s32 %v8244, %v8441
        %v8443 = vrot.slane %v7325, %v8442
        %v8444 = vsel %vm8249, %v8443, %v8439
        %v8445 = vlaneseq
        %v8446 = vshrl.u32 %v8445, 7
        %v8447 = vsub.s32 %v8251, %v8446
        %v8448 = vrot.slane %v7328, %v8447
        %v8449 = vsel %vm8256, %v8448, %v8444
        %v8450 = vlaneseq
        %v8451 = vshrl.u32 %v8450, 7
        %v8452 = vsub.s32 %v8258, %v8451
        %v8453 = vrot.slane %v7331, %v8452
        %v8454 = vsel %vm8263, %v8453, %v8449
        %v8455 = vlaneseq
        %v8456 = vshrl.u32 %v8455, 7
        %v8457 = vsub.s32 %v8239, %v8456
        %v8458 = vrot.slane %v7334, %v8457
        %v8459 = vlaneseq
        %v8460 = vshrl.u32 %v8459, 7
        %v8461 = vsub.s32 %v8244, %v8460
        %v8462 = vrot.slane %v7337, %v8461
        %v8463 = vsel %vm8249, %v8462, %v8458
        %v8464 = vlaneseq
        %v8465 = vshrl.u32 %v8464, 7
        %v8466 = vsub.s32 %v8251, %v8465
        %v8467 = vrot.slane %v7340, %v8466
        %v8468 = vsel %vm8256, %v8467, %v8463
        %v8469 = vlaneseq
        %v8470 = vshrl.u32 %v8469, 7
        %v8471 = vsub.s32 %v8258, %v8470
        %v8472 = vrot.slane %v7343, %v8471
        %v8473 = vsel %vm8263, %v8472, %v8468
        %v8474 = vlaneseq
        %v8475 = vshrl.u32 %v8474, 7
        %v8476 = vsub.s32 %v8239, %v8475
        %v8477 = vrot.slane %v7346, %v8476
        %v8478 = vlaneseq
        %v8479 = vshrl.u32 %v8478, 7
        %v8480 = vsub.s32 %v8244, %v8479
        %v8481 = vrot.slane %v7349, %v8480
        %v8482 = vsel %vm8249, %v8481, %v8477
        %v8483 = vlaneseq
        %v8484 = vshrl.u32 %v8483, 7
        %v8485 = vsub.s32 %v8251, %v8484
        %v8486 = vrot.slane %v7352, %v8485
        %v8487 = vsel %vm8256, %v8486, %v8482
        %v8488 = vlaneseq
        %v8489 = vshrl.u32 %v8488, 7
        %v8490 = vsub.s32 %v8258, %v8489
        %v8491 = vrot.slane %v7355, %v8490
        %v8492 = vsel %vm8263, %v8491, %v8487
        %v8493 = vlaneseq
        %v8494 = vshrl.u32 %v8493, 7
        %v8495 = vsub.s32 %v8239, %v8494
        %v8496 = vrot.slane %v7358, %v8495
        %v8497 = vlaneseq
        %v8498 = vshrl.u32 %v8497, 7
        %v8499 = vsub.s32 %v8244, %v8498
        %v8500 = vrot.slane %v7361, %v8499
        %v8501 = vsel %vm8249, %v8500, %v8496
        %v8502 = vlaneseq
        %v8503 = vshrl.u32 %v8502, 7
        %v8504 = vsub.s32 %v8251, %v8503
        %v8505 = vrot.slane %v7364, %v8504
        %v8506 = vsel %vm8256, %v8505, %v8501
        %v8507 = vlaneseq
        %v8508 = vshrl.u32 %v8507, 7
        %v8509 = vsub.s32 %v8258, %v8508
        %v8510 = vrot.slane %v7367, %v8509
        %v8511 = vsel %vm8263, %v8510, %v8506
        %v8512 = vlaneseq
        %v8513 = vshrl.u32 %v8512, 7
        %v8514 = vsub.s32 %v8239, %v8513
        %v8515 = vrot.slane %v7370, %v8514
        %v8516 = vlaneseq
        %v8517 = vshrl.u32 %v8516, 7
        %v8518 = vsub.s32 %v8244, %v8517
        %v8519 = vrot.slane %v7373, %v8518
        %v8520 = vsel %vm8249, %v8519, %v8515
        %v8521 = vlaneseq
        %v8522 = vshrl.u32 %v8521, 7
        %v8523 = vsub.s32 %v8251, %v8522
        %v8524 = vrot.slane %v7376, %v8523
        %v8525 = vsel %vm8256, %v8524, %v8520
        %v8526 = vlaneseq
        %v8527 = vshrl.u32 %v8526, 7
        %v8528 = vsub.s32 %v8258, %v8527
        %v8529 = vrot.slane %v7379, %v8528
        %v8530 = vsel %vm8263, %v8529, %v8525
        %v8531 = vlaneseq
        %v8532 = vshrl.u32 %v8531, 7
        %v8533 = vsub.s32 %v8239, %v8532
        %v8534 = vrot.slane %v7382, %v8533
        %v8535 = vlaneseq
        %v8536 = vshrl.u32 %v8535, 7
        %v8537 = vsub.s32 %v8244, %v8536
        %v8538 = vrot.slane %v7385, %v8537
        %v8539 = vsel %vm8249, %v8538, %v8534
        %v8540 = vlaneseq
        %v8541 = vshrl.u32 %v8540, 7
        %v8542 = vsub.s32 %v8251, %v8541
        %v8543 = vrot.slane %v7388, %v8542
        %v8544 = vsel %vm8256, %v8543, %v8539
        %v8545 = vlaneseq
        %v8546 = vshrl.u32 %v8545, 7
        %v8547 = vsub.s32 %v8258, %v8546
        %v8548 = vrot.slane %v7391, %v8547
        %v8549 = vsel %vm8263, %v8548, %v8544
        %v8550 = vsel %vm8152, %v8283, %v8264
        %v8551 = vsel %vm8154, %v8302, %v8550
        %v8552 = vsel %vm8156, %v8321, %v8551
        %v8553 = vsel %vm8158, %v8340, %v8552
        %v8554 = vsel %vm8160, %v8359, %v8553
        %v8555 = vsel %vm8162, %v8378, %v8554
        %v8556 = vsel %vm8164, %v8397, %v8555
        %v8557 = vsel %vm8152, %v8435, %v8416
        %v8558 = vsel %vm8154, %v8454, %v8557
        %v8559 = vsel %vm8156, %v8473, %v8558
        %v8560 = vsel %vm8158, %v8492, %v8559
        %v8561 = vsel %vm8160, %v8511, %v8560
        %v8562 = vsel %vm8162, %v8530, %v8561
        %v8563 = vsel %vm8164, %v8549, %v8562
        %v8630 = vadd.s32 %v7841, 4294967232
        %v8631 = vlaneseq
        %v8632 = vshrl.u32 %v8631, 7
        %v8633 = vsub.s32 %v8630, %v8632
        %v8634 = vrot.slane %v7394, %v8633
        %v8635 = vadd.s32 %v7841, 4294967224
        %v8636 = vlaneseq
        %v8637 = vshrl.u32 %v8636, 7
        %v8638 = vsub.s32 %v8635, %v8637
        %v8639 = vrot.slane %v7397, %v8638
        %vm8640 = vcmask 654912
        %v8641 = vsel %vm8640, %v8639, %v8634
        %v8642 = vadd.s32 %v7841, 4294967216
        %v8643 = vlaneseq
        %v8644 = vshrl.u32 %v8643, 7
        %v8645 = vsub.s32 %v8642, %v8644
        %v8646 = vrot.slane %v7400, %v8645
        %vm8647 = vcmask 720512
        %v8648 = vsel %vm8647, %v8646, %v8641
        %v8649 = vadd.s32 %v7841, 4294967208
        %v8650 = vlaneseq
        %v8651 = vshrl.u32 %v8650, 7
        %v8652 = vsub.s32 %v8649, %v8651
        %v8653 = vrot.slane %v7403, %v8652
        %vm8654 = vcmask 786112
        %v8655 = vsel %vm8654, %v8653, %v8648
        %v8656 = vlaneseq
        %v8657 = vshrl.u32 %v8656, 7
        %v8658 = vsub.s32 %v8630, %v8657
        %v8659 = vrot.slane %v7406, %v8658
        %v8660 = vlaneseq
        %v8661 = vshrl.u32 %v8660, 7
        %v8662 = vsub.s32 %v8635, %v8661
        %v8663 = vrot.slane %v7409, %v8662
        %v8664 = vsel %vm8640, %v8663, %v8659
        %v8665 = vlaneseq
        %v8666 = vshrl.u32 %v8665, 7
        %v8667 = vsub.s32 %v8642, %v8666
        %v8668 = vrot.slane %v7412, %v8667
        %v8669 = vsel %vm8647, %v8668, %v8664
        %v8670 = vlaneseq
        %v8671 = vshrl.u32 %v8670, 7
        %v8672 = vsub.s32 %v8649, %v8671
        %v8673 = vrot.slane %v7415, %v8672
        %v8674 = vsel %vm8654, %v8673, %v8669
        %v8675 = vlaneseq
        %v8676 = vshrl.u32 %v8675, 7
        %v8677 = vsub.s32 %v8630, %v8676
        %v8678 = vrot.slane %v7418, %v8677
        %v8679 = vlaneseq
        %v8680 = vshrl.u32 %v8679, 7
        %v8681 = vsub.s32 %v8635, %v8680
        %v8682 = vrot.slane %v7421, %v8681
        %v8683 = vsel %vm8640, %v8682, %v8678
        %v8684 = vlaneseq
        %v8685 = vshrl.u32 %v8684, 7
        %v8686 = vsub.s32 %v8642, %v8685
        %v8687 = vrot.slane %v7424, %v8686
        %v8688 = vsel %vm8647, %v8687, %v8683
        %v8689 = vlaneseq
        %v8690 = vshrl.u32 %v8689, 7
        %v8691 = vsub.s32 %v8649, %v8690
        %v8692 = vrot.slane %v7427, %v8691
        %v8693 = vsel %vm8654, %v8692, %v8688
        %v8694 = vlaneseq
        %v8695 = vshrl.u32 %v8694, 7
        %v8696 = vsub.s32 %v8630, %v8695
        %v8697 = vrot.slane %v7430, %v8696
        %v8698 = vlaneseq
        %v8699 = vshrl.u32 %v8698, 7
        %v8700 = vsub.s32 %v8635, %v8699
        %v8701 = vrot.slane %v7433, %v8700
        %v8702 = vsel %vm8640, %v8701, %v8697
        %v8703 = vlaneseq
        %v8704 = vshrl.u32 %v8703, 7
        %v8705 = vsub.s32 %v8642, %v8704
        %v8706 = vrot.slane %v7436, %v8705
        %v8707 = vsel %vm8647, %v8706, %v8702
        %v8708 = vlaneseq
        %v8709 = vshrl.u32 %v8708, 7
        %v8710 = vsub.s32 %v8649, %v8709
        %v8711 = vrot.slane %v7439, %v8710
        %v8712 = vsel %vm8654, %v8711, %v8707
        %v8713 = vlaneseq
        %v8714 = vshrl.u32 %v8713, 7
        %v8715 = vsub.s32 %v8630, %v8714
        %v8716 = vrot.slane %v7442, %v8715
        %v8717 = vlaneseq
        %v8718 = vshrl.u32 %v8717, 7
        %v8719 = vsub.s32 %v8635, %v8718
        %v8720 = vrot.slane %v7445, %v8719
        %v8721 = vsel %vm8640, %v8720, %v8716
        %v8722 = vlaneseq
        %v8723 = vshrl.u32 %v8722, 7
        %v8724 = vsub.s32 %v8642, %v8723
        %v8725 = vrot.slane %v7448, %v8724
        %v8726 = vsel %vm8647, %v8725, %v8721
        %v8727 = vlaneseq
        %v8728 = vshrl.u32 %v8727, 7
        %v8729 = vsub.s32 %v8649, %v8728
        %v8730 = vrot.slane %v7451, %v8729
        %v8731 = vsel %vm8654, %v8730, %v8726
        %v8732 = vlaneseq
        %v8733 = vshrl.u32 %v8732, 7
        %v8734 = vsub.s32 %v8630, %v8733
        %v8735 = vrot.slane %v7454, %v8734
        %v8736 = vlaneseq
        %v8737 = vshrl.u32 %v8736, 7
        %v8738 = vsub.s32 %v8635, %v8737
        %v8739 = vrot.slane %v7457, %v8738
        %v8740 = vsel %vm8640, %v8739, %v8735
        %v8741 = vlaneseq
        %v8742 = vshrl.u32 %v8741, 7
        %v8743 = vsub.s32 %v8642, %v8742
        %v8744 = vrot.slane %v7460, %v8743
        %v8745 = vsel %vm8647, %v8744, %v8740
        %v8746 = vlaneseq
        %v8747 = vshrl.u32 %v8746, 7
        %v8748 = vsub.s32 %v8649, %v8747
        %v8749 = vrot.slane %v7463, %v8748
        %v8750 = vsel %vm8654, %v8749, %v8745
        %v8751 = vlaneseq
        %v8752 = vshrl.u32 %v8751, 7
        %v8753 = vsub.s32 %v8630, %v8752
        %v8754 = vrot.slane %v7466, %v8753
        %v8755 = vlaneseq
        %v8756 = vshrl.u32 %v8755, 7
        %v8757 = vsub.s32 %v8635, %v8756
        %v8758 = vrot.slane %v7469, %v8757
        %v8759 = vsel %vm8640, %v8758, %v8754
        %v8760 = vlaneseq
        %v8761 = vshrl.u32 %v8760, 7
        %v8762 = vsub.s32 %v8642, %v8761
        %v8763 = vrot.slane %v7472, %v8762
        %v8764 = vsel %vm8647, %v8763, %v8759
        %v8765 = vlaneseq
        %v8766 = vshrl.u32 %v8765, 7
        %v8767 = vsub.s32 %v8649, %v8766
        %v8768 = vrot.slane %v7475, %v8767
        %v8769 = vsel %vm8654, %v8768, %v8764
        %v8770 = vlaneseq
        %v8771 = vshrl.u32 %v8770, 7
        %v8772 = vsub.s32 %v8630, %v8771
        %v8773 = vrot.slane %v7478, %v8772
        %v8774 = vlaneseq
        %v8775 = vshrl.u32 %v8774, 7
        %v8776 = vsub.s32 %v8635, %v8775
        %v8777 = vrot.slane %v7481, %v8776
        %v8778 = vsel %vm8640, %v8777, %v8773
        %v8779 = vlaneseq
        %v8780 = vshrl.u32 %v8779, 7
        %v8781 = vsub.s32 %v8642, %v8780
        %v8782 = vrot.slane %v7484, %v8781
        %v8783 = vsel %vm8647, %v8782, %v8778
        %v8784 = vlaneseq
        %v8785 = vshrl.u32 %v8784, 7
        %v8786 = vsub.s32 %v8649, %v8785
        %v8787 = vrot.slane %v7487, %v8786
        %v8788 = vsel %vm8654, %v8787, %v8783
        %v8789 = vlaneseq
        %v8790 = vshrl.u32 %v8789, 7
        %v8791 = vsub.s32 %v8630, %v8790
        %v8792 = vrot.slane %v7490, %v8791
        %v8793 = vlaneseq
        %v8794 = vshrl.u32 %v8793, 7
        %v8795 = vsub.s32 %v8635, %v8794
        %v8796 = vrot.slane %v7493, %v8795
        %v8797 = vsel %vm8640, %v8796, %v8792
        %v8798 = vlaneseq
        %v8799 = vshrl.u32 %v8798, 7
        %v8800 = vsub.s32 %v8642, %v8799
        %v8801 = vrot.slane %v7496, %v8800
        %v8802 = vsel %vm8647, %v8801, %v8797
        %v8803 = vlaneseq
        %v8804 = vshrl.u32 %v8803, 7
        %v8805 = vsub.s32 %v8649, %v8804
        %v8806 = vrot.slane %v7499, %v8805
        %v8807 = vsel %vm8654, %v8806, %v8802
        %v8808 = vlaneseq
        %v8809 = vshrl.u32 %v8808, 7
        %v8810 = vsub.s32 %v8630, %v8809
        %v8811 = vrot.slane %v7502, %v8810
        %v8812 = vlaneseq
        %v8813 = vshrl.u32 %v8812, 7
        %v8814 = vsub.s32 %v8635, %v8813
        %v8815 = vrot.slane %v7505, %v8814
        %v8816 = vsel %vm8640, %v8815, %v8811
        %v8817 = vlaneseq
        %v8818 = vshrl.u32 %v8817, 7
        %v8819 = vsub.s32 %v8642, %v8818
        %v8820 = vrot.slane %v7508, %v8819
        %v8821 = vsel %vm8647, %v8820, %v8816
        %v8822 = vlaneseq
        %v8823 = vshrl.u32 %v8822, 7
        %v8824 = vsub.s32 %v8649, %v8823
        %v8825 = vrot.slane %v7511, %v8824
        %v8826 = vsel %vm8654, %v8825, %v8821
        %v8827 = vlaneseq
        %v8828 = vshrl.u32 %v8827, 7
        %v8829 = vsub.s32 %v8630, %v8828
        %v8830 = vrot.slane %v7514, %v8829
        %v8831 = vlaneseq
        %v8832 = vshrl.u32 %v8831, 7
        %v8833 = vsub.s32 %v8635, %v8832
        %v8834 = vrot.slane %v7517, %v8833
        %v8835 = vsel %vm8640, %v8834, %v8830
        %v8836 = vlaneseq
        %v8837 = vshrl.u32 %v8836, 7
        %v8838 = vsub.s32 %v8642, %v8837
        %v8839 = vrot.slane %v7520, %v8838
        %v8840 = vsel %vm8647, %v8839, %v8835
        %v8841 = vlaneseq
        %v8842 = vshrl.u32 %v8841, 7
        %v8843 = vsub.s32 %v8649, %v8842
        %v8844 = vrot.slane %v7523, %v8843
        %v8845 = vsel %vm8654, %v8844, %v8840
        %v8846 = vlaneseq
        %v8847 = vshrl.u32 %v8846, 7
        %v8848 = vsub.s32 %v8630, %v8847
        %v8849 = vrot.slane %v7526, %v8848
        %v8850 = vlaneseq
        %v8851 = vshrl.u32 %v8850, 7
        %v8852 = vsub.s32 %v8635, %v8851
        %v8853 = vrot.slane %v7529, %v8852
        %v8854 = vsel %vm8640, %v8853, %v8849
        %v8855 = vlaneseq
        %v8856 = vshrl.u32 %v8855, 7
        %v8857 = vsub.s32 %v8642, %v8856
        %v8858 = vrot.slane %v7532, %v8857
        %v8859 = vsel %vm8647, %v8858, %v8854
        %v8860 = vlaneseq
        %v8861 = vshrl.u32 %v8860, 7
        %v8862 = vsub.s32 %v8649, %v8861
        %v8863 = vrot.slane %v7535, %v8862
        %v8864 = vsel %vm8654, %v8863, %v8859
        %v8865 = vlaneseq
        %v8866 = vshrl.u32 %v8865, 7
        %v8867 = vsub.s32 %v8630, %v8866
        %v8868 = vrot.slane %v7538, %v8867
        %v8869 = vlaneseq
        %v8870 = vshrl.u32 %v8869, 7
        %v8871 = vsub.s32 %v8635, %v8870
        %v8872 = vrot.slane %v7541, %v8871
        %v8873 = vsel %vm8640, %v8872, %v8868
        %v8874 = vlaneseq
        %v8875 = vshrl.u32 %v8874, 7
        %v8876 = vsub.s32 %v8642, %v8875
        %v8877 = vrot.slane %v7544, %v8876
        %v8878 = vsel %vm8647, %v8877, %v8873
        %v8879 = vlaneseq
        %v8880 = vshrl.u32 %v8879, 7
        %v8881 = vsub.s32 %v8649, %v8880
        %v8882 = vrot.slane %v7547, %v8881
        %v8883 = vsel %vm8654, %v8882, %v8878
        %v8884 = vlaneseq
        %v8885 = vshrl.u32 %v8884, 7
        %v8886 = vsub.s32 %v8630, %v8885
        %v8887 = vrot.slane %v7550, %v8886
        %v8888 = vlaneseq
        %v8889 = vshrl.u32 %v8888, 7
        %v8890 = vsub.s32 %v8635, %v8889
        %v8891 = vrot.slane %v7553, %v8890
        %v8892 = vsel %vm8640, %v8891, %v8887
        %v8893 = vlaneseq
        %v8894 = vshrl.u32 %v8893, 7
        %v8895 = vsub.s32 %v8642, %v8894
        %v8896 = vrot.slane %v7556, %v8895
        %v8897 = vsel %vm8647, %v8896, %v8892
        %v8898 = vlaneseq
        %v8899 = vshrl.u32 %v8898, 7
        %v8900 = vsub.s32 %v8649, %v8899
        %v8901 = vrot.slane %v7559, %v8900
        %v8902 = vsel %vm8654, %v8901, %v8897
        %v8903 = vlaneseq
        %v8904 = vshrl.u32 %v8903, 7
        %v8905 = vsub.s32 %v8630, %v8904
        %v8906 = vrot.slane %v7562, %v8905
        %v8907 = vlaneseq
        %v8908 = vshrl.u32 %v8907, 7
        %v8909 = vsub.s32 %v8635, %v8908
        %v8910 = vrot.slane %v7565, %v8909
        %v8911 = vsel %vm8640, %v8910, %v8906
        %v8912 = vlaneseq
        %v8913 = vshrl.u32 %v8912, 7
        %v8914 = vsub.s32 %v8642, %v8913
        %v8915 = vrot.slane %v7568, %v8914
        %v8916 = vsel %vm8647, %v8915, %v8911
        %v8917 = vlaneseq
        %v8918 = vshrl.u32 %v8917, 7
        %v8919 = vsub.s32 %v8649, %v8918
        %v8920 = vrot.slane %v7571, %v8919
        %v8921 = vsel %vm8654, %v8920, %v8916
        %v8922 = vlaneseq
        %v8923 = vshrl.u32 %v8922, 7
        %v8924 = vsub.s32 %v8630, %v8923
        %v8925 = vrot.slane %v7574, %v8924
        %v8926 = vlaneseq
        %v8927 = vshrl.u32 %v8926, 7
        %v8928 = vsub.s32 %v8635, %v8927
        %v8929 = vrot.slane %v7577, %v8928
        %v8930 = vsel %vm8640, %v8929, %v8925
        %v8931 = vlaneseq
        %v8932 = vshrl.u32 %v8931, 7
        %v8933 = vsub.s32 %v8642, %v8932
        %v8934 = vrot.slane %v7580, %v8933
        %v8935 = vsel %vm8647, %v8934, %v8930
        %v8936 = vlaneseq
        %v8937 = vshrl.u32 %v8936, 7
        %v8938 = vsub.s32 %v8649, %v8937
        %v8939 = vrot.slane %v7583, %v8938
        %v8940 = vsel %vm8654, %v8939, %v8935
        %v8941 = vsel %vm8152, %v8674, %v8655
        %v8942 = vsel %vm8154, %v8693, %v8941
        %v8943 = vsel %vm8156, %v8712, %v8942
        %v8944 = vsel %vm8158, %v8731, %v8943
        %v8945 = vsel %vm8160, %v8750, %v8944
        %v8946 = vsel %vm8162, %v8769, %v8945
        %v8947 = vsel %vm8164, %v8788, %v8946
        %v8948 = vsel %vm8152, %v8826, %v8807
        %v8949 = vsel %vm8154, %v8845, %v8948
        %v8950 = vsel %vm8156, %v8864, %v8949
        %v8951 = vsel %vm8158, %v8883, %v8950
        %v8952 = vsel %vm8160, %v8902, %v8951
        %v8953 = vsel %vm8162, %v8921, %v8952
        %v8954 = vsel %vm8164, %v8940, %v8953
        %v9021 = vadd.s32 %v7841, 4294967200
        %v9022 = vlaneseq
        %v9023 = vshrl.u32 %v9022, 7
        %v9024 = vsub.s32 %v9021, %v9023
        %v9025 = vrot.slane %v7586, %v9024
        %v9026 = vadd.s32 %v7841, 4294967192
        %v9027 = vlaneseq
        %v9028 = vshrl.u32 %v9027, 7
        %v9029 = vsub.s32 %v9026, %v9028
        %v9030 = vrot.slane %v7589, %v9029
        %vm9031 = vcmask 917312
        %v9032 = vsel %vm9031, %v9030, %v9025
        %v9033 = vadd.s32 %v7841, 4294967184
        %v9034 = vlaneseq
        %v9035 = vshrl.u32 %v9034, 7
        %v9036 = vsub.s32 %v9033, %v9035
        %v9037 = vrot.slane %v7592, %v9036
        %vm9038 = vcmask 982912
        %v9039 = vsel %vm9038, %v9037, %v9032
        %v9040 = vadd.s32 %v7841, 4294967176
        %v9041 = vlaneseq
        %v9042 = vshrl.u32 %v9041, 7
        %v9043 = vsub.s32 %v9040, %v9042
        %v9044 = vrot.slane %v7595, %v9043
        %vm9045 = vcmask 1048512
        %v9046 = vsel %vm9045, %v9044, %v9039
        %v9047 = vlaneseq
        %v9048 = vshrl.u32 %v9047, 7
        %v9049 = vsub.s32 %v9021, %v9048
        %v9050 = vrot.slane %v7598, %v9049
        %v9051 = vlaneseq
        %v9052 = vshrl.u32 %v9051, 7
        %v9053 = vsub.s32 %v9026, %v9052
        %v9054 = vrot.slane %v7601, %v9053
        %v9055 = vsel %vm9031, %v9054, %v9050
        %v9056 = vlaneseq
        %v9057 = vshrl.u32 %v9056, 7
        %v9058 = vsub.s32 %v9033, %v9057
        %v9059 = vrot.slane %v7604, %v9058
        %v9060 = vsel %vm9038, %v9059, %v9055
        %v9061 = vlaneseq
        %v9062 = vshrl.u32 %v9061, 7
        %v9063 = vsub.s32 %v9040, %v9062
        %v9064 = vrot.slane %v7607, %v9063
        %v9065 = vsel %vm9045, %v9064, %v9060
        %v9066 = vlaneseq
        %v9067 = vshrl.u32 %v9066, 7
        %v9068 = vsub.s32 %v9021, %v9067
        %v9069 = vrot.slane %v7610, %v9068
        %v9070 = vlaneseq
        %v9071 = vshrl.u32 %v9070, 7
        %v9072 = vsub.s32 %v9026, %v9071
        %v9073 = vrot.slane %v7613, %v9072
        %v9074 = vsel %vm9031, %v9073, %v9069
        %v9075 = vlaneseq
        %v9076 = vshrl.u32 %v9075, 7
        %v9077 = vsub.s32 %v9033, %v9076
        %v9078 = vrot.slane %v7616, %v9077
        %v9079 = vsel %vm9038, %v9078, %v9074
        %v9080 = vlaneseq
        %v9081 = vshrl.u32 %v9080, 7
        %v9082 = vsub.s32 %v9040, %v9081
        %v9083 = vrot.slane %v7619, %v9082
        %v9084 = vsel %vm9045, %v9083, %v9079
        %v9085 = vlaneseq
        %v9086 = vshrl.u32 %v9085, 7
        %v9087 = vsub.s32 %v9021, %v9086
        %v9088 = vrot.slane %v7622, %v9087
        %v9089 = vlaneseq
        %v9090 = vshrl.u32 %v9089, 7
        %v9091 = vsub.s32 %v9026, %v9090
        %v9092 = vrot.slane %v7625, %v9091
        %v9093 = vsel %vm9031, %v9092, %v9088
        %v9094 = vlaneseq
        %v9095 = vshrl.u32 %v9094, 7
        %v9096 = vsub.s32 %v9033, %v9095
        %v9097 = vrot.slane %v7628, %v9096
        %v9098 = vsel %vm9038, %v9097, %v9093
        %v9099 = vlaneseq
        %v9100 = vshrl.u32 %v9099, 7
        %v9101 = vsub.s32 %v9040, %v9100
        %v9102 = vrot.slane %v7631, %v9101
        %v9103 = vsel %vm9045, %v9102, %v9098
        %v9104 = vlaneseq
        %v9105 = vshrl.u32 %v9104, 7
        %v9106 = vsub.s32 %v9021, %v9105
        %v9107 = vrot.slane %v7634, %v9106
        %v9108 = vlaneseq
        %v9109 = vshrl.u32 %v9108, 7
        %v9110 = vsub.s32 %v9026, %v9109
        %v9111 = vrot.slane %v7637, %v9110
        %v9112 = vsel %vm9031, %v9111, %v9107
        %v9113 = vlaneseq
        %v9114 = vshrl.u32 %v9113, 7
        %v9115 = vsub.s32 %v9033, %v9114
        %v9116 = vrot.slane %v7640, %v9115
        %v9117 = vsel %vm9038, %v9116, %v9112
        %v9118 = vlaneseq
        %v9119 = vshrl.u32 %v9118, 7
        %v9120 = vsub.s32 %v9040, %v9119
        %v9121 = vrot.slane %v7643, %v9120
        %v9122 = vsel %vm9045, %v9121, %v9117
        %v9123 = vlaneseq
        %v9124 = vshrl.u32 %v9123, 7
        %v9125 = vsub.s32 %v9021, %v9124
        %v9126 = vrot.slane %v7646, %v9125
        %v9127 = vlaneseq
        %v9128 = vshrl.u32 %v9127, 7
        %v9129 = vsub.s32 %v9026, %v9128
        %v9130 = vrot.slane %v7649, %v9129
        %v9131 = vsel %vm9031, %v9130, %v9126
        %v9132 = vlaneseq
        %v9133 = vshrl.u32 %v9132, 7
        %v9134 = vsub.s32 %v9033, %v9133
        %v9135 = vrot.slane %v7652, %v9134
        %v9136 = vsel %vm9038, %v9135, %v9131
        %v9137 = vlaneseq
        %v9138 = vshrl.u32 %v9137, 7
        %v9139 = vsub.s32 %v9040, %v9138
        %v9140 = vrot.slane %v7655, %v9139
        %v9141 = vsel %vm9045, %v9140, %v9136
        %v9142 = vlaneseq
        %v9143 = vshrl.u32 %v9142, 7
        %v9144 = vsub.s32 %v9021, %v9143
        %v9145 = vrot.slane %v7658, %v9144
        %v9146 = vlaneseq
        %v9147 = vshrl.u32 %v9146, 7
        %v9148 = vsub.s32 %v9026, %v9147
        %v9149 = vrot.slane %v7661, %v9148
        %v9150 = vsel %vm9031, %v9149, %v9145
        %v9151 = vlaneseq
        %v9152 = vshrl.u32 %v9151, 7
        %v9153 = vsub.s32 %v9033, %v9152
        %v9154 = vrot.slane %v7664, %v9153
        %v9155 = vsel %vm9038, %v9154, %v9150
        %v9156 = vlaneseq
        %v9157 = vshrl.u32 %v9156, 7
        %v9158 = vsub.s32 %v9040, %v9157
        %v9159 = vrot.slane %v7667, %v9158
        %v9160 = vsel %vm9045, %v9159, %v9155
        %v9161 = vlaneseq
        %v9162 = vshrl.u32 %v9161, 7
        %v9163 = vsub.s32 %v9021, %v9162
        %v9164 = vrot.slane %v7670, %v9163
        %v9165 = vlaneseq
        %v9166 = vshrl.u32 %v9165, 7
        %v9167 = vsub.s32 %v9026, %v9166
        %v9168 = vrot.slane %v7673, %v9167
        %v9169 = vsel %vm9031, %v9168, %v9164
        %v9170 = vlaneseq
        %v9171 = vshrl.u32 %v9170, 7
        %v9172 = vsub.s32 %v9033, %v9171
        %v9173 = vrot.slane %v7676, %v9172
        %v9174 = vsel %vm9038, %v9173, %v9169
        %v9175 = vlaneseq
        %v9176 = vshrl.u32 %v9175, 7
        %v9177 = vsub.s32 %v9040, %v9176
        %v9178 = vrot.slane %v7679, %v9177
        %v9179 = vsel %vm9045, %v9178, %v9174
        %v9180 = vlaneseq
        %v9181 = vshrl.u32 %v9180, 7
        %v9182 = vsub.s32 %v9021, %v9181
        %v9183 = vrot.slane %v7682, %v9182
        %v9184 = vlaneseq
        %v9185 = vshrl.u32 %v9184, 7
        %v9186 = vsub.s32 %v9026, %v9185
        %v9187 = vrot.slane %v7685, %v9186
        %v9188 = vsel %vm9031, %v9187, %v9183
        %v9189 = vlaneseq
        %v9190 = vshrl.u32 %v9189, 7
        %v9191 = vsub.s32 %v9033, %v9190
        %v9192 = vrot.slane %v7688, %v9191
        %v9193 = vsel %vm9038, %v9192, %v9188
        %v9194 = vlaneseq
        %v9195 = vshrl.u32 %v9194, 7
        %v9196 = vsub.s32 %v9040, %v9195
        %v9197 = vrot.slane %v7691, %v9196
        %v9198 = vsel %vm9045, %v9197, %v9193
        %v9199 = vlaneseq
        %v9200 = vshrl.u32 %v9199, 7
        %v9201 = vsub.s32 %v9021, %v9200
        %v9202 = vrot.slane %v7694, %v9201
        %v9203 = vlaneseq
        %v9204 = vshrl.u32 %v9203, 7
        %v9205 = vsub.s32 %v9026, %v9204
        %v9206 = vrot.slane %v7697, %v9205
        %v9207 = vsel %vm9031, %v9206, %v9202
        %v9208 = vlaneseq
        %v9209 = vshrl.u32 %v9208, 7
        %v9210 = vsub.s32 %v9033, %v9209
        %v9211 = vrot.slane %v7700, %v9210
        %v9212 = vsel %vm9038, %v9211, %v9207
        %v9213 = vlaneseq
        %v9214 = vshrl.u32 %v9213, 7
        %v9215 = vsub.s32 %v9040, %v9214
        %v9216 = vrot.slane %v7703, %v9215
        %v9217 = vsel %vm9045, %v9216, %v9212
        %v9218 = vlaneseq
        %v9219 = vshrl.u32 %v9218, 7
        %v9220 = vsub.s32 %v9021, %v9219
        %v9221 = vrot.slane %v7706, %v9220
        %v9222 = vlaneseq
        %v9223 = vshrl.u32 %v9222, 7
        %v9224 = vsub.s32 %v9026, %v9223
        %v9225 = vrot.slane %v7709, %v9224
        %v9226 = vsel %vm9031, %v9225, %v9221
        %v9227 = vlaneseq
        %v9228 = vshrl.u32 %v9227, 7
        %v9229 = vsub.s32 %v9033, %v9228
        %v9230 = vrot.slane %v7712, %v9229
        %v9231 = vsel %vm9038, %v9230, %v9226
        %v9232 = vlaneseq
        %v9233 = vshrl.u32 %v9232, 7
        %v9234 = vsub.s32 %v9040, %v9233
        %v9235 = vrot.slane %v7715, %v9234
        %v9236 = vsel %vm9045, %v9235, %v9231
        %v9237 = vlaneseq
        %v9238 = vshrl.u32 %v9237, 7
        %v9239 = vsub.s32 %v9021, %v9238
        %v9240 = vrot.slane %v7718, %v9239
        %v9241 = vlaneseq
        %v9242 = vshrl.u32 %v9241, 7
        %v9243 = vsub.s32 %v9026, %v9242
        %v9244 = vrot.slane %v7721, %v9243
        %v9245 = vsel %vm9031, %v9244, %v9240
        %v9246 = vlaneseq
        %v9247 = vshrl.u32 %v9246, 7
        %v9248 = vsub.s32 %v9033, %v9247
        %v9249 = vrot.slane %v7724, %v9248
        %v9250 = vsel %vm9038, %v9249, %v9245
        %v9251 = vlaneseq
        %v9252 = vshrl.u32 %v9251, 7
        %v9253 = vsub.s32 %v9040, %v9252
        %v9254 = vrot.slane %v7727, %v9253
        %v9255 = vsel %vm9045, %v9254, %v9250
        %v9256 = vlaneseq
        %v9257 = vshrl.u32 %v9256, 7
        %v9258 = vsub.s32 %v9021, %v9257
        %v9259 = vrot.slane %v7730, %v9258
        %v9260 = vlaneseq
        %v9261 = vshrl.u32 %v9260, 7
        %v9262 = vsub.s32 %v9026, %v9261
        %v9263 = vrot.slane %v7733, %v9262
        %v9264 = vsel %vm9031, %v9263, %v9259
        %v9265 = vlaneseq
        %v9266 = vshrl.u32 %v9265, 7
        %v9267 = vsub.s32 %v9033, %v9266
        %v9268 = vrot.slane %v7736, %v9267
        %v9269 = vsel %vm9038, %v9268, %v9264
        %v9270 = vlaneseq
        %v9271 = vshrl.u32 %v9270, 7
        %v9272 = vsub.s32 %v9040, %v9271
        %v9273 = vrot.slane %v7739, %v9272
        %v9274 = vsel %vm9045, %v9273, %v9269
        %v9275 = vlaneseq
        %v9276 = vshrl.u32 %v9275, 7
        %v9277 = vsub.s32 %v9021, %v9276
        %v9278 = vrot.slane %v7742, %v9277
        %v9279 = vlaneseq
        %v9280 = vshrl.u32 %v9279, 7
        %v9281 = vsub.s32 %v9026, %v9280
        %v9282 = vrot.slane %v7745, %v9281
        %v9283 = vsel %vm9031, %v9282, %v9278
        %v9284 = vlaneseq
        %v9285 = vshrl.u32 %v9284, 7
        %v9286 = vsub.s32 %v9033, %v9285
        %v9287 = vrot.slane %v7748, %v9286
        %v9288 = vsel %vm9038, %v9287, %v9283
        %v9289 = vlaneseq
        %v9290 = vshrl.u32 %v9289, 7
        %v9291 = vsub.s32 %v9040, %v9290
        %v9292 = vrot.slane %v7751, %v9291
        %v9293 = vsel %vm9045, %v9292, %v9288
        %v9294 = vlaneseq
        %v9295 = vshrl.u32 %v9294, 7
        %v9296 = vsub.s32 %v9021, %v9295
        %v9297 = vrot.slane %v7754, %v9296
        %v9298 = vlaneseq
        %v9299 = vshrl.u32 %v9298, 7
        %v9300 = vsub.s32 %v9026, %v9299
        %v9301 = vrot.slane %v7757, %v9300
        %v9302 = vsel %vm9031, %v9301, %v9297
        %v9303 = vlaneseq
        %v9304 = vshrl.u32 %v9303, 7
        %v9305 = vsub.s32 %v9033, %v9304
        %v9306 = vrot.slane %v7760, %v9305
        %v9307 = vsel %vm9038, %v9306, %v9302
        %v9308 = vlaneseq
        %v9309 = vshrl.u32 %v9308, 7
        %v9310 = vsub.s32 %v9040, %v9309
        %v9311 = vrot.slane %v7763, %v9310
        %v9312 = vsel %vm9045, %v9311, %v9307
        %v9313 = vlaneseq
        %v9314 = vshrl.u32 %v9313, 7
        %v9315 = vsub.s32 %v9021, %v9314
        %v9316 = vrot.slane %v7766, %v9315
        %v9317 = vlaneseq
        %v9318 = vshrl.u32 %v9317, 7
        %v9319 = vsub.s32 %v9026, %v9318
        %v9320 = vrot.slane %v7769, %v9319
        %v9321 = vsel %vm9031, %v9320, %v9316
        %v9322 = vlaneseq
        %v9323 = vshrl.u32 %v9322, 7
        %v9324 = vsub.s32 %v9033, %v9323
        %v9325 = vrot.slane %v7772, %v9324
        %v9326 = vsel %vm9038, %v9325, %v9321
        %v9327 = vlaneseq
        %v9328 = vshrl.u32 %v9327, 7
        %v9329 = vsub.s32 %v9040, %v9328
        %v9330 = vrot.slane %v7775, %v9329
        %v9331 = vsel %vm9045, %v9330, %v9326
        %v9332 = vsel %vm8152, %v9065, %v9046
        %v9333 = vsel %vm8154, %v9084, %v9332
        %v9334 = vsel %vm8156, %v9103, %v9333
        %v9335 = vsel %vm8158, %v9122, %v9334
        %v9336 = vsel %vm8160, %v9141, %v9335
        %v9337 = vsel %vm8162, %v9160, %v9336
        %v9338 = vsel %vm8164, %v9179, %v9337
        %v9339 = vsel %vm8152, %v9217, %v9198
        %v9340 = vsel %vm8154, %v9236, %v9339
        %v9341 = vsel %vm8156, %v9255, %v9340
        %v9342 = vsel %vm8158, %v9274, %v9341
        %v9343 = vsel %vm8160, %v9293, %v9342
        %v9344 = vsel %vm8162, %v9312, %v9343
        %v9345 = vsel %vm8164, %v9331, %v9344
        %v9348 = vsel %vm3223, %v8165, %v8556
        %v9349 = vsel %vm3223, %v8172, %v8563
        %vm9350 = vcmask 523264
        %v9351 = vsel %vm9350, %v9348, %v8947
        %v9352 = vsel %vm9350, %v9349, %v8954
        %vm9353 = vcmask 785408
        %v9354 = vsel %vm9353, %v9351, %v9338
        %v9355 = vsel %vm9353, %v9352, %v9345
        %v9356 = vld [vmem:[#allocation7] sm:$0xff]
        %v9357 = vld [vmem:[#allocation7 + $0x8] sm:$0xff]
        %v9358 = vld [vmem:[#allocation7 + $0x10] sm:$0xff]
        %v9359 = vld [vmem:[#allocation7 + $0x18] sm:$0xff]
        %v9360 = vld [vmem:[#allocation7 + $0x20] sm:$0xff]
        %v9361 = vld [vmem:[#allocation7 + $0x28] sm:$0xff]
        %v9362 = vld [vmem:[#allocation7 + $0x30] sm:$0xff]
        %v9363 = vld [vmem:[#allocation7 + $0x38] sm:$0xff]
        %v9364 = vld [vmem:[#allocation7 + $0x40] sm:$0xff]
        %v9365 = vld [vmem:[#allocation7 + $0x48] sm:$0xff]
        %v9366 = vld [vmem:[#allocation7 + $0x50] sm:$0xff]
        %v9367 = vld [vmem:[#allocation7 + $0x58] sm:$0xff]
        %v9368 = vld [vmem:[#allocation7 + $0x60] sm:$0xff]
        %v9369 = vld [vmem:[#allocation7 + $0x68] sm:$0xff]
        %v9370 = vld [vmem:[#allocation7 + $0x70] sm:$0xff]
        %v9371 = vld [vmem:[#allocation7 + $0x78] sm:$0xff]
        %v9372 = vld [vmem:[%s5] sm:$0x1]
        %v9374 = vlaneseq
        %v9375 = vshrl.u32 %v9374, 7
        %v9376 = vsub.s32 0, %v9375
        %v9377 = vrot.slane %v9372, %v9376
        %9379 = vmatprep.subr.mxu0 0.0
        %9380 = vmatpush1.msra.mxu0 %v9371
        %9381 = vmatprep.subr.mxu0 0.0
        %9382 = vmatpush1.msra.mxu0 %v9370
        %9383 = vmatprep.subr.mxu0 0.0
        %9384 = vmatpush1.msra.mxu0 %v9369
        %9385 = vmatprep.subr.mxu0 0.0
        %9386 = vmatpush1.msra.mxu0 %v9368
        %9387 = vmatprep.subr.mxu0 0.0
        %9388 = vmatpush1.msra.mxu0 %v9367
        %9389 = vmatprep.subr.mxu0 0.0
        %9390 = vmatpush1.msra.mxu0 %v9366
        %9391 = vmatprep.subr.mxu0 0.0
        %9392 = vmatpush1.msra.mxu0 %v9365
        %9393 = vmatprep.subr.mxu0 0.0
        %9394 = vmatpush1.msra.mxu0 %v9364
        %9395 = vmatprep.subr.mxu0 0.0
        %9396 = vmatpush1.msra.mxu0 %v9363
        %9397 = vmatprep.subr.mxu0 0.0
        %9398 = vmatpush1.msra.mxu0 %v9362
        %9399 = vmatprep.subr.mxu0 0.0
        %9400 = vmatpush1.msra.mxu0 %v9361
        %9401 = vmatprep.subr.mxu0 0.0
        %9402 = vmatpush1.msra.mxu0 %v9360
        %9403 = vmatprep.subr.mxu0 0.0
        %9404 = vmatpush1.msra.mxu0 %v9359
        %9405 = vmatprep.subr.mxu0 0.0
        %9406 = vmatpush1.msra.mxu0 %v9358
        %9407 = vmatprep.subr.mxu0 0.0
        %9408 = vmatpush1.msra.mxu0 %v9357
        %9409 = vmatprep.subr.mxu0 0.0
        %9410 = vmatpush1.msra.mxu0 %v9356
        %9411 = vmatprep.subr.mxu0 0.0
        %9412 = vmatpush2.msra.mxu0 0.0
        %9413 = vmatprep.subr.mxu0 0.0
        %9414 = vmatpush2.msra.mxu0 0.0
        %9415 = vmatprep.subr.mxu0 0.0
        %9416 = vmatpush2.msra.mxu0 0.0
        %9417 = vmatprep.subr.mxu0 0.0
        %9418 = vmatpush2.msra.mxu0 0.0
        %9419 = vmatprep.subr.mxu0 0.0
        %9420 = vmatpush2.msra.mxu0 0.0
        %9421 = vmatprep.subr.mxu0 0.0
        %9422 = vmatpush2.msra.mxu0 0.0
        %9423 = vmatprep.subr.mxu0 0.0
        %9424 = vmatpush2.msra.mxu0 0.0
        %9425 = vmatprep.subr.mxu0 0.0
        %9426 = vmatpush2.msra.mxu0 0.0
        %9427 = vmatprep.subr.mxu0 0.0
        %9428 = vmatpush2.msra.mxu0 0.0
        %9429 = vmatprep.subr.mxu0 0.0
        %9430 = vmatpush2.msra.mxu0 0.0
        %9431 = vmatprep.subr.mxu0 0.0
        %9432 = vmatpush2.msra.mxu0 0.0
        %9433 = vmatprep.subr.mxu0 0.0
        %9434 = vmatpush2.msra.mxu0 0.0
        %9435 = vmatprep.subr.mxu0 0.0
        %9436 = vmatpush2.msra.mxu0 0.0
        %9437 = vmatprep.subr.mxu0 0.0
        %9438 = vmatpush2.msra.mxu0 0.0
        %9439 = vmatprep.subr.mxu0 0.0
        %9440 = vmatpush2.msra.mxu0 0.0
        %9441 = vmatprep.subr.mxu0 0.0
        %9442 = vmatpush2.msra.mxu0 0.0
        %9443 = vmatprep.mubr.f32.mxu0 0.0
        %9444 = vmatmul.mubr.f32.gmra.mxu0 %v9354
        %v9445 = vpop.f32.mrf.mxu0
        %v9446 = vadd.f32 %v9377, %v9445
        %v9447 = vpop.f32.mrf.mxu0
        %9448 = vmatprep.mubr.f32.mxu0 0.0
        %9449 = vmatmul.mubr.f32.gmra.mxu0 %v9355
        %v9450 = vpop.f32.mrf.mxu0
        %v9451 = vadd.f32 %v9377, %v9450
        %v9452 = vpop.f32.mrf.mxu0
        %9453 = vdwg.mxu0
        %v9454 = vadd.f32 %v492, %v9446
        %v9455 = vadd.f32 %v493, %v9451
        %v9456 = vld [vmem:[%s6] sm:$0x1]
        %v9457 = vld [vmem:[%s7] sm:$0x1]
        %9458 = vadd.xlane.f32.xlu0 %v9454
        %v9459 = vpop.xlane.xlu0 %9458
        %9460 = vadd.xlane.f32.xlu0 %v9455
        %v9461 = vpop.xlane.xlu0 %9460
        %v9462 = vmul.f32 %v9459, %v500
        %v9463 = vmul.f32 %v9461, %v500
        %v9464 = vsub.f32 %v9454, %v9462
        %v9465 = vsub.f32 %v9455, %v9463
        %v9466 = vmul.f32 %v9464, %v9464
        %v9467 = vmul.f32 %v9465, %v9465
        %9468 = vadd.xlane.f32.xlu0 %v9466
        %v9469 = vpop.xlane.xlu0 %9468
        %9470 = vadd.xlane.f32.xlu0 %v9467
        %v9471 = vpop.xlane.xlu0 %9470
        %v9472 = vmul.f32 %v9469, %v500
        %v9473 = vmul.f32 %v9471, %v500
        %v9474 = vadd.f32 %v9472, 1e-05
        %v9475 = vadd.f32 %v9473, 1e-05
        %v9476 = vrsqrt.pop %v9474
        %v9477 = vrsqrt.pop %v9475
        %v9478 = vmul.f32 %v9464, %v9476
        %v9479 = vmul.f32 %v9465, %v9477
        %v9481 = vlaneseq
        %v9482 = vshrl.u32 %v9481, 7
        %v9483 = vsub.s32 0, %v9482
        %v9484 = vrot.slane %v9456, %v9483
        %v9486 = vmul.f32 %v9478, %v9484
        %v9487 = vmul.f32 %v9479, %v9484
        %v9489 = vlaneseq
        %v9490 = vshrl.u32 %v9489, 7
        %v9491 = vsub.s32 0, %v9490
        %v9492 = vrot.slane %v9457, %v9491
        %v9494 = vadd.f32 %v9486, %v9492
        %v9495 = vadd.f32 %v9487, %v9492
        %v9496 = vld [vmem:[#allocation8] sm:$0xff]
        %v9497 = vld [vmem:[#allocation8 + $0x8] sm:$0xff]
        %v9498 = vld [vmem:[#allocation8 + $0x10] sm:$0xff]
        %v9499 = vld [vmem:[#allocation8 + $0x18] sm:$0xff]
        %v9500 = vld [vmem:[#allocation8 + $0x20] sm:$0xff]
        %v9501 = vld [vmem:[#allocation8 + $0x28] sm:$0xff]
        %v9502 = vld [vmem:[#allocation8 + $0x30] sm:$0xff]
        %v9503 = vld [vmem:[#allocation8 + $0x38] sm:$0xff]
        %v9504 = vld [vmem:[#allocation8 + $0x40] sm:$0xff]
        %v9505 = vld [vmem:[#allocation8 + $0x48] sm:$0xff]
        %v9506 = vld [vmem:[#allocation8 + $0x50] sm:$0xff]
        %v9507 = vld [vmem:[#allocation8 + $0x58] sm:$0xff]
        %v9508 = vld [vmem:[#allocation8 + $0x60] sm:$0xff]
        %v9509 = vld [vmem:[#allocation8 + $0x68] sm:$0xff]
        %v9510 = vld [vmem:[#allocation8 + $0x70] sm:$0xff]
        %v9511 = vld [vmem:[#allocation8 + $0x78] sm:$0xff]
        %v9512 = vld [vmem:[#allocation8 + $0x80] sm:$0xff]
        %v9513 = vld [vmem:[#allocation8 + $0x88] sm:$0xff]
        %v9514 = vld [vmem:[#allocation8 + $0x90] sm:$0xff]
        %v9515 = vld [vmem:[#allocation8 + $0x98] sm:$0xff]
        %v9516 = vld [vmem:[#allocation8 + $0xa0] sm:$0xff]
        %v9517 = vld [vmem:[#allocation8 + $0xa8] sm:$0xff]
        %v9518 = vld [vmem:[#allocation8 + $0xb0] sm:$0xff]
        %v9519 = vld [vmem:[#allocation8 + $0xb8] sm:$0xff]
        %v9520 = vld [vmem:[#allocation8 + $0xc0] sm:$0xff]
        %v9521 = vld [vmem:[#allocation8 + $0xc8] sm:$0xff]
        %v9522 = vld [vmem:[#allocation8 + $0xd0] sm:$0xff]
        %v9523 = vld [vmem:[#allocation8 + $0xd8] sm:$0xff]
        %v9524 = vld [vmem:[#allocation8 + $0xe0] sm:$0xff]
        %v9525 = vld [vmem:[#allocation8 + $0xe8] sm:$0xff]
        %v9526 = vld [vmem:[#allocation8 + $0xf0] sm:$0xff]
        %v9527 = vld [vmem:[#allocation8 + $0xf8] sm:$0xff]
        %v9528 = vld [vmem:[#allocation8 + $0x100] sm:$0xff]
        %v9529 = vld [vmem:[#allocation8 + $0x108] sm:$0xff]
        %v9530 = vld [vmem:[#allocation8 + $0x110] sm:$0xff]
        %v9531 = vld [vmem:[#allocation8 + $0x118] sm:$0xff]
        %v9532 = vld [vmem:[#allocation8 + $0x120] sm:$0xff]
        %v9533 = vld [vmem:[#allocation8 + $0x128] sm:$0xff]
        %v9534 = vld [vmem:[#allocation8 + $0x130] sm:$0xff]
        %v9535 = vld [vmem:[#allocation8 + $0x138] sm:$0xff]
        %v9536 = vld [vmem:[#allocation8 + $0x140] sm:$0xff]
        %v9537 = vld [vmem:[#allocation8 + $0x148] sm:$0xff]
        %v9538 = vld [vmem:[#allocation8 + $0x150] sm:$0xff]
        %v9539 = vld [vmem:[#allocation8 + $0x158] sm:$0xff]
        %v9540 = vld [vmem:[#allocation8 + $0x160] sm:$0xff]
        %v9541 = vld [vmem:[#allocation8 + $0x168] sm:$0xff]
        %v9542 = vld [vmem:[#allocation8 + $0x170] sm:$0xff]
        %v9543 = vld [vmem:[#allocation8 + $0x178] sm:$0xff]
        %v9544 = vld [vmem:[#allocation8 + $0x180] sm:$0xff]
        %v9545 = vld [vmem:[#allocation8 + $0x188] sm:$0xff]
        %v9546 = vld [vmem:[#allocation8 + $0x190] sm:$0xff]
        %v9547 = vld [vmem:[#allocation8 + $0x198] sm:$0xff]
        %v9548 = vld [vmem:[#allocation8 + $0x1a0] sm:$0xff]
        %v9549 = vld [vmem:[#allocation8 + $0x1a8] sm:$0xff]
        %v9550 = vld [vmem:[#allocation8 + $0x1b0] sm:$0xff]
        %v9551 = vld [vmem:[#allocation8 + $0x1b8] sm:$0xff]
        %v9552 = vld [vmem:[#allocation8 + $0x1c0] sm:$0xff]
        %v9553 = vld [vmem:[#allocation8 + $0x1c8] sm:$0xff]
        %v9554 = vld [vmem:[#allocation8 + $0x1d0] sm:$0xff]
        %v9555 = vld [vmem:[#allocation8 + $0x1d8] sm:$0xff]
        %v9556 = vld [vmem:[#allocation8 + $0x1e0] sm:$0xff]
        %v9557 = vld [vmem:[#allocation8 + $0x1e8] sm:$0xff]
        %v9558 = vld [vmem:[#allocation8 + $0x1f0] sm:$0xff]
        %v9559 = vld [vmem:[#allocation8 + $0x1f8] sm:$0xff]
        %v9560 = vld [vmem:[%s9] sm:$0xf]
        %v9562 = vlaneseq
        %v9563 = vshrl.u32 %v9562, 7
        %v9564 = vsub.s32 0, %v9563
        %v9565 = vrot.slane %v9560, %v9564
        %v9566 = vlaneseq
        %v9567 = vshrl.u32 %v9566, 7
        %v9568 = vsub.s32 1, %v9567
        %v9569 = vrot.slane %v9560, %v9568
        %v9570 = vlaneseq
        %v9571 = vshrl.u32 %v9570, 7
        %v9572 = vsub.s32 2, %v9571
        %v9573 = vrot.slane %v9560, %v9572
        %v9574 = vlaneseq
        %v9575 = vshrl.u32 %v9574, 7
        %v9576 = vsub.s32 3, %v9575
        %v9577 = vrot.slane %v9560, %v9576
        %9582 = vmatprep.subr.mxu0 %v9557
        %9583 = vmatpush1.msra.mxu0 %v9556
        %9584 = vmatprep.subr.mxu0 %v9553
        %9585 = vmatpush1.msra.mxu0 %v9552
        %9586 = vmatprep.subr.mxu0 %v9549
        %9587 = vmatpush1.msra.mxu0 %v9548
        %9588 = vmatprep.subr.mxu0 %v9545
        %9589 = vmatpush1.msra.mxu0 %v9544
        %9590 = vmatprep.subr.mxu0 %v9541
        %9591 = vmatpush1.msra.mxu0 %v9540
        %9592 = vmatprep.subr.mxu0 %v9537
        %9593 = vmatpush1.msra.mxu0 %v9536
        %9594 = vmatprep.subr.mxu0 %v9533
        %9595 = vmatpush1.msra.mxu0 %v9532
        %9596 = vmatprep.subr.mxu0 %v9529
        %9597 = vmatpush1.msra.mxu0 %v9528
        %9598 = vmatprep.subr.mxu0 %v9525
        %9599 = vmatpush1.msra.mxu0 %v9524
        %9600 = vmatprep.subr.mxu0 %v9521
        %9601 = vmatpush1.msra.mxu0 %v9520
        %9602 = vmatprep.subr.mxu0 %v9517
        %9603 = vmatpush1.msra.mxu0 %v9516
        %9604 = vmatprep.subr.mxu0 %v9513
        %9605 = vmatpush1.msra.mxu0 %v9512
        %9606 = vmatprep.subr.mxu0 %v9509
        %9607 = vmatpush1.msra.mxu0 %v9508
        %9608 = vmatprep.subr.mxu0 %v9505
        %9609 = vmatpush1.msra.mxu0 %v9504
        %9610 = vmatprep.subr.mxu0 %v9501
        %9611 = vmatpush1.msra.mxu0 %v9500
        %9612 = vmatprep.subr.mxu0 %v9497
        %9613 = vmatpush1.msra.mxu0 %v9496
        %9614 = vmatprep.subr.mxu0 0.0
        %9615 = vmatpush2.msra.mxu0 0.0
        %9616 = vmatprep.subr.mxu0 0.0
        %9617 = vmatpush2.msra.mxu0 0.0
        %9618 = vmatprep.subr.mxu0 0.0
        %9619 = vmatpush2.msra.mxu0 0.0
        %9620 = vmatprep.subr.mxu0 0.0
        %9621 = vmatpush2.msra.mxu0 0.0
        %9622 = vmatprep.subr.mxu0 0.0
        %9623 = vmatpush2.msra.mxu0 0.0
        %9624 = vmatprep.subr.mxu0 0.0
        %9625 = vmatpush2.msra.mxu0 0.0
        %9626 = vmatprep.subr.mxu0 0.0
        %9627 = vmatpush2.msra.mxu0 0.0
        %9628 = vmatprep.subr.mxu0 0.0
        %9629 = vmatpush2.msra.mxu0 0.0
        %9630 = vmatprep.subr.mxu0 0.0
        %9631 = vmatpush2.msra.mxu0 0.0
        %9632 = vmatprep.subr.mxu0 0.0
        %9633 = vmatpush2.msra.mxu0 0.0
        %9634 = vmatprep.subr.mxu0 0.0
        %9635 = vmatpush2.msra.mxu0 0.0
        %9636 = vmatprep.subr.mxu0 0.0
        %9637 = vmatpush2.msra.mxu0 0.0
        %9638 = vmatprep.subr.mxu0 0.0
        %9639 = vmatpush2.msra.mxu0 0.0
        %9640 = vmatprep.subr.mxu0 0.0
        %9641 = vmatpush2.msra.mxu0 0.0
        %9642 = vmatprep.subr.mxu0 0.0
        %9643 = vmatpush2.msra.mxu0 0.0
        %9644 = vmatprep.subr.mxu0 0.0
        %9645 = vmatpush2.msra.mxu0 0.0
        %9646 = vmatprep.mubr.f32.mxu0 0.0
        %9647 = vmatmul.mubr.f32.gmra.mxu0 %v9494
        %v9648 = vpop.f32.mrf.mxu0
        %v9649 = vadd.f32 %v9565, %v9648
        %v9650 = vpop.f32.mrf.mxu0
        %v9651 = vadd.f32 %v9569, %v9650
        %9652 = vmatprep.mubr.f32.mxu0 0.0
        %9653 = vmatmul.mubr.f32.gmra.mxu0 %v9495
        %v9654 = vpop.f32.mrf.mxu0
        %v9655 = vadd.f32 %v9565, %v9654
        %v9656 = vpop.f32.mrf.mxu0
        %v9657 = vadd.f32 %v9569, %v9656
        %9658 = vdwg.mxu0
        %9659 = vmatprep.subr.mxu0 %v9559
        %9660 = vmatpush1.msra.mxu0 %v9558
        %9661 = vmatprep.subr.mxu0 %v9555
        %9662 = vmatpush1.msra.mxu0 %v9554
        %9663 = vmatprep.subr.mxu0 %v9551
        %9664 = vmatpush1.msra.mxu0 %v9550
        %9665 = vmatprep.subr.mxu0 %v9547
        %9666 = vmatpush1.msra.mxu0 %v9546
        %9667 = vmatprep.subr.mxu0 %v9543
        %9668 = vmatpush1.msra.mxu0 %v9542
        %9669 = vmatprep.subr.mxu0 %v9539
        %9670 = vmatpush1.msra.mxu0 %v9538
        %9671 = vmatprep.subr.mxu0 %v9535
        %9672 = vmatpush1.msra.mxu0 %v9534
        %9673 = vmatprep.subr.mxu0 %v9531
        %9674 = vmatpush1.msra.mxu0 %v9530
        %9675 = vmatprep.subr.mxu0 %v9527
        %9676 = vmatpush1.msra.mxu0 %v9526
        %9677 = vmatprep.subr.mxu0 %v9523
        %9678 = vmatpush1.msra.mxu0 %v9522
        %9679 = vmatprep.subr.mxu0 %v9519
        %9680 = vmatpush1.msra.mxu0 %v9518
        %9681 = vmatprep.subr.mxu0 %v9515
        %9682 = vmatpush1.msra.mxu0 %v9514
        %9683 = vmatprep.subr.mxu0 %v9511
        %9684 = vmatpush1.msra.mxu0 %v9510
        %9685 = vmatprep.subr.mxu0 %v9507
        %9686 = vmatpush1.msra.mxu0 %v9506
        %9687 = vmatprep.subr.mxu0 %v9503
        %9688 = vmatpush1.msra.mxu0 %v9502
        %9689 = vmatprep.subr.mxu0 %v9499
        %9690 = vmatpush1.msra.mxu0 %v9498
        %9691 = vmatprep.subr.mxu0 0.0
        %9692 = vmatpush2.msra.mxu0 0.0
        %9693 = vmatprep.subr.mxu0 0.0
        %9694 = vmatpush2.msra.mxu0 0.0
        %9695 = vmatprep.subr.mxu0 0.0
        %9696 = vmatpush2.msra.mxu0 0.0
        %9697 = vmatprep.subr.mxu0 0.0
        %9698 = vmatpush2.msra.mxu0 0.0
        %9699 = vmatprep.subr.mxu0 0.0
        %9700 = vmatpush2.msra.mxu0 0.0
        %9701 = vmatprep.subr.mxu0 0.0
        %9702 = vmatpush2.msra.mxu0 0.0
        %9703 = vmatprep.subr.mxu0 0.0
        %9704 = vmatpush2.msra.mxu0 0.0
        %9705 = vmatprep.subr.mxu0 0.0
        %9706 = vmatpush2.msra.mxu0 0.0
        %9707 = vmatprep.subr.mxu0 0.0
        %9708 = vmatpush2.msra.mxu0 0.0
        %9709 = vmatprep.subr.mxu0 0.0
        %9710 = vmatpush2.msra.mxu0 0.0
        %9711 = vmatprep.subr.mxu0 0.0
        %9712 = vmatpush2.msra.mxu0 0.0
        %9713 = vmatprep.subr.mxu0 0.0
        %9714 = vmatpush2.msra.mxu0 0.0
        %9715 = vmatprep.subr.mxu0 0.0
        %9716 = vmatpush2.msra.mxu0 0.0
        %9717 = vmatprep.subr.mxu0 0.0
        %9718 = vmatpush2.msra.mxu0 0.0
        %9719 = vmatprep.subr.mxu0 0.0
        %9720 = vmatpush2.msra.mxu0 0.0
        %9721 = vmatprep.subr.mxu0 0.0
        %9722 = vmatpush2.msra.mxu0 0.0
        %9723 = vmatprep.mubr.f32.mxu0 0.0
        %9724 = vmatmul.mubr.f32.gmra.mxu0 %v9494
        %v9725 = vpop.f32.mrf.mxu0
        %v9726 = vadd.f32 %v9573, %v9725
        %v9727 = vpop.f32.mrf.mxu0
        %v9728 = vadd.f32 %v9577, %v9727
        %9729 = vmatprep.mubr.f32.mxu0 0.0
        %9730 = vmatmul.mubr.f32.gmra.mxu0 %v9495
        %v9731 = vpop.f32.mrf.mxu0
        %v9732 = vadd.f32 %v9573, %v9731
        %v9733 = vpop.f32.mrf.mxu0
        %v9734 = vadd.f32 %v9577, %v9733
        %9735 = vdwg.mxu0
        %v9736 = vmul.f32 %v9649, 0.5
        %v9737 = vmul.f32 %v9651, 0.5
        %v9738 = vmul.f32 %v9726, 0.5
        %v9739 = vmul.f32 %v9728, 0.5
        %v9740 = vmul.f32 %v9655, 0.5
        %v9741 = vmul.f32 %v9657, 0.5
        %v9742 = vmul.f32 %v9732, 0.5
        %v9743 = vmul.f32 %v9734, 0.5
        %v9744 = vmul.f32 %v9649, 0.044715
        %v9745 = vmul.f32 %v9651, 0.044715
        %v9746 = vmul.f32 %v9726, 0.044715
        %v9747 = vmul.f32 %v9728, 0.044715
        %v9748 = vmul.f32 %v9655, 0.044715
        %v9749 = vmul.f32 %v9657, 0.044715
        %v9750 = vmul.f32 %v9732, 0.044715
        %v9751 = vmul.f32 %v9734, 0.044715
        %v9752 = vmul.f32 %v9744, %v9649
        %v9753 = vmul.f32 %v9745, %v9651
        %v9754 = vmul.f32 %v9746, %v9726
        %v9755 = vmul.f32 %v9747, %v9728
        %v9756 = vmul.f32 %v9748, %v9655
        %v9757 = vmul.f32 %v9749, %v9657
        %v9758 = vmul.f32 %v9750, %v9732
        %v9759 = vmul.f32 %v9751, %v9734
        %v9760 = vmul.f32 %v9752, %v9649
        %v9761 = vmul.f32 %v9753, %v9651
        %v9762 = vmul.f32 %v9754, %v9726
        %v9763 = vmul.f32 %v9755, %v9728
        %v9764 = vmul.f32 %v9756, %v9655
        %v9765 = vmul.f32 %v9757, %v9657
        %v9766 = vmul.f32 %v9758, %v9732
        %v9767 = vmul.f32 %v9759, %v9734
        %v9768 = vadd.f32 %v9649, %v9760
        %v9769 = vadd.f32 %v9651, %v9761
        %v9770 = vadd.f32 %v9726, %v9762
        %v9771 = vadd.f32 %v9728, %v9763
        %v9772 = vadd.f32 %v9655, %v9764
        %v9773 = vadd.f32 %v9657, %v9765
        %v9774 = vadd.f32 %v9732, %v9766
        %v9775 = vadd.f32 %v9734, %v9767
        %v9776 = vmul.f32 %v9768, 0.7978846
        %v9777 = vmul.f32 %v9769, 0.7978846
        %v9778 = vmul.f32 %v9770, 0.7978846
        %v9779 = vmul.f32 %v9771, 0.7978846
        %v9780 = vmul.f32 %v9772, 0.7978846
        %v9781 = vmul.f32 %v9773, 0.7978846
        %v9782 = vmul.f32 %v9774, 0.7978846
        %v9783 = vmul.f32 %v9775, 0.7978846
        %v9784 = vtanh.pop %v9776
        %v9785 = vtanh.pop %v9777
        %v9786 = vtanh.pop %v9778
        %v9787 = vtanh.pop %v9779
        %v9788 = vtanh.pop %v9780
        %v9789 = vtanh.pop %v9781
        %v9790 = vtanh.pop %v9782
        %v9791 = vtanh.pop %v9783
        %v9792 = vadd.f32 %v9784, 1.0
        %v9793 = vadd.f32 %v9785, 1.0
        %v9794 = vadd.f32 %v9786, 1.0
        %v9795 = vadd.f32 %v9787, 1.0
        %v9796 = vadd.f32 %v9788, 1.0
        %v9797 = vadd.f32 %v9789, 1.0
        %v9798 = vadd.f32 %v9790, 1.0
        %v9799 = vadd.f32 %v9791, 1.0
        %v9800 = vmul.f32 %v9736, %v9792
        %v9801 = vmul.f32 %v9737, %v9793
        %v9802 = vmul.f32 %v9738, %v9794
        %v9803 = vmul.f32 %v9739, %v9795
        %v9804 = vmul.f32 %v9740, %v9796
        %v9805 = vmul.f32 %v9741, %v9797
        %v9806 = vmul.f32 %v9742, %v9798
        %v9807 = vmul.f32 %v9743, %v9799
        %v9808 = vld [vmem:[#allocation10] sm:$0xff]
        %v9809 = vld [vmem:[#allocation10 + $0x8] sm:$0xff]
        %v9810 = vld [vmem:[#allocation10 + $0x10] sm:$0xff]
        %v9811 = vld [vmem:[#allocation10 + $0x18] sm:$0xff]
        %v9812 = vld [vmem:[#allocation10 + $0x20] sm:$0xff]
        %v9813 = vld [vmem:[#allocation10 + $0x28] sm:$0xff]
        %v9814 = vld [vmem:[#allocation10 + $0x30] sm:$0xff]
        %v9815 = vld [vmem:[#allocation10 + $0x38] sm:$0xff]
        %v9816 = vld [vmem:[#allocation10 + $0x40] sm:$0xff]
        %v9817 = vld [vmem:[#allocation10 + $0x48] sm:$0xff]
        %v9818 = vld [vmem:[#allocation10 + $0x50] sm:$0xff]
        %v9819 = vld [vmem:[#allocation10 + $0x58] sm:$0xff]
        %v9820 = vld [vmem:[#allocation10 + $0x60] sm:$0xff]
        %v9821 = vld [vmem:[#allocation10 + $0x68] sm:$0xff]
        %v9822 = vld [vmem:[#allocation10 + $0x70] sm:$0xff]
        %v9823 = vld [vmem:[#allocation10 + $0x78] sm:$0xff]
        %v9824 = vld [vmem:[#allocation10 + $0x80] sm:$0xff]
        %v9825 = vld [vmem:[#allocation10 + $0x88] sm:$0xff]
        %v9826 = vld [vmem:[#allocation10 + $0x90] sm:$0xff]
        %v9827 = vld [vmem:[#allocation10 + $0x98] sm:$0xff]
        %v9828 = vld [vmem:[#allocation10 + $0xa0] sm:$0xff]
        %v9829 = vld [vmem:[#allocation10 + $0xa8] sm:$0xff]
        %v9830 = vld [vmem:[#allocation10 + $0xb0] sm:$0xff]
        %v9831 = vld [vmem:[#allocation10 + $0xb8] sm:$0xff]
        %v9832 = vld [vmem:[#allocation10 + $0xc0] sm:$0xff]
        %v9833 = vld [vmem:[#allocation10 + $0xc8] sm:$0xff]
        %v9834 = vld [vmem:[#allocation10 + $0xd0] sm:$0xff]
        %v9835 = vld [vmem:[#allocation10 + $0xd8] sm:$0xff]
        %v9836 = vld [vmem:[#allocation10 + $0xe0] sm:$0xff]
        %v9837 = vld [vmem:[#allocation10 + $0xe8] sm:$0xff]
        %v9838 = vld [vmem:[#allocation10 + $0xf0] sm:$0xff]
        %v9839 = vld [vmem:[#allocation10 + $0xf8] sm:$0xff]
        %v9840 = vld [vmem:[#allocation10 + $0x100] sm:$0xff]
        %v9841 = vld [vmem:[#allocation10 + $0x108] sm:$0xff]
        %v9842 = vld [vmem:[#allocation10 + $0x110] sm:$0xff]
        %v9843 = vld [vmem:[#allocation10 + $0x118] sm:$0xff]
        %v9844 = vld [vmem:[#allocation10 + $0x120] sm:$0xff]
        %v9845 = vld [vmem:[#allocation10 + $0x128] sm:$0xff]
        %v9846 = vld [vmem:[#allocation10 + $0x130] sm:$0xff]
        %v9847 = vld [vmem:[#allocation10 + $0x138] sm:$0xff]
        %v9848 = vld [vmem:[#allocation10 + $0x140] sm:$0xff]
        %v9849 = vld [vmem:[#allocation10 + $0x148] sm:$0xff]
        %v9850 = vld [vmem:[#allocation10 + $0x150] sm:$0xff]
        %v9851 = vld [vmem:[#allocation10 + $0x158] sm:$0xff]
        %v9852 = vld [vmem:[#allocation10 + $0x160] sm:$0xff]
        %v9853 = vld [vmem:[#allocation10 + $0x168] sm:$0xff]
        %v9854 = vld [vmem:[#allocation10 + $0x170] sm:$0xff]
        %v9855 = vld [vmem:[#allocation10 + $0x178] sm:$0xff]
        %v9856 = vld [vmem:[#allocation10 + $0x180] sm:$0xff]
        %v9857 = vld [vmem:[#allocation10 + $0x188] sm:$0xff]
        %v9858 = vld [vmem:[#allocation10 + $0x190] sm:$0xff]
        %v9859 = vld [vmem:[#allocation10 + $0x198] sm:$0xff]
        %v9860 = vld [vmem:[#allocation10 + $0x1a0] sm:$0xff]
        %v9861 = vld [vmem:[#allocation10 + $0x1a8] sm:$0xff]
        %v9862 = vld [vmem:[#allocation10 + $0x1b0] sm:$0xff]
        %v9863 = vld [vmem:[#allocation10 + $0x1b8] sm:$0xff]
        %v9864 = vld [vmem:[#allocation10 + $0x1c0] sm:$0xff]
        %v9865 = vld [vmem:[#allocation10 + $0x1c8] sm:$0xff]
        %v9866 = vld [vmem:[#allocation10 + $0x1d0] sm:$0xff]
        %v9867 = vld [vmem:[#allocation10 + $0x1d8] sm:$0xff]
        %v9868 = vld [vmem:[#allocation10 + $0x1e0] sm:$0xff]
        %v9869 = vld [vmem:[#allocation10 + $0x1e8] sm:$0xff]
        %v9870 = vld [vmem:[#allocation10 + $0x1f0] sm:$0xff]
        %v9871 = vld [vmem:[#allocation10 + $0x1f8] sm:$0xff]
        %v9872 = vld [vmem:[%s11] sm:$0x1]
        %v9874 = vlaneseq
        %v9875 = vshrl.u32 %v9874, 7
        %v9876 = vsub.s32 0, %v9875
        %v9877 = vrot.slane %v9872, %v9876
        %9879 = vmatprep.subr.mxu0 0.0
        %9880 = vmatpush1.msra.mxu0 %v9823
        %9881 = vmatprep.subr.mxu0 0.0
        %9882 = vmatpush1.msra.mxu0 %v9822
        %9883 = vmatprep.subr.mxu0 0.0
        %9884 = vmatpush1.msra.mxu0 %v9821
        %9885 = vmatprep.subr.mxu0 0.0
        %9886 = vmatpush1.msra.mxu0 %v9820
        %9887 = vmatprep.subr.mxu0 0.0
        %9888 = vmatpush1.msra.mxu0 %v9819
        %9889 = vmatprep.subr.mxu0 0.0
        %9890 = vmatpush1.msra.mxu0 %v9818
        %9891 = vmatprep.subr.mxu0 0.0
        %9892 = vmatpush1.msra.mxu0 %v9817
        %9893 = vmatprep.subr.mxu0 0.0
        %9894 = vmatpush1.msra.mxu0 %v9816
        %9895 = vmatprep.subr.mxu0 0.0
        %9896 = vmatpush1.msra.mxu0 %v9815
        %9897 = vmatprep.subr.mxu0 0.0
        %9898 = vmatpush1.msra.mxu0 %v9814
        %9899 = vmatprep.subr.mxu0 0.0
        %9900 = vmatpush1.msra.mxu0 %v9813
        %9901 = vmatprep.subr.mxu0 0.0
        %9902 = vmatpush1.msra.mxu0 %v9812
        %9903 = vmatprep.subr.mxu0 0.0
        %9904 = vmatpush1.msra.mxu0 %v9811
        %9905 = vmatprep.subr.mxu0 0.0
        %9906 = vmatpush1.msra.mxu0 %v9810
        %9907 = vmatprep.subr.mxu0 0.0
        %9908 = vmatpush1.msra.mxu0 %v9809
        %9909 = vmatprep.subr.mxu0 0.0
        %9910 = vmatpush1.msra.mxu0 %v9808
        %9911 = vmatprep.subr.mxu0 0.0
        %9912 = vmatpush2.msra.mxu0 %v9839
        %9913 = vmatprep.subr.mxu0 0.0
        %9914 = vmatpush2.msra.mxu0 %v9838
        %9915 = vmatprep.subr.mxu0 0.0
        %9916 = vmatpush2.msra.mxu0 %v9837
        %9917 = vmatprep.subr.mxu0 0.0
        %9918 = vmatpush2.msra.mxu0 %v9836
        %9919 = vmatprep.subr.mxu0 0.0
        %9920 = vmatpush2.msra.mxu0 %v9835
        %9921 = vmatprep.subr.mxu0 0.0
        %9922 = vmatpush2.msra.mxu0 %v9834
        %9923 = vmatprep.subr.mxu0 0.0
        %9924 = vmatpush2.msra.mxu0 %v9833
        %9925 = vmatprep.subr.mxu0 0.0
        %9926 = vmatpush2.msra.mxu0 %v9832
        %9927 = vmatprep.subr.mxu0 0.0
        %9928 = vmatpush2.msra.mxu0 %v9831
        %9929 = vmatprep.subr.mxu0 0.0
        %9930 = vmatpush2.msra.mxu0 %v9830
        %9931 = vmatprep.subr.mxu0 0.0
        %9932 = vmatpush2.msra.mxu0 %v9829
        %9933 = vmatprep.subr.mxu0 0.0
        %9934 = vmatpush2.msra.mxu0 %v9828
        %9935 = vmatprep.subr.mxu0 0.0
        %9936 = vmatpush2.msra.mxu0 %v9827
        %9937 = vmatprep.subr.mxu0 0.0
        %9938 = vmatpush2.msra.mxu0 %v9826
        %9939 = vmatprep.subr.mxu0 0.0
        %9940 = vmatpush2.msra.mxu0 %v9825
        %9941 = vmatprep.subr.mxu0 0.0
        %9942 = vmatpush2.msra.mxu0 %v9824
        %9943 = vmatprep.mubr.f32.mxu0 %v9801
        %9944 = vmatmul.mubr.f32.gmra.mxu0 %v9800
        %v9945 = vpop.f32.mrf.mxu0
        %v9946 = vadd.f32 %v9877, %v9945
        %v9947 = vpop.f32.mrf.mxu0
        %9948 = vmatprep.mubr.f32.mxu0 %v9805
        %9949 = vmatmul.mubr.f32.gmra.mxu0 %v9804
        %v9950 = vpop.f32.mrf.mxu0
        %v9951 = vadd.f32 %v9877, %v9950
        %v9952 = vpop.f32.mrf.mxu0
        %9953 = vdwg.mxu0
        %9954 = vmatprep.subr.mxu0 0.0
        %9955 = vmatpush1.msra.mxu0 %v9855
        %9956 = vmatprep.subr.mxu0 0.0
        %9957 = vmatpush1.msra.mxu0 %v9854
        %9958 = vmatprep.subr.mxu0 0.0
        %9959 = vmatpush1.msra.mxu0 %v9853
        %9960 = vmatprep.subr.mxu0 0.0
        %9961 = vmatpush1.msra.mxu0 %v9852
        %9962 = vmatprep.subr.mxu0 0.0
        %9963 = vmatpush1.msra.mxu0 %v9851
        %9964 = vmatprep.subr.mxu0 0.0
        %9965 = vmatpush1.msra.mxu0 %v9850
        %9966 = vmatprep.subr.mxu0 0.0
        %9967 = vmatpush1.msra.mxu0 %v9849
        %9968 = vmatprep.subr.mxu0 0.0
        %9969 = vmatpush1.msra.mxu0 %v9848
        %9970 = vmatprep.subr.mxu0 0.0
        %9971 = vmatpush1.msra.mxu0 %v9847
        %9972 = vmatprep.subr.mxu0 0.0
        %9973 = vmatpush1.msra.mxu0 %v9846
        %9974 = vmatprep.subr.mxu0 0.0
        %9975 = vmatpush1.msra.mxu0 %v9845
        %9976 = vmatprep.subr.mxu0 0.0
        %9977 = vmatpush1.msra.mxu0 %v9844
        %9978 = vmatprep.subr.mxu0 0.0
        %9979 = vmatpush1.msra.mxu0 %v9843
        %9980 = vmatprep.subr.mxu0 0.0
        %9981 = vmatpush1.msra.mxu0 %v9842
        %9982 = vmatprep.subr.mxu0 0.0
        %9983 = vmatpush1.msra.mxu0 %v9841
        %9984 = vmatprep.subr.mxu0 0.0
        %9985 = vmatpush1.msra.mxu0 %v9840
        %9986 = vmatprep.subr.mxu0 0.0
        %9987 = vmatpush2.msra.mxu0 %v9871
        %9988 = vmatprep.subr.mxu0 0.0
        %9989 = vmatpush2.msra.mxu0 %v9870
        %9990 = vmatprep.subr.mxu0 0.0
        %9991 = vmatpush2.msra.mxu0 %v9869
        %9992 = vmatprep.subr.mxu0 0.0
        %9993 = vmatpush2.msra.mxu0 %v9868
        %9994 = vmatprep.subr.mxu0 0.0
        %9995 = vmatpush2.msra.mxu0 %v9867
        %9996 = vmatprep.subr.mxu0 0.0
        %9997 = vmatpush2.msra.mxu0 %v9866
        %9998 = vmatprep.subr.mxu0 0.0
        %9999 = vmatpush2.msra.mxu0 %v9865
        %10000 = vmatprep.subr.mxu0 0.0
        %10001 = vmatpush2.msra.mxu0 %v9864
        %10002 = vmatprep.subr.mxu0 0.0
        %10003 = vmatpush2.msra.mxu0 %v9863
        %10004 = vmatprep.subr.mxu0 0.0
        %10005 = vmatpush2.msra.mxu0 %v9862
        %10006 = vmatprep.subr.mxu0 0.0
        %10007 = vmatpush2.msra.mxu0 %v9861
        %10008 = vmatprep.subr.mxu0 0.0
        %10009 = vmatpush2.msra.mxu0 %v9860
        %10010 = vmatprep.subr.mxu0 0.0
        %10011 = vmatpush2.msra.mxu0 %v9859
        %10012 = vmatprep.subr.mxu0 0.0
        %10013 = vmatpush2.msra.mxu0 %v9858
        %10014 = vmatprep.subr.mxu0 0.0
        %10015 = vmatpush2.msra.mxu0 %v9857
        %10016 = vmatprep.subr.mxu0 0.0
        %10017 = vmatpush2.msra.mxu0 %v9856
        %10018 = vmatprep.mubr.f32.mxu0 %v9803
        %10019 = vmatmul.mubr.f32.gmra.mxu0 %v9802
        %v10020 = vpop.f32.mrf.mxu0
        %v10021 = vadd.f32 %v9946, %v10020
        %v10022 = vpop.f32.mrf.mxu0
        %10023 = vmatprep.mubr.f32.mxu0 %v9807
        %10024 = vmatmul.mubr.f32.gmra.mxu0 %v9806
        %v10025 = vpop.f32.mrf.mxu0
        %v10026 = vadd.f32 %v9951, %v10025
        %v10027 = vpop.f32.mrf.mxu0
        %10028 = vdwg.mxu0
        %v10029 = vadd.f32 %v9454, %v10021
        %v10030 = vadd.f32 %v9455, %v10026
        %10031 = vst [vmem:[%s489] sm:$0xff] %v10029
        %10032 = vst [vmem:[%s489 + $0x8] sm:$0xff] %v10030
        %s10033 = sand.u32 %s296, 1
        %s10034 = scalar_lea.sflag [#allocation4], %s10033
        %s10035 = sand.u32 %s296, 1
        %s10036 = smul.addr %s10035, 16
        %s10037 = scalar_lea.vmem [#allocation11], %s10036
        // Predicated region
        $region89: #{tpu_custom_call.1} parent=67 // pred_check
          %p10038 = pneg %p306
        $region90: #{tpu_custom_call.1} parent=67 // pred_check_branch
          %10040 = sbr.rel (%p10038) target = $region92
        $region91: #{tpu_custom_call.1} parent=67 // pred_region
          %s10041 = smul.u32 2, %s31
          %s10043 = ssub.s32 256, 256
          %10044 = vsyncadd %s10034, %s10043
          %s10045 = smul.addr %s10041, 128
          %s10046 = scalar_lea.hbm %s12, %s10045
          %s10047 = sshll.u32 %s10037, 4
          %s10048 = int_to_ptr.vmem [resolvable:$true] %s10047
          %10053 = dma.vmem_to_hbm [thread:$0]  %s10048, 256, %s10046, %s10034, 128, 128, 8
        $region92: #{tpu_custom_call.1} parent=67 // pred_fallthru
          _
      $region68: #{tpu_custom_call.1} parent=5 // pred_fallthru
        _
      %p10054 = scmp.le.s32.totalorder 2, %s26
      // Predicated region
      $region93: #{tpu_custom_call.1} parent=5 // pred_check
        %p10055 = pneg %p10054
      $region94: #{tpu_custom_call.1} parent=5 // pred_check_branch
        %10057 = sbr.rel (%p10055) target = $region96
      $region95: #{tpu_custom_call.1} parent=5 // pred_region
        %s10058 = ssub.s32 %s26, 2
        // Predicated region
        $region97: #{tpu_custom_call.1} parent=95 // pred_check
          %p10059 = pneg %p312
        $region98: #{tpu_custom_call.1} parent=95 // pred_check_branch
          %10061 = sbr.rel (%p10059) target = $region100
        $region99: #{tpu_custom_call.1} parent=95 // pred_region
          %s10062 = sand.u32 %s297, 1
          %s10063 = scalar_lea.sflag [#allocation4], %s10062
          %s10064 = sand.u32 %s297, 1
          %s10065 = smul.addr %s10064, 16
          %s10066 = scalar_lea.vmem [#allocation11], %s10065
          %10067 = dma.done %s10063, 256
        $region100: #{tpu_custom_call.1} parent=95 // pred_fallthru
          _
      $region96: #{tpu_custom_call.1} parent=5 // pred_fallthru
        _
    $region6: #{tpu_custom_call.1} parent=1 // loop_footer
      %s30 = sadd.s32 1, %s26
    $region7: #{tpu_custom_call.1} parent=1 // loop_footer_branch
      %25 = sbr.rel target = $region3
    $region8: #{tpu_custom_call.1} parent=1 // loop_exit
      _
    %10068 = vsyncpa [#allocation3], 1
    %s10069 = scalar_lea.sflag [#allocation3], 1
    %10070 = vsyncpa %s10069, 1
    %10071 = vsyncpa [#allocation6], 1
    %10072 = vsyncpa [#allocation9], 1
    %10073 = vsyncpa [#allocation4], 1
    %s10074 = scalar_lea.sflag [#allocation4], 1
    %10075 = vsyncpa %s10074, 1

</llo_original>
